<compile_context>
chip_gen: v7x
topology: tpu7x:2x2x1
jax: 0.10.0
libtpu: 0.0.40
codegen_flags: <defaults>
</compile_context>

<pallas_src>
import functools

import jax
import jax.numpy as jnp
from jax.experimental import pallas as pl
from jax.experimental.pallas import tpu as pltpu


# --------------------------------------------------------------------------
# helpers
# --------------------------------------------------------------------------
def _mosaic(dims, est_bytes):
    """CompilerParams with a VMEM limit derived from the estimated footprint."""
    return pltpu.CompilerParams(
        dimension_semantics=dims,
        vmem_limit_bytes=int(min(max(2 * est_bytes, 16 * 2**20), 64 * 2**20)))


def _pick_row_tile(m, row_bytes, budget=4 * 2**20, min_steps=4):
    cands = [c for c in (4096, 2048, 1024, 512, 256, 128, 64, 32, 16, 8)
             if m % c == 0 and c * row_bytes <= budget]
    for c in cands:
        if m // c >= min_steps:
            return c
    return cands[0] if cands else m


def _conv_vmem_bytes(td, H, wci, wco):
    halo = 2 * (2 * H * wci * 2)            # prev/next plane blocks (x2 buf)
    xc = 2 * (td * H * wci * 2)             # centre block (x2 buf)
    w = 2 * (9 * wci * wco * 2)             # banded weights
    y = 2 * (td * H * wco * 2)              # output block (x2 buf)
    st = 2 * (2 * wco * 4)
    xd = (td + 2) * (H + 2) * wci * 2       # halo scratch
    acc = td * H * wco * 4                  # f32 accumulator value
    return halo + xc + w + y + st + xd + acc


def _pick_depth_tile(D, H, wci, wco, budget=12 * 2**20):
    best = 1
    for t in range(1, D + 1):
        if D % t:
            continue
        if _conv_vmem_bytes(t, H, wci, wco) <= budget and (D // t >= 2 or D <= 2):
            best = t
    return best


def _bn_affine(stats, count, gamma, beta, eps=1e-5):
    """(sum, sumsq) lane-folded partials -> training-BN scale/shift per channel."""
    C = gamma.shape[0]
    tot = stats.astype(jnp.float32).reshape(-1, 2, stats.shape[-1] // C, C)
    tot = jnp.sum(tot, axis=(0, 2))                          # (2, C)
    mean = tot[0] / count
    var = jnp.maximum(tot[1] / count - mean * mean, 0.0)     # biased (training)
    inv = jax.lax.rsqrt(var + eps)
    scale = gamma.astype(jnp.float32) * inv
    shift = beta.astype(jnp.float32) - mean * scale
    return scale, shift


def _lane_vec(v, W):
    """Per-channel (C,) vector -> per-(w, c) lane vector of shape (1, W*C)."""
    return jnp.tile(v.astype(jnp.float32), W).reshape(1, -1)


def _banded_conv_weights(w, W):
    """(Cout, Cin, 3, 3, 3) weights -> (9, W*Cin, W*Cout) banded bf16.

    For each (kd, kh) pair, Wb[kd*3+kh] folds all three kw taps and the channel
    contraction into one MXU K dimension; zero padding along W is encoded by
    the band structure, so one dot produces a whole (rows, W*Cout) slab.
    """
    Co, Ci = w.shape[0], w.shape[1]
    wk = jnp.transpose(w, (2, 3, 4, 1, 0))                      # (3,3,3,Ci,Co)
    kw = jnp.arange(W)[:, None] - jnp.arange(W)[None, :] + 1    # (w_in, w_out)
    valid = ((kw >= 0) & (kw <= 2)).astype(w.dtype)
    g = wk[:, :, jnp.clip(kw, 0, 2)]                            # (3,3,W,W,Ci,Co)
    g = g * valid[None, None, :, :, None, None]
    g = jnp.transpose(g, (0, 1, 2, 4, 3, 5))                    # (3,3,Win,Ci,Wout,Co)
    return g.reshape(9, W * Ci, W * Co).astype(jnp.bfloat16)


# --------------------------------------------------------------------------
# Fused 3x3x3 conv (stride 1, pad 1) + BN-statistics epilogue, depth-tiled.
# --------------------------------------------------------------------------
def _conv3x3x3_kernel(xp_ref, xc_ref, xn_ref, wb_ref, y_ref, st_ref, xd_ref):
    # xp_ref : (1, H, W*Ci)      depth plane d0-1 (clamped; masked at d == 0)
    # xc_ref : (td, H, W*Ci)     output-tile depth planes [d0, d0+td)
    # xn_ref : (1, H, W*Ci)      depth plane d0+td (clamped; masked at last)
    # wb_ref : (9, W*Ci, W*Co)   banded weights, tap index = kd*3 + kh
    # y_ref  : (td, H, W*Co)     lane-dense output block
    # st_ref : (2, W*Co)         lane-folded (sum, sum-of-squares) partials
    # xd_ref : (td+2, H+2, W*Ci) scratch: tile + zero D/H halo (= conv padding)
    td, H, wci = xc_ref.shape
    wco = y_ref.shape[-1]
    d = pl.program_id(1)
    nd = pl.num_programs(1)

    # Assemble the halo-padded tile once per grid step.
    xd_ref[...] = jnp.zeros(xd_ref.shape, xd_ref.dtype)
    xd_ref[1:td + 1, 1:H + 1, :] = xc_ref[...]

    @pl.when(d > 0)
    def _():
        xd_ref[0, 1:H + 1, :] = xp_ref[0]

    @pl.when(d < nd - 1)
    def _():
        xd_ref[td + 1, 1:H + 1, :] = xn_ref[0]

    # 9 lane-dense (rows, W*Ci) x (W*Ci, W*Co) MXU dots, accumulated in values
    # (single store at the end -- no per-tap accumulator read-modify-write).
    def lhs(kd, kh):
        return xd_ref[kd:kd + td, kh:kh + H, :].reshape(td * H, wci)

    acc = jnp.dot(lhs(0, 0), wb_ref[0], preferred_element_type=jnp.float32)
    for kd in range(3):
        for kh in range(3):
            if kd == 0 and kh == 0:
                continue
            acc = acc + jnp.dot(lhs(kd, kh), wb_ref[kd * 3 + kh],
                                preferred_element_type=jnp.float32)

    y_ref[...] = acc.reshape(td, H, wco).astype(y_ref.dtype)
    # BatchNorm batch-statistic partials (channel fold done on the tiny host
    # side output; no extra HBM pass over the activation).
    st_ref[...] = jnp.concatenate(
        [jnp.sum(acc, axis=0, keepdims=True),
         jnp.sum(acc * acc, axis=0, keepdims=True)], axis=0)


def conv3x3x3_fused(x_wc, w_banded, td):
    """x_wc: (N, D, H, W*Ci) bf16;  w_banded: (9, W*Ci, W*Co) bf16."""
    N, D, H, wci = x_wc.shape
    wco = w_banded.shape[-1]
    nd = D // td
    est = _conv_vmem_bytes(td, H, wci, wco)

    y, st = pl.pallas_call(
        _conv3x3x3_kernel,
        out_shape=(jax.ShapeDtypeStruct((N, D, H, wco), jnp.bfloat16),
                   jax.ShapeDtypeStruct((N, nd, 2, wco), jnp.float32)),
        grid_spec=pltpu.PrefetchScalarGridSpec(
            num_scalar_prefetch=0,
            grid=(N, nd),
            in_specs=[
                pl.BlockSpec((None, 1, H, wci),
                             lambda n, d: (n, jnp.maximum(d * td - 1, 0), 0, 0)),
                pl.BlockSpec((None, td, H, wci), lambda n, d: (n, d, 0, 0)),
                pl.BlockSpec((None, 1, H, wci),
                             lambda n, d: (n, jnp.minimum((d + 1) * td, D - 1),
                                           0, 0)),
                pl.BlockSpec((9, wci, wco), lambda n, d: (0, 0, 0)),
            ],
            out_specs=[
                pl.BlockSpec((None, td, H, wco), lambda n, d: (n, d, 0, 0)),
                pl.BlockSpec((None, None, 2, wco), lambda n, d: (n, d, 0, 0)),
            ],
            scratch_shapes=[pltpu.VMEM((td + 2, H + 2, wci), jnp.bfloat16)],
        ),
        compiler_params=_mosaic(("parallel", "parallel"), est),
    )(x_wc, x_wc, x_wc, w_banded)
    return y, st


# --------------------------------------------------------------------------
# Lane-dense BN-apply + LeakyReLU (stage A) and fused BN + residual (+1x1x1
# downsample recomputed in-kernel) + LeakyReLU (stage B).
# --------------------------------------------------------------------------
def _bn_lrelu_kernel(y_ref, sc_ref, sh_ref, o_ref, *, slope):
    z = y_ref[...].astype(jnp.float32) * sc_ref[...] + sh_ref[...]
    o_ref[...] = jnp.where(z >= 0.0, z, slope * z).astype(o_ref.dtype)


def bn_lrelu(y2d, scale_l, shift_l, out_dtype, slope=0.01):
    R, L = y2d.shape
    row_bytes = L * (2 + jnp.dtype(out_dtype).itemsize)
    tm = _pick_row_tile(R, row_bytes)
    nt = R // tm
    row = pl.BlockSpec((tm, L), lambda i: (i, 0))
    vec = pl.BlockSpec((1, L), lambda i: (0, 0))
    est = 2 * tm * row_bytes + 8 * L * 4
    return pl.pallas_call(
        functools.partial(_bn_lrelu_kernel, slope=slope),
        out_shape=jax.ShapeDtypeStruct((R, L), out_dtype),
        grid_spec=pltpu.PrefetchScalarGridSpec(
            num_scalar_prefetch=0, grid=(nt,),
            in_specs=[row, vec, vec], out_specs=row),
        compiler_params=_mosaic(("parallel",), est),
    )(y2d, scale_l, shift_l)


def _bn_matres_lrelu_kernel(y_ref, sc_ref, sh_ref, x_ref, wr_ref, rsc_ref,
                            rsh_ref, o_ref, *, slope):
    z = y_ref[...].astype(jnp.float32) * sc_ref[...] + sh_ref[...]
    r = jnp.dot(x_ref[...], wr_ref[...], preferred_element_type=jnp.float32)
    z = z + r * rsc_ref[...] + rsh_ref[...]
    o_ref[...] = jnp.where(z >= 0.0, z, slope * z).astype(o_ref.dtype)


def _bn_idres_lrelu_kernel(y_ref, sc_ref, sh_ref, x_ref, o_ref, *, slope):
    z = (y_ref[...].astype(jnp.float32) * sc_ref[...] + sh_ref[...]
         + x_ref[...].astype(jnp.float32))
    o_ref[...] = jnp.where(z >= 0.0, z, slope * z).astype(o_ref.dtype)


def bn_residual_lrelu(y2d, scale_l, shift_l, x2d, wr=None, res_scale_l=None,
                      res_shift_l=None, out_dtype=jnp.float32, slope=0.01):
    R, L = y2d.shape
    Lin = x2d.shape[1]
    row_bytes = L * 2 + Lin * 2 + L * jnp.dtype(out_dtype).itemsize
    tm = _pick_row_tile(R, row_bytes)
    nt = R // tm
    rowy = pl.BlockSpec((tm, L), lambda i: (i, 0))
    rowx = pl.BlockSpec((tm, Lin), lambda i: (i, 0))
    vec = pl.BlockSpec((1, L), lambda i: (0, 0))
    est = 2 * tm * row_bytes + 16 * L * 4

    if wr is None:
        return pl.pallas_call(
            functools.partial(_bn_idres_lrelu_kernel, slope=slope),
            out_shape=jax.ShapeDtypeStruct((R, L), out_dtype),
            grid_spec=pltpu.PrefetchScalarGridSpec(
                num_scalar_prefetch=0, grid=(nt,),
                in_specs=[rowy, vec, vec, rowx], out_specs=rowy),
            compiler_params=_mosaic(("parallel",), est),
        )(y2d, scale_l, shift_l, x2d)

    wspec = pl.BlockSpec((Lin, L), lambda i: (0, 0))
    est += 2 * Lin * L * 2 + tm * L * 4
    return pl.pallas_call(
        functools.partial(_bn_matres_lrelu_kernel, slope=slope),
        out_shape=jax.ShapeDtypeStruct((R, L), out_dtype),
        grid_spec=pltpu.PrefetchScalarGridSpec(
            num_scalar_prefetch=0, grid=(nt,),
            in_specs=[rowy, vec, vec, rowx, wspec, vec, vec], out_specs=rowy),
        compiler_params=_mosaic(("parallel",), est),
    )(y2d, scale_l, shift_l, x2d, wr, res_scale_l, res_shift_l)


# --------------------------------------------------------------------------
# Downsample BN statistics: (sum, sumsq) of x @ Wds without writing x @ Wds.
# --------------------------------------------------------------------------
def _matmul_stats_kernel(x_ref, wr_ref, st_ref):
    r = jnp.dot(x_ref[...], wr_ref[...], preferred_element_type=jnp.float32)
    st_ref[...] = jnp.concatenate(
        [jnp.sum(r, axis=0, keepdims=True),
         jnp.sum(r * r, axis=0, keepdims=True)], axis=0)


def matmul_stats(x2d, wr):
    R, Lin = x2d.shape
    L = wr.shape[-1]
    tm = _pick_row_tile(R, Lin * 2)
    nt = R // tm
    est = 2 * tm * Lin * 2 + 2 * Lin * L * 2 + tm * L * 4
    return pl.pallas_call(
        _matmul_stats_kernel,
        out_shape=jax.ShapeDtypeStruct((nt, 2, L), jnp.float32),
        grid_spec=pltpu.PrefetchScalarGridSpec(
            num_scalar_prefetch=0, grid=(nt,),
            in_specs=[pl.BlockSpec((tm, Lin), lambda i: (i, 0)),
                      pl.BlockSpec((Lin, L), lambda i: (0, 0))],
            out_specs=pl.BlockSpec((None, 2, L), lambda i: (i, 0, 0))),
        compiler_params=_mosaic(("parallel",), est),
    )(x2d, wr)


# --------------------------------------------------------------------------
# Module: parameters + forward
# --------------------------------------------------------------------------
def init_params(key, inplanes, planes):
    ks = jax.random.split(key, 8)

    def conv_w(k, cin, cout):
        return 0.1 * jax.random.normal(k, (cout, cin, 3, 3, 3), jnp.float32)

    p = {
        "conv1_w": conv_w(ks[0], inplanes, planes),
        "bn1_gamma": 1.0 + 0.1 * jax.random.normal(ks[1], (planes,), jnp.float32),
        "bn1_beta": 0.1 * jax.random.normal(ks[2], (planes,), jnp.float32),
        "conv2_w": conv_w(ks[3], planes, planes),
        "bn2_gamma": 1.0 + 0.1 * jax.random.normal(ks[4], (planes,), jnp.float32),
        "bn2_beta": 0.1 * jax.random.normal(ks[5], (planes,), jnp.float32),
    }
    if inplanes != planes:
        p["ds_w"] = 0.1 * jax.random.normal(ks[6], (planes, inplanes), jnp.float32)
        p["ds_gamma"] = 1.0 + 0.05 * jax.random.normal(ks[7], (planes,), jnp.float32)
        p["ds_beta"] = jnp.zeros((planes,), jnp.float32)
    return p


def basic_block3d_forward(x_ncdhw, params, stride=1, eps=1e-5):
    if stride != 1:
        # TODO(synk): strided conv1 / strided 1x1x1 downsample not implemented
        # in the fused Pallas path; the module default is stride=1.
        raise NotImplementedError("stride != 1 not implemented")

    N, Ci, D, H, W = x_ncdhw.shape
    planes = params["bn1_gamma"].shape[0]
    M = N * D * H * W
    R = N * D * H
    Lmid = W * planes

    # NCDHW -> (N, D, H, W*Ci): channels on the lane axis, W folded in so all
    # Pallas loads/stores are lane-dense.  Single XLA transpose pass.
    x_wc = jnp.transpose(x_ncdhw, (0, 2, 3, 4, 1)).astype(jnp.bfloat16)
    x_wc = x_wc.reshape(N, D, H, W * Ci)

    wb1 = _banded_conv_weights(params["conv1_w"], W)    # (9, W*Ci,     W*planes)
    wb2 = _banded_conv_weights(params["conv2_w"], W)    # (9, W*planes, W*planes)

    # ---- conv1 + bn1 batch statistics -------------------------------------
    td1 = _pick_depth_tile(D, H, W * Ci, Lmid)
    y1, st1 = conv3x3x3_fused(x_wc, wb1, td1)
    sc1, sh1 = _bn_affine(st1, M, params["bn1_gamma"], params["bn1_beta"], eps)

    # ---- bn1 apply + LeakyReLU ---------------------------------------------
    h1 = bn_lrelu(y1.reshape(R, Lmid), _lane_vec(sc1, W), _lane_vec(sh1, W),
                  jnp.bfloat16)
    h1 = h1.reshape(N, D, H, Lmid)

    # ---- conv2 + bn2 batch statistics --------------------------------------
    td2 = _pick_depth_tile(D, H, Lmid, Lmid)
    y2, st2 = conv3x3x3_fused(h1, wb2, td2)
    sc2, sh2 = _bn_affine(st2, M, params["bn2_gamma"], params["bn2_beta"], eps)

    # ---- residual branch + fused final BN / add / LeakyReLU -----------------
    if "ds_w" in params:
        # Block-diagonal 1x1x1 conv acting on the folded (w, ci) lane axis; the
        # product itself is recomputed inside the final kernel (never hits HBM).
        wr = jnp.kron(jnp.eye(W, dtype=jnp.float32),
                      params["ds_w"].T.astype(jnp.float32)).astype(jnp.bfloat16)
        st_ds = matmul_stats(x_wc.reshape(R, W * Ci), wr)
        rsc, rsh = _bn_affine(st_ds, M, params["ds_gamma"], params["ds_beta"], eps)
        out2d = bn_residual_lrelu(
            y2.reshape(R, Lmid), _lane_vec(sc2, W), _lane_vec(sh2, W),
            x_wc.reshape(R, W * Ci), wr, _lane_vec(rsc, W), _lane_vec(rsh, W),
            out_dtype=jnp.float32)
    else:
        out2d = bn_residual_lrelu(
            y2.reshape(R, Lmid), _lane_vec(sc2, W), _lane_vec(sh2, W),
            x_wc.reshape(R, Lmid), out_dtype=jnp.float32)

    out = out2d.reshape(N, D, H, W, planes)
    return jnp.transpose(out, (0, 4, 1, 2, 3))           # back to NCDHW, f32


# --------------------------------------------------------------------------
# Pure-JAX reference (f32) for a correctness check
# --------------------------------------------------------------------------
def _reference_forward(x, params, eps=1e-5):
    def conv3(a, w):
        return jax.lax.conv_general_dilated(
            a, w, window_strides=(1, 1, 1), padding=((1, 1),) * 3,
            dimension_numbers=("NCDHW", "OIDHW", "NCDHW"),
            precision=jax.lax.Precision.HIGHEST)

    def bn(y, g, b):
        mean = jnp.mean(y, axis=(0, 2, 3, 4), keepdims=True)
        var = jnp.mean((y - mean) ** 2, axis=(0, 2, 3, 4), keepdims=True)
        return ((y - mean) * jax.lax.rsqrt(var + eps)
                * g.reshape(1, -1, 1, 1, 1) + b.reshape(1, -1, 1, 1, 1))

    def lrelu(z):
        return jnp.where(z >= 0, z, 0.01 * z)

    out = lrelu(bn(conv3(x, params["conv1_w"]),
                   params["bn1_gamma"], params["bn1_beta"]))
    out = bn(conv3(out, params["conv2_w"]),
             params["bn2_gamma"], params["bn2_beta"])
    if "ds_w" in params:
        r = jnp.einsum("ncdhw,kc->nkdhw", x, params["ds_w"],
                       precision=jax.lax.Precision.HIGHEST)
        r = bn(r, params["ds_gamma"], params["ds_beta"])
    else:
        r = x
    return lrelu(out + r)


if __name__ == "__main__":
    key = jax.random.PRNGKey(0)
    kx, kp = jax.random.split(key)

    # BasicBlock3D(inplanes=8, planes=16, stride=1) -> downsample branch active.
    N, inplanes, planes = 2, 8, 16
    D = H = W = 16
    x = jax.random.normal(kx, (N, inplanes, D, H, W), jnp.float32)
    params = init_params(kp, inplanes, planes)

    fwd = jax.jit(basic_block3d_forward)
    out = jax.block_until_ready(fwd(x, params))

    assert out.shape == (N, planes, D, H, W), out.shape
    assert bool(jnp.all(jnp.isfinite(out)))

    ref = jax.block_until_ready(jax.jit(_reference_forward)(x, params))
    max_err = float(jnp.max(jnp.abs(out - ref)))
    mean_err = float(jnp.mean(jnp.abs(out - ref)))
    assert max_err < 0.25 and mean_err < 0.02, (max_err, mean_err)

    print("KERNEL_OK")
</pallas_src>

<mosaic_0001>
module attributes {stable_mosaic.version = 11 : i64} {
  func.func @_matmul_stats_kernel(%arg0: i32, %arg1: memref<128x128xbf16, #tpu.memory_space<vmem>>, %arg2: memref<128x256xbf16, #tpu.memory_space<vmem>>, %arg3: memref<1x2x256xf32, #tpu.memory_space<vmem>>) attributes {dimension_semantics = [#tpu.dimension_semantics<parallel>], iteration_bounds = array<i64: 4>, scalar_prefetch = 0 : i64, scratch_operands = 0 : i64, tpu.core_type = #tpu.core_type<tc>, window_params = [{transform_indices = @transform_0, window_bounds = array<i64: 128, 128>}, {pipeline_mode = #tpu.pipeline_mode<synchronous>, transform_indices = @transform_1, window_bounds = array<i64: 128, 256>}, {transform_indices = @transform_2, window_bounds = array<i64: 1, 2, 256>}]} {
    %c0 = arith.constant 0 : index
    %c0_0 = arith.constant 0 : index
    %0 = vector.load %arg1[%c0, %c0_0] : memref<128x128xbf16, #tpu.memory_space<vmem>>, vector<128x128xbf16>
    %c0_1 = arith.constant 0 : index
    %c0_2 = arith.constant 0 : index
    %1 = vector.load %arg2[%c0_1, %c0_2] : memref<128x256xbf16, #tpu.memory_space<vmem>>, vector<128x256xbf16>
    %cst = arith.constant dense<0.000000e+00> : vector<128x256xf32>
    %2 = tpu.matmul %0, %1, %cst {dimension_numbers = #tpu.dot_dimension_numbers<[1], [0], [0], [1], [0, 0, 1, 1], [], []>} : vector<128x128xbf16>, vector<128x256xbf16>, vector<128x256xf32> -> vector<128x256xf32>
    %cst_3 = arith.constant dense<0.000000e+00> : vector<256xf32>
    %3 = vector.multi_reduction <add>, %2, %cst_3 [0] : vector<128x256xf32> to vector<256xf32>
    %4 = vector.shape_cast %3 : vector<256xf32> to vector<1x256xf32>
    %5 = arith.mulf %2, %2 : vector<128x256xf32>
    %cst_4 = arith.constant dense<0.000000e+00> : vector<256xf32>
    %6 = vector.multi_reduction <add>, %5, %cst_4 [0] : vector<128x256xf32> to vector<256xf32>
    %7 = vector.shape_cast %6 : vector<256xf32> to vector<1x256xf32>
    %8 = tpu.concatenate %4, %7 in 0 : vector<1x256xf32>, vector<1x256xf32> -> vector<2x256xf32>
    %c0_5 = arith.constant 0 : index
    %c0_6 = arith.constant 0 : index
    %c0_7 = arith.constant 0 : index
    %9 = vector.load %arg3[%c0_5, %c0_6, %c0_7] : memref<1x2x256xf32, #tpu.memory_space<vmem>>, vector<1x2x256xf32>
    %10 = vector.shape_cast %9 : vector<1x2x256xf32> to vector<2x256xf32>
    %11 = vector.shape_cast %8 : vector<2x256xf32> to vector<1x2x256xf32>
    tpu.vector_store %arg3[%c0_5, %c0_6, %c0_7], %11 {strides = array<i32>} : memref<1x2x256xf32, #tpu.memory_space<vmem>>, vector<1x2x256xf32>,
    return
  }
  func.func @transform_0(%arg0: i32) -> (i32, i32) {
    %c0_i32 = arith.constant 0 : i32
    %c0_i32_0 = arith.constant 0 : i32
    return %arg0, %c0_i32 : i32, i32
  }
  func.func @transform_1(%arg0: i32) -> (i32, i32) {
    %c0_i32 = arith.constant 0 : i32
    %c0_i32_0 = arith.constant 0 : i32
    %c0_i32_1 = arith.constant 0 : i32
    return %c0_i32, %c0_i32_0 : i32, i32
  }
  func.func @transform_2(%arg0: i32) -> (i32, i32, i32) {
    %c0_i32 = arith.constant 0 : i32
    %c0_i32_0 = arith.constant 0 : i32
    %c0_i32_1 = arith.constant 0 : i32
    return %arg0, %c0_i32, %c0_i32_0 : i32, i32, i32
  }
}

module attributes {stable_mosaic.version = 11 : i64} {
  func.func @_conv3x3x3_kernel(%arg0: i32, %arg1: i32, %arg2: memref<1x1x16x128xbf16, #tpu.memory_space<vmem>>, %arg3: memref<1x8x16x128xbf16, #tpu.memory_space<vmem>>, %arg4: memref<1x1x16x128xbf16, #tpu.memory_space<vmem>>, %arg5: memref<9x128x256xbf16, #tpu.memory_space<vmem>>, %arg6: memref<1x8x16x256xbf16, #tpu.memory_space<vmem>>, %arg7: memref<1x1x2x256xf32, #tpu.memory_space<vmem>>, %arg8: memref<10x18x128xbf16, #tpu.memory_space<vmem>>) attributes {dimension_semantics = [#tpu.dimension_semantics<parallel>, #tpu.dimension_semantics<parallel>], iteration_bounds = array<i64: 2, 2>, scalar_prefetch = 0 : i64, scratch_operands = 1 : i64, tpu.core_type = #tpu.core_type<tc>, window_params = [{transform_indices = @transform_0, window_bounds = array<i64: 1, 1, 16, 128>}, {transform_indices = @transform_1, window_bounds = array<i64: 1, 8, 16, 128>}, {transform_indices = @transform_2, window_bounds = array<i64: 1, 1, 16, 128>}, {pipeline_mode = #tpu.pipeline_mode<synchronous>, transform_indices = @transform_3, window_bounds = array<i64: 9, 128, 256>}, {transform_indices = @transform_4, window_bounds = array<i64: 1, 8, 16, 256>}, {transform_indices = @transform_5, window_bounds = array<i64: 1, 1, 2, 256>}]} {
    %cst = arith.constant 0.000000e+00 : bf16
    %0 = vector.broadcast %cst : bf16 to vector<10x18x128xbf16>
    %c0 = arith.constant 0 : index
    %c0_0 = arith.constant 0 : index
    %c0_1 = arith.constant 0 : index
    %1 = vector.load %arg8[%c0, %c0_0, %c0_1] : memref<10x18x128xbf16, #tpu.memory_space<vmem>>, vector<10x18x128xbf16>
    tpu.vector_store %arg8[%c0, %c0_0, %c0_1], %0 {strides = array<i32>} : memref<10x18x128xbf16, #tpu.memory_space<vmem>>, vector<10x18x128xbf16>,
    %c0_2 = arith.constant 0 : index
    %c0_3 = arith.constant 0 : index
    %c0_4 = arith.constant 0 : index
    %c0_5 = arith.constant 0 : index
    %2 = vector.load %arg3[%c0_2, %c0_3, %c0_4, %c0_5] : memref<1x8x16x128xbf16, #tpu.memory_space<vmem>>, vector<1x8x16x128xbf16>
    %3 = vector.shape_cast %2 : vector<1x8x16x128xbf16> to vector<8x16x128xbf16>
    %c1 = arith.constant 1 : index
    %c1_6 = arith.constant 1 : index
    %c0_7 = arith.constant 0 : index
    %4 = vector.load %arg8[%c1, %c1_6, %c0_7] : memref<10x18x128xbf16, #tpu.memory_space<vmem>>, vector<8x16x128xbf16>
    tpu.vector_store %arg8[%c1, %c1_6, %c0_7], %3 {strides = array<i32>} : memref<10x18x128xbf16, #tpu.memory_space<vmem>>, vector<8x16x128xbf16>,
    %c0_i32 = arith.constant 0 : i32
    %5 = arith.cmpi sgt, %arg1, %c0_i32 : i32
    %6 = arith.extui %5 : i1 to i32
    %c0_i32_8 = arith.constant 0 : i32
    %7 = arith.cmpi ne, %6, %c0_i32_8 : i32
    scf.if %7 {
      %c0_76 = arith.constant 0 : index
      %c0_77 = arith.constant 0 : index
      %c0_78 = arith.constant 0 : index
      %c0_79 = arith.constant 0 : index
      %78 = vector.load %arg2[%c0_76, %c0_77, %c0_78, %c0_79] : memref<1x1x16x128xbf16, #tpu.memory_space<vmem>>, vector<1x1x16x128xbf16>
      %79 = vector.shape_cast %78 : vector<1x1x16x128xbf16> to vector<16x128xbf16>
      %c0_80 = arith.constant 0 : index
      %c1_81 = arith.constant 1 : index
      %c0_82 = arith.constant 0 : index
      %80 = vector.load %arg8[%c0_80, %c1_81, %c0_82] : memref<10x18x128xbf16, #tpu.memory_space<vmem>>, vector<1x16x128xbf16>
      %81 = vector.shape_cast %80 : vector<1x16x128xbf16> to vector<16x128xbf16>
      %82 = vector.shape_cast %79 : vector<16x128xbf16> to vector<1x16x128xbf16>
      tpu.vector_store %arg8[%c0_80, %c1_81, %c0_82], %82 {strides = array<i32>} : memref<10x18x128xbf16, #tpu.memory_space<vmem>>, vector<1x16x128xbf16>,
    } else {
    }
    %c1_i32 = arith.constant 1 : i32
    %8 = arith.cmpi slt, %arg1, %c1_i32 : i32
    %9 = arith.extui %8 : i1 to i32
    %c0_i32_9 = arith.constant 0 : i32
    %10 = arith.cmpi ne, %9, %c0_i32_9 : i32
    scf.if %10 {
      %c0_76 = arith.constant 0 : index
      %c0_77 = arith.constant 0 : index
      %c0_78 = arith.constant 0 : index
      %c0_79 = arith.constant 0 : index
      %78 = vector.load %arg4[%c0_76, %c0_77, %c0_78, %c0_79] : memref<1x1x16x128xbf16, #tpu.memory_space<vmem>>, vector<1x1x16x128xbf16>
      %79 = vector.shape_cast %78 : vector<1x1x16x128xbf16> to vector<16x128xbf16>
      %c9 = arith.constant 9 : index
      %c1_80 = arith.constant 1 : index
      %c0_81 = arith.constant 0 : index
      %80 = vector.load %arg8[%c9, %c1_80, %c0_81] : memref<10x18x128xbf16, #tpu.memory_space<vmem>>, vector<1x16x128xbf16>
      %81 = vector.shape_cast %80 : vector<1x16x128xbf16> to vector<16x128xbf16>
      %82 = vector.shape_cast %79 : vector<16x128xbf16> to vector<1x16x128xbf16>
      tpu.vector_store %arg8[%c9, %c1_80, %c0_81], %82 {strides = array<i32>} : memref<10x18x128xbf16, #tpu.memory_space<vmem>>, vector<1x16x128xbf16>,
    } else {
    }
    %c0_10 = arith.constant 0 : index
    %c0_11 = arith.constant 0 : index
    %c0_12 = arith.constant 0 : index
    %11 = vector.load %arg8[%c0_10, %c0_11, %c0_12] : memref<10x18x128xbf16, #tpu.memory_space<vmem>>, vector<8x16x128xbf16>
    %12 = vector.shape_cast %11 : vector<8x16x128xbf16> to vector<128x128xbf16>
    %c0_13 = arith.constant 0 : index
    %c0_14 = arith.constant 0 : index
    %c0_15 = arith.constant 0 : index
    %13 = vector.load %arg5[%c0_13, %c0_14, %c0_15] : memref<9x128x256xbf16, #tpu.memory_space<vmem>>, vector<1x128x256xbf16>
    %14 = vector.shape_cast %13 : vector<1x128x256xbf16> to vector<128x256xbf16>
    %cst_16 = arith.constant dense<0.000000e+00> : vector<128x256xf32>
    %15 = tpu.matmul %12, %14, %cst_16 {dimension_numbers = #tpu.dot_dimension_numbers<[1], [0], [0], [1], [0, 0, 1, 1], [], []>} : vector<128x128xbf16>, vector<128x256xbf16>, vector<128x256xf32> -> vector<128x256xf32>
    %c0_17 = arith.constant 0 : index
    %c1_18 = arith.constant 1 : index
    %c0_19 = arith.constant 0 : index
    %16 = vector.load %arg8[%c0_17, %c1_18, %c0_19] : memref<10x18x128xbf16, #tpu.memory_space<vmem>>, vector<8x16x128xbf16>
    %17 = vector.shape_cast %16 : vector<8x16x128xbf16> to vector<128x128xbf16>
    %c1_20 = arith.constant 1 : index
    %c0_21 = arith.constant 0 : index
    %c0_22 = arith.constant 0 : index
    %18 = vector.load %arg5[%c1_20, %c0_21, %c0_22] : memref<9x128x256xbf16, #tpu.memory_space<vmem>>, vector<1x128x256xbf16>
    %19 = vector.shape_cast %18 : vector<1x128x256xbf16> to vector<128x256xbf16>
    %cst_23 = arith.constant dense<0.000000e+00> : vector<128x256xf32>
    %20 = tpu.matmul %17, %19, %cst_23 {dimension_numbers = #tpu.dot_dimension_numbers<[1], [0], [0], [1], [0, 0, 1, 1], [], []>} : vector<128x128xbf16>, vector<128x256xbf16>, vector<128x256xf32> -> vector<128x256xf32>
    %21 = arith.addf %15, %20 : vector<128x256xf32>
    %c0_24 = arith.constant 0 : index
    %c2 = arith.constant 2 : index
    %c0_25 = arith.constant 0 : index
    %22 = vector.load %arg8[%c0_24, %c2, %c0_25] : memref<10x18x128xbf16, #tpu.memory_space<vmem>>, vector<8x16x128xbf16>
    %23 = vector.shape_cast %22 : vector<8x16x128xbf16> to vector<128x128xbf16>
    %c2_26 = arith.constant 2 : index
    %c0_27 = arith.constant 0 : index
    %c0_28 = arith.constant 0 : index
    %24 = vector.load %arg5[%c2_26, %c0_27, %c0_28] : memref<9x128x256xbf16, #tpu.memory_space<vmem>>, vector<1x128x256xbf16>
    %25 = vector.shape_cast %24 : vector<1x128x256xbf16> to vector<128x256xbf16>
    %cst_29 = arith.constant dense<0.000000e+00> : vector<128x256xf32>
    %26 = tpu.matmul %23, %25, %cst_29 {dimension_numbers = #tpu.dot_dimension_numbers<[1], [0], [0], [1], [0, 0, 1, 1], [], []>} : vector<128x128xbf16>, vector<128x256xbf16>, vector<128x256xf32> -> vector<128x256xf32>
    %27 = arith.addf %21, %26 : vector<128x256xf32>
    %c1_30 = arith.constant 1 : index
    %c0_31 = arith.constant 0 : index
    %c0_32 = arith.constant 0 : index
    %28 = vector.load %arg8[%c1_30, %c0_31, %c0_32] : memref<10x18x128xbf16, #tpu.memory_space<vmem>>, vector<8x16x128xbf16>
    %29 = vector.shape_cast %28 : vector<8x16x128xbf16> to vector<128x128xbf16>
    %c3 = arith.constant 3 : index
    %c0_33 = arith.constant 0 : index
    %c0_34 = arith.constant 0 : index
    %30 = vector.load %arg5[%c3, %c0_33, %c0_34] : memref<9x128x256xbf16, #tpu.memory_space<vmem>>, vector<1x128x256xbf16>
    %31 = vector.shape_cast %30 : vector<1x128x256xbf16> to vector<128x256xbf16>
    %cst_35 = arith.constant dense<0.000000e+00> : vector<128x256xf32>
    %32 = tpu.matmul %29, %31, %cst_35 {dimension_numbers = #tpu.dot_dimension_numbers<[1], [0], [0], [1], [0, 0, 1, 1], [], []>} : vector<128x128xbf16>, vector<128x256xbf16>, vector<128x256xf32> -> vector<128x256xf32>
    %33 = arith.addf %27, %32 : vector<128x256xf32>
    %c1_36 = arith.constant 1 : index
    %c1_37 = arith.constant 1 : index
    %c0_38 = arith.constant 0 : index
    %34 = vector.load %arg8[%c1_36, %c1_37, %c0_38] : memref<10x18x128xbf16, #tpu.memory_space<vmem>>, vector<8x16x128xbf16>
    %35 = vector.shape_cast %34 : vector<8x16x128xbf16> to vector<128x128xbf16>
    %c4 = arith.constant 4 : index
    %c0_39 = arith.constant 0 : index
    %c0_40 = arith.constant 0 : index
    %36 = vector.load %arg5[%c4, %c0_39, %c0_40] : memref<9x128x256xbf16, #tpu.memory_space<vmem>>, vector<1x128x256xbf16>
    %37 = vector.shape_cast %36 : vector<1x128x256xbf16> to vector<128x256xbf16>
    %cst_41 = arith.constant dense<0.000000e+00> : vector<128x256xf32>
    %38 = tpu.matmul %35, %37, %cst_41 {dimension_numbers = #tpu.dot_dimension_numbers<[1], [0], [0], [1], [0, 0, 1, 1], [], []>} : vector<128x128xbf16>, vector<128x256xbf16>, vector<128x256xf32> -> vector<128x256xf32>
    %39 = arith.addf %33, %38 : vector<128x256xf32>
    %c1_42 = arith.constant 1 : index
    %c2_43 = arith.constant 2 : index
    %c0_44 = arith.constant 0 : index
    %40 = vector.load %arg8[%c1_42, %c2_43, %c0_44] : memref<10x18x128xbf16, #tpu.memory_space<vmem>>, vector<8x16x128xbf16>
    %41 = vector.shape_cast %40 : vector<8x16x128xbf16> to vector<128x128xbf16>
    %c5 = arith.constant 5 : index
    %c0_45 = arith.constant 0 : index
    %c0_46 = arith.constant 0 : index
    %42 = vector.load %arg5[%c5, %c0_45, %c0_46] : memref<9x128x256xbf16, #tpu.memory_space<vmem>>, vector<1x128x256xbf16>
    %43 = vector.shape_cast %42 : vector<1x128x256xbf16> to vector<128x256xbf16>
    %cst_47 = arith.constant dense<0.000000e+00> : vector<128x256xf32>
    %44 = tpu.matmul %41, %43, %cst_47 {dimension_numbers = #tpu.dot_dimension_numbers<[1], [0], [0], [1], [0, 0, 1, 1], [], []>} : vector<128x128xbf16>, vector<128x256xbf16>, vector<128x256xf32> -> vector<128x256xf32>
    %45 = arith.addf %39, %44 : vector<128x256xf32>
    %c2_48 = arith.constant 2 : index
    %c0_49 = arith.constant 0 : index
    %c0_50 = arith.constant 0 : index
    %46 = vector.load %arg8[%c2_48, %c0_49, %c0_50] : memref<10x18x128xbf16, #tpu.memory_space<vmem>>, vector<8x16x128xbf16>
    %47 = vector.shape_cast %46 : vector<8x16x128xbf16> to vector<128x128xbf16>
    %c6 = arith.constant 6 : index
    %c0_51 = arith.constant 0 : index
    %c0_52 = arith.constant 0 : index
    %48 = vector.load %arg5[%c6, %c0_51, %c0_52] : memref<9x128x256xbf16, #tpu.memory_space<vmem>>, vector<1x128x256xbf16>
    %49 = vector.shape_cast %48 : vector<1x128x256xbf16> to vector<128x256xbf16>
    %cst_53 = arith.constant dense<0.000000e+00> : vector<128x256xf32>
    %50 = tpu.matmul %47, %49, %cst_53 {dimension_numbers = #tpu.dot_dimension_numbers<[1], [0], [0], [1], [0, 0, 1, 1], [], []>} : vector<128x128xbf16>, vector<128x256xbf16>, vector<128x256xf32> -> vector<128x256xf32>
    %51 = arith.addf %45, %50 : vector<128x256xf32>
    %c2_54 = arith.constant 2 : index
    %c1_55 = arith.constant 1 : index
    %c0_56 = arith.constant 0 : index
    %52 = vector.load %arg8[%c2_54, %c1_55, %c0_56] : memref<10x18x128xbf16, #tpu.memory_space<vmem>>, vector<8x16x128xbf16>
    %53 = vector.shape_cast %52 : vector<8x16x128xbf16> to vector<128x128xbf16>
    %c7 = arith.constant 7 : index
    %c0_57 = arith.constant 0 : index
    %c0_58 = arith.constant 0 : index
    %54 = vector.load %arg5[%c7, %c0_57, %c0_58] : memref<9x128x256xbf16, #tpu.memory_space<vmem>>, vector<1x128x256xbf16>
    %55 = vector.shape_cast %54 : vector<1x128x256xbf16> to vector<128x256xbf16>
    %cst_59 = arith.constant dense<0.000000e+00> : vector<128x256xf32>
    %56 = tpu.matmul %53, %55, %cst_59 {dimension_numbers = #tpu.dot_dimension_numbers<[1], [0], [0], [1], [0, 0, 1, 1], [], []>} : vector<128x128xbf16>, vector<128x256xbf16>, vector<128x256xf32> -> vector<128x256xf32>
    %57 = arith.addf %51, %56 : vector<128x256xf32>
    %c2_60 = arith.constant 2 : index
    %c2_61 = arith.constant 2 : index
    %c0_62 = arith.constant 0 : index
    %58 = vector.load %arg8[%c2_60, %c2_61, %c0_62] : memref<10x18x128xbf16, #tpu.memory_space<vmem>>, vector<8x16x128xbf16>
    %59 = vector.shape_cast %58 : vector<8x16x128xbf16> to vector<128x128xbf16>
    %c8 = arith.constant 8 : index
    %c0_63 = arith.constant 0 : index
    %c0_64 = arith.constant 0 : index
    %60 = vector.load %arg5[%c8, %c0_63, %c0_64] : memref<9x128x256xbf16, #tpu.memory_space<vmem>>, vector<1x128x256xbf16>
    %61 = vector.shape_cast %60 : vector<1x128x256xbf16> to vector<128x256xbf16>
    %cst_65 = arith.constant dense<0.000000e+00> : vector<128x256xf32>
    %62 = tpu.matmul %59, %61, %cst_65 {dimension_numbers = #tpu.dot_dimension_numbers<[1], [0], [0], [1], [0, 0, 1, 1], [], []>} : vector<128x128xbf16>, vector<128x256xbf16>, vector<128x256xf32> -> vector<128x256xf32>
    %63 = arith.addf %57, %62 : vector<128x256xf32>
    %64 = vector.shape_cast %63 : vector<128x256xf32> to vector<8x16x256xf32>
    %65 = arith.truncf %64 : vector<8x16x256xf32> to vector<8x16x256xbf16>
    %c0_66 = arith.constant 0 : index
    %c0_67 = arith.constant 0 : index
    %c0_68 = arith.constant 0 : index
    %c0_69 = arith.constant 0 : index
    %66 = vector.load %arg6[%c0_66, %c0_67, %c0_68, %c0_69] : memref<1x8x16x256xbf16, #tpu.memory_space<vmem>>, vector<1x8x16x256xbf16>
    %67 = vector.shape_cast %66 : vector<1x8x16x256xbf16> to vector<8x16x256xbf16>
    %68 = vector.shape_cast %65 : vector<8x16x256xbf16> to vector<1x8x16x256xbf16>
    tpu.vector_store %arg6[%c0_66, %c0_67, %c0_68, %c0_69], %68 {strides = array<i32>} : memref<1x8x16x256xbf16, #tpu.memory_space<vmem>>, vector<1x8x16x256xbf16>,
    %cst_70 = arith.constant dense<0.000000e+00> : vector<256xf32>
    %69 = vector.multi_reduction <add>, %63, %cst_70 [0] : vector<128x256xf32> to vector<256xf32>
    %70 = vector.shape_cast %69 : vector<256xf32> to vector<1x256xf32>
    %71 = arith.mulf %63, %63 : vector<128x256xf32>
    %cst_71 = arith.constant dense<0.000000e+00> : vector<256xf32>
    %72 = vector.multi_reduction <add>, %71, %cst_71 [0] : vector<128x256xf32> to vector<256xf32>
    %73 = vector.shape_cast %72 : vector<256xf32> to vector<1x256xf32>
    %74 = tpu.concatenate %70, %73 in 0 : vector<1x256xf32>, vector<1x256xf32> -> vector<2x256xf32>
    %c0_72 = arith.constant 0 : index
    %c0_73 = arith.constant 0 : index
    %c0_74 = arith.constant 0 : index
    %c0_75 = arith.constant 0 : index
    %75 = vector.load %arg7[%c0_72, %c0_73, %c0_74, %c0_75] : memref<1x1x2x256xf32, #tpu.memory_space<vmem>>, vector<1x1x2x256xf32>
    %76 = vector.shape_cast %75 : vector<1x1x2x256xf32> to vector<2x256xf32>
    %77 = vector.shape_cast %74 : vector<2x256xf32> to vector<1x1x2x256xf32>
    tpu.vector_store %arg7[%c0_72, %c0_73, %c0_74, %c0_75], %77 {strides = array<i32>} : memref<1x1x2x256xf32, #tpu.memory_space<vmem>>, vector<1x1x2x256xf32>,
    return
  }
  func.func @transform_0(%arg0: i32, %arg1: i32) -> (i32, i32, i32, i32) {
    %c8_i32 = arith.constant 8 : i32
    %0 = arith.muli %arg1, %c8_i32 : i32
    %c1_i32 = arith.constant 1 : i32
    %1 = arith.subi %0, %c1_i32 : i32
    %c0_i32 = arith.constant 0 : i32
    %2 = arith.maxsi %1, %c0_i32 : i32
    %c0_i32_0 = arith.constant 0 : i32
    %c0_i32_1 = arith.constant 0 : i32
    %c0_i32_2 = arith.constant 0 : i32
    return %arg0, %2, %c0_i32_0, %c0_i32_1 : i32, i32, i32, i32
  }
  func.func @transform_1(%arg0: i32, %arg1: i32) -> (i32, i32, i32, i32) {
    %c0_i32 = arith.constant 0 : i32
    %c0_i32_0 = arith.constant 0 : i32
    %c0_i32_1 = arith.constant 0 : i32
    return %arg0, %arg1, %c0_i32, %c0_i32_0 : i32, i32, i32, i32
  }
  func.func @transform_2(%arg0: i32, %arg1: i32) -> (i32, i32, i32, i32) {
    %c1_i32 = arith.constant 1 : i32
    %0 = arith.addi %arg1, %c1_i32 : i32
    %c8_i32 = arith.constant 8 : i32
    %1 = arith.muli %0, %c8_i32 : i32
    %c15_i32 = arith.constant 15 : i32
    %2 = arith.minsi %1, %c15_i32 : i32
    %c0_i32 = arith.constant 0 : i32
    %c0_i32_0 = arith.constant 0 : i32
    %c0_i32_1 = arith.constant 0 : i32
    return %arg0, %2, %c0_i32, %c0_i32_0 : i32, i32, i32, i32
  }
  func.func @transform_3(%arg0: i32, %arg1: i32) -> (i32, i32, i32) {
    %c0_i32 = arith.constant 0 : i32
    %c0_i32_0 = arith.constant 0 : i32
    %c0_i32_1 = arith.constant 0 : i32
    %c0_i32_2 = arith.constant 0 : i32
    return %c0_i32, %c0_i32_0, %c0_i32_1 : i32, i32, i32
  }
  func.func @transform_4(%arg0: i32, %arg1: i32) -> (i32, i32, i32, i32) {
    %c0_i32 = arith.constant 0 : i32
    %c0_i32_0 = arith.constant 0 : i32
    %c0_i32_1 = arith.constant 0 : i32
    return %arg0, %arg1, %c0_i32, %c0_i32_0 : i32, i32, i32, i32
  }
  func.func @transform_5(%arg0: i32, %arg1: i32) -> (i32, i32, i32, i32) {
    %c0_i32 = arith.constant 0 : i32
    %c0_i32_0 = arith.constant 0 : i32
    %c0_i32_1 = arith.constant 0 : i32
    return %arg0, %arg1, %c0_i32, %c0_i32_0 : i32, i32, i32, i32
  }
}

module attributes {stable_mosaic.version = 11 : i64} {
  func.func @_bn_lrelu_kernel(%arg0: i32, %arg1: memref<128x256xbf16, #tpu.memory_space<vmem>>, %arg2: memref<1x256xf32, #tpu.memory_space<vmem>>, %arg3: memref<1x256xf32, #tpu.memory_space<vmem>>, %arg4: memref<128x256xbf16, #tpu.memory_space<vmem>>) attributes {dimension_semantics = [#tpu.dimension_semantics<parallel>], iteration_bounds = array<i64: 4>, scalar_prefetch = 0 : i64, scratch_operands = 0 : i64, tpu.core_type = #tpu.core_type<tc>, window_params = [{transform_indices = @transform_0, window_bounds = array<i64: 128, 256>}, {pipeline_mode = #tpu.pipeline_mode<synchronous>, transform_indices = @transform_1, window_bounds = array<i64: 1, 256>}, {pipeline_mode = #tpu.pipeline_mode<synchronous>, transform_indices = @transform_2, window_bounds = array<i64: 1, 256>}, {transform_indices = @transform_3, window_bounds = array<i64: 128, 256>}]} {
    %c0 = arith.constant 0 : index
    %c0_0 = arith.constant 0 : index
    %0 = vector.load %arg1[%c0, %c0_0] : memref<128x256xbf16, #tpu.memory_space<vmem>>, vector<128x256xbf16>
    %1 = arith.extf %0 : vector<128x256xbf16> to vector<128x256xf32>
    %c0_1 = arith.constant 0 : index
    %c0_2 = arith.constant 0 : index
    %2 = vector.load %arg2[%c0_1, %c0_2] : memref<1x256xf32, #tpu.memory_space<vmem>>, vector<1x256xf32>
    %3 = vector.broadcast %2 : vector<1x256xf32> to vector<128x256xf32>
    %4 = arith.mulf %1, %3 : vector<128x256xf32>
    %c0_3 = arith.constant 0 : index
    %c0_4 = arith.constant 0 : index
    %5 = vector.load %arg3[%c0_3, %c0_4] : memref<1x256xf32, #tpu.memory_space<vmem>>, vector<1x256xf32>
    %6 = vector.broadcast %5 : vector<1x256xf32> to vector<128x256xf32>
    %7 = arith.addf %4, %6 : vector<128x256xf32>
    %cst = arith.constant 0.000000e+00 : f32
    %8 = vector.broadcast %cst : f32 to vector<128x256xf32>
    %9 = arith.cmpf oge, %7, %8 : vector<128x256xf32>
    %cst_5 = arith.constant 0.00999999977 : f32
    %10 = vector.broadcast %cst_5 : f32 to vector<128x256xf32>
    %11 = arith.mulf %10, %7 : vector<128x256xf32>
    %12 = arith.select %9, %7, %11 : vector<128x256xi1>, vector<128x256xf32>
    %13 = arith.truncf %12 : vector<128x256xf32> to vector<128x256xbf16>
    %c0_6 = arith.constant 0 : index
    %c0_7 = arith.constant 0 : index
    %14 = vector.load %arg4[%c0_6, %c0_7] : memref<128x256xbf16, #tpu.memory_space<vmem>>, vector<128x256xbf16>
    tpu.vector_store %arg4[%c0_6, %c0_7], %13 {strides = array<i32>} : memref<128x256xbf16, #tpu.memory_space<vmem>>, vector<128x256xbf16>,
    return
  }
  func.func @transform_0(%arg0: i32) -> (i32, i32) {
    %c0_i32 = arith.constant 0 : i32
    %c0_i32_0 = arith.constant 0 : i32
    return %arg0, %c0_i32 : i32, i32
  }
  func.func @transform_1(%arg0: i32) -> (i32, i32) {
    %c0_i32 = arith.constant 0 : i32
    %c0_i32_0 = arith.constant 0 : i32
    %c0_i32_1 = arith.constant 0 : i32
    return %c0_i32, %c0_i32_0 : i32, i32
  }
  func.func @transform_2(%arg0: i32) -> (i32, i32) {
    %c0_i32 = arith.constant 0 : i32
    %c0_i32_0 = arith.constant 0 : i32
    %c0_i32_1 = arith.constant 0 : i32
    return %c0_i32, %c0_i32_0 : i32, i32
  }
  func.func @transform_3(%arg0: i32) -> (i32, i32) {
    %c0_i32 = arith.constant 0 : i32
    %c0_i32_0 = arith.constant 0 : i32
    return %arg0, %c0_i32 : i32, i32
  }
}

module attributes {stable_mosaic.version = 11 : i64} {
  func.func @_bn_matres_lrelu_kernel(%arg0: i32, %arg1: memref<128x256xbf16, #tpu.memory_space<vmem>>, %arg2: memref<1x256xf32, #tpu.memory_space<vmem>>, %arg3: memref<1x256xf32, #tpu.memory_space<vmem>>, %arg4: memref<128x128xbf16, #tpu.memory_space<vmem>>, %arg5: memref<128x256xbf16, #tpu.memory_space<vmem>>, %arg6: memref<1x256xf32, #tpu.memory_space<vmem>>, %arg7: memref<1x256xf32, #tpu.memory_space<vmem>>, %arg8: memref<128x256xf32, #tpu.memory_space<vmem>>) attributes {dimension_semantics = [#tpu.dimension_semantics<parallel>], iteration_bounds = array<i64: 4>, scalar_prefetch = 0 : i64, scratch_operands = 0 : i64, tpu.core_type = #tpu.core_type<tc>, window_params = [{transform_indices = @transform_0, window_bounds = array<i64: 128, 256>}, {pipeline_mode = #tpu.pipeline_mode<synchronous>, transform_indices = @transform_1, window_bounds = array<i64: 1, 256>}, {pipeline_mode = #tpu.pipeline_mode<synchronous>, transform_indices = @transform_2, window_bounds = array<i64: 1, 256>}, {transform_indices = @transform_3, window_bounds = array<i64: 128, 128>}, {pipeline_mode = #tpu.pipeline_mode<synchronous>, transform_indices = @transform_4, window_bounds = array<i64: 128, 256>}, {pipeline_mode = #tpu.pipeline_mode<synchronous>, transform_indices = @transform_5, window_bounds = array<i64: 1, 256>}, {pipeline_mode = #tpu.pipeline_mode<synchronous>, transform_indices = @transform_6, window_bounds = array<i64: 1, 256>}, {transform_indices = @transform_7, window_bounds = array<i64: 128, 256>}]} {
    %c0 = arith.constant 0 : index
    %c0_0 = arith.constant 0 : index
    %0 = vector.load %arg1[%c0, %c0_0] : memref<128x256xbf16, #tpu.memory_space<vmem>>, vector<128x256xbf16>
    %1 = arith.extf %0 : vector<128x256xbf16> to vector<128x256xf32>
    %c0_1 = arith.constant 0 : index
    %c0_2 = arith.constant 0 : index
    %2 = vector.load %arg2[%c0_1, %c0_2] : memref<1x256xf32, #tpu.memory_space<vmem>>, vector<1x256xf32>
    %3 = vector.broadcast %2 : vector<1x256xf32> to vector<128x256xf32>
    %4 = arith.mulf %1, %3 : vector<128x256xf32>
    %c0_3 = arith.constant 0 : index
    %c0_4 = arith.constant 0 : index
    %5 = vector.load %arg3[%c0_3, %c0_4] : memref<1x256xf32, #tpu.memory_space<vmem>>, vector<1x256xf32>
    %6 = vector.broadcast %5 : vector<1x256xf32> to vector<128x256xf32>
    %7 = arith.addf %4, %6 : vector<128x256xf32>
    %c0_5 = arith.constant 0 : index
    %c0_6 = arith.constant 0 : index
    %8 = vector.load %arg4[%c0_5, %c0_6] : memref<128x128xbf16, #tpu.memory_space<vmem>>, vector<128x128xbf16>
    %c0_7 = arith.constant 0 : index
    %c0_8 = arith.constant 0 : index
    %9 = vector.load %arg5[%c0_7, %c0_8] : memref<128x256xbf16, #tpu.memory_space<vmem>>, vector<128x256xbf16>
    %cst = arith.constant dense<0.000000e+00> : vector<128x256xf32>
    %10 = tpu.matmul %8, %9, %cst {dimension_numbers = #tpu.dot_dimension_numbers<[1], [0], [0], [1], [0, 0, 1, 1], [], []>} : vector<128x128xbf16>, vector<128x256xbf16>, vector<128x256xf32> -> vector<128x256xf32>
    %c0_9 = arith.constant 0 : index
    %c0_10 = arith.constant 0 : index
    %11 = vector.load %arg6[%c0_9, %c0_10] : memref<1x256xf32, #tpu.memory_space<vmem>>, vector<1x256xf32>
    %12 = vector.broadcast %11 : vector<1x256xf32> to vector<128x256xf32>
    %13 = arith.mulf %10, %12 : vector<128x256xf32>
    %14 = arith.addf %7, %13 : vector<128x256xf32>
    %c0_11 = arith.constant 0 : index
    %c0_12 = arith.constant 0 : index
    %15 = vector.load %arg7[%c0_11, %c0_12] : memref<1x256xf32, #tpu.memory_space<vmem>>, vector<1x256xf32>
    %16 = vector.broadcast %15 : vector<1x256xf32> to vector<128x256xf32>
    %17 = arith.addf %14, %16 : vector<128x256xf32>
    %cst_13 = arith.constant 0.000000e+00 : f32
    %18 = vector.broadcast %cst_13 : f32 to vector<128x256xf32>
    %19 = arith.cmpf oge, %17, %18 : vector<128x256xf32>
    %cst_14 = arith.constant 0.00999999977 : f32
    %20 = vector.broadcast %cst_14 : f32 to vector<128x256xf32>
    %21 = arith.mulf %20, %17 : vector<128x256xf32>
    %22 = arith.select %19, %17, %21 : vector<128x256xi1>, vector<128x256xf32>
    %c0_15 = arith.constant 0 : index
    %c0_16 = arith.constant 0 : index
    %23 = vector.load %arg8[%c0_15, %c0_16] : memref<128x256xf32, #tpu.memory_space<vmem>>, vector<128x256xf32>
    tpu.vector_store %arg8[%c0_15, %c0_16], %22 {strides = array<i32>} : memref<128x256xf32, #tpu.memory_space<vmem>>, vector<128x256xf32>,
    return
  }
  func.func @transform_0(%arg0: i32) -> (i32, i32) {
    %c0_i32 = arith.constant 0 : i32
    %c0_i32_0 = arith.constant 0 : i32
    return %arg0, %c0_i32 : i32, i32
  }
  func.func @transform_1(%arg0: i32) -> (i32, i32) {
    %c0_i32 = arith.constant 0 : i32
    %c0_i32_0 = arith.constant 0 : i32
    %c0_i32_1 = arith.constant 0 : i32
    return %c0_i32, %c0_i32_0 : i32, i32
  }
  func.func @transform_2(%arg0: i32) -> (i32, i32) {
    %c0_i32 = arith.constant 0 : i32
    %c0_i32_0 = arith.constant 0 : i32
    %c0_i32_1 = arith.constant 0 : i32
    return %c0_i32, %c0_i32_0 : i32, i32
  }
  func.func @transform_3(%arg0: i32) -> (i32, i32) {
    %c0_i32 = arith.constant 0 : i32
    %c0_i32_0 = arith.constant 0 : i32
    return %arg0, %c0_i32 : i32, i32
  }
  func.func @transform_4(%arg0: i32) -> (i32, i32) {
    %c0_i32 = arith.constant 0 : i32
    %c0_i32_0 = arith.constant 0 : i32
    %c0_i32_1 = arith.constant 0 : i32
    return %c0_i32, %c0_i32_0 : i32, i32
  }
  func.func @transform_5(%arg0: i32) -> (i32, i32) {
    %c0_i32 = arith.constant 0 : i32
    %c0_i32_0 = arith.constant 0 : i32
    %c0_i32_1 = arith.constant 0 : i32
    return %c0_i32, %c0_i32_0 : i32, i32
  }
  func.func @transform_6(%arg0: i32) -> (i32, i32) {
    %c0_i32 = arith.constant 0 : i32
    %c0_i32_0 = arith.constant 0 : i32
    %c0_i32_1 = arith.constant 0 : i32
    return %c0_i32, %c0_i32_0 : i32, i32
  }
  func.func @transform_7(%arg0: i32) -> (i32, i32) {
    %c0_i32 = arith.constant 0 : i32
    %c0_i32_0 = arith.constant 0 : i32
    return %arg0, %c0_i32 : i32, i32
  }
}

module attributes {stable_mosaic.version = 11 : i64} {
  func.func @_conv3x3x3_kernel(%arg0: i32, %arg1: i32, %arg2: memref<1x1x16x256xbf16, #tpu.memory_space<vmem>>, %arg3: memref<1x8x16x256xbf16, #tpu.memory_space<vmem>>, %arg4: memref<1x1x16x256xbf16, #tpu.memory_space<vmem>>, %arg5: memref<9x256x256xbf16, #tpu.memory_space<vmem>>, %arg6: memref<1x8x16x256xbf16, #tpu.memory_space<vmem>>, %arg7: memref<1x1x2x256xf32, #tpu.memory_space<vmem>>, %arg8: memref<10x18x256xbf16, #tpu.memory_space<vmem>>) attributes {dimension_semantics = [#tpu.dimension_semantics<parallel>, #tpu.dimension_semantics<parallel>], iteration_bounds = array<i64: 2, 2>, scalar_prefetch = 0 : i64, scratch_operands = 1 : i64, tpu.core_type = #tpu.core_type<tc>, window_params = [{transform_indices = @transform_0, window_bounds = array<i64: 1, 1, 16, 256>}, {transform_indices = @transform_1, window_bounds = array<i64: 1, 8, 16, 256>}, {transform_indices = @transform_2, window_bounds = array<i64: 1, 1, 16, 256>}, {pipeline_mode = #tpu.pipeline_mode<synchronous>, transform_indices = @transform_3, window_bounds = array<i64: 9, 256, 256>}, {transform_indices = @transform_4, window_bounds = array<i64: 1, 8, 16, 256>}, {transform_indices = @transform_5, window_bounds = array<i64: 1, 1, 2, 256>}]} {
    %cst = arith.constant 0.000000e+00 : bf16
    %0 = vector.broadcast %cst : bf16 to vector<10x18x256xbf16>
    %c0 = arith.constant 0 : index
    %c0_0 = arith.constant 0 : index
    %c0_1 = arith.constant 0 : index
    %1 = vector.load %arg8[%c0, %c0_0, %c0_1] : memref<10x18x256xbf16, #tpu.memory_space<vmem>>, vector<10x18x256xbf16>
    tpu.vector_store %arg8[%c0, %c0_0, %c0_1], %0 {strides = array<i32>} : memref<10x18x256xbf16, #tpu.memory_space<vmem>>, vector<10x18x256xbf16>,
    %c0_2 = arith.constant 0 : index
    %c0_3 = arith.constant 0 : index
    %c0_4 = arith.constant 0 : index
    %c0_5 = arith.constant 0 : index
    %2 = vector.load %arg3[%c0_2, %c0_3, %c0_4, %c0_5] : memref<1x8x16x256xbf16, #tpu.memory_space<vmem>>, vector<1x8x16x256xbf16>
    %3 = vector.shape_cast %2 : vector<1x8x16x256xbf16> to vector<8x16x256xbf16>
    %c1 = arith.constant 1 : index
    %c1_6 = arith.constant 1 : index
    %c0_7 = arith.constant 0 : index
    %4 = vector.load %arg8[%c1, %c1_6, %c0_7] : memref<10x18x256xbf16, #tpu.memory_space<vmem>>, vector<8x16x256xbf16>
    tpu.vector_store %arg8[%c1, %c1_6, %c0_7], %3 {strides = array<i32>} : memref<10x18x256xbf16, #tpu.memory_space<vmem>>, vector<8x16x256xbf16>,
    %c0_i32 = arith.constant 0 : i32
    %5 = arith.cmpi sgt, %arg1, %c0_i32 : i32
    %6 = arith.extui %5 : i1 to i32
    %c0_i32_8 = arith.constant 0 : i32
    %7 = arith.cmpi ne, %6, %c0_i32_8 : i32
    scf.if %7 {
      %c0_76 = arith.constant 0 : index
      %c0_77 = arith.constant 0 : index
      %c0_78 = arith.constant 0 : index
      %c0_79 = arith.constant 0 : index
      %78 = vector.load %arg2[%c0_76, %c0_77, %c0_78, %c0_79] : memref<1x1x16x256xbf16, #tpu.memory_space<vmem>>, vector<1x1x16x256xbf16>
      %79 = vector.shape_cast %78 : vector<1x1x16x256xbf16> to vector<16x256xbf16>
      %c0_80 = arith.constant 0 : index
      %c1_81 = arith.constant 1 : index
      %c0_82 = arith.constant 0 : index
      %80 = vector.load %arg8[%c0_80, %c1_81, %c0_82] : memref<10x18x256xbf16, #tpu.memory_space<vmem>>, vector<1x16x256xbf16>
      %81 = vector.shape_cast %80 : vector<1x16x256xbf16> to vector<16x256xbf16>
      %82 = vector.shape_cast %79 : vector<16x256xbf16> to vector<1x16x256xbf16>
      tpu.vector_store %arg8[%c0_80, %c1_81, %c0_82], %82 {strides = array<i32>} : memref<10x18x256xbf16, #tpu.memory_space<vmem>>, vector<1x16x256xbf16>,
    } else {
    }
    %c1_i32 = arith.constant 1 : i32
    %8 = arith.cmpi slt, %arg1, %c1_i32 : i32
    %9 = arith.extui %8 : i1 to i32
    %c0_i32_9 = arith.constant 0 : i32
    %10 = arith.cmpi ne, %9, %c0_i32_9 : i32
    scf.if %10 {
      %c0_76 = arith.constant 0 : index
      %c0_77 = arith.constant 0 : index
      %c0_78 = arith.constant 0 : index
      %c0_79 = arith.constant 0 : index
      %78 = vector.load %arg4[%c0_76, %c0_77, %c0_78, %c0_79] : memref<1x1x16x256xbf16, #tpu.memory_space<vmem>>, vector<1x1x16x256xbf16>
      %79 = vector.shape_cast %78 : vector<1x1x16x256xbf16> to vector<16x256xbf16>
      %c9 = arith.constant 9 : index
      %c1_80 = arith.constant 1 : index
      %c0_81 = arith.constant 0 : index
      %80 = vector.load %arg8[%c9, %c1_80, %c0_81] : memref<10x18x256xbf16, #tpu.memory_space<vmem>>, vector<1x16x256xbf16>
      %81 = vector.shape_cast %80 : vector<1x16x256xbf16> to vector<16x256xbf16>
      %82 = vector.shape_cast %79 : vector<16x256xbf16> to vector<1x16x256xbf16>
      tpu.vector_store %arg8[%c9, %c1_80, %c0_81], %82 {strides = array<i32>} : memref<10x18x256xbf16, #tpu.memory_space<vmem>>, vector<1x16x256xbf16>,
    } else {
    }
    %c0_10 = arith.constant 0 : index
    %c0_11 = arith.constant 0 : index
    %c0_12 = arith.constant 0 : index
    %11 = vector.load %arg8[%c0_10, %c0_11, %c0_12] : memref<10x18x256xbf16, #tpu.memory_space<vmem>>, vector<8x16x256xbf16>
    %12 = vector.shape_cast %11 : vector<8x16x256xbf16> to vector<128x256xbf16>
    %c0_13 = arith.constant 0 : index
    %c0_14 = arith.constant 0 : index
    %c0_15 = arith.constant 0 : index
    %13 = vector.load %arg5[%c0_13, %c0_14, %c0_15] : memref<9x256x256xbf16, #tpu.memory_space<vmem>>, vector<1x256x256xbf16>
    %14 = vector.shape_cast %13 : vector<1x256x256xbf16> to vector<256x256xbf16>
    %cst_16 = arith.constant dense<0.000000e+00> : vector<128x256xf32>
    %15 = tpu.matmul %12, %14, %cst_16 {dimension_numbers = #tpu.dot_dimension_numbers<[1], [0], [0], [1], [0, 0, 1, 1], [], []>} : vector<128x256xbf16>, vector<256x256xbf16>, vector<128x256xf32> -> vector<128x256xf32>
    %c0_17 = arith.constant 0 : index
    %c1_18 = arith.constant 1 : index
    %c0_19 = arith.constant 0 : index
    %16 = vector.load %arg8[%c0_17, %c1_18, %c0_19] : memref<10x18x256xbf16, #tpu.memory_space<vmem>>, vector<8x16x256xbf16>
    %17 = vector.shape_cast %16 : vector<8x16x256xbf16> to vector<128x256xbf16>
    %c1_20 = arith.constant 1 : index
    %c0_21 = arith.constant 0 : index
    %c0_22 = arith.constant 0 : index
    %18 = vector.load %arg5[%c1_20, %c0_21, %c0_22] : memref<9x256x256xbf16, #tpu.memory_space<vmem>>, vector<1x256x256xbf16>
    %19 = vector.shape_cast %18 : vector<1x256x256xbf16> to vector<256x256xbf16>
    %cst_23 = arith.constant dense<0.000000e+00> : vector<128x256xf32>
    %20 = tpu.matmul %17, %19, %cst_23 {dimension_numbers = #tpu.dot_dimension_numbers<[1], [0], [0], [1], [0, 0, 1, 1], [], []>} : vector<128x256xbf16>, vector<256x256xbf16>, vector<128x256xf32> -> vector<128x256xf32>
    %21 = arith.addf %15, %20 : vector<128x256xf32>
    %c0_24 = arith.constant 0 : index
    %c2 = arith.constant 2 : index
    %c0_25 = arith.constant 0 : index
    %22 = vector.load %arg8[%c0_24, %c2, %c0_25] : memref<10x18x256xbf16, #tpu.memory_space<vmem>>, vector<8x16x256xbf16>
    %23 = vector.shape_cast %22 : vector<8x16x256xbf16> to vector<128x256xbf16>
    %c2_26 = arith.constant 2 : index
    %c0_27 = arith.constant 0 : index
    %c0_28 = arith.constant 0 : index
    %24 = vector.load %arg5[%c2_26, %c0_27, %c0_28] : memref<9x256x256xbf16, #tpu.memory_space<vmem>>, vector<1x256x256xbf16>
    %25 = vector.shape_cast %24 : vector<1x256x256xbf16> to vector<256x256xbf16>
    %cst_29 = arith.constant dense<0.000000e+00> : vector<128x256xf32>
    %26 = tpu.matmul %23, %25, %cst_29 {dimension_numbers = #tpu.dot_dimension_numbers<[1], [0], [0], [1], [0, 0, 1, 1], [], []>} : vector<128x256xbf16>, vector<256x256xbf16>, vector<128x256xf32> -> vector<128x256xf32>
    %27 = arith.addf %21, %26 : vector<128x256xf32>
    %c1_30 = arith.constant 1 : index
    %c0_31 = arith.constant 0 : index
    %c0_32 = arith.constant 0 : index
    %28 = vector.load %arg8[%c1_30, %c0_31, %c0_32] : memref<10x18x256xbf16, #tpu.memory_space<vmem>>, vector<8x16x256xbf16>
    %29 = vector.shape_cast %28 : vector<8x16x256xbf16> to vector<128x256xbf16>
    %c3 = arith.constant 3 : index
    %c0_33 = arith.constant 0 : index
    %c0_34 = arith.constant 0 : index
    %30 = vector.load %arg5[%c3, %c0_33, %c0_34] : memref<9x256x256xbf16, #tpu.memory_space<vmem>>, vector<1x256x256xbf16>
    %31 = vector.shape_cast %30 : vector<1x256x256xbf16> to vector<256x256xbf16>
    %cst_35 = arith.constant dense<0.000000e+00> : vector<128x256xf32>
    %32 = tpu.matmul %29, %31, %cst_35 {dimension_numbers = #tpu.dot_dimension_numbers<[1], [0], [0], [1], [0, 0, 1, 1], [], []>} : vector<128x256xbf16>, vector<256x256xbf16>, vector<128x256xf32> -> vector<128x256xf32>
    %33 = arith.addf %27, %32 : vector<128x256xf32>
    %c1_36 = arith.constant 1 : index
    %c1_37 = arith.constant 1 : index
    %c0_38 = arith.constant 0 : index
    %34 = vector.load %arg8[%c1_36, %c1_37, %c0_38] : memref<10x18x256xbf16, #tpu.memory_space<vmem>>, vector<8x16x256xbf16>
    %35 = vector.shape_cast %34 : vector<8x16x256xbf16> to vector<128x256xbf16>
    %c4 = arith.constant 4 : index
    %c0_39 = arith.constant 0 : index
    %c0_40 = arith.constant 0 : index
    %36 = vector.load %arg5[%c4, %c0_39, %c0_40] : memref<9x256x256xbf16, #tpu.memory_space<vmem>>, vector<1x256x256xbf16>
    %37 = vector.shape_cast %36 : vector<1x256x256xbf16> to vector<256x256xbf16>
    %cst_41 = arith.constant dense<0.000000e+00> : vector<128x256xf32>
    %38 = tpu.matmul %35, %37, %cst_41 {dimension_numbers = #tpu.dot_dimension_numbers<[1], [0], [0], [1], [0, 0, 1, 1], [], []>} : vector<128x256xbf16>, vector<256x256xbf16>, vector<128x256xf32> -> vector<128x256xf32>
    %39 = arith.addf %33, %38 : vector<128x256xf32>
    %c1_42 = arith.constant 1 : index
    %c2_43 = arith.constant 2 : index
    %c0_44 = arith.constant 0 : index
    %40 = vector.load %arg8[%c1_42, %c2_43, %c0_44] : memref<10x18x256xbf16, #tpu.memory_space<vmem>>, vector<8x16x256xbf16>
    %41 = vector.shape_cast %40 : vector<8x16x256xbf16> to vector<128x256xbf16>
    %c5 = arith.constant 5 : index
    %c0_45 = arith.constant 0 : index
    %c0_46 = arith.constant 0 : index
    %42 = vector.load %arg5[%c5, %c0_45, %c0_46] : memref<9x256x256xbf16, #tpu.memory_space<vmem>>, vector<1x256x256xbf16>
    %43 = vector.shape_cast %42 : vector<1x256x256xbf16> to vector<256x256xbf16>
    %cst_47 = arith.constant dense<0.000000e+00> : vector<128x256xf32>
    %44 = tpu.matmul %41, %43, %cst_47 {dimension_numbers = #tpu.dot_dimension_numbers<[1], [0], [0], [1], [0, 0, 1, 1], [], []>} : vector<128x256xbf16>, vector<256x256xbf16>, vector<128x256xf32> -> vector<128x256xf32>
    %45 = arith.addf %39, %44 : vector<128x256xf32>
    %c2_48 = arith.constant 2 : index
    %c0_49 = arith.constant 0 : index
    %c0_50 = arith.constant 0 : index
    %46 = vector.load %arg8[%c2_48, %c0_49, %c0_50] : memref<10x18x256xbf16, #tpu.memory_space<vmem>>, vector<8x16x256xbf16>
    %47 = vector.shape_cast %46 : vector<8x16x256xbf16> to vector<128x256xbf16>
    %c6 = arith.constant 6 : index
    %c0_51 = arith.constant 0 : index
    %c0_52 = arith.constant 0 : index
    %48 = vector.load %arg5[%c6, %c0_51, %c0_52] : memref<9x256x256xbf16, #tpu.memory_space<vmem>>, vector<1x256x256xbf16>
    %49 = vector.shape_cast %48 : vector<1x256x256xbf16> to vector<256x256xbf16>
    %cst_53 = arith.constant dense<0.000000e+00> : vector<128x256xf32>
    %50 = tpu.matmul %47, %49, %cst_53 {dimension_numbers = #tpu.dot_dimension_numbers<[1], [0], [0], [1], [0, 0, 1, 1], [], []>} : vector<128x256xbf16>, vector<256x256xbf16>, vector<128x256xf32> -> vector<128x256xf32>
    %51 = arith.addf %45, %50 : vector<128x256xf32>
    %c2_54 = arith.constant 2 : index
    %c1_55 = arith.constant 1 : index
    %c0_56 = arith.constant 0 : index
    %52 = vector.load %arg8[%c2_54, %c1_55, %c0_56] : memref<10x18x256xbf16, #tpu.memory_space<vmem>>, vector<8x16x256xbf16>
    %53 = vector.shape_cast %52 : vector<8x16x256xbf16> to vector<128x256xbf16>
    %c7 = arith.constant 7 : index
    %c0_57 = arith.constant 0 : index
    %c0_58 = arith.constant 0 : index
    %54 = vector.load %arg5[%c7, %c0_57, %c0_58] : memref<9x256x256xbf16, #tpu.memory_space<vmem>>, vector<1x256x256xbf16>
    %55 = vector.shape_cast %54 : vector<1x256x256xbf16> to vector<256x256xbf16>
    %cst_59 = arith.constant dense<0.000000e+00> : vector<128x256xf32>
    %56 = tpu.matmul %53, %55, %cst_59 {dimension_numbers = #tpu.dot_dimension_numbers<[1], [0], [0], [1], [0, 0, 1, 1], [], []>} : vector<128x256xbf16>, vector<256x256xbf16>, vector<128x256xf32> -> vector<128x256xf32>
    %57 = arith.addf %51, %56 : vector<128x256xf32>
    %c2_60 = arith.constant 2 : index
    %c2_61 = arith.constant 2 : index
    %c0_62 = arith.constant 0 : index
    %58 = vector.load %arg8[%c2_60, %c2_61, %c0_62] : memref<10x18x256xbf16, #tpu.memory_space<vmem>>, vector<8x16x256xbf16>
    %59 = vector.shape_cast %58 : vector<8x16x256xbf16> to vector<128x256xbf16>
    %c8 = arith.constant 8 : index
    %c0_63 = arith.constant 0 : index
    %c0_64 = arith.constant 0 : index
    %60 = vector.load %arg5[%c8, %c0_63, %c0_64] : memref<9x256x256xbf16, #tpu.memory_space<vmem>>, vector<1x256x256xbf16>
    %61 = vector.shape_cast %60 : vector<1x256x256xbf16> to vector<256x256xbf16>
    %cst_65 = arith.constant dense<0.000000e+00> : vector<128x256xf32>
    %62 = tpu.matmul %59, %61, %cst_65 {dimension_numbers = #tpu.dot_dimension_numbers<[1], [0], [0], [1], [0, 0, 1, 1], [], []>} : vector<128x256xbf16>, vector<256x256xbf16>, vector<128x256xf32> -> vector<128x256xf32>
    %63 = arith.addf %57, %62 : vector<128x256xf32>
    %64 = vector.shape_cast %63 : vector<128x256xf32> to vector<8x16x256xf32>
    %65 = arith.truncf %64 : vector<8x16x256xf32> to vector<8x16x256xbf16>
    %c0_66 = arith.constant 0 : index
    %c0_67 = arith.constant 0 : index
    %c0_68 = arith.constant 0 : index
    %c0_69 = arith.constant 0 : index
    %66 = vector.load %arg6[%c0_66, %c0_67, %c0_68, %c0_69] : memref<1x8x16x256xbf16, #tpu.memory_space<vmem>>, vector<1x8x16x256xbf16>
    %67 = vector.shape_cast %66 : vector<1x8x16x256xbf16> to vector<8x16x256xbf16>
    %68 = vector.shape_cast %65 : vector<8x16x256xbf16> to vector<1x8x16x256xbf16>
    tpu.vector_store %arg6[%c0_66, %c0_67, %c0_68, %c0_69], %68 {strides = array<i32>} : memref<1x8x16x256xbf16, #tpu.memory_space<vmem>>, vector<1x8x16x256xbf16>,
    %cst_70 = arith.constant dense<0.000000e+00> : vector<256xf32>
    %69 = vector.multi_reduction <add>, %63, %cst_70 [0] : vector<128x256xf32> to vector<256xf32>
    %70 = vector.shape_cast %69 : vector<256xf32> to vector<1x256xf32>
    %71 = arith.mulf %63, %63 : vector<128x256xf32>
    %cst_71 = arith.constant dense<0.000000e+00> : vector<256xf32>
    %72 = vector.multi_reduction <add>, %71, %cst_71 [0] : vector<128x256xf32> to vector<256xf32>
    %73 = vector.shape_cast %72 : vector<256xf32> to vector<1x256xf32>
    %74 = tpu.concatenate %70, %73 in 0 : vector<1x256xf32>, vector<1x256xf32> -> vector<2x256xf32>
    %c0_72 = arith.constant 0 : index
    %c0_73 = arith.constant 0 : index
    %c0_74 = arith.constant 0 : index
    %c0_75 = arith.constant 0 : index
    %75 = vector.load %arg7[%c0_72, %c0_73, %c0_74, %c0_75] : memref<1x1x2x256xf32, #tpu.memory_space<vmem>>, vector<1x1x2x256xf32>
    %76 = vector.shape_cast %75 : vector<1x1x2x256xf32> to vector<2x256xf32>
    %77 = vector.shape_cast %74 : vector<2x256xf32> to vector<1x1x2x256xf32>
    tpu.vector_store %arg7[%c0_72, %c0_73, %c0_74, %c0_75], %77 {strides = array<i32>} : memref<1x1x2x256xf32, #tpu.memory_space<vmem>>, vector<1x1x2x256xf32>,
    return
  }
  func.func @transform_0(%arg0: i32, %arg1: i32) -> (i32, i32, i32, i32) {
    %c8_i32 = arith.constant 8 : i32
    %0 = arith.muli %arg1, %c8_i32 : i32
    %c1_i32 = arith.constant 1 : i32
    %1 = arith.subi %0, %c1_i32 : i32
    %c0_i32 = arith.constant 0 : i32
    %2 = arith.maxsi %1, %c0_i32 : i32
    %c0_i32_0 = arith.constant 0 : i32
    %c0_i32_1 = arith.constant 0 : i32
    %c0_i32_2 = arith.constant 0 : i32
    return %arg0, %2, %c0_i32_0, %c0_i32_1 : i32, i32, i32, i32
  }
  func.func @transform_1(%arg0: i32, %arg1: i32) -> (i32, i32, i32, i32) {
    %c0_i32 = arith.constant 0 : i32
    %c0_i32_0 = arith.constant 0 : i32
    %c0_i32_1 = arith.constant 0 : i32
    return %arg0, %arg1, %c0_i32, %c0_i32_0 : i32, i32, i32, i32
  }
  func.func @transform_2(%arg0: i32, %arg1: i32) -> (i32, i32, i32, i32) {
    %c1_i32 = arith.constant 1 : i32
    %0 = arith.addi %arg1, %c1_i32 : i32
    %c8_i32 = arith.constant 8 : i32
    %1 = arith.muli %0, %c8_i32 : i32
    %c15_i32 = arith.constant 15 : i32
    %2 = arith.minsi %1, %c15_i32 : i32
    %c0_i32 = arith.constant 0 : i32
    %c0_i32_0 = arith.constant 0 : i32
    %c0_i32_1 = arith.constant 0 : i32
    return %arg0, %2, %c0_i32, %c0_i32_0 : i32, i32, i32, i32
  }
  func.func @transform_3(%arg0: i32, %arg1: i32) -> (i32, i32, i32) {
    %c0_i32 = arith.constant 0 : i32
    %c0_i32_0 = arith.constant 0 : i32
    %c0_i32_1 = arith.constant 0 : i32
    %c0_i32_2 = arith.constant 0 : i32
    return %c0_i32, %c0_i32_0, %c0_i32_1 : i32, i32, i32
  }
  func.func @transform_4(%arg0: i32, %arg1: i32) -> (i32, i32, i32, i32) {
    %c0_i32 = arith.constant 0 : i32
    %c0_i32_0 = arith.constant 0 : i32
    %c0_i32_1 = arith.constant 0 : i32
    return %arg0, %arg1, %c0_i32, %c0_i32_0 : i32, i32, i32, i32
  }
  func.func @transform_5(%arg0: i32, %arg1: i32) -> (i32, i32, i32, i32) {
    %c0_i32 = arith.constant 0 : i32
    %c0_i32_0 = arith.constant 0 : i32
    %c0_i32_1 = arith.constant 0 : i32
    return %arg0, %arg1, %c0_i32, %c0_i32_0 : i32, i32, i32, i32
  }
}

</mosaic_0001>

<llo_original>
// kernel: tile.58
$region0: #{tile.58}
  #allocation0 [shape = 's32[1]{0}', space=sflag, size = 0x4, scoped, tag = 'scoped memory for tile.58']
  %s0 = inlined_call_operand.vmem [shape: f32[16], index: 0, kind: input, shape index: {}]
  %s1 = inlined_call_operand.vmem [shape: f32[16,16], index: 1, kind: output, shape index: {}]
  // Predicated region
  $region2: #{tile.58} parent=0 // pred_check
    _
  $region3: #{tile.58} parent=0 // pred_check_branch
    %3 = sbr.rel (0) target = $region5
  $region4: #{tile.58} parent=0 // pred_region
    _
  $region5: #{tile.58} parent=0 // pred_fallthru
    _
  %v4 = vld [vmem:[%s0] ss:$0 sm:$0xff]
  %5 = vst [vmem:[%s1] sm:$0xff] %v4
  %s6 = scalar_lea.vmem %s1, 8
  %7 = vst [vmem:[%s6] sm:$0xff] %v4

// kernel: tile.59
$region0: #{tile.59}
  %s0 = inlined_call_operand.vmem [shape: f32[16,16], index: 0, kind: input, shape index: {}]
  %s1 = inlined_call_operand.vmem [shape: f32[1,256], index: 1, kind: output, shape index: {}]
  $region1: #{tile.59} parent=0
    #allocation0 [shape = 'u8[8192]{0}', space=vmem, size = 0x2000, scoped, tag = 'scoped mem for output reshape']
    %s2 = smov 3
    %v3 = vld [vmem:[%s0] ss:$8 sm:%s2]
    %vm4 = vcmask 130048
    %5 = vst.msk [vmem:[#allocation0] ss:$8 sm:$0x3] %vm4, %v3
    %s6 = scalar_lea.vmem %s0, 7
    %s7 = smov 3
    %v8 = vld [vmem:[%s6] ss:$8 sm:%s7]
    %9 = vrot.lane.b32.xlu0 %v8, 112
    %v10 = vpop.permute.xlu0 %9
    %vm11 = vcmask 1048448
    %12 = vst.msk [vmem:[#allocation0] ss:$8 sm:$0x3] %vm11, %v10
    %s13 = scalar_lea.vmem %s0, 6
    %s14 = smov 3
    %v15 = vld [vmem:[%s13] ss:$8 sm:%s14]
    %16 = vrot.lane.b32.xlu0 %v15, 96
    %v17 = vpop.permute.xlu0 %16
    %vm18 = vcmask 917248
    %19 = vst.msk [vmem:[#allocation0] ss:$8 sm:$0x3] %vm18, %v17
    %s20 = scalar_lea.vmem %s0, 5
    %s21 = smov 3
    %v22 = vld [vmem:[%s20] ss:$8 sm:%s21]
    %23 = vrot.lane.b32.xlu0 %v22, 80
    %v24 = vpop.permute.xlu0 %23
    %vm25 = vcmask 786048
    %26 = vst.msk [vmem:[#allocation0] ss:$8 sm:$0x3] %vm25, %v24
    %s27 = scalar_lea.vmem %s0, 4
    %s28 = smov 3
    %v29 = vld [vmem:[%s27] ss:$8 sm:%s28]
    %30 = vrot.lane.b32.xlu0 %v29, 64
    %v31 = vpop.permute.xlu0 %30
    %vm32 = vcmask 654848
    %33 = vst.msk [vmem:[#allocation0] ss:$8 sm:$0x3] %vm32, %v31
    %s34 = scalar_lea.vmem %s0, 3
    %s35 = smov 3
    %v36 = vld [vmem:[%s34] ss:$8 sm:%s35]
    %37 = vrot.lane.b32.xlu0 %v36, 48
    %v38 = vpop.permute.xlu0 %37
    %vm39 = vcmask 523648
    %40 = vst.msk [vmem:[#allocation0] ss:$8 sm:$0x3] %vm39, %v38
    %s41 = scalar_lea.vmem %s0, 2
    %s42 = smov 3
    %v43 = vld [vmem:[%s41] ss:$8 sm:%s42]
    %44 = vrot.lane.b32.xlu0 %v43, 32
    %v45 = vpop.permute.xlu0 %44
    %vm46 = vcmask 392448
    %47 = vst.msk [vmem:[#allocation0] ss:$8 sm:$0x3] %vm46, %v45
    %s48 = scalar_lea.vmem %s0, 1
    %s49 = smov 3
    %v50 = vld [vmem:[%s48] ss:$8 sm:%s49]
    %51 = vrot.lane.b32.xlu0 %v50, 16
    %v52 = vpop.permute.xlu0 %51
    %vm53 = vcmask 261248
    %54 = vst.msk [vmem:[#allocation0] ss:$8 sm:$0x3] %vm53, %v52
    %s56 = sshllo.u32 0, 1
    %v58 = vld [vmem:[#allocation0] sm:%s56]
    %s59 = sshllo.u32 0, 1
    %60 = vst [vmem:[%s1] sm:%s59] %v58
    %s61 = scalar_lea.vmem [#allocation0], 8
    %v62 = vld [vmem:[%s61] sm:%s56]
    %s63 = sshllo.u32 0, 1
    %s64 = scalar_lea.vmem %s1, 1
    %65 = vst [vmem:[%s64] sm:%s63] %v62

// kernel: basic_block3d_forward.8
$region0: #{basic_block3d_forward.8}
  #allocation0 [shape = 'u32[]', space=smem, size = 0x4, offset = 0x4, fixed_abs, tag = 'smem constant byte address 0x4 - core index']
  #allocation1 [shape = 'u32[144,128]{1,0:T(1,128)}', space=vmem, size = 0x12000, scoped, tag = 'internal scratch']
  %s0 = inlined_call_operand.vmem [shape: bf16[512,128], index: 0, kind: input, shape index: {}]
  %s1 = inlined_call_operand.vmem [shape: bf16[128,256], index: 1, kind: input, shape index: {}]
  %s2 = inlined_call_operand.vmem [shape: f32[4,2,256], index: 2, kind: output, shape index: {}]
  %s3 = sld [smem:[#allocation0]]
  $region41: #{basic_block3d_forward.8} parent=0
    _
  %s5 = ssub.s32 1, %s3
  %s6 = scalar_select 0, %s5, %s3
  loop: start=0, step=1, limit=6
  $region2: #{basic_block3d_forward.8} parent=0 // loop_pre_header
    _
  $region3: #{basic_block3d_forward.8} parent=0 // loop_header
    %s8 = sphi 0, %s12
    %p9 = scmp.ge.s32.totalorder %s8, 6
    %s18 = sphi 0, %s20
    %s21 = sphi 0, %s18
    %s22 = sphi 0, %s21
    %s38 = sphi 0, %s22
    %s42 = sphi 0, %s42
    %s44 = sphi 0, %s42
    %s45 = sphi 0, %s44
    %s59 = sphi 0, %s45
    %s65 = sphi 0, %s67
    %s68 = sphi 0, %s65
    %s69 = sphi 0, %s68
    %s85 = sphi 0, %s69
  $region4: #{basic_block3d_forward.8} parent=0 // loop_header_branch
    %11 = sbr.rel (%p9) target = $region8
  $region5: #{basic_block3d_forward.8} parent=0 // loop_body
    %s13 = ssub.s32 %s8, 1
    %s14 = ssub.s32 %s8, 2
    %s15 = sadd.s32 %s8, 1
    %s16 = ssub.s32 %s8, %s15
    %p17 = scmp.eq.s32.totalorder %s16, 0
    %s19 = sadd.s32 %s18, 1
    %s20 = scalar_select %p17, %s18, %s19
    %p23 = pneg %p17
    %p24 = scmp.eq.s32.totalorder %s8, 3
    %p25 = por %p23, %p24
    %p26 = scmp.ne.s32.totalorder %s18, %s21
    %p27 = scmp.eq.s32.totalorder %s8, 0
    %p28 = por %p26, %p27
    %p29 = scmp.ne.s32.totalorder %s18, %s21
    %p30 = scmp.eq.s32.totalorder %s13, 3
    %p31 = por %p29, %p30
    %p32 = scmp.ne.s32.totalorder %s21, %s22
    %p33 = scmp.eq.s32.totalorder %s13, 0
    %p34 = por %p32, %p33
    %p35 = scmp.ne.s32.totalorder %s21, %s22
    %p36 = scmp.eq.s32.totalorder %s14, 3
    %p37 = por %p35, %p36
    %p39 = scmp.ne.s32.totalorder %s22, %s38
    %p40 = scmp.eq.s32.totalorder %s14, 0
    %p41 = por %p39, %p40
    %s43 = sadd.s32 %s42, 1
    %p46 = scmp.eq.s32.totalorder %s8, 3
    %p47 = scmp.ne.s32.totalorder %s42, %s44
    %p48 = scmp.eq.s32.totalorder %s8, 0
    %p49 = por %p47, %p48
    %p50 = scmp.ne.s32.totalorder %s42, %s44
    %p51 = scmp.eq.s32.totalorder %s13, 3
    %p52 = por %p50, %p51
    %p53 = scmp.ne.s32.totalorder %s44, %s45
    %p54 = scmp.eq.s32.totalorder %s13, 0
    %p55 = por %p53, %p54
    %p56 = scmp.ne.s32.totalorder %s44, %s45
    %p57 = scmp.eq.s32.totalorder %s14, 3
    %p58 = por %p56, %p57
    %p60 = scmp.ne.s32.totalorder %s45, %s59
    %p61 = scmp.eq.s32.totalorder %s14, 0
    %p62 = por %p60, %p61
    %s63 = ssub.s32 %s8, %s15
    %p64 = scmp.eq.s32.totalorder %s63, 0
    %s66 = sadd.s32 %s65, 1
    %s67 = scalar_select %p64, %s65, %s66
    %p70 = pneg %p64
    %p71 = scmp.eq.s32.totalorder %s8, 3
    %p72 = por %p70, %p71
    %p73 = scmp.ne.s32.totalorder %s65, %s68
    %p74 = scmp.eq.s32.totalorder %s8, 0
    %p75 = por %p73, %p74
    %p76 = scmp.ne.s32.totalorder %s65, %s68
    %p77 = scmp.eq.s32.totalorder %s13, 3
    %p78 = por %p76, %p77
    %p79 = scmp.ne.s32.totalorder %s68, %s69
    %p80 = scmp.eq.s32.totalorder %s13, 0
    %p81 = por %p79, %p80
    %p82 = scmp.ne.s32.totalorder %s68, %s69
    %p83 = scmp.eq.s32.totalorder %s14, 3
    %p84 = por %p82, %p83
    %p86 = scmp.ne.s32.totalorder %s69, %s85
    %p87 = scmp.eq.s32.totalorder %s14, 0
    %p88 = por %p86, %p87
    %p89 = scmp.le.s32.totalorder 1, %s8
    %p90 = scmp.lt.s32.totalorder %s8, 5
    %p91 = pnand %p89, %p90
    %p92 = pneg %p91
    // Predicated region
    $region9: #{basic_block3d_forward.8} parent=5 // pred_check
      _
    $region10: #{basic_block3d_forward.8} parent=5 // pred_check_branch
      %94 = sbr.rel (%p91) target = $region12
    $region11: #{basic_block3d_forward.8} parent=5 // pred_region
      %s95 = ssub.s32 %s8, 1
      // Predicated region
      $region13: #{basic_block3d_forward.8} parent=11 // pred_check
        %p96 = pneg %p55
      $region14: #{basic_block3d_forward.8} parent=11 // pred_check_branch
        %98 = sbr.rel (%p96) target = $region16
      $region15: #{basic_block3d_forward.8} parent=11 // pred_region
        _
      $region16: #{basic_block3d_forward.8} parent=11 // pred_fallthru
        _
    $region12: #{basic_block3d_forward.8} parent=5 // pred_fallthru
      _
    %p99 = scmp.lt.s32.totalorder %s8, 4
    // Predicated region
    $region17: #{basic_block3d_forward.8} parent=5 // pred_check
      %p100 = pneg %p99
    $region18: #{basic_block3d_forward.8} parent=5 // pred_check_branch
      %102 = sbr.rel (%p100) target = $region20
    $region19: #{basic_block3d_forward.8} parent=5 // pred_region
      // Predicated region
      $region21: #{basic_block3d_forward.8} parent=19 // pred_check
        %p103 = pneg %p28
      $region22: #{basic_block3d_forward.8} parent=19 // pred_check_branch
        %105 = sbr.rel (%p103) target = $region24
      $region23: #{basic_block3d_forward.8} parent=19 // pred_region
        %s106 = smul.u32 16, %s8
        %p107 = scmp.lt.s32.totalorder %s106, 63
        %s108 = scalar_select %p107, %s106, 63
        %s109 = smul.addr %s108, 4
        %s110 = scalar_lea.vmem %s0, %s109
        %s111 = smul.u32 16, %s8
      $region24: #{basic_block3d_forward.8} parent=19 // pred_fallthru
        _
    $region20: #{basic_block3d_forward.8} parent=5 // pred_fallthru
      _
    %p112 = scmp.le.s32.totalorder 1, %s8
    %p113 = scmp.lt.s32.totalorder %s8, 5
    %p114 = pnand %p112, %p113
    %p115 = pneg %p114
    // Predicated region
    $region25: #{basic_block3d_forward.8} parent=5 // pred_check
      _
    $region26: #{basic_block3d_forward.8} parent=5 // pred_check_branch
      %117 = sbr.rel (%p114) target = $region28
    $region27: #{basic_block3d_forward.8} parent=5 // pred_region
      %s118 = ssub.s32 %s8, 1
      %s119 = smul.u32 16, %s13
      %p120 = scmp.lt.s32.totalorder %s119, 63
      %s121 = scalar_select %p120, %s119, 63
      %s122 = smul.addr %s121, 4
      %s123 = scalar_lea.vmem %s0, %s122
      %p124 = pneg %p34
      %p125 = pneg %p31
      %p126 = pneg %p55
      %p127 = pneg %p52
      %p128 = pneg %p81
      %p129 = pneg %p78
      %p130 = scmp.lt.s32.totalorder %s13, 3
      %s131 = scalar_select %p130, %s13, 3
      %s132 = smul.addr %s131, 2
      %s133 = smul.addr %s132, 2
      %s134 = scalar_lea.vmem %s2, %s133
      %s135 = smul.u32 16, %s13
      %p136 = scmp.lt.s32.totalorder %s135, 63
      %s137 = scalar_select %p136, %s135, 63
      %s138 = smul.addr %s137, 4
      %s139 = scalar_lea.vmem %s0, %s138
      %s140 = smul.u32 16, %s13
      %p141 = scmp.lt.s32.totalorder %s13, 3
      %s142 = scalar_select %p141, %s13, 3
      %s143 = smul.addr %s142, 2
      %s144 = smul.addr %s143, 2
      %s145 = scalar_lea.vmem %s2, %s144
      %v147 = vld [vmem:[%s139] sm:$0xf]
      %v148 = vld [vmem:[%s139 + $0x4] sm:$0xf]
      %v149 = vld [vmem:[%s139 + $0x8] sm:$0xf]
      %v150 = vld [vmem:[%s139 + $0xc] sm:$0xf]
      %v151 = vld [vmem:[%s139 + $0x10] sm:$0xf]
      %v152 = vld [vmem:[%s139 + $0x14] sm:$0xf]
      %v153 = vld [vmem:[%s139 + $0x18] sm:$0xf]
      %v154 = vld [vmem:[%s139 + $0x1c] sm:$0xf]
      %v155 = vld [vmem:[%s139 + $0x20] sm:$0xf]
      %v156 = vld [vmem:[%s139 + $0x24] sm:$0xf]
      %v157 = vld [vmem:[%s139 + $0x28] sm:$0xf]
      %v158 = vld [vmem:[%s139 + $0x2c] sm:$0xf]
      %v159 = vld [vmem:[%s139 + $0x30] sm:$0xf]
      %v160 = vld [vmem:[%s139 + $0x34] sm:$0xf]
      %v161 = vld [vmem:[%s139 + $0x38] sm:$0xf]
      %v162 = vld [vmem:[%s139 + $0x3c] sm:$0xf]
      %v163 = vld [vmem:[%s1] sm:$0xff]
      %v164 = vld [vmem:[%s1 + $0x8] sm:$0xff]
      %v165 = vld [vmem:[%s1 + $0x10] sm:$0xff]
      %v166 = vld [vmem:[%s1 + $0x18] sm:$0xff]
      %v167 = vld [vmem:[%s1 + $0x20] sm:$0xff]
      %v168 = vld [vmem:[%s1 + $0x28] sm:$0xff]
      %v169 = vld [vmem:[%s1 + $0x30] sm:$0xff]
      %v170 = vld [vmem:[%s1 + $0x38] sm:$0xff]
      %v171 = vld [vmem:[%s1 + $0x40] sm:$0xff]
      %v172 = vld [vmem:[%s1 + $0x48] sm:$0xff]
      %v173 = vld [vmem:[%s1 + $0x50] sm:$0xff]
      %v174 = vld [vmem:[%s1 + $0x58] sm:$0xff]
      %v175 = vld [vmem:[%s1 + $0x60] sm:$0xff]
      %v176 = vld [vmem:[%s1 + $0x68] sm:$0xff]
      %v177 = vld [vmem:[%s1 + $0x70] sm:$0xff]
      %v178 = vld [vmem:[%s1 + $0x78] sm:$0xff]
      %v195 = vunpack.c.l.b16 %v147
      %v196 = vunpack.c.l.b16 %v148
      %v197 = vunpack.c.l.b16 %v149
      %v198 = vunpack.c.l.b16 %v150
      %v199 = vunpack.c.l.b16 %v151
      %v200 = vunpack.c.l.b16 %v152
      %v201 = vunpack.c.l.b16 %v153
      %v202 = vunpack.c.l.b16 %v154
      %v203 = vunpack.c.l.b16 %v155
      %v204 = vunpack.c.l.b16 %v156
      %v205 = vunpack.c.l.b16 %v157
      %v206 = vunpack.c.l.b16 %v158
      %v207 = vunpack.c.l.b16 %v159
      %v208 = vunpack.c.l.b16 %v160
      %v209 = vunpack.c.l.b16 %v161
      %v210 = vunpack.c.l.b16 %v162
      %v211 = vpack.c.b16 %v196, %v195
      %v212 = vpack.c.b16 %v198, %v197
      %v213 = vpack.c.b16 %v200, %v199
      %v214 = vpack.c.b16 %v202, %v201
      %v215 = vpack.c.b16 %v204, %v203
      %v216 = vpack.c.b16 %v206, %v205
      %v217 = vpack.c.b16 %v208, %v207
      %v218 = vpack.c.b16 %v210, %v209
      %v243 = vunpack.c.l.b16 %v163
      %v244 = vunpack.c.h.b16 %v163
      %v245 = vunpack.c.l.b16 %v164
      %v246 = vunpack.c.h.b16 %v164
      %v247 = vunpack.c.l.b16 %v165
      %v248 = vunpack.c.h.b16 %v165
      %v249 = vunpack.c.l.b16 %v166
      %v250 = vunpack.c.h.b16 %v166
      %v251 = vunpack.c.l.b16 %v167
      %v252 = vunpack.c.h.b16 %v167
      %v253 = vunpack.c.l.b16 %v168
      %v254 = vunpack.c.h.b16 %v168
      %v255 = vunpack.c.l.b16 %v169
      %v256 = vunpack.c.h.b16 %v169
      %v257 = vunpack.c.l.b16 %v170
      %v258 = vunpack.c.h.b16 %v170
      %v259 = vunpack.c.l.b16 %v171
      %v260 = vunpack.c.h.b16 %v171
      %v261 = vunpack.c.l.b16 %v172
      %v262 = vunpack.c.h.b16 %v172
      %v263 = vunpack.c.l.b16 %v173
      %v264 = vunpack.c.h.b16 %v173
      %v265 = vunpack.c.l.b16 %v174
      %v266 = vunpack.c.h.b16 %v174
      %v267 = vunpack.c.l.b16 %v175
      %v268 = vunpack.c.h.b16 %v175
      %v269 = vunpack.c.l.b16 %v176
      %v270 = vunpack.c.h.b16 %v176
      %v271 = vunpack.c.l.b16 %v177
      %v272 = vunpack.c.h.b16 %v177
      %v273 = vunpack.c.l.b16 %v178
      %v274 = vunpack.c.h.b16 %v178
      %v275 = vpack.c.b16 %v245, %v243
      %v276 = vpack.c.b16 %v246, %v244
      %v277 = vpack.c.b16 %v249, %v247
      %v278 = vpack.c.b16 %v250, %v248
      %v279 = vpack.c.b16 %v253, %v251
      %v280 = vpack.c.b16 %v254, %v252
      %v281 = vpack.c.b16 %v257, %v255
      %v282 = vpack.c.b16 %v258, %v256
      %v283 = vpack.c.b16 %v261, %v259
      %v284 = vpack.c.b16 %v262, %v260
      %v285 = vpack.c.b16 %v265, %v263
      %v286 = vpack.c.b16 %v266, %v264
      %v287 = vpack.c.b16 %v269, %v267
      %v288 = vpack.c.b16 %v270, %v268
      %v289 = vpack.c.b16 %v273, %v271
      %v290 = vpack.c.b16 %v274, %v272
      %307 = vmatprep.subr.bf16.mxu0 %v276
      %308 = vmatpush1.bf16.msra.mxu0 %v275
      %309 = vmatprep.subr.bf16.mxu0 %v278
      %310 = vmatpush1.bf16.msra.mxu0 %v277
      %311 = vmatprep.subr.bf16.mxu0 %v280
      %312 = vmatpush1.bf16.msra.mxu0 %v279
      %313 = vmatprep.subr.bf16.mxu0 %v282
      %314 = vmatpush1.bf16.msra.mxu0 %v281
      %315 = vmatprep.subr.bf16.mxu0 %v284
      %316 = vmatpush1.bf16.msra.mxu0 %v283
      %317 = vmatprep.subr.bf16.mxu0 %v286
      %318 = vmatpush1.bf16.msra.mxu0 %v285
      %319 = vmatprep.subr.bf16.mxu0 %v288
      %320 = vmatpush1.bf16.msra.mxu0 %v287
      %321 = vmatprep.subr.bf16.mxu0 %v290
      %322 = vmatpush1.bf16.msra.mxu0 %v289
      %323 = vmatprep.subr.bf16.mxu0 0
      %324 = vmatpush1.bf16.msra.mxu0 0
      %325 = vmatprep.subr.bf16.mxu0 0
      %326 = vmatpush1.bf16.msra.mxu0 0
      %327 = vmatprep.subr.bf16.mxu0 0
      %328 = vmatpush1.bf16.msra.mxu0 0
      %329 = vmatprep.subr.bf16.mxu0 0
      %330 = vmatpush1.bf16.msra.mxu0 0
      %331 = vmatprep.subr.bf16.mxu0 0
      %332 = vmatpush1.bf16.msra.mxu0 0
      %333 = vmatprep.subr.bf16.mxu0 0
      %334 = vmatpush1.bf16.msra.mxu0 0
      %335 = vmatprep.subr.bf16.mxu0 0
      %336 = vmatpush1.bf16.msra.mxu0 0
      %337 = vmatprep.subr.bf16.mxu0 0
      %338 = vmatpush1.bf16.msra.mxu0 0
      %339 = vmatprep.mubr.bf16.mxu0 0
      %340 = vmatmul.mubr.bf16.gmra.mrb[0].mxu0 %v211
      %v341 = vpop.f32.mrb[0].mxu0
      %v342 = vadd.f32 0.0, %v341
      %v343 = vpop.f32.mrb[0].mxu0
      %v344 = vadd.f32 0.0, %v343
      %v345 = vpop.f32.mrb[0].mxu0
      %v346 = vadd.f32 0.0, %v345
      %v347 = vpop.f32.mrb[0].mxu0
      %v348 = vadd.f32 0.0, %v347
      %349 = vmatprep.mubr.bf16.mxu0 0
      %350 = vmatmul.mubr.bf16.gmra.mrb[0].mxu0 %v212
      %v351 = vpop.f32.mrb[0].mxu0
      %v352 = vadd.f32 0.0, %v351
      %v353 = vpop.f32.mrb[0].mxu0
      %v354 = vadd.f32 0.0, %v353
      %v355 = vpop.f32.mrb[0].mxu0
      %v356 = vadd.f32 0.0, %v355
      %v357 = vpop.f32.mrb[0].mxu0
      %v358 = vadd.f32 0.0, %v357
      %359 = vmatprep.mubr.bf16.mxu0 0
      %360 = vmatmul.mubr.bf16.gmra.mrb[0].mxu0 %v213
      %v361 = vpop.f32.mrb[0].mxu0
      %v362 = vadd.f32 0.0, %v361
      %v363 = vpop.f32.mrb[0].mxu0
      %v364 = vadd.f32 0.0, %v363
      %v365 = vpop.f32.mrb[0].mxu0
      %v366 = vadd.f32 0.0, %v365
      %v367 = vpop.f32.mrb[0].mxu0
      %v368 = vadd.f32 0.0, %v367
      %369 = vmatprep.mubr.bf16.mxu0 0
      %370 = vmatmul.mubr.bf16.gmra.mrb[0].mxu0 %v214
      %v371 = vpop.f32.mrb[0].mxu0
      %v372 = vadd.f32 0.0, %v371
      %v373 = vpop.f32.mrb[0].mxu0
      %v374 = vadd.f32 0.0, %v373
      %v375 = vpop.f32.mrb[0].mxu0
      %v376 = vadd.f32 0.0, %v375
      %v377 = vpop.f32.mrb[0].mxu0
      %v378 = vadd.f32 0.0, %v377
      %379 = vmatprep.mubr.bf16.mxu0 0
      %380 = vmatmul.mubr.bf16.gmra.mrb[0].mxu0 %v215
      %v381 = vpop.f32.mrb[0].mxu0
      %v382 = vadd.f32 0.0, %v381
      %v383 = vpop.f32.mrb[0].mxu0
      %v384 = vadd.f32 0.0, %v383
      %v385 = vpop.f32.mrb[0].mxu0
      %v386 = vadd.f32 0.0, %v385
      %v387 = vpop.f32.mrb[0].mxu0
      %v388 = vadd.f32 0.0, %v387
      %389 = vmatprep.mubr.bf16.mxu0 0
      %390 = vmatmul.mubr.bf16.gmra.mrb[0].mxu0 %v216
      %v391 = vpop.f32.mrb[0].mxu0
      %v392 = vadd.f32 0.0, %v391
      %v393 = vpop.f32.mrb[0].mxu0
      %v394 = vadd.f32 0.0, %v393
      %v395 = vpop.f32.mrb[0].mxu0
      %v396 = vadd.f32 0.0, %v395
      %v397 = vpop.f32.mrb[0].mxu0
      %v398 = vadd.f32 0.0, %v397
      %399 = vmatprep.mubr.bf16.mxu0 0
      %400 = vmatmul.mubr.bf16.gmra.mrb[0].mxu0 %v217
      %v401 = vpop.f32.mrb[0].mxu0
      %v402 = vadd.f32 0.0, %v401
      %v403 = vpop.f32.mrb[0].mxu0
      %v404 = vadd.f32 0.0, %v403
      %v405 = vpop.f32.mrb[0].mxu0
      %v406 = vadd.f32 0.0, %v405
      %v407 = vpop.f32.mrb[0].mxu0
      %v408 = vadd.f32 0.0, %v407
      %409 = vmatprep.mubr.bf16.mxu0 0
      %410 = vmatmul.mubr.bf16.gmra.mrb[0].mxu0 %v218
      %v411 = vpop.f32.mrb[0].mxu0
      %v412 = vadd.f32 0.0, %v411
      %v413 = vpop.f32.mrb[0].mxu0
      %v414 = vadd.f32 0.0, %v413
      %v415 = vpop.f32.mrb[0].mxu0
      %v416 = vadd.f32 0.0, %v415
      %v417 = vpop.f32.mrb[0].mxu0
      %v418 = vadd.f32 0.0, %v417
      %419 = vdwg.mxu0
      %v420 = vadd.f32 %v342, %v346
      %v421 = vadd.f32 %v420, %v352
      %v422 = vadd.f32 %v421, %v356
      %v423 = vadd.f32 %v422, %v362
      %v424 = vadd.f32 %v423, %v366
      %v425 = vadd.f32 %v424, %v372
      %v426 = vadd.f32 %v425, %v376
      %v427 = vadd.f32 %v426, %v382
      %v428 = vadd.f32 %v427, %v386
      %v429 = vadd.f32 %v428, %v392
      %v430 = vadd.f32 %v429, %v396
      %v431 = vadd.f32 %v430, %v402
      %v432 = vadd.f32 %v431, %v406
      %v433 = vadd.f32 %v432, %v412
      %v434 = vadd.f32 %v433, %v416
      %v435 = vrot.slane %v434, 4
      %v436 = vadd.f32 %v434, %v435
      %v437 = vrot.slane %v436, 2
      %v438 = vadd.f32 %v436, %v437
      %v439 = vrot.slane %v438, 1
      %v440 = vadd.f32 %v438, %v439
      %v441 = vadd.f32 %v344, %v348
      %v442 = vadd.f32 %v441, %v354
      %v443 = vadd.f32 %v442, %v358
      %v444 = vadd.f32 %v443, %v364
      %v445 = vadd.f32 %v444, %v368
      %v446 = vadd.f32 %v445, %v374
      %v447 = vadd.f32 %v446, %v378
      %v448 = vadd.f32 %v447, %v384
      %v449 = vadd.f32 %v448, %v388
      %v450 = vadd.f32 %v449, %v394
      %v451 = vadd.f32 %v450, %v398
      %v452 = vadd.f32 %v451, %v404
      %v453 = vadd.f32 %v452, %v408
      %v454 = vadd.f32 %v453, %v414
      %v455 = vadd.f32 %v454, %v418
      %v456 = vrot.slane %v455, 4
      %v457 = vadd.f32 %v455, %v456
      %v458 = vrot.slane %v457, 2
      %v459 = vadd.f32 %v457, %v458
      %v460 = vrot.slane %v459, 1
      %v461 = vadd.f32 %v459, %v460
      %v462 = vmul.f32 %v342, %v342
      %v463 = vmul.f32 %v344, %v344
      %v464 = vmul.f32 %v346, %v346
      %v465 = vmul.f32 %v348, %v348
      %v466 = vmul.f32 %v352, %v352
      %v467 = vmul.f32 %v354, %v354
      %v468 = vmul.f32 %v356, %v356
      %v469 = vmul.f32 %v358, %v358
      %v470 = vmul.f32 %v362, %v362
      %v471 = vmul.f32 %v364, %v364
      %v472 = vmul.f32 %v366, %v366
      %v473 = vmul.f32 %v368, %v368
      %v474 = vmul.f32 %v372, %v372
      %v475 = vmul.f32 %v374, %v374
      %v476 = vmul.f32 %v376, %v376
      %v477 = vmul.f32 %v378, %v378
      %v478 = vmul.f32 %v382, %v382
      %v479 = vmul.f32 %v384, %v384
      %v480 = vmul.f32 %v386, %v386
      %v481 = vmul.f32 %v388, %v388
      %v482 = vmul.f32 %v392, %v392
      %v483 = vmul.f32 %v394, %v394
      %v484 = vmul.f32 %v396, %v396
      %v485 = vmul.f32 %v398, %v398
      %v486 = vmul.f32 %v402, %v402
      %v487 = vmul.f32 %v404, %v404
      %v488 = vmul.f32 %v406, %v406
      %v489 = vmul.f32 %v408, %v408
      %v490 = vmul.f32 %v412, %v412
      %v491 = vmul.f32 %v414, %v414
      %v492 = vmul.f32 %v416, %v416
      %v493 = vmul.f32 %v418, %v418
      %v494 = vadd.f32 %v462, %v464
      %v495 = vadd.f32 %v494, %v466
      %v496 = vadd.f32 %v495, %v468
      %v497 = vadd.f32 %v496, %v470
      %v498 = vadd.f32 %v497, %v472
      %v499 = vadd.f32 %v498, %v474
      %v500 = vadd.f32 %v499, %v476
      %v501 = vadd.f32 %v500, %v478
      %v502 = vadd.f32 %v501, %v480
      %v503 = vadd.f32 %v502, %v482
      %v504 = vadd.f32 %v503, %v484
      %v505 = vadd.f32 %v504, %v486
      %v506 = vadd.f32 %v505, %v488
      %v507 = vadd.f32 %v506, %v490
      %v508 = vadd.f32 %v507, %v492
      %v509 = vrot.slane %v508, 4
      %v510 = vadd.f32 %v508, %v509
      %v511 = vrot.slane %v510, 2
      %v512 = vadd.f32 %v510, %v511
      %v513 = vrot.slane %v512, 1
      %v514 = vadd.f32 %v512, %v513
      %v515 = vadd.f32 %v463, %v465
      %v516 = vadd.f32 %v515, %v467
      %v517 = vadd.f32 %v516, %v469
      %v518 = vadd.f32 %v517, %v471
      %v519 = vadd.f32 %v518, %v473
      %v520 = vadd.f32 %v519, %v475
      %v521 = vadd.f32 %v520, %v477
      %v522 = vadd.f32 %v521, %v479
      %v523 = vadd.f32 %v522, %v481
      %v524 = vadd.f32 %v523, %v483
      %v525 = vadd.f32 %v524, %v485
      %v526 = vadd.f32 %v525, %v487
      %v527 = vadd.f32 %v526, %v489
      %v528 = vadd.f32 %v527, %v491
      %v529 = vadd.f32 %v528, %v493
      %v530 = vrot.slane %v529, 4
      %v531 = vadd.f32 %v529, %v530
      %v532 = vrot.slane %v531, 2
      %v533 = vadd.f32 %v531, %v532
      %v534 = vrot.slane %v533, 1
      %v535 = vadd.f32 %v533, %v534
      %vm536 = vcmask 1040384
      %v537 = vsel %vm536, %v440, %v514
      %v538 = vsel %vm536, %v461, %v535
      %v541 = vcombine.low %v537, %v538
      %v543 = vunpack.c.l.s4 1983009808
      %v544 = vunpack.c.0.s8 %v543
      %v545 = vlaneseq
      %v546 = vshrl.u32 %v545, 7
      %v547 = vsub.s32 %v544, %v546
      %v548 = vrot.slane %v541, %v547
      %550 = vst [vmem:[%s145] sm:$0xf] %v548
      %p551 = scmp.lt.s32.totalorder %s13, 3
      %s552 = scalar_select %p551, %s13, 3
      %s553 = smul.addr %s552, 2
      %s554 = smul.addr %s553, 2
      %s555 = scalar_lea.vmem %s2, %s554
      // Predicated region
      $region29: #{basic_block3d_forward.8} parent=27 // pred_check
        %p556 = pneg %p78
      $region30: #{basic_block3d_forward.8} parent=27 // pred_check_branch
        %558 = sbr.rel (%p556) target = $region32
      $region31: #{basic_block3d_forward.8} parent=27 // pred_region
        _
      $region32: #{basic_block3d_forward.8} parent=27 // pred_fallthru
        _
    $region28: #{basic_block3d_forward.8} parent=5 // pred_fallthru
      _
    %p559 = scmp.le.s32.totalorder 2, %s8
    // Predicated region
    $region33: #{basic_block3d_forward.8} parent=5 // pred_check
      %p560 = pneg %p559
    $region34: #{basic_block3d_forward.8} parent=5 // pred_check_branch
      %562 = sbr.rel (%p560) target = $region36
    $region35: #{basic_block3d_forward.8} parent=5 // pred_region
      %s563 = ssub.s32 %s8, 2
      // Predicated region
      $region37: #{basic_block3d_forward.8} parent=35 // pred_check
        %p564 = pneg %p84
      $region38: #{basic_block3d_forward.8} parent=35 // pred_check_branch
        %566 = sbr.rel (%p564) target = $region40
      $region39: #{basic_block3d_forward.8} parent=35 // pred_region
        %p567 = scmp.lt.s32.totalorder %s14, 3
        %s568 = scalar_select %p567, %s14, 3
        %s569 = smul.addr %s568, 2
        %s570 = smul.addr %s569, 2
        %s571 = scalar_lea.vmem %s2, %s570
      $region40: #{basic_block3d_forward.8} parent=35 // pred_fallthru
        _
    $region36: #{basic_block3d_forward.8} parent=5 // pred_fallthru
      _
  $region6: #{basic_block3d_forward.8} parent=0 // loop_footer
    %s12 = sadd.s32 1, %s8
  $region7: #{basic_block3d_forward.8} parent=0 // loop_footer_branch
    %7 = sbr.rel target = $region3
  $region8: #{basic_block3d_forward.8} parent=0 // loop_exit
    _

// kernel: basic_block3d_forward.6
$region0: #{basic_block3d_forward.6}
  #allocation0 [shape = 'u32[]', space=smem, size = 0x4, offset = 0x4, fixed_abs, tag = 'smem constant byte address 0x4 - core index']
  #allocation1 [shape = 'u32[144,128]{1,0:T(1,128)}', space=vmem, size = 0x12000, scoped, tag = 'internal scratch']
  %s0 = inlined_call_operand.vmem [shape: bf16[512,256], index: 0, kind: input, shape index: {}]
  %s1 = inlined_call_operand.vmem [shape: f32[1,256], index: 1, kind: input, shape index: {}]
  %s2 = inlined_call_operand.vmem [shape: f32[1,256], index: 2, kind: input, shape index: {}]
  %s3 = inlined_call_operand.vmem [shape: bf16[512,256], index: 3, kind: output, shape index: {}]
  %s4 = sld [smem:[#allocation0]]
  $region45: #{basic_block3d_forward.6} parent=0
    _
  %s6 = ssub.s32 1, %s4
  %s7 = scalar_select 0, %s6, %s4
  loop: start=0, step=1, limit=6
  $region2: #{basic_block3d_forward.6} parent=0 // loop_pre_header
    _
  $region3: #{basic_block3d_forward.6} parent=0 // loop_header
    %s9 = sphi 0, %s13
    %p10 = scmp.ge.s32.totalorder %s9, 6
    %s19 = sphi 0, %s21
    %s22 = sphi 0, %s19
    %s23 = sphi 0, %s22
    %s39 = sphi 0, %s23
    %s43 = sphi 0, %s43
    %s45 = sphi 0, %s43
    %s46 = sphi 0, %s45
    %s60 = sphi 0, %s46
    %s64 = sphi 0, %s64
    %s66 = sphi 0, %s64
    %s67 = sphi 0, %s66
    %s81 = sphi 0, %s67
    %s87 = sphi 0, %s89
    %s90 = sphi 0, %s87
    %s91 = sphi 0, %s90
    %s107 = sphi 0, %s91
  $region4: #{basic_block3d_forward.6} parent=0 // loop_header_branch
    %12 = sbr.rel (%p10) target = $region8
  $region5: #{basic_block3d_forward.6} parent=0 // loop_body
    %s14 = ssub.s32 %s9, 1
    %s15 = ssub.s32 %s9, 2
    %s16 = sadd.s32 %s9, 1
    %s17 = ssub.s32 %s9, %s16
    %p18 = scmp.eq.s32.totalorder %s17, 0
    %s20 = sadd.s32 %s19, 1
    %s21 = scalar_select %p18, %s19, %s20
    %p24 = pneg %p18
    %p25 = scmp.eq.s32.totalorder %s9, 3
    %p26 = por %p24, %p25
    %p27 = scmp.ne.s32.totalorder %s19, %s22
    %p28 = scmp.eq.s32.totalorder %s9, 0
    %p29 = por %p27, %p28
    %p30 = scmp.ne.s32.totalorder %s19, %s22
    %p31 = scmp.eq.s32.totalorder %s14, 3
    %p32 = por %p30, %p31
    %p33 = scmp.ne.s32.totalorder %s22, %s23
    %p34 = scmp.eq.s32.totalorder %s14, 0
    %p35 = por %p33, %p34
    %p36 = scmp.ne.s32.totalorder %s22, %s23
    %p37 = scmp.eq.s32.totalorder %s15, 3
    %p38 = por %p36, %p37
    %p40 = scmp.ne.s32.totalorder %s23, %s39
    %p41 = scmp.eq.s32.totalorder %s15, 0
    %p42 = por %p40, %p41
    %s44 = sadd.s32 %s43, 1
    %p47 = scmp.eq.s32.totalorder %s9, 3
    %p48 = scmp.ne.s32.totalorder %s43, %s45
    %p49 = scmp.eq.s32.totalorder %s9, 0
    %p50 = por %p48, %p49
    %p51 = scmp.ne.s32.totalorder %s43, %s45
    %p52 = scmp.eq.s32.totalorder %s14, 3
    %p53 = por %p51, %p52
    %p54 = scmp.ne.s32.totalorder %s45, %s46
    %p55 = scmp.eq.s32.totalorder %s14, 0
    %p56 = por %p54, %p55
    %p57 = scmp.ne.s32.totalorder %s45, %s46
    %p58 = scmp.eq.s32.totalorder %s15, 3
    %p59 = por %p57, %p58
    %p61 = scmp.ne.s32.totalorder %s46, %s60
    %p62 = scmp.eq.s32.totalorder %s15, 0
    %p63 = por %p61, %p62
    %s65 = sadd.s32 %s64, 1
    %p68 = scmp.eq.s32.totalorder %s9, 3
    %p69 = scmp.ne.s32.totalorder %s64, %s66
    %p70 = scmp.eq.s32.totalorder %s9, 0
    %p71 = por %p69, %p70
    %p72 = scmp.ne.s32.totalorder %s64, %s66
    %p73 = scmp.eq.s32.totalorder %s14, 3
    %p74 = por %p72, %p73
    %p75 = scmp.ne.s32.totalorder %s66, %s67
    %p76 = scmp.eq.s32.totalorder %s14, 0
    %p77 = por %p75, %p76
    %p78 = scmp.ne.s32.totalorder %s66, %s67
    %p79 = scmp.eq.s32.totalorder %s15, 3
    %p80 = por %p78, %p79
    %p82 = scmp.ne.s32.totalorder %s67, %s81
    %p83 = scmp.eq.s32.totalorder %s15, 0
    %p84 = por %p82, %p83
    %s85 = ssub.s32 %s9, %s16
    %p86 = scmp.eq.s32.totalorder %s85, 0
    %s88 = sadd.s32 %s87, 1
    %s89 = scalar_select %p86, %s87, %s88
    %p92 = pneg %p86
    %p93 = scmp.eq.s32.totalorder %s9, 3
    %p94 = por %p92, %p93
    %p95 = scmp.ne.s32.totalorder %s87, %s90
    %p96 = scmp.eq.s32.totalorder %s9, 0
    %p97 = por %p95, %p96
    %p98 = scmp.ne.s32.totalorder %s87, %s90
    %p99 = scmp.eq.s32.totalorder %s14, 3
    %p100 = por %p98, %p99
    %p101 = scmp.ne.s32.totalorder %s90, %s91
    %p102 = scmp.eq.s32.totalorder %s14, 0
    %p103 = por %p101, %p102
    %p104 = scmp.ne.s32.totalorder %s90, %s91
    %p105 = scmp.eq.s32.totalorder %s15, 3
    %p106 = por %p104, %p105
    %p108 = scmp.ne.s32.totalorder %s91, %s107
    %p109 = scmp.eq.s32.totalorder %s15, 0
    %p110 = por %p108, %p109
    %p111 = scmp.le.s32.totalorder 1, %s9
    %p112 = scmp.lt.s32.totalorder %s9, 5
    %p113 = pnand %p111, %p112
    %p114 = pneg %p113
    // Predicated region
    $region9: #{basic_block3d_forward.6} parent=5 // pred_check
      _
    $region10: #{basic_block3d_forward.6} parent=5 // pred_check_branch
      %116 = sbr.rel (%p113) target = $region12
    $region11: #{basic_block3d_forward.6} parent=5 // pred_region
      %s117 = ssub.s32 %s9, 1
      // Predicated region
      $region13: #{basic_block3d_forward.6} parent=11 // pred_check
        %p118 = pneg %p56
      $region14: #{basic_block3d_forward.6} parent=11 // pred_check_branch
        %120 = sbr.rel (%p118) target = $region16
      $region15: #{basic_block3d_forward.6} parent=11 // pred_region
        _
      $region16: #{basic_block3d_forward.6} parent=11 // pred_fallthru
        _
      // Predicated region
      $region17: #{basic_block3d_forward.6} parent=11 // pred_check
        %p121 = pneg %p77
      $region18: #{basic_block3d_forward.6} parent=11 // pred_check_branch
        %123 = sbr.rel (%p121) target = $region20
      $region19: #{basic_block3d_forward.6} parent=11 // pred_region
        _
      $region20: #{basic_block3d_forward.6} parent=11 // pred_fallthru
        _
    $region12: #{basic_block3d_forward.6} parent=5 // pred_fallthru
      _
    %p124 = scmp.lt.s32.totalorder %s9, 4
    // Predicated region
    $region21: #{basic_block3d_forward.6} parent=5 // pred_check
      %p125 = pneg %p124
    $region22: #{basic_block3d_forward.6} parent=5 // pred_check_branch
      %127 = sbr.rel (%p125) target = $region24
    $region23: #{basic_block3d_forward.6} parent=5 // pred_region
      // Predicated region
      $region25: #{basic_block3d_forward.6} parent=23 // pred_check
        %p128 = pneg %p29
      $region26: #{basic_block3d_forward.6} parent=23 // pred_check_branch
        %130 = sbr.rel (%p128) target = $region28
      $region27: #{basic_block3d_forward.6} parent=23 // pred_region
        %s131 = smul.u32 16, %s9
        %p132 = scmp.lt.s32.totalorder %s131, 63
        %s133 = scalar_select %p132, %s131, 63
        %s134 = smul.addr %s133, 2
        %s135 = smul.addr %s134, 4
        %s136 = scalar_lea.vmem %s0, %s135
        %s137 = smul.u32 16, %s9
      $region28: #{basic_block3d_forward.6} parent=23 // pred_fallthru
        _
    $region24: #{basic_block3d_forward.6} parent=5 // pred_fallthru
      _
    %p138 = scmp.le.s32.totalorder 1, %s9
    %p139 = scmp.lt.s32.totalorder %s9, 5
    %p140 = pnand %p138, %p139
    %p141 = pneg %p140
    // Predicated region
    $region29: #{basic_block3d_forward.6} parent=5 // pred_check
      _
    $region30: #{basic_block3d_forward.6} parent=5 // pred_check_branch
      %143 = sbr.rel (%p140) target = $region32
    $region31: #{basic_block3d_forward.6} parent=5 // pred_region
      %s144 = ssub.s32 %s9, 1
      %s145 = smul.u32 16, %s14
      %p146 = scmp.lt.s32.totalorder %s145, 63
      %s147 = scalar_select %p146, %s145, 63
      %s148 = smul.addr %s147, 2
      %s149 = smul.addr %s148, 4
      %s150 = scalar_lea.vmem %s0, %s149
      %p151 = pneg %p35
      %p152 = pneg %p32
      %p153 = pneg %p56
      %p154 = pneg %p53
      %p155 = pneg %p77
      %p156 = pneg %p74
      %p157 = pneg %p103
      %p158 = pneg %p100
      %s159 = smul.u32 16, %s14
      %p160 = scmp.lt.s32.totalorder %s159, 63
      %s161 = scalar_select %p160, %s159, 63
      %s162 = smul.addr %s161, 2
      %s163 = smul.addr %s162, 4
      %s164 = scalar_lea.vmem %s3, %s163
      %s165 = smul.u32 16, %s14
      %p166 = scmp.lt.s32.totalorder %s165, 63
      %s167 = scalar_select %p166, %s165, 63
      %s168 = smul.addr %s167, 2
      %s169 = smul.addr %s168, 4
      %s170 = scalar_lea.vmem %s0, %s169
      %s171 = smul.u32 16, %s14
      %s172 = smul.u32 16, %s14
      %p173 = scmp.lt.s32.totalorder %s172, 63
      %s174 = scalar_select %p173, %s172, 63
      %s175 = smul.addr %s174, 2
      %s176 = smul.addr %s175, 4
      %s177 = scalar_lea.vmem %s3, %s176
      %s178 = smul.u32 16, %s14
      %v179 = vld [vmem:[%s170] sm:$0xff]
      %v180 = vld [vmem:[%s170 + $0x8] sm:$0xff]
      %v181 = vld [vmem:[%s170 + $0x10] sm:$0xff]
      %v182 = vld [vmem:[%s170 + $0x18] sm:$0xff]
      %v183 = vld [vmem:[%s170 + $0x20] sm:$0xff]
      %v184 = vld [vmem:[%s170 + $0x28] sm:$0xff]
      %v185 = vld [vmem:[%s170 + $0x30] sm:$0xff]
      %v186 = vld [vmem:[%s170 + $0x38] sm:$0xff]
      %v187 = vld [vmem:[%s170 + $0x40] sm:$0xff]
      %v188 = vld [vmem:[%s170 + $0x48] sm:$0xff]
      %v189 = vld [vmem:[%s170 + $0x50] sm:$0xff]
      %v190 = vld [vmem:[%s170 + $0x58] sm:$0xff]
      %v191 = vld [vmem:[%s170 + $0x60] sm:$0xff]
      %v192 = vld [vmem:[%s170 + $0x68] sm:$0xff]
      %v193 = vld [vmem:[%s170 + $0x70] sm:$0xff]
      %v194 = vld [vmem:[%s170 + $0x78] sm:$0xff]
      %v195 = vunpack.c.l.bf16 %v179
      %v196 = vunpack.c.h.bf16 %v179
      %v197 = vunpack.c.l.bf16 %v180
      %v198 = vunpack.c.h.bf16 %v180
      %v199 = vunpack.c.l.bf16 %v181
      %v200 = vunpack.c.h.bf16 %v181
      %v201 = vunpack.c.l.bf16 %v182
      %v202 = vunpack.c.h.bf16 %v182
      %v203 = vunpack.c.l.bf16 %v183
      %v204 = vunpack.c.h.bf16 %v183
      %v205 = vunpack.c.l.bf16 %v184
      %v206 = vunpack.c.h.bf16 %v184
      %v207 = vunpack.c.l.bf16 %v185
      %v208 = vunpack.c.h.bf16 %v185
      %v209 = vunpack.c.l.bf16 %v186
      %v210 = vunpack.c.h.bf16 %v186
      %v211 = vunpack.c.l.bf16 %v187
      %v212 = vunpack.c.h.bf16 %v187
      %v213 = vunpack.c.l.bf16 %v188
      %v214 = vunpack.c.h.bf16 %v188
      %v215 = vunpack.c.l.bf16 %v189
      %v216 = vunpack.c.h.bf16 %v189
      %v217 = vunpack.c.l.bf16 %v190
      %v218 = vunpack.c.h.bf16 %v190
      %v219 = vunpack.c.l.bf16 %v191
      %v220 = vunpack.c.h.bf16 %v191
      %v221 = vunpack.c.l.bf16 %v192
      %v222 = vunpack.c.h.bf16 %v192
      %v223 = vunpack.c.l.bf16 %v193
      %v224 = vunpack.c.h.bf16 %v193
      %v225 = vunpack.c.l.bf16 %v194
      %v226 = vunpack.c.h.bf16 %v194
      %v227 = vld [vmem:[%s1] sm:$0x3]
      %v229 = vlaneseq
      %v230 = vshrl.u32 %v229, 7
      %v231 = vsub.s32 0, %v230
      %v232 = vrot.slane %v227, %v231
      %v233 = vlaneseq
      %v234 = vshrl.u32 %v233, 7
      %v235 = vsub.s32 1, %v234
      %v236 = vrot.slane %v227, %v235
      %v239 = vmul.f32 %v195, %v232
      %v240 = vmul.f32 %v196, %v236
      %v241 = vmul.f32 %v197, %v232
      %v242 = vmul.f32 %v198, %v236
      %v243 = vmul.f32 %v199, %v232
      %v244 = vmul.f32 %v200, %v236
      %v245 = vmul.f32 %v201, %v232
      %v246 = vmul.f32 %v202, %v236
      %v247 = vmul.f32 %v203, %v232
      %v248 = vmul.f32 %v204, %v236
      %v249 = vmul.f32 %v205, %v232
      %v250 = vmul.f32 %v206, %v236
      %v251 = vmul.f32 %v207, %v232
      %v252 = vmul.f32 %v208, %v236
      %v253 = vmul.f32 %v209, %v232
      %v254 = vmul.f32 %v210, %v236
      %v255 = vmul.f32 %v211, %v232
      %v256 = vmul.f32 %v212, %v236
      %v257 = vmul.f32 %v213, %v232
      %v258 = vmul.f32 %v214, %v236
      %v259 = vmul.f32 %v215, %v232
      %v260 = vmul.f32 %v216, %v236
      %v261 = vmul.f32 %v217, %v232
      %v262 = vmul.f32 %v218, %v236
      %v263 = vmul.f32 %v219, %v232
      %v264 = vmul.f32 %v220, %v236
      %v265 = vmul.f32 %v221, %v232
      %v266 = vmul.f32 %v222, %v236
      %v267 = vmul.f32 %v223, %v232
      %v268 = vmul.f32 %v224, %v236
      %v269 = vmul.f32 %v225, %v232
      %v270 = vmul.f32 %v226, %v236
      %v271 = vld [vmem:[%s2] sm:$0x3]
      %v273 = vlaneseq
      %v274 = vshrl.u32 %v273, 7
      %v275 = vsub.s32 0, %v274
      %v276 = vrot.slane %v271, %v275
      %v277 = vlaneseq
      %v278 = vshrl.u32 %v277, 7
      %v279 = vsub.s32 1, %v278
      %v280 = vrot.slane %v271, %v279
      %v283 = vadd.f32 %v239, %v276
      %v284 = vadd.f32 %v240, %v280
      %v285 = vadd.f32 %v241, %v276
      %v286 = vadd.f32 %v242, %v280
      %v287 = vadd.f32 %v243, %v276
      %v288 = vadd.f32 %v244, %v280
      %v289 = vadd.f32 %v245, %v276
      %v290 = vadd.f32 %v246, %v280
      %v291 = vadd.f32 %v247, %v276
      %v292 = vadd.f32 %v248, %v280
      %v293 = vadd.f32 %v249, %v276
      %v294 = vadd.f32 %v250, %v280
      %v295 = vadd.f32 %v251, %v276
      %v296 = vadd.f32 %v252, %v280
      %v297 = vadd.f32 %v253, %v276
      %v298 = vadd.f32 %v254, %v280
      %v299 = vadd.f32 %v255, %v276
      %v300 = vadd.f32 %v256, %v280
      %v301 = vadd.f32 %v257, %v276
      %v302 = vadd.f32 %v258, %v280
      %v303 = vadd.f32 %v259, %v276
      %v304 = vadd.f32 %v260, %v280
      %v305 = vadd.f32 %v261, %v276
      %v306 = vadd.f32 %v262, %v280
      %v307 = vadd.f32 %v263, %v276
      %v308 = vadd.f32 %v264, %v280
      %v309 = vadd.f32 %v265, %v276
      %v310 = vadd.f32 %v266, %v280
      %v311 = vadd.f32 %v267, %v276
      %v312 = vadd.f32 %v268, %v280
      %v313 = vadd.f32 %v269, %v276
      %v314 = vadd.f32 %v270, %v280
      %vm315 = vcmp.ge.f32.partialorder %v283, 0.0
      %vm316 = vcmp.ge.f32.partialorder %v284, 0.0
      %vm317 = vcmp.ge.f32.partialorder %v285, 0.0
      %vm318 = vcmp.ge.f32.partialorder %v286, 0.0
      %vm319 = vcmp.ge.f32.partialorder %v287, 0.0
      %vm320 = vcmp.ge.f32.partialorder %v288, 0.0
      %vm321 = vcmp.ge.f32.partialorder %v289, 0.0
      %vm322 = vcmp.ge.f32.partialorder %v290, 0.0
      %vm323 = vcmp.ge.f32.partialorder %v291, 0.0
      %vm324 = vcmp.ge.f32.partialorder %v292, 0.0
      %vm325 = vcmp.ge.f32.partialorder %v293, 0.0
      %vm326 = vcmp.ge.f32.partialorder %v294, 0.0
      %vm327 = vcmp.ge.f32.partialorder %v295, 0.0
      %vm328 = vcmp.ge.f32.partialorder %v296, 0.0
      %vm329 = vcmp.ge.f32.partialorder %v297, 0.0
      %vm330 = vcmp.ge.f32.partialorder %v298, 0.0
      %vm331 = vcmp.ge.f32.partialorder %v299, 0.0
      %vm332 = vcmp.ge.f32.partialorder %v300, 0.0
      %vm333 = vcmp.ge.f32.partialorder %v301, 0.0
      %vm334 = vcmp.ge.f32.partialorder %v302, 0.0
      %vm335 = vcmp.ge.f32.partialorder %v303, 0.0
      %vm336 = vcmp.ge.f32.partialorder %v304, 0.0
      %vm337 = vcmp.ge.f32.partialorder %v305, 0.0
      %vm338 = vcmp.ge.f32.partialorder %v306, 0.0
      %vm339 = vcmp.ge.f32.partialorder %v307, 0.0
      %vm340 = vcmp.ge.f32.partialorder %v308, 0.0
      %vm341 = vcmp.ge.f32.partialorder %v309, 0.0
      %vm342 = vcmp.ge.f32.partialorder %v310, 0.0
      %vm343 = vcmp.ge.f32.partialorder %v311, 0.0
      %vm344 = vcmp.ge.f32.partialorder %v312, 0.0
      %vm345 = vcmp.ge.f32.partialorder %v313, 0.0
      %vm346 = vcmp.ge.f32.partialorder %v314, 0.0
      %v347 = vmul.f32 %v283, 0.01
      %v348 = vmul.f32 %v284, 0.01
      %v349 = vmul.f32 %v285, 0.01
      %v350 = vmul.f32 %v286, 0.01
      %v351 = vmul.f32 %v287, 0.01
      %v352 = vmul.f32 %v288, 0.01
      %v353 = vmul.f32 %v289, 0.01
      %v354 = vmul.f32 %v290, 0.01
      %v355 = vmul.f32 %v291, 0.01
      %v356 = vmul.f32 %v292, 0.01
      %v357 = vmul.f32 %v293, 0.01
      %v358 = vmul.f32 %v294, 0.01
      %v359 = vmul.f32 %v295, 0.01
      %v360 = vmul.f32 %v296, 0.01
      %v361 = vmul.f32 %v297, 0.01
      %v362 = vmul.f32 %v298, 0.01
      %v363 = vmul.f32 %v299, 0.01
      %v364 = vmul.f32 %v300, 0.01
      %v365 = vmul.f32 %v301, 0.01
      %v366 = vmul.f32 %v302, 0.01
      %v367 = vmul.f32 %v303, 0.01
      %v368 = vmul.f32 %v304, 0.01
      %v369 = vmul.f32 %v305, 0.01
      %v370 = vmul.f32 %v306, 0.01
      %v371 = vmul.f32 %v307, 0.01
      %v372 = vmul.f32 %v308, 0.01
      %v373 = vmul.f32 %v309, 0.01
      %v374 = vmul.f32 %v310, 0.01
      %v375 = vmul.f32 %v311, 0.01
      %v376 = vmul.f32 %v312, 0.01
      %v377 = vmul.f32 %v313, 0.01
      %v378 = vmul.f32 %v314, 0.01
      %v379 = vsel %vm315, %v283, %v347
      %v380 = vsel %vm316, %v284, %v348
      %v381 = vsel %vm317, %v285, %v349
      %v382 = vsel %vm318, %v286, %v350
      %v383 = vsel %vm319, %v287, %v351
      %v384 = vsel %vm320, %v288, %v352
      %v385 = vsel %vm321, %v289, %v353
      %v386 = vsel %vm322, %v290, %v354
      %v387 = vsel %vm323, %v291, %v355
      %v388 = vsel %vm324, %v292, %v356
      %v389 = vsel %vm325, %v293, %v357
      %v390 = vsel %vm326, %v294, %v358
      %v391 = vsel %vm327, %v295, %v359
      %v392 = vsel %vm328, %v296, %v360
      %v393 = vsel %vm329, %v297, %v361
      %v394 = vsel %vm330, %v298, %v362
      %v395 = vsel %vm331, %v299, %v363
      %v396 = vsel %vm332, %v300, %v364
      %v397 = vsel %vm333, %v301, %v365
      %v398 = vsel %vm334, %v302, %v366
      %v399 = vsel %vm335, %v303, %v367
      %v400 = vsel %vm336, %v304, %v368
      %v401 = vsel %vm337, %v305, %v369
      %v402 = vsel %vm338, %v306, %v370
      %v403 = vsel %vm339, %v307, %v371
      %v404 = vsel %vm340, %v308, %v372
      %v405 = vsel %vm341, %v309, %v373
      %v406 = vsel %vm342, %v310, %v374
      %v407 = vsel %vm343, %v311, %v375
      %v408 = vsel %vm344, %v312, %v376
      %v409 = vsel %vm345, %v313, %v377
      %v410 = vsel %vm346, %v314, %v378
      %v411 = vpack.c.bf16 %v381, %v379
      %v412 = vpack.c.bf16 %v382, %v380
      %v413 = vpack.c.bf16 %v385, %v383
      %v414 = vpack.c.bf16 %v386, %v384
      %v415 = vpack.c.bf16 %v389, %v387
      %v416 = vpack.c.bf16 %v390, %v388
      %v417 = vpack.c.bf16 %v393, %v391
      %v418 = vpack.c.bf16 %v394, %v392
      %v419 = vpack.c.bf16 %v397, %v395
      %v420 = vpack.c.bf16 %v398, %v396
      %v421 = vpack.c.bf16 %v401, %v399
      %v422 = vpack.c.bf16 %v402, %v400
      %v423 = vpack.c.bf16 %v405, %v403
      %v424 = vpack.c.bf16 %v406, %v404
      %v425 = vpack.c.bf16 %v409, %v407
      %v426 = vpack.c.bf16 %v410, %v408
      %v443 = vunpack.c.l.b16 %v411
      %v444 = vunpack.c.l.b16 %v412
      %v445 = vunpack.c.h.b16 %v411
      %v446 = vunpack.c.h.b16 %v412
      %v447 = vunpack.c.l.b16 %v413
      %v448 = vunpack.c.l.b16 %v414
      %v449 = vunpack.c.h.b16 %v413
      %v450 = vunpack.c.h.b16 %v414
      %v451 = vunpack.c.l.b16 %v415
      %v452 = vunpack.c.l.b16 %v416
      %v453 = vunpack.c.h.b16 %v415
      %v454 = vunpack.c.h.b16 %v416
      %v455 = vunpack.c.l.b16 %v417
      %v456 = vunpack.c.l.b16 %v418
      %v457 = vunpack.c.h.b16 %v417
      %v458 = vunpack.c.h.b16 %v418
      %v459 = vunpack.c.l.b16 %v419
      %v460 = vunpack.c.l.b16 %v420
      %v461 = vunpack.c.h.b16 %v419
      %v462 = vunpack.c.h.b16 %v420
      %v463 = vunpack.c.l.b16 %v421
      %v464 = vunpack.c.l.b16 %v422
      %v465 = vunpack.c.h.b16 %v421
      %v466 = vunpack.c.h.b16 %v422
      %v467 = vunpack.c.l.b16 %v423
      %v468 = vunpack.c.l.b16 %v424
      %v469 = vunpack.c.h.b16 %v423
      %v470 = vunpack.c.h.b16 %v424
      %v471 = vunpack.c.l.b16 %v425
      %v472 = vunpack.c.l.b16 %v426
      %v473 = vunpack.c.h.b16 %v425
      %v474 = vunpack.c.h.b16 %v426
      %v475 = vpack.c.b16 %v444, %v443
      %v476 = vpack.c.b16 %v446, %v445
      %v477 = vpack.c.b16 %v448, %v447
      %v478 = vpack.c.b16 %v450, %v449
      %v479 = vpack.c.b16 %v452, %v451
      %v480 = vpack.c.b16 %v454, %v453
      %v481 = vpack.c.b16 %v456, %v455
      %v482 = vpack.c.b16 %v458, %v457
      %v483 = vpack.c.b16 %v460, %v459
      %v484 = vpack.c.b16 %v462, %v461
      %v485 = vpack.c.b16 %v464, %v463
      %v486 = vpack.c.b16 %v466, %v465
      %v487 = vpack.c.b16 %v468, %v467
      %v488 = vpack.c.b16 %v470, %v469
      %v489 = vpack.c.b16 %v472, %v471
      %v490 = vpack.c.b16 %v474, %v473
      %507 = vst [vmem:[%s177] sm:$0xff] %v475
      %508 = vst [vmem:[%s177 + $0x8] sm:$0xff] %v476
      %509 = vst [vmem:[%s177 + $0x10] sm:$0xff] %v477
      %510 = vst [vmem:[%s177 + $0x18] sm:$0xff] %v478
      %511 = vst [vmem:[%s177 + $0x20] sm:$0xff] %v479
      %512 = vst [vmem:[%s177 + $0x28] sm:$0xff] %v480
      %513 = vst [vmem:[%s177 + $0x30] sm:$0xff] %v481
      %514 = vst [vmem:[%s177 + $0x38] sm:$0xff] %v482
      %515 = vst [vmem:[%s177 + $0x40] sm:$0xff] %v483
      %516 = vst [vmem:[%s177 + $0x48] sm:$0xff] %v484
      %517 = vst [vmem:[%s177 + $0x50] sm:$0xff] %v485
      %518 = vst [vmem:[%s177 + $0x58] sm:$0xff] %v486
      %519 = vst [vmem:[%s177 + $0x60] sm:$0xff] %v487
      %520 = vst [vmem:[%s177 + $0x68] sm:$0xff] %v488
      %521 = vst [vmem:[%s177 + $0x70] sm:$0xff] %v489
      %522 = vst [vmem:[%s177 + $0x78] sm:$0xff] %v490
      %s523 = smul.u32 16, %s14
      %p524 = scmp.lt.s32.totalorder %s523, 63
      %s525 = scalar_select %p524, %s523, 63
      %s526 = smul.addr %s525, 2
      %s527 = smul.addr %s526, 4
      %s528 = scalar_lea.vmem %s3, %s527
      // Predicated region
      $region33: #{basic_block3d_forward.6} parent=31 // pred_check
        %p529 = pneg %p100
      $region34: #{basic_block3d_forward.6} parent=31 // pred_check_branch
        %531 = sbr.rel (%p529) target = $region36
      $region35: #{basic_block3d_forward.6} parent=31 // pred_region
        %s532 = smul.u32 16, %s14
      $region36: #{basic_block3d_forward.6} parent=31 // pred_fallthru
        _
    $region32: #{basic_block3d_forward.6} parent=5 // pred_fallthru
      _
    %p533 = scmp.le.s32.totalorder 2, %s9
    // Predicated region
    $region37: #{basic_block3d_forward.6} parent=5 // pred_check
      %p534 = pneg %p533
    $region38: #{basic_block3d_forward.6} parent=5 // pred_check_branch
      %536 = sbr.rel (%p534) target = $region40
    $region39: #{basic_block3d_forward.6} parent=5 // pred_region
      %s537 = ssub.s32 %s9, 2
      // Predicated region
      $region41: #{basic_block3d_forward.6} parent=39 // pred_check
        %p538 = pneg %p106
      $region42: #{basic_block3d_forward.6} parent=39 // pred_check_branch
        %540 = sbr.rel (%p538) target = $region44
      $region43: #{basic_block3d_forward.6} parent=39 // pred_region
        %s541 = smul.u32 16, %s15
        %p542 = scmp.lt.s32.totalorder %s541, 63
        %s543 = scalar_select %p542, %s541, 63
        %s544 = smul.addr %s543, 2
        %s545 = smul.addr %s544, 4
        %s546 = scalar_lea.vmem %s3, %s545
      $region44: #{basic_block3d_forward.6} parent=39 // pred_fallthru
        _
    $region40: #{basic_block3d_forward.6} parent=5 // pred_fallthru
      _
  $region6: #{basic_block3d_forward.6} parent=0 // loop_footer
    %s13 = sadd.s32 1, %s9
  $region7: #{basic_block3d_forward.6} parent=0 // loop_footer_branch
    %8 = sbr.rel target = $region3
  $region8: #{basic_block3d_forward.6} parent=0 // loop_exit
    _

// kernel: basic_block3d_forward.5
$region0: #{basic_block3d_forward.5}
  #allocation0 [shape = 'u32[]', space=smem, size = 0x4, offset = 0x4, fixed_abs, tag = 'smem constant byte address 0x4 - core index']
  #allocation1 [shape = 'u32[144,128]{1,0:T(1,128)}', space=vmem, size = 0x12000, scoped, tag = 'internal scratch']
  #allocation2 [shape = 'bf16[10,18,128]{2,1,0:T(8,128)(2,1)}', space=vmem, size = 0xf000, scoped, tag = 'scratch operand']
  %s0 = inlined_call_operand.vmem [shape: bf16[2,16,16,128], index: 0, kind: input, shape index: {}, may-alias: {0,1,2}]
  %s1 = inlined_call_operand.vmem [shape: bf16[2,16,16,128], index: 1, kind: input, shape index: {}, may-alias: {0,1,2}]
  %s2 = inlined_call_operand.vmem [shape: bf16[2,16,16,128], index: 2, kind: input, shape index: {}, may-alias: {0,1,2}]
  %s3 = inlined_call_operand.vmem [shape: bf16[9,128,256], index: 3, kind: input, shape index: {}]
  %s4 = inlined_call_operand.vmem [shape: bf16[2,16,16,256], index: 4, kind: output, shape index: {0}]
  %s5 = inlined_call_operand.vmem [shape: f32[2,2,2,256], index: 5, kind: output, shape index: {1}]
  %6 = xla_tuple %s4, %s5
  %s7 = sld [smem:[#allocation0]]
  $region65: #{basic_block3d_forward.5} parent=0
    _
  %s9 = ssub.s32 1, %s7
  %s10 = scalar_select 0, %s9, %s7
  loop: start=0, step=1, limit=6
  $region2: #{basic_block3d_forward.5} parent=0 // loop_pre_header
    _
  $region3: #{basic_block3d_forward.5} parent=0 // loop_header
    %s12 = sphi 0, %s16
    %p13 = scmp.ge.s32.totalorder %s12, 6
    %s19 = sphi 0, %s31
    %s20 = sphi 0, %s27
    %s21 = sphi 0, %s19
    %s22 = sphi 0, %s20
    %s23 = sphi 0, %s21
    %s24 = sphi 0, %s22
    %s44 = sphi 0, %s46
    %s47 = sphi 0, %s44
    %s48 = sphi 0, %s47
    %s64 = sphi 0, %s48
    %s72 = sphi 0, %s74
    %s75 = sphi 0, %s72
    %s76 = sphi 0, %s75
    %s92 = sphi 0, %s76
    %s108 = sphi 0, %s110
    %s111 = sphi 0, %s108
    %s112 = sphi 0, %s111
    %s128 = sphi 0, %s112
    %s132 = sphi 0, %s132
    %s134 = sphi 0, %s132
    %s135 = sphi 0, %s134
    %s149 = sphi 0, %s135
    %s157 = sphi 0, %s159
    %s160 = sphi 0, %s157
    %s161 = sphi 0, %s160
    %s177 = sphi 0, %s161
    %s185 = sphi 0, %s187
    %s188 = sphi 0, %s185
    %s189 = sphi 0, %s188
    %s205 = sphi 0, %s189
  $region4: #{basic_block3d_forward.5} parent=0 // loop_header_branch
    %15 = sbr.rel (%p13) target = $region8
  $region5: #{basic_block3d_forward.5} parent=0 // loop_body
    %s17 = ssub.s32 %s12, 1
    %s18 = ssub.s32 %s12, 2
    %s25 = sadd.s32 1, %s20
    %p26 = scmp.ge.s32.totalorder %s25, 2
    %s27 = scalar_select %p26, 0, %s25
    %s28 = sadd.s32 1, %s19
    %s29 = scalar_select %p26, %s28, %s19
    %p30 = scmp.ge.s32.totalorder %s29, 2
    %s31 = scalar_select %p30, 0, %s29
    %s32 = smul.u32 %s20, 8
    %s33 = ssub.s32 %s32, 1
    %p34 = scmp.gt.s32.totalorder %s33, 0
    %s35 = scalar_select %p34, %s33, 0
    %s36 = smul.u32 %s27, 8
    %s37 = ssub.s32 %s36, 1
    %p38 = scmp.gt.s32.totalorder %s37, 0
    %s39 = scalar_select %p38, %s37, 0
    %s40 = ssub.s32 %s19, %s31
    %s41 = ssub.s32 %s35, %s39
    %s42 = sor.u32 %s40, %s41
    %p43 = scmp.eq.s32.totalorder %s42, 0
    %s45 = sadd.s32 %s44, 1
    %s46 = scalar_select %p43, %s44, %s45
    %p49 = pneg %p43
    %p50 = scmp.eq.s32.totalorder %s12, 3
    %p51 = por %p49, %p50
    %p52 = scmp.ne.s32.totalorder %s44, %s47
    %p53 = scmp.eq.s32.totalorder %s12, 0
    %p54 = por %p52, %p53
    %p55 = scmp.ne.s32.totalorder %s44, %s47
    %p56 = scmp.eq.s32.totalorder %s17, 3
    %p57 = por %p55, %p56
    %p58 = scmp.ne.s32.totalorder %s47, %s48
    %p59 = scmp.eq.s32.totalorder %s17, 0
    %p60 = por %p58, %p59
    %p61 = scmp.ne.s32.totalorder %s47, %s48
    %p62 = scmp.eq.s32.totalorder %s18, 3
    %p63 = por %p61, %p62
    %p65 = scmp.ne.s32.totalorder %s48, %s64
    %p66 = scmp.eq.s32.totalorder %s18, 0
    %p67 = por %p65, %p66
    %s68 = ssub.s32 %s19, %s31
    %s69 = ssub.s32 %s20, %s27
    %s70 = sor.u32 %s68, %s69
    %p71 = scmp.eq.s32.totalorder %s70, 0
    %s73 = sadd.s32 %s72, 1
    %s74 = scalar_select %p71, %s72, %s73
    %p77 = pneg %p71
    %p78 = scmp.eq.s32.totalorder %s12, 3
    %p79 = por %p77, %p78
    %p80 = scmp.ne.s32.totalorder %s72, %s75
    %p81 = scmp.eq.s32.totalorder %s12, 0
    %p82 = por %p80, %p81
    %p83 = scmp.ne.s32.totalorder %s72, %s75
    %p84 = scmp.eq.s32.totalorder %s17, 3
    %p85 = por %p83, %p84
    %p86 = scmp.ne.s32.totalorder %s75, %s76
    %p87 = scmp.eq.s32.totalorder %s17, 0
    %p88 = por %p86, %p87
    %p89 = scmp.ne.s32.totalorder %s75, %s76
    %p90 = scmp.eq.s32.totalorder %s18, 3
    %p91 = por %p89, %p90
    %p93 = scmp.ne.s32.totalorder %s76, %s92
    %p94 = scmp.eq.s32.totalorder %s18, 0
    %p95 = por %p93, %p94
    %s96 = sadd.s32 %s20, 1
    %s97 = smul.u32 %s96, 8
    %p98 = scmp.lt.s32.totalorder %s97, 15
    %s99 = scalar_select %p98, %s97, 15
    %s100 = sadd.s32 %s27, 1
    %s101 = smul.u32 %s100, 8
    %p102 = scmp.lt.s32.totalorder %s101, 15
    %s103 = scalar_select %p102, %s101, 15
    %s104 = ssub.s32 %s19, %s31
    %s105 = ssub.s32 %s99, %s103
    %s106 = sor.u32 %s104, %s105
    %p107 = scmp.eq.s32.totalorder %s106, 0
    %s109 = sadd.s32 %s108, 1
    %s110 = scalar_select %p107, %s108, %s109
    %p113 = pneg %p107
    %p114 = scmp.eq.s32.totalorder %s12, 3
    %p115 = por %p113, %p114
    %p116 = scmp.ne.s32.totalorder %s108, %s111
    %p117 = scmp.eq.s32.totalorder %s12, 0
    %p118 = por %p116, %p117
    %p119 = scmp.ne.s32.totalorder %s108, %s111
    %p120 = scmp.eq.s32.totalorder %s17, 3
    %p121 = por %p119, %p120
    %p122 = scmp.ne.s32.totalorder %s111, %s112
    %p123 = scmp.eq.s32.totalorder %s17, 0
    %p124 = por %p122, %p123
    %p125 = scmp.ne.s32.totalorder %s111, %s112
    %p126 = scmp.eq.s32.totalorder %s18, 3
    %p127 = por %p125, %p126
    %p129 = scmp.ne.s32.totalorder %s112, %s128
    %p130 = scmp.eq.s32.totalorder %s18, 0
    %p131 = por %p129, %p130
    %s133 = sadd.s32 %s132, 1
    %p136 = scmp.eq.s32.totalorder %s12, 3
    %p137 = scmp.ne.s32.totalorder %s132, %s134
    %p138 = scmp.eq.s32.totalorder %s12, 0
    %p139 = por %p137, %p138
    %p140 = scmp.ne.s32.totalorder %s132, %s134
    %p141 = scmp.eq.s32.totalorder %s17, 3
    %p142 = por %p140, %p141
    %p143 = scmp.ne.s32.totalorder %s134, %s135
    %p144 = scmp.eq.s32.totalorder %s17, 0
    %p145 = por %p143, %p144
    %p146 = scmp.ne.s32.totalorder %s134, %s135
    %p147 = scmp.eq.s32.totalorder %s18, 3
    %p148 = por %p146, %p147
    %p150 = scmp.ne.s32.totalorder %s135, %s149
    %p151 = scmp.eq.s32.totalorder %s18, 0
    %p152 = por %p150, %p151
    %s153 = ssub.s32 %s19, %s31
    %s154 = ssub.s32 %s20, %s27
    %s155 = sor.u32 %s153, %s154
    %p156 = scmp.eq.s32.totalorder %s155, 0
    %s158 = sadd.s32 %s157, 1
    %s159 = scalar_select %p156, %s157, %s158
    %p162 = pneg %p156
    %p163 = scmp.eq.s32.totalorder %s12, 3
    %p164 = por %p162, %p163
    %p165 = scmp.ne.s32.totalorder %s157, %s160
    %p166 = scmp.eq.s32.totalorder %s12, 0
    %p167 = por %p165, %p166
    %p168 = scmp.ne.s32.totalorder %s157, %s160
    %p169 = scmp.eq.s32.totalorder %s17, 3
    %p170 = por %p168, %p169
    %p171 = scmp.ne.s32.totalorder %s160, %s161
    %p172 = scmp.eq.s32.totalorder %s17, 0
    %p173 = por %p171, %p172
    %p174 = scmp.ne.s32.totalorder %s160, %s161
    %p175 = scmp.eq.s32.totalorder %s18, 3
    %p176 = por %p174, %p175
    %p178 = scmp.ne.s32.totalorder %s161, %s177
    %p179 = scmp.eq.s32.totalorder %s18, 0
    %p180 = por %p178, %p179
    %s181 = ssub.s32 %s19, %s31
    %s182 = ssub.s32 %s20, %s27
    %s183 = sor.u32 %s181, %s182
    %p184 = scmp.eq.s32.totalorder %s183, 0
    %s186 = sadd.s32 %s185, 1
    %s187 = scalar_select %p184, %s185, %s186
    %p190 = pneg %p184
    %p191 = scmp.eq.s32.totalorder %s12, 3
    %p192 = por %p190, %p191
    %p193 = scmp.ne.s32.totalorder %s185, %s188
    %p194 = scmp.eq.s32.totalorder %s12, 0
    %p195 = por %p193, %p194
    %p196 = scmp.ne.s32.totalorder %s185, %s188
    %p197 = scmp.eq.s32.totalorder %s17, 3
    %p198 = por %p196, %p197
    %p199 = scmp.ne.s32.totalorder %s188, %s189
    %p200 = scmp.eq.s32.totalorder %s17, 0
    %p201 = por %p199, %p200
    %p202 = scmp.ne.s32.totalorder %s188, %s189
    %p203 = scmp.eq.s32.totalorder %s18, 3
    %p204 = por %p202, %p203
    %p206 = scmp.ne.s32.totalorder %s189, %s205
    %p207 = scmp.eq.s32.totalorder %s18, 0
    %p208 = por %p206, %p207
    %p209 = scmp.le.s32.totalorder 1, %s12
    %p210 = scmp.lt.s32.totalorder %s12, 5
    %p211 = pnand %p209, %p210
    %p212 = pneg %p211
    // Predicated region
    $region9: #{basic_block3d_forward.5} parent=5 // pred_check
      _
    $region10: #{basic_block3d_forward.5} parent=5 // pred_check_branch
      %214 = sbr.rel (%p211) target = $region12
    $region11: #{basic_block3d_forward.5} parent=5 // pred_region
      %s215 = ssub.s32 %s12, 1
      // Predicated region
      $region13: #{basic_block3d_forward.5} parent=11 // pred_check
        %p216 = pneg %p145
      $region14: #{basic_block3d_forward.5} parent=11 // pred_check_branch
        %218 = sbr.rel (%p216) target = $region16
      $region15: #{basic_block3d_forward.5} parent=11 // pred_region
        _
      $region16: #{basic_block3d_forward.5} parent=11 // pred_fallthru
        _
    $region12: #{basic_block3d_forward.5} parent=5 // pred_fallthru
      _
    %p219 = scmp.lt.s32.totalorder %s12, 4
    // Predicated region
    $region17: #{basic_block3d_forward.5} parent=5 // pred_check
      %p220 = pneg %p219
    $region18: #{basic_block3d_forward.5} parent=5 // pred_check_branch
      %222 = sbr.rel (%p220) target = $region20
    $region19: #{basic_block3d_forward.5} parent=5 // pred_region
      // Predicated region
      $region21: #{basic_block3d_forward.5} parent=19 // pred_check
        %p223 = pneg %p54
      $region22: #{basic_block3d_forward.5} parent=19 // pred_check_branch
        %225 = sbr.rel (%p223) target = $region24
      $region23: #{basic_block3d_forward.5} parent=19 // pred_region
        %s226 = smul.u32 %s20, 8
        %s227 = ssub.s32 %s226, 1
        %p228 = scmp.gt.s32.totalorder %s227, 0
        %s229 = scalar_select %p228, %s227, 0
        %p230 = scmp.lt.s32.totalorder %s19, 1
        %s231 = scalar_select %p230, %s19, 1
        %p232 = scmp.lt.s32.totalorder %s229, 15
        %s233 = scalar_select %p232, %s229, 15
        %s234 = smul.addr %s233, 2
        %s235 = smul.addr %s231, 32
        %s236 = sadd.s32 %s234, %s235
        %s237 = smul.addr %s236, 4
        %s238 = scalar_lea.vmem %s0, %s237
        %s239 = smul.u32 %s20, 8
        %s240 = ssub.s32 %s239, 1
        %p241 = scmp.gt.s32.totalorder %s240, 0
        %s242 = scalar_select %p241, %s240, 0
      $region24: #{basic_block3d_forward.5} parent=19 // pred_fallthru
        _
      // Predicated region
      $region25: #{basic_block3d_forward.5} parent=19 // pred_check
        %p243 = pneg %p82
      $region26: #{basic_block3d_forward.5} parent=19 // pred_check_branch
        %245 = sbr.rel (%p243) target = $region28
      $region27: #{basic_block3d_forward.5} parent=19 // pred_region
        %s246 = smul.u32 8, %s20
        %p247 = scmp.lt.s32.totalorder %s19, 1
        %s248 = scalar_select %p247, %s19, 1
        %p249 = scmp.lt.s32.totalorder %s246, 15
        %s250 = scalar_select %p249, %s246, 15
        %s251 = smul.addr %s250, 2
        %s252 = smul.addr %s248, 32
        %s253 = sadd.s32 %s251, %s252
        %s254 = smul.addr %s253, 4
        %s255 = scalar_lea.vmem %s1, %s254
        %s256 = smul.u32 8, %s20
      $region28: #{basic_block3d_forward.5} parent=19 // pred_fallthru
        _
      // Predicated region
      $region29: #{basic_block3d_forward.5} parent=19 // pred_check
        %p257 = pneg %p118
      $region30: #{basic_block3d_forward.5} parent=19 // pred_check_branch
        %259 = sbr.rel (%p257) target = $region32
      $region31: #{basic_block3d_forward.5} parent=19 // pred_region
        %s260 = sadd.s32 %s20, 1
        %s261 = smul.u32 %s260, 8
        %p262 = scmp.lt.s32.totalorder %s261, 15
        %s263 = scalar_select %p262, %s261, 15
        %p264 = scmp.lt.s32.totalorder %s19, 1
        %s265 = scalar_select %p264, %s19, 1
        %p266 = scmp.lt.s32.totalorder %s263, 15
        %s267 = scalar_select %p266, %s263, 15
        %s268 = smul.addr %s267, 2
        %s269 = smul.addr %s265, 32
        %s270 = sadd.s32 %s268, %s269
        %s271 = smul.addr %s270, 4
        %s272 = scalar_lea.vmem %s2, %s271
        %s273 = sadd.s32 %s20, 1
        %s274 = smul.u32 %s273, 8
        %p275 = scmp.lt.s32.totalorder %s274, 15
        %s276 = scalar_select %p275, %s274, 15
      $region32: #{basic_block3d_forward.5} parent=19 // pred_fallthru
        _
    $region20: #{basic_block3d_forward.5} parent=5 // pred_fallthru
      _
    %p277 = scmp.le.s32.totalorder 1, %s12
    %p278 = scmp.lt.s32.totalorder %s12, 5
    %p279 = pnand %p277, %p278
    %p280 = pneg %p279
    // Predicated region
    $region33: #{basic_block3d_forward.5} parent=5 // pred_check
      _
    $region34: #{basic_block3d_forward.5} parent=5 // pred_check_branch
      %282 = sbr.rel (%p279) target = $region36
    $region35: #{basic_block3d_forward.5} parent=5 // pred_region
      %s283 = ssub.s32 %s12, 1
      %s284 = smul.u32 %s22, 8
      %s285 = ssub.s32 %s284, 1
      %p286 = scmp.gt.s32.totalorder %s285, 0
      %s287 = scalar_select %p286, %s285, 0
      %p288 = scmp.lt.s32.totalorder %s21, 1
      %s289 = scalar_select %p288, %s21, 1
      %p290 = scmp.lt.s32.totalorder %s287, 15
      %s291 = scalar_select %p290, %s287, 15
      %s292 = smul.addr %s291, 2
      %s293 = smul.addr %s289, 32
      %s294 = sadd.s32 %s292, %s293
      %s295 = smul.addr %s294, 4
      %s296 = scalar_lea.vmem %s0, %s295
      %p297 = pneg %p60
      %p298 = pneg %p57
      %s299 = smul.u32 8, %s22
      %p300 = scmp.lt.s32.totalorder %s21, 1
      %s301 = scalar_select %p300, %s21, 1
      %p302 = scmp.lt.s32.totalorder %s299, 15
      %s303 = scalar_select %p302, %s299, 15
      %s304 = smul.addr %s303, 2
      %s305 = smul.addr %s301, 32
      %s306 = sadd.s32 %s304, %s305
      %s307 = smul.addr %s306, 4
      %s308 = scalar_lea.vmem %s1, %s307
      %p309 = pneg %p88
      %p310 = pneg %p85
      %s311 = sadd.s32 %s22, 1
      %s312 = smul.u32 %s311, 8
      %p313 = scmp.lt.s32.totalorder %s312, 15
      %s314 = scalar_select %p313, %s312, 15
      %p315 = scmp.lt.s32.totalorder %s21, 1
      %s316 = scalar_select %p315, %s21, 1
      %p317 = scmp.lt.s32.totalorder %s314, 15
      %s318 = scalar_select %p317, %s314, 15
      %s319 = smul.addr %s318, 2
      %s320 = smul.addr %s316, 32
      %s321 = sadd.s32 %s319, %s320
      %s322 = smul.addr %s321, 4
      %s323 = scalar_lea.vmem %s2, %s322
      %p324 = pneg %p124
      %p325 = pneg %p121
      %p326 = pneg %p145
      %p327 = pneg %p142
      %p328 = pneg %p173
      %p329 = pneg %p170
      %s330 = smul.u32 8, %s22
      %p331 = scmp.lt.s32.totalorder %s21, 1
      %s332 = scalar_select %p331, %s21, 1
      %p333 = scmp.lt.s32.totalorder %s330, 15
      %s334 = scalar_select %p333, %s330, 15
      %s335 = smul.addr %s334, 4
      %s336 = smul.addr %s332, 64
      %s337 = sadd.s32 %s335, %s336
      %s338 = smul.addr %s337, 4
      %s339 = scalar_lea.vmem %s4, %s338
      %p340 = pneg %p201
      %p341 = pneg %p198
      %p342 = scmp.lt.s32.totalorder %s21, 1
      %s343 = scalar_select %p342, %s21, 1
      %p344 = scmp.lt.s32.totalorder %s22, 1
      %s345 = scalar_select %p344, %s22, 1
      %s346 = smul.addr %s345, 2
      %s347 = smul.addr %s343, 4
      %s348 = sadd.s32 %s346, %s347
      %s349 = smul.addr %s348, 2
      %s350 = scalar_lea.vmem %s5, %s349
      %s351 = smul.u32 %s22, 8
      %s352 = ssub.s32 %s351, 1
      %p353 = scmp.gt.s32.totalorder %s352, 0
      %s354 = scalar_select %p353, %s352, 0
      %p355 = scmp.lt.s32.totalorder %s21, 1
      %s356 = scalar_select %p355, %s21, 1
      %p357 = scmp.lt.s32.totalorder %s354, 15
      %s358 = scalar_select %p357, %s354, 15
      %s359 = smul.addr %s358, 2
      %s360 = smul.addr %s356, 32
      %s361 = sadd.s32 %s359, %s360
      %s362 = smul.addr %s361, 4
      %s363 = scalar_lea.vmem %s0, %s362
      %s364 = smul.u32 %s22, 8
      %s365 = ssub.s32 %s364, 1
      %p366 = scmp.gt.s32.totalorder %s365, 0
      %s367 = scalar_select %p366, %s365, 0
      %s368 = smul.u32 8, %s22
      %p369 = scmp.lt.s32.totalorder %s21, 1
      %s370 = scalar_select %p369, %s21, 1
      %p371 = scmp.lt.s32.totalorder %s368, 15
      %s372 = scalar_select %p371, %s368, 15
      %s373 = smul.addr %s372, 2
      %s374 = smul.addr %s370, 32
      %s375 = sadd.s32 %s373, %s374
      %s376 = smul.addr %s375, 4
      %s377 = scalar_lea.vmem %s1, %s376
      %s378 = smul.u32 8, %s22
      %s379 = sadd.s32 %s22, 1
      %s380 = smul.u32 %s379, 8
      %p381 = scmp.lt.s32.totalorder %s380, 15
      %s382 = scalar_select %p381, %s380, 15
      %p383 = scmp.lt.s32.totalorder %s21, 1
      %s384 = scalar_select %p383, %s21, 1
      %p385 = scmp.lt.s32.totalorder %s382, 15
      %s386 = scalar_select %p385, %s382, 15
      %s387 = smul.addr %s386, 2
      %s388 = smul.addr %s384, 32
      %s389 = sadd.s32 %s387, %s388
      %s390 = smul.addr %s389, 4
      %s391 = scalar_lea.vmem %s2, %s390
      %s392 = sadd.s32 %s22, 1
      %s393 = smul.u32 %s392, 8
      %p394 = scmp.lt.s32.totalorder %s393, 15
      %s395 = scalar_select %p394, %s393, 15
      %s396 = smul.u32 8, %s22
      %p397 = scmp.lt.s32.totalorder %s21, 1
      %s398 = scalar_select %p397, %s21, 1
      %p399 = scmp.lt.s32.totalorder %s396, 15
      %s400 = scalar_select %p399, %s396, 15
      %s401 = smul.addr %s400, 4
      %s402 = smul.addr %s398, 64
      %s403 = sadd.s32 %s401, %s402
      %s404 = smul.addr %s403, 4
      %s405 = scalar_lea.vmem %s4, %s404
      %s406 = smul.u32 8, %s22
      %p407 = scmp.lt.s32.totalorder %s21, 1
      %s408 = scalar_select %p407, %s21, 1
      %p409 = scmp.lt.s32.totalorder %s22, 1
      %s410 = scalar_select %p409, %s22, 1
      %s411 = smul.addr %s410, 2
      %s412 = smul.addr %s408, 4
      %s413 = sadd.s32 %s411, %s412
      %s414 = smul.addr %s413, 2
      %s415 = scalar_lea.vmem %s5, %s414
      %417 = vst [vmem:[#allocation2] sm:$0xf] 0
      %418 = vst [vmem:[#allocation2 + $0x4] sm:$0xf] 0
      %419 = vst [vmem:[#allocation2 + $0x8] sm:$0x1] 0
      %420 = vst [vmem:[#allocation2 + $0xc] sm:$0xf] 0
      %421 = vst [vmem:[#allocation2 + $0x10] sm:$0xf] 0
      %422 = vst [vmem:[#allocation2 + $0x14] sm:$0x1] 0
      %423 = vst [vmem:[#allocation2 + $0x18] sm:$0xf] 0
      %424 = vst [vmem:[#allocation2 + $0x1c] sm:$0xf] 0
      %425 = vst [vmem:[#allocation2 + $0x20] sm:$0x1] 0
      %426 = vst [vmem:[#allocation2 + $0x24] sm:$0xf] 0
      %427 = vst [vmem:[#allocation2 + $0x28] sm:$0xf] 0
      %428 = vst [vmem:[#allocation2 + $0x2c] sm:$0x1] 0
      %429 = vst [vmem:[#allocation2 + $0x30] sm:$0xf] 0
      %430 = vst [vmem:[#allocation2 + $0x34] sm:$0xf] 0
      %431 = vst [vmem:[#allocation2 + $0x38] sm:$0x1] 0
      %432 = vst [vmem:[#allocation2 + $0x3c] sm:$0xf] 0
      %433 = vst [vmem:[#allocation2 + $0x40] sm:$0xf] 0
      %434 = vst [vmem:[#allocation2 + $0x44] sm:$0x1] 0
      %435 = vst [vmem:[#allocation2 + $0x48] sm:$0xf] 0
      %436 = vst [vmem:[#allocation2 + $0x4c] sm:$0xf] 0
      %437 = vst [vmem:[#allocation2 + $0x50] sm:$0x1] 0
      %438 = vst [vmem:[#allocation2 + $0x54] sm:$0xf] 0
      %439 = vst [vmem:[#allocation2 + $0x58] sm:$0xf] 0
      %440 = vst [vmem:[#allocation2 + $0x5c] sm:$0x1] 0
      %441 = vst [vmem:[#allocation2 + $0x60] sm:$0xf] 0
      %442 = vst [vmem:[#allocation2 + $0x64] sm:$0xf] 0
      %443 = vst [vmem:[#allocation2 + $0x68] sm:$0x1] 0
      %444 = vst [vmem:[#allocation2 + $0x6c] sm:$0xf] 0
      %445 = vst [vmem:[#allocation2 + $0x70] sm:$0xf] 0
      %446 = vst [vmem:[#allocation2 + $0x74] sm:$0x1] 0
      %v447 = vld [vmem:[%s377] sm:$0xf]
      %v448 = vld [vmem:[%s377 + $0x4] sm:$0xf]
      %v449 = vld [vmem:[%s377 + $0x8] sm:$0xf]
      %v450 = vld [vmem:[%s377 + $0xc] sm:$0xf]
      %v451 = vld [vmem:[%s377 + $0x10] sm:$0xf]
      %v452 = vld [vmem:[%s377 + $0x14] sm:$0xf]
      %v453 = vld [vmem:[%s377 + $0x18] sm:$0xf]
      %v454 = vld [vmem:[%s377 + $0x1c] sm:$0xf]
      %v455 = vld [vmem:[%s377 + $0x20] sm:$0xf]
      %v456 = vld [vmem:[%s377 + $0x24] sm:$0xf]
      %v457 = vld [vmem:[%s377 + $0x28] sm:$0xf]
      %v458 = vld [vmem:[%s377 + $0x2c] sm:$0xf]
      %v459 = vld [vmem:[%s377 + $0x30] sm:$0xf]
      %v460 = vld [vmem:[%s377 + $0x34] sm:$0xf]
      %v461 = vld [vmem:[%s377 + $0x38] sm:$0xf]
      %v462 = vld [vmem:[%s377 + $0x3c] sm:$0xf]
      %vm463 = vsmask.f32 256
      %vm464 = vsmask.f32 4368
      %vm465 = vmor %vm463, %vm464
      %v467 = vshrl.u32 %v447, 16
      %v469 = vrot.slane %v467, 7
      %v470 = vshll.u32 %v447, 16
      %v472 = vor.u32 %v469, %v470
      %v473 = vrot.slane %v469, 4
      %v475 = vshrl.u32 %v448, 16
      %v477 = vrot.slane %v475, 7
      %v478 = vshll.u32 %v448, 16
      %v480 = vor.u32 %v477, %v478
      %v481 = vsel %vm465, %v473, %v480
      %v482 = vrot.slane %v477, 4
      %v484 = vshrl.u32 %v449, 16
      %v486 = vrot.slane %v484, 7
      %v487 = vshll.u32 %v449, 16
      %v489 = vor.u32 %v486, %v487
      %v490 = vrot.slane %v486, 4
      %v492 = vshrl.u32 %v450, 16
      %v494 = vrot.slane %v492, 7
      %v495 = vshll.u32 %v450, 16
      %v497 = vor.u32 %v494, %v495
      %v498 = vsel %vm465, %v490, %v497
      %v499 = vrot.slane %v494, 4
      %v501 = vshrl.u32 %v451, 16
      %v503 = vrot.slane %v501, 7
      %v504 = vshll.u32 %v451, 16
      %v506 = vor.u32 %v503, %v504
      %v507 = vrot.slane %v503, 4
      %v509 = vshrl.u32 %v452, 16
      %v511 = vrot.slane %v509, 7
      %v512 = vshll.u32 %v452, 16
      %v514 = vor.u32 %v511, %v512
      %v515 = vsel %vm465, %v507, %v514
      %v516 = vrot.slane %v511, 4
      %v518 = vshrl.u32 %v453, 16
      %v520 = vrot.slane %v518, 7
      %v521 = vshll.u32 %v453, 16
      %v523 = vor.u32 %v520, %v521
      %v524 = vrot.slane %v520, 4
      %v526 = vshrl.u32 %v454, 16
      %v528 = vrot.slane %v526, 7
      %v529 = vshll.u32 %v454, 16
      %v531 = vor.u32 %v528, %v529
      %v532 = vsel %vm465, %v524, %v531
      %v533 = vrot.slane %v528, 4
      %v535 = vshrl.u32 %v455, 16
      %v537 = vrot.slane %v535, 7
      %v538 = vshll.u32 %v455, 16
      %v540 = vor.u32 %v537, %v538
      %v541 = vrot.slane %v537, 4
      %v543 = vshrl.u32 %v456, 16
      %v545 = vrot.slane %v543, 7
      %v546 = vshll.u32 %v456, 16
      %v548 = vor.u32 %v545, %v546
      %v549 = vsel %vm465, %v541, %v548
      %v550 = vrot.slane %v545, 4
      %v552 = vshrl.u32 %v457, 16
      %v554 = vrot.slane %v552, 7
      %v555 = vshll.u32 %v457, 16
      %v557 = vor.u32 %v554, %v555
      %v558 = vrot.slane %v554, 4
      %v560 = vshrl.u32 %v458, 16
      %v562 = vrot.slane %v560, 7
      %v563 = vshll.u32 %v458, 16
      %v565 = vor.u32 %v562, %v563
      %v566 = vsel %vm465, %v558, %v565
      %v567 = vrot.slane %v562, 4
      %v569 = vshrl.u32 %v459, 16
      %v571 = vrot.slane %v569, 7
      %v572 = vshll.u32 %v459, 16
      %v574 = vor.u32 %v571, %v572
      %v575 = vrot.slane %v571, 4
      %v577 = vshrl.u32 %v460, 16
      %v579 = vrot.slane %v577, 7
      %v580 = vshll.u32 %v460, 16
      %v582 = vor.u32 %v579, %v580
      %v583 = vsel %vm465, %v575, %v582
      %v584 = vrot.slane %v579, 4
      %v586 = vshrl.u32 %v461, 16
      %v588 = vrot.slane %v586, 7
      %v589 = vshll.u32 %v461, 16
      %v591 = vor.u32 %v588, %v589
      %v592 = vrot.slane %v588, 4
      %v594 = vshrl.u32 %v462, 16
      %v596 = vrot.slane %v594, 7
      %v597 = vshll.u32 %v462, 16
      %v599 = vor.u32 %v596, %v597
      %v600 = vsel %vm465, %v592, %v599
      %v601 = vrot.slane %v596, 4
      %s626 = scalar_lea.vmem [#allocation2], 12
      %vm627 = vcmask 1043456
      %vm628 = vsmask.f32 7938
      %vm629 = vmand %vm627, %vm628
      %v630 = vld [vmem:[%s626] sm:$0xf]
      %v631 = vsel %vm629, %v472, %v630
      %632 = vst [vmem:[%s626] sm:$0xf] %v631
      %633 = vst [vmem:[%s626 + $0x4] sm:$0xf] %v481
      %vm634 = vcmask 1040384
      %vm635 = vmand %vm634, %vm463
      %v636 = vld [vmem:[%s626 + $0x8] sm:$0x1]
      %v637 = vsel %vm635, %v482, %v636
      %638 = vst [vmem:[%s626 + $0x8] sm:$0x1] %v637
      %v639 = vld [vmem:[%s626 + $0xc] sm:$0xf]
      %v640 = vsel %vm629, %v489, %v639
      %641 = vst [vmem:[%s626 + $0xc] sm:$0xf] %v640
      %642 = vst [vmem:[%s626 + $0x10] sm:$0xf] %v498
      %v643 = vld [vmem:[%s626 + $0x14] sm:$0x1]
      %v644 = vsel %vm635, %v499, %v643
      %645 = vst [vmem:[%s626 + $0x14] sm:$0x1] %v644
      %v646 = vld [vmem:[%s626 + $0x18] sm:$0xf]
      %v647 = vsel %vm629, %v506, %v646
      %648 = vst [vmem:[%s626 + $0x18] sm:$0xf] %v647
      %649 = vst [vmem:[%s626 + $0x1c] sm:$0xf] %v515
      %v650 = vld [vmem:[%s626 + $0x20] sm:$0x1]
      %v651 = vsel %vm635, %v516, %v650
      %652 = vst [vmem:[%s626 + $0x20] sm:$0x1] %v651
      %v653 = vld [vmem:[%s626 + $0x24] sm:$0xf]
      %v654 = vsel %vm629, %v523, %v653
      %655 = vst [vmem:[%s626 + $0x24] sm:$0xf] %v654
      %656 = vst [vmem:[%s626 + $0x28] sm:$0xf] %v532
      %v657 = vld [vmem:[%s626 + $0x2c] sm:$0x1]
      %v658 = vsel %vm635, %v533, %v657
      %659 = vst [vmem:[%s626 + $0x2c] sm:$0x1] %v658
      %v660 = vld [vmem:[%s626 + $0x30] sm:$0xf]
      %v661 = vsel %vm629, %v540, %v660
      %662 = vst [vmem:[%s626 + $0x30] sm:$0xf] %v661
      %663 = vst [vmem:[%s626 + $0x34] sm:$0xf] %v549
      %v664 = vld [vmem:[%s626 + $0x38] sm:$0x1]
      %v665 = vsel %vm635, %v550, %v664
      %666 = vst [vmem:[%s626 + $0x38] sm:$0x1] %v665
      %v667 = vld [vmem:[%s626 + $0x3c] sm:$0xf]
      %v668 = vsel %vm629, %v557, %v667
      %669 = vst [vmem:[%s626 + $0x3c] sm:$0xf] %v668
      %670 = vst [vmem:[%s626 + $0x40] sm:$0xf] %v566
      %v671 = vld [vmem:[%s626 + $0x44] sm:$0x1]
      %v672 = vsel %vm635, %v567, %v671
      %673 = vst [vmem:[%s626 + $0x44] sm:$0x1] %v672
      %v674 = vld [vmem:[%s626 + $0x48] sm:$0xf]
      %v675 = vsel %vm629, %v574, %v674
      %676 = vst [vmem:[%s626 + $0x48] sm:$0xf] %v675
      %677 = vst [vmem:[%s626 + $0x4c] sm:$0xf] %v583
      %v678 = vld [vmem:[%s626 + $0x50] sm:$0x1]
      %v679 = vsel %vm635, %v584, %v678
      %680 = vst [vmem:[%s626 + $0x50] sm:$0x1] %v679
      %v681 = vld [vmem:[%s626 + $0x54] sm:$0xf]
      %v682 = vsel %vm629, %v591, %v681
      %683 = vst [vmem:[%s626 + $0x54] sm:$0xf] %v682
      %684 = vst [vmem:[%s626 + $0x58] sm:$0xf] %v600
      %v685 = vld [vmem:[%s626 + $0x5c] sm:$0x1]
      %v686 = vsel %vm635, %v601, %v685
      %687 = vst [vmem:[%s626 + $0x5c] sm:$0x1] %v686
      %p688 = scmp.gt.s32.totalorder %s22, 0
      // Predicated region
      $region37: #{basic_block3d_forward.5} parent=35 // pred_check
        %p689 = pneg %p688
      $region38: #{basic_block3d_forward.5} parent=35 // pred_check_branch
        %691 = sbr.rel (%p689) target = $region40
      $region39: #{basic_block3d_forward.5} parent=35 // pred_region
        %v692 = vld [vmem:[%s363] sm:$0xf]
        %v693 = vld [vmem:[%s363 + $0x4] sm:$0xf]
        %v695 = vshrl.u32 %v692, 16
        %v697 = vrot.slane %v695, 7
        %v698 = vshll.u32 %v692, 16
        %v700 = vor.u32 %v697, %v698
        %v701 = vrot.slane %v697, 4
        %v703 = vshrl.u32 %v693, 16
        %v705 = vrot.slane %v703, 7
        %v706 = vshll.u32 %v693, 16
        %v708 = vor.u32 %v705, %v706
        %v709 = vsel %vm465, %v701, %v708
        %v710 = vrot.slane %v705, 4
        %v714 = vld [vmem:[#allocation2] sm:$0xf]
        %v715 = vsel %vm629, %v700, %v714
        %716 = vst [vmem:[#allocation2] sm:$0xf] %v715
        %717 = vst [vmem:[#allocation2 + $0x4] sm:$0xf] %v709
        %v718 = vld [vmem:[#allocation2 + $0x8] sm:$0x1]
        %v719 = vsel %vm635, %v710, %v718
        %720 = vst [vmem:[#allocation2 + $0x8] sm:$0x1] %v719
      $region40: #{basic_block3d_forward.5} parent=35 // pred_fallthru
        _
      %p721 = scmp.lt.s32.totalorder %s22, 1
      // Predicated region
      $region41: #{basic_block3d_forward.5} parent=35 // pred_check
        %p722 = pneg %p721
      $region42: #{basic_block3d_forward.5} parent=35 // pred_check_branch
        %724 = sbr.rel (%p722) target = $region44
      $region43: #{basic_block3d_forward.5} parent=35 // pred_region
        %v725 = vld [vmem:[%s391] sm:$0xf]
        %v726 = vld [vmem:[%s391 + $0x4] sm:$0xf]
        %v728 = vshrl.u32 %v725, 16
        %v730 = vrot.slane %v728, 7
        %v731 = vshll.u32 %v725, 16
        %v733 = vor.u32 %v730, %v731
        %v734 = vrot.slane %v730, 4
        %v736 = vshrl.u32 %v726, 16
        %v738 = vrot.slane %v736, 7
        %v739 = vshll.u32 %v726, 16
        %v741 = vor.u32 %v738, %v739
        %v742 = vsel %vm465, %v734, %v741
        %v743 = vrot.slane %v738, 4
        %s747 = scalar_lea.vmem [#allocation2], 108
        %v748 = vld [vmem:[%s747] sm:$0xf]
        %v749 = vsel %vm629, %v733, %v748
        %750 = vst [vmem:[%s747] sm:$0xf] %v749
        %751 = vst [vmem:[%s747 + $0x4] sm:$0xf] %v742
        %v752 = vld [vmem:[%s747 + $0x8] sm:$0x1]
        %v753 = vsel %vm635, %v743, %v752
        %754 = vst [vmem:[%s747 + $0x8] sm:$0x1] %v753
      $region44: #{basic_block3d_forward.5} parent=35 // pred_fallthru
        _
      %v755 = vld [vmem:[#allocation2] sm:$0xf]
      %v756 = vld [vmem:[#allocation2 + $0x4] sm:$0xf]
      %v757 = vld [vmem:[#allocation2 + $0xc] sm:$0xf]
      %v758 = vld [vmem:[#allocation2 + $0x10] sm:$0xf]
      %v759 = vld [vmem:[#allocation2 + $0x18] sm:$0xf]
      %v760 = vld [vmem:[#allocation2 + $0x1c] sm:$0xf]
      %v761 = vld [vmem:[#allocation2 + $0x24] sm:$0xf]
      %v762 = vld [vmem:[#allocation2 + $0x28] sm:$0xf]
      %v763 = vld [vmem:[#allocation2 + $0x30] sm:$0xf]
      %v764 = vld [vmem:[#allocation2 + $0x34] sm:$0xf]
      %v765 = vld [vmem:[#allocation2 + $0x3c] sm:$0xf]
      %v766 = vld [vmem:[#allocation2 + $0x40] sm:$0xf]
      %v767 = vld [vmem:[#allocation2 + $0x48] sm:$0xf]
      %v768 = vld [vmem:[#allocation2 + $0x4c] sm:$0xf]
      %v769 = vld [vmem:[#allocation2 + $0x54] sm:$0xf]
      %v770 = vld [vmem:[#allocation2 + $0x58] sm:$0xf]
      %v771 = vld [vmem:[%s3] sm:$0xff]
      %v772 = vld [vmem:[%s3 + $0x8] sm:$0xff]
      %v773 = vld [vmem:[%s3 + $0x10] sm:$0xff]
      %v774 = vld [vmem:[%s3 + $0x18] sm:$0xff]
      %v775 = vld [vmem:[%s3 + $0x20] sm:$0xff]
      %v776 = vld [vmem:[%s3 + $0x28] sm:$0xff]
      %v777 = vld [vmem:[%s3 + $0x30] sm:$0xff]
      %v778 = vld [vmem:[%s3 + $0x38] sm:$0xff]
      %v779 = vld [vmem:[%s3 + $0x40] sm:$0xff]
      %v780 = vld [vmem:[%s3 + $0x48] sm:$0xff]
      %v781 = vld [vmem:[%s3 + $0x50] sm:$0xff]
      %v782 = vld [vmem:[%s3 + $0x58] sm:$0xff]
      %v783 = vld [vmem:[%s3 + $0x60] sm:$0xff]
      %v784 = vld [vmem:[%s3 + $0x68] sm:$0xff]
      %v785 = vld [vmem:[%s3 + $0x70] sm:$0xff]
      %v786 = vld [vmem:[%s3 + $0x78] sm:$0xff]
      %v787 = vld [vmem:[#allocation2 + $0x8] sm:$0x1]
      %v788 = vld [vmem:[#allocation2 + $0x14] sm:$0x1]
      %v789 = vld [vmem:[#allocation2 + $0x20] sm:$0x1]
      %v790 = vld [vmem:[#allocation2 + $0x2c] sm:$0x1]
      %v791 = vld [vmem:[#allocation2 + $0x38] sm:$0x1]
      %v792 = vld [vmem:[#allocation2 + $0x44] sm:$0x1]
      %v793 = vld [vmem:[#allocation2 + $0x50] sm:$0x1]
      %v794 = vld [vmem:[#allocation2 + $0x5c] sm:$0x1]
      %vm795 = vsmask.f32 3328
      %vm796 = vsmask.f32 7440
      %vm797 = vmor %vm795, %vm796
      %v799 = vshrl.u32 %v755, 16
      %v801 = vrot.slane %v799, 4
      %v802 = vshll.u32 %v755, 16
      %v804 = vrot.slane %v802, 5
      %v805 = vor.u32 %v801, %v804
      %v806 = vrot.slane %v805, 4
      %v808 = vshll.u32 %v756, 16
      %v810 = vrot.slane %v808, 5
      %v811 = vsel %vm797, %v806, %v810
      %v812 = vshrl.u32 %v756, 16
      %v814 = vrot.slane %v812, 4
      %v815 = vor.u32 %v814, %v810
      %v816 = vrot.slane %v815, 4
      %v818 = vshll.u32 %v787, 16
      %v820 = vrot.slane %v818, 5
      %v821 = vsel %vm797, %v816, %v820
      %v823 = vshrl.u32 %v757, 16
      %v825 = vrot.slane %v823, 4
      %v826 = vshll.u32 %v757, 16
      %v828 = vrot.slane %v826, 5
      %v829 = vor.u32 %v825, %v828
      %v830 = vrot.slane %v829, 4
      %v832 = vshll.u32 %v758, 16
      %v834 = vrot.slane %v832, 5
      %v835 = vsel %vm797, %v830, %v834
      %v836 = vshrl.u32 %v758, 16
      %v838 = vrot.slane %v836, 4
      %v839 = vor.u32 %v838, %v834
      %v840 = vrot.slane %v839, 4
      %v842 = vshll.u32 %v788, 16
      %v844 = vrot.slane %v842, 5
      %v845 = vsel %vm797, %v840, %v844
      %v847 = vshrl.u32 %v759, 16
      %v849 = vrot.slane %v847, 4
      %v850 = vshll.u32 %v759, 16
      %v852 = vrot.slane %v850, 5
      %v853 = vor.u32 %v849, %v852
      %v854 = vrot.slane %v853, 4
      %v856 = vshll.u32 %v760, 16
      %v858 = vrot.slane %v856, 5
      %v859 = vsel %vm797, %v854, %v858
      %v860 = vshrl.u32 %v760, 16
      %v862 = vrot.slane %v860, 4
      %v863 = vor.u32 %v862, %v858
      %v864 = vrot.slane %v863, 4
      %v866 = vshll.u32 %v789, 16
      %v868 = vrot.slane %v866, 5
      %v869 = vsel %vm797, %v864, %v868
      %v871 = vshrl.u32 %v761, 16
      %v873 = vrot.slane %v871, 4
      %v874 = vshll.u32 %v761, 16
      %v876 = vrot.slane %v874, 5
      %v877 = vor.u32 %v873, %v876
      %v878 = vrot.slane %v877, 4
      %v880 = vshll.u32 %v762, 16
      %v882 = vrot.slane %v880, 5
      %v883 = vsel %vm797, %v878, %v882
      %v884 = vshrl.u32 %v762, 16
      %v886 = vrot.slane %v884, 4
      %v887 = vor.u32 %v886, %v882
      %v888 = vrot.slane %v887, 4
      %v890 = vshll.u32 %v790, 16
      %v892 = vrot.slane %v890, 5
      %v893 = vsel %vm797, %v888, %v892
      %v895 = vshrl.u32 %v763, 16
      %v897 = vrot.slane %v895, 4
      %v898 = vshll.u32 %v763, 16
      %v900 = vrot.slane %v898, 5
      %v901 = vor.u32 %v897, %v900
      %v902 = vrot.slane %v901, 4
      %v904 = vshll.u32 %v764, 16
      %v906 = vrot.slane %v904, 5
      %v907 = vsel %vm797, %v902, %v906
      %v908 = vshrl.u32 %v764, 16
      %v910 = vrot.slane %v908, 4
      %v911 = vor.u32 %v910, %v906
      %v912 = vrot.slane %v911, 4
      %v914 = vshll.u32 %v791, 16
      %v916 = vrot.slane %v914, 5
      %v917 = vsel %vm797, %v912, %v916
      %v919 = vshrl.u32 %v765, 16
      %v921 = vrot.slane %v919, 4
      %v922 = vshll.u32 %v765, 16
      %v924 = vrot.slane %v922, 5
      %v925 = vor.u32 %v921, %v924
      %v926 = vrot.slane %v925, 4
      %v928 = vshll.u32 %v766, 16
      %v930 = vrot.slane %v928, 5
      %v931 = vsel %vm797, %v926, %v930
      %v932 = vshrl.u32 %v766, 16
      %v934 = vrot.slane %v932, 4
      %v935 = vor.u32 %v934, %v930
      %v936 = vrot.slane %v935, 4
      %v938 = vshll.u32 %v792, 16
      %v940 = vrot.slane %v938, 5
      %v941 = vsel %vm797, %v936, %v940
      %v943 = vshrl.u32 %v767, 16
      %v945 = vrot.slane %v943, 4
      %v946 = vshll.u32 %v767, 16
      %v948 = vrot.slane %v946, 5
      %v949 = vor.u32 %v945, %v948
      %v950 = vrot.slane %v949, 4
      %v952 = vshll.u32 %v768, 16
      %v954 = vrot.slane %v952, 5
      %v955 = vsel %vm797, %v950, %v954
      %v956 = vshrl.u32 %v768, 16
      %v958 = vrot.slane %v956, 4
      %v959 = vor.u32 %v958, %v954
      %v960 = vrot.slane %v959, 4
      %v962 = vshll.u32 %v793, 16
      %v964 = vrot.slane %v962, 5
      %v965 = vsel %vm797, %v960, %v964
      %v967 = vshrl.u32 %v769, 16
      %v969 = vrot.slane %v967, 4
      %v970 = vshll.u32 %v769, 16
      %v972 = vrot.slane %v970, 5
      %v973 = vor.u32 %v969, %v972
      %v974 = vrot.slane %v973, 4
      %v976 = vshll.u32 %v770, 16
      %v978 = vrot.slane %v976, 5
      %v979 = vsel %vm797, %v974, %v978
      %v980 = vshrl.u32 %v770, 16
      %v982 = vrot.slane %v980, 4
      %v983 = vor.u32 %v982, %v978
      %v984 = vrot.slane %v983, 4
      %v986 = vshll.u32 %v794, 16
      %v988 = vrot.slane %v986, 5
      %v989 = vsel %vm797, %v984, %v988
      %s990 = scalar_lea.vmem %s3, 128
      %v991 = vld [vmem:[%s990] sm:$0xff]
      %v992 = vld [vmem:[%s990 + $0x8] sm:$0xff]
      %v993 = vld [vmem:[%s990 + $0x10] sm:$0xff]
      %v994 = vld [vmem:[%s990 + $0x18] sm:$0xff]
      %v995 = vld [vmem:[%s990 + $0x20] sm:$0xff]
      %v996 = vld [vmem:[%s990 + $0x28] sm:$0xff]
      %v997 = vld [vmem:[%s990 + $0x30] sm:$0xff]
      %v998 = vld [vmem:[%s990 + $0x38] sm:$0xff]
      %v999 = vld [vmem:[%s990 + $0x40] sm:$0xff]
      %v1000 = vld [vmem:[%s990 + $0x48] sm:$0xff]
      %v1001 = vld [vmem:[%s990 + $0x50] sm:$0xff]
      %v1002 = vld [vmem:[%s990 + $0x58] sm:$0xff]
      %v1003 = vld [vmem:[%s990 + $0x60] sm:$0xff]
      %v1004 = vld [vmem:[%s990 + $0x68] sm:$0xff]
      %v1005 = vld [vmem:[%s990 + $0x70] sm:$0xff]
      %v1006 = vld [vmem:[%s990 + $0x78] sm:$0xff]
      %v1007 = vunpack.c.l.b16 %v811
      %v1008 = vunpack.c.l.b16 %v821
      %v1009 = vunpack.c.l.b16 %v835
      %v1010 = vunpack.c.l.b16 %v845
      %v1011 = vunpack.c.l.b16 %v859
      %v1012 = vunpack.c.l.b16 %v869
      %v1013 = vunpack.c.l.b16 %v883
      %v1014 = vunpack.c.l.b16 %v893
      %v1015 = vunpack.c.l.b16 %v907
      %v1016 = vunpack.c.l.b16 %v917
      %v1017 = vunpack.c.l.b16 %v931
      %v1018 = vunpack.c.l.b16 %v941
      %v1019 = vunpack.c.l.b16 %v955
      %v1020 = vunpack.c.l.b16 %v965
      %v1021 = vunpack.c.l.b16 %v979
      %v1022 = vunpack.c.l.b16 %v989
      %v1023 = vpack.c.b16 %v1008, %v1007
      %v1024 = vpack.c.b16 %v1010, %v1009
      %v1025 = vpack.c.b16 %v1012, %v1011
      %v1026 = vpack.c.b16 %v1014, %v1013
      %v1027 = vpack.c.b16 %v1016, %v1015
      %v1028 = vpack.c.b16 %v1018, %v1017
      %v1029 = vpack.c.b16 %v1020, %v1019
      %v1030 = vpack.c.b16 %v1022, %v1021
      %v1055 = vunpack.c.l.b16 %v991
      %v1056 = vunpack.c.h.b16 %v991
      %v1057 = vunpack.c.l.b16 %v992
      %v1058 = vunpack.c.h.b16 %v992
      %v1059 = vunpack.c.l.b16 %v993
      %v1060 = vunpack.c.h.b16 %v993
      %v1061 = vunpack.c.l.b16 %v994
      %v1062 = vunpack.c.h.b16 %v994
      %v1063 = vunpack.c.l.b16 %v995
      %v1064 = vunpack.c.h.b16 %v995
      %v1065 = vunpack.c.l.b16 %v996
      %v1066 = vunpack.c.h.b16 %v996
      %v1067 = vunpack.c.l.b16 %v997
      %v1068 = vunpack.c.h.b16 %v997
      %v1069 = vunpack.c.l.b16 %v998
      %v1070 = vunpack.c.h.b16 %v998
      %v1071 = vunpack.c.l.b16 %v999
      %v1072 = vunpack.c.h.b16 %v999
      %v1073 = vunpack.c.l.b16 %v1000
      %v1074 = vunpack.c.h.b16 %v1000
      %v1075 = vunpack.c.l.b16 %v1001
      %v1076 = vunpack.c.h.b16 %v1001
      %v1077 = vunpack.c.l.b16 %v1002
      %v1078 = vunpack.c.h.b16 %v1002
      %v1079 = vunpack.c.l.b16 %v1003
      %v1080 = vunpack.c.h.b16 %v1003
      %v1081 = vunpack.c.l.b16 %v1004
      %v1082 = vunpack.c.h.b16 %v1004
      %v1083 = vunpack.c.l.b16 %v1005
      %v1084 = vunpack.c.h.b16 %v1005
      %v1085 = vunpack.c.l.b16 %v1006
      %v1086 = vunpack.c.h.b16 %v1006
      %v1087 = vpack.c.b16 %v1057, %v1055
      %v1088 = vpack.c.b16 %v1058, %v1056
      %v1089 = vpack.c.b16 %v1061, %v1059
      %v1090 = vpack.c.b16 %v1062, %v1060
      %v1091 = vpack.c.b16 %v1065, %v1063
      %v1092 = vpack.c.b16 %v1066, %v1064
      %v1093 = vpack.c.b16 %v1069, %v1067
      %v1094 = vpack.c.b16 %v1070, %v1068
      %v1095 = vpack.c.b16 %v1073, %v1071
      %v1096 = vpack.c.b16 %v1074, %v1072
      %v1097 = vpack.c.b16 %v1077, %v1075
      %v1098 = vpack.c.b16 %v1078, %v1076
      %v1099 = vpack.c.b16 %v1081, %v1079
      %v1100 = vpack.c.b16 %v1082, %v1080
      %v1101 = vpack.c.b16 %v1085, %v1083
      %v1102 = vpack.c.b16 %v1086, %v1084
      %1119 = vmatprep.subr.bf16.mxu0 %v1088
      %1120 = vmatpush1.bf16.msra.mxu0 %v1087
      %1121 = vmatprep.subr.bf16.mxu0 %v1090
      %1122 = vmatpush1.bf16.msra.mxu0 %v1089
      %1123 = vmatprep.subr.bf16.mxu0 %v1092
      %1124 = vmatpush1.bf16.msra.mxu0 %v1091
      %1125 = vmatprep.subr.bf16.mxu0 %v1094
      %1126 = vmatpush1.bf16.msra.mxu0 %v1093
      %1127 = vmatprep.subr.bf16.mxu0 %v1096
      %1128 = vmatpush1.bf16.msra.mxu0 %v1095
      %1129 = vmatprep.subr.bf16.mxu0 %v1098
      %1130 = vmatpush1.bf16.msra.mxu0 %v1097
      %1131 = vmatprep.subr.bf16.mxu0 %v1100
      %1132 = vmatpush1.bf16.msra.mxu0 %v1099
      %1133 = vmatprep.subr.bf16.mxu0 %v1102
      %1134 = vmatpush1.bf16.msra.mxu0 %v1101
      %1135 = vmatprep.subr.bf16.mxu0 0
      %1136 = vmatpush1.bf16.msra.mxu0 0
      %1137 = vmatprep.subr.bf16.mxu0 0
      %1138 = vmatpush1.bf16.msra.mxu0 0
      %1139 = vmatprep.subr.bf16.mxu0 0
      %1140 = vmatpush1.bf16.msra.mxu0 0
      %1141 = vmatprep.subr.bf16.mxu0 0
      %1142 = vmatpush1.bf16.msra.mxu0 0
      %1143 = vmatprep.subr.bf16.mxu0 0
      %1144 = vmatpush1.bf16.msra.mxu0 0
      %1145 = vmatprep.subr.bf16.mxu0 0
      %1146 = vmatpush1.bf16.msra.mxu0 0
      %1147 = vmatprep.subr.bf16.mxu0 0
      %1148 = vmatpush1.bf16.msra.mxu0 0
      %1149 = vmatprep.subr.bf16.mxu0 0
      %1150 = vmatpush1.bf16.msra.mxu0 0
      %1151 = vmatprep.mubr.bf16.mxu0 0
      %1152 = vmatmul.mubr.bf16.gmra.mrb[0].mxu0 %v1023
      %v1153 = vpop.f32.mrb[0].mxu0
      %v1154 = vadd.f32 0.0, %v1153
      %v1155 = vpop.f32.mrb[0].mxu0
      %v1156 = vadd.f32 0.0, %v1155
      %v1157 = vpop.f32.mrb[0].mxu0
      %v1158 = vadd.f32 0.0, %v1157
      %v1159 = vpop.f32.mrb[0].mxu0
      %v1160 = vadd.f32 0.0, %v1159
      %1161 = vmatprep.mubr.bf16.mxu0 0
      %1162 = vmatmul.mubr.bf16.gmra.mrb[0].mxu0 %v1024
      %v1163 = vpop.f32.mrb[0].mxu0
      %v1164 = vadd.f32 0.0, %v1163
      %v1165 = vpop.f32.mrb[0].mxu0
      %v1166 = vadd.f32 0.0, %v1165
      %v1167 = vpop.f32.mrb[0].mxu0
      %v1168 = vadd.f32 0.0, %v1167
      %v1169 = vpop.f32.mrb[0].mxu0
      %v1170 = vadd.f32 0.0, %v1169
      %1171 = vmatprep.mubr.bf16.mxu0 0
      %1172 = vmatmul.mubr.bf16.gmra.mrb[0].mxu0 %v1025
      %v1173 = vpop.f32.mrb[0].mxu0
      %v1174 = vadd.f32 0.0, %v1173
      %v1175 = vpop.f32.mrb[0].mxu0
      %v1176 = vadd.f32 0.0, %v1175
      %v1177 = vpop.f32.mrb[0].mxu0
      %v1178 = vadd.f32 0.0, %v1177
      %v1179 = vpop.f32.mrb[0].mxu0
      %v1180 = vadd.f32 0.0, %v1179
      %1181 = vmatprep.mubr.bf16.mxu0 0
      %1182 = vmatmul.mubr.bf16.gmra.mrb[0].mxu0 %v1026
      %v1183 = vpop.f32.mrb[0].mxu0
      %v1184 = vadd.f32 0.0, %v1183
      %v1185 = vpop.f32.mrb[0].mxu0
      %v1186 = vadd.f32 0.0, %v1185
      %v1187 = vpop.f32.mrb[0].mxu0
      %v1188 = vadd.f32 0.0, %v1187
      %v1189 = vpop.f32.mrb[0].mxu0
      %v1190 = vadd.f32 0.0, %v1189
      %1191 = vmatprep.mubr.bf16.mxu0 0
      %1192 = vmatmul.mubr.bf16.gmra.mrb[0].mxu0 %v1027
      %v1193 = vpop.f32.mrb[0].mxu0
      %v1194 = vadd.f32 0.0, %v1193
      %v1195 = vpop.f32.mrb[0].mxu0
      %v1196 = vadd.f32 0.0, %v1195
      %v1197 = vpop.f32.mrb[0].mxu0
      %v1198 = vadd.f32 0.0, %v1197
      %v1199 = vpop.f32.mrb[0].mxu0
      %v1200 = vadd.f32 0.0, %v1199
      %1201 = vmatprep.mubr.bf16.mxu0 0
      %1202 = vmatmul.mubr.bf16.gmra.mrb[0].mxu0 %v1028
      %v1203 = vpop.f32.mrb[0].mxu0
      %v1204 = vadd.f32 0.0, %v1203
      %v1205 = vpop.f32.mrb[0].mxu0
      %v1206 = vadd.f32 0.0, %v1205
      %v1207 = vpop.f32.mrb[0].mxu0
      %v1208 = vadd.f32 0.0, %v1207
      %v1209 = vpop.f32.mrb[0].mxu0
      %v1210 = vadd.f32 0.0, %v1209
      %1211 = vmatprep.mubr.bf16.mxu0 0
      %1212 = vmatmul.mubr.bf16.gmra.mrb[0].mxu0 %v1029
      %v1213 = vpop.f32.mrb[0].mxu0
      %v1214 = vadd.f32 0.0, %v1213
      %v1215 = vpop.f32.mrb[0].mxu0
      %v1216 = vadd.f32 0.0, %v1215
      %v1217 = vpop.f32.mrb[0].mxu0
      %v1218 = vadd.f32 0.0, %v1217
      %v1219 = vpop.f32.mrb[0].mxu0
      %v1220 = vadd.f32 0.0, %v1219
      %1221 = vmatprep.mubr.bf16.mxu0 0
      %1222 = vmatmul.mubr.bf16.gmra.mrb[0].mxu0 %v1030
      %v1223 = vpop.f32.mrb[0].mxu0
      %v1224 = vadd.f32 0.0, %v1223
      %v1225 = vpop.f32.mrb[0].mxu0
      %v1226 = vadd.f32 0.0, %v1225
      %v1227 = vpop.f32.mrb[0].mxu0
      %v1228 = vadd.f32 0.0, %v1227
      %v1229 = vpop.f32.mrb[0].mxu0
      %v1230 = vadd.f32 0.0, %v1229
      %1231 = vdwg.mxu0
      %v1248 = vunpack.c.l.b16 %v755
      %v1249 = vunpack.c.l.b16 %v756
      %v1250 = vunpack.c.l.b16 %v757
      %v1251 = vunpack.c.l.b16 %v758
      %v1252 = vunpack.c.l.b16 %v759
      %v1253 = vunpack.c.l.b16 %v760
      %v1254 = vunpack.c.l.b16 %v761
      %v1255 = vunpack.c.l.b16 %v762
      %v1256 = vunpack.c.l.b16 %v763
      %v1257 = vunpack.c.l.b16 %v764
      %v1258 = vunpack.c.l.b16 %v765
      %v1259 = vunpack.c.l.b16 %v766
      %v1260 = vunpack.c.l.b16 %v767
      %v1261 = vunpack.c.l.b16 %v768
      %v1262 = vunpack.c.l.b16 %v769
      %v1263 = vunpack.c.l.b16 %v770
      %v1264 = vpack.c.b16 %v1249, %v1248
      %v1265 = vpack.c.b16 %v1251, %v1250
      %v1266 = vpack.c.b16 %v1253, %v1252
      %v1267 = vpack.c.b16 %v1255, %v1254
      %v1268 = vpack.c.b16 %v1257, %v1256
      %v1269 = vpack.c.b16 %v1259, %v1258
      %v1270 = vpack.c.b16 %v1261, %v1260
      %v1271 = vpack.c.b16 %v1263, %v1262
      %v1296 = vunpack.c.l.b16 %v771
      %v1297 = vunpack.c.h.b16 %v771
      %v1298 = vunpack.c.l.b16 %v772
      %v1299 = vunpack.c.h.b16 %v772
      %v1300 = vunpack.c.l.b16 %v773
      %v1301 = vunpack.c.h.b16 %v773
      %v1302 = vunpack.c.l.b16 %v774
      %v1303 = vunpack.c.h.b16 %v774
      %v1304 = vunpack.c.l.b16 %v775
      %v1305 = vunpack.c.h.b16 %v775
      %v1306 = vunpack.c.l.b16 %v776
      %v1307 = vunpack.c.h.b16 %v776
      %v1308 = vunpack.c.l.b16 %v777
      %v1309 = vunpack.c.h.b16 %v777
      %v1310 = vunpack.c.l.b16 %v778
      %v1311 = vunpack.c.h.b16 %v778
      %v1312 = vunpack.c.l.b16 %v779
      %v1313 = vunpack.c.h.b16 %v779
      %v1314 = vunpack.c.l.b16 %v780
      %v1315 = vunpack.c.h.b16 %v780
      %v1316 = vunpack.c.l.b16 %v781
      %v1317 = vunpack.c.h.b16 %v781
      %v1318 = vunpack.c.l.b16 %v782
      %v1319 = vunpack.c.h.b16 %v782
      %v1320 = vunpack.c.l.b16 %v783
      %v1321 = vunpack.c.h.b16 %v783
      %v1322 = vunpack.c.l.b16 %v784
      %v1323 = vunpack.c.h.b16 %v784
      %v1324 = vunpack.c.l.b16 %v785
      %v1325 = vunpack.c.h.b16 %v785
      %v1326 = vunpack.c.l.b16 %v786
      %v1327 = vunpack.c.h.b16 %v786
      %v1328 = vpack.c.b16 %v1298, %v1296
      %v1329 = vpack.c.b16 %v1299, %v1297
      %v1330 = vpack.c.b16 %v1302, %v1300
      %v1331 = vpack.c.b16 %v1303, %v1301
      %v1332 = vpack.c.b16 %v1306, %v1304
      %v1333 = vpack.c.b16 %v1307, %v1305
      %v1334 = vpack.c.b16 %v1310, %v1308
      %v1335 = vpack.c.b16 %v1311, %v1309
      %v1336 = vpack.c.b16 %v1314, %v1312
      %v1337 = vpack.c.b16 %v1315, %v1313
      %v1338 = vpack.c.b16 %v1318, %v1316
      %v1339 = vpack.c.b16 %v1319, %v1317
      %v1340 = vpack.c.b16 %v1322, %v1320
      %v1341 = vpack.c.b16 %v1323, %v1321
      %v1342 = vpack.c.b16 %v1326, %v1324
      %v1343 = vpack.c.b16 %v1327, %v1325
      %1360 = vmatprep.subr.bf16.mxu0 %v1329
      %1361 = vmatpush1.bf16.msra.mxu0 %v1328
      %1362 = vmatprep.subr.bf16.mxu0 %v1331
      %1363 = vmatpush1.bf16.msra.mxu0 %v1330
      %1364 = vmatprep.subr.bf16.mxu0 %v1333
      %1365 = vmatpush1.bf16.msra.mxu0 %v1332
      %1366 = vmatprep.subr.bf16.mxu0 %v1335
      %1367 = vmatpush1.bf16.msra.mxu0 %v1334
      %1368 = vmatprep.subr.bf16.mxu0 %v1337
      %1369 = vmatpush1.bf16.msra.mxu0 %v1336
      %1370 = vmatprep.subr.bf16.mxu0 %v1339
      %1371 = vmatpush1.bf16.msra.mxu0 %v1338
      %1372 = vmatprep.subr.bf16.mxu0 %v1341
      %1373 = vmatpush1.bf16.msra.mxu0 %v1340
      %1374 = vmatprep.subr.bf16.mxu0 %v1343
      %1375 = vmatpush1.bf16.msra.mxu0 %v1342
      %1376 = vmatprep.subr.bf16.mxu0 0
      %1377 = vmatpush1.bf16.msra.mxu0 0
      %1378 = vmatprep.subr.bf16.mxu0 0
      %1379 = vmatpush1.bf16.msra.mxu0 0
      %1380 = vmatprep.subr.bf16.mxu0 0
      %1381 = vmatpush1.bf16.msra.mxu0 0
      %1382 = vmatprep.subr.bf16.mxu0 0
      %1383 = vmatpush1.bf16.msra.mxu0 0
      %1384 = vmatprep.subr.bf16.mxu0 0
      %1385 = vmatpush1.bf16.msra.mxu0 0
      %1386 = vmatprep.subr.bf16.mxu0 0
      %1387 = vmatpush1.bf16.msra.mxu0 0
      %1388 = vmatprep.subr.bf16.mxu0 0
      %1389 = vmatpush1.bf16.msra.mxu0 0
      %1390 = vmatprep.subr.bf16.mxu0 0
      %1391 = vmatpush1.bf16.msra.mxu0 0
      %1392 = vmatprep.mubr.bf16.mxu0 0
      %1393 = vmatmul.mubr.bf16.gmra.mrb[0].mxu0 %v1264
      %v1394 = vpop.f32.mrb[0].mxu0
      %v1395 = vadd.f32 %v1154, %v1394
      %v1396 = vpop.f32.mrb[0].mxu0
      %v1397 = vadd.f32 %v1156, %v1396
      %v1398 = vpop.f32.mrb[0].mxu0
      %v1399 = vadd.f32 %v1158, %v1398
      %v1400 = vpop.f32.mrb[0].mxu0
      %v1401 = vadd.f32 %v1160, %v1400
      %1402 = vmatprep.mubr.bf16.mxu0 0
      %1403 = vmatmul.mubr.bf16.gmra.mrb[0].mxu0 %v1265
      %v1404 = vpop.f32.mrb[0].mxu0
      %v1405 = vadd.f32 %v1164, %v1404
      %v1406 = vpop.f32.mrb[0].mxu0
      %v1407 = vadd.f32 %v1166, %v1406
      %v1408 = vpop.f32.mrb[0].mxu0
      %v1409 = vadd.f32 %v1168, %v1408
      %v1410 = vpop.f32.mrb[0].mxu0
      %v1411 = vadd.f32 %v1170, %v1410
      %1412 = vmatprep.mubr.bf16.mxu0 0
      %1413 = vmatmul.mubr.bf16.gmra.mrb[0].mxu0 %v1266
      %v1414 = vpop.f32.mrb[0].mxu0
      %v1415 = vadd.f32 %v1174, %v1414
      %v1416 = vpop.f32.mrb[0].mxu0
      %v1417 = vadd.f32 %v1176, %v1416
      %v1418 = vpop.f32.mrb[0].mxu0
      %v1419 = vadd.f32 %v1178, %v1418
      %v1420 = vpop.f32.mrb[0].mxu0
      %v1421 = vadd.f32 %v1180, %v1420
      %1422 = vmatprep.mubr.bf16.mxu0 0
      %1423 = vmatmul.mubr.bf16.gmra.mrb[0].mxu0 %v1267
      %v1424 = vpop.f32.mrb[0].mxu0
      %v1425 = vadd.f32 %v1184, %v1424
      %v1426 = vpop.f32.mrb[0].mxu0
      %v1427 = vadd.f32 %v1186, %v1426
      %v1428 = vpop.f32.mrb[0].mxu0
      %v1429 = vadd.f32 %v1188, %v1428
      %v1430 = vpop.f32.mrb[0].mxu0
      %v1431 = vadd.f32 %v1190, %v1430
      %1432 = vmatprep.mubr.bf16.mxu0 0
      %1433 = vmatmul.mubr.bf16.gmra.mrb[0].mxu0 %v1268
      %v1434 = vpop.f32.mrb[0].mxu0
      %v1435 = vadd.f32 %v1194, %v1434
      %v1436 = vpop.f32.mrb[0].mxu0
      %v1437 = vadd.f32 %v1196, %v1436
      %v1438 = vpop.f32.mrb[0].mxu0
      %v1439 = vadd.f32 %v1198, %v1438
      %v1440 = vpop.f32.mrb[0].mxu0
      %v1441 = vadd.f32 %v1200, %v1440
      %1442 = vmatprep.mubr.bf16.mxu0 0
      %1443 = vmatmul.mubr.bf16.gmra.mrb[0].mxu0 %v1269
      %v1444 = vpop.f32.mrb[0].mxu0
      %v1445 = vadd.f32 %v1204, %v1444
      %v1446 = vpop.f32.mrb[0].mxu0
      %v1447 = vadd.f32 %v1206, %v1446
      %v1448 = vpop.f32.mrb[0].mxu0
      %v1449 = vadd.f32 %v1208, %v1448
      %v1450 = vpop.f32.mrb[0].mxu0
      %v1451 = vadd.f32 %v1210, %v1450
      %1452 = vmatprep.mubr.bf16.mxu0 0
      %1453 = vmatmul.mubr.bf16.gmra.mrb[0].mxu0 %v1270
      %v1454 = vpop.f32.mrb[0].mxu0
      %v1455 = vadd.f32 %v1214, %v1454
      %v1456 = vpop.f32.mrb[0].mxu0
      %v1457 = vadd.f32 %v1216, %v1456
      %v1458 = vpop.f32.mrb[0].mxu0
      %v1459 = vadd.f32 %v1218, %v1458
      %v1460 = vpop.f32.mrb[0].mxu0
      %v1461 = vadd.f32 %v1220, %v1460
      %1462 = vmatprep.mubr.bf16.mxu0 0
      %1463 = vmatmul.mubr.bf16.gmra.mrb[0].mxu0 %v1271
      %v1464 = vpop.f32.mrb[0].mxu0
      %v1465 = vadd.f32 %v1224, %v1464
      %v1466 = vpop.f32.mrb[0].mxu0
      %v1467 = vadd.f32 %v1226, %v1466
      %v1468 = vpop.f32.mrb[0].mxu0
      %v1469 = vadd.f32 %v1228, %v1468
      %v1470 = vpop.f32.mrb[0].mxu0
      %v1471 = vadd.f32 %v1230, %v1470
      %1472 = vdwg.mxu0
      %v1473 = vld [vmem:[#allocation2] sm:$0xe]
      %v1474 = vld [vmem:[#allocation2 + $0xc] sm:$0xe]
      %v1475 = vld [vmem:[#allocation2 + $0x18] sm:$0xe]
      %v1476 = vld [vmem:[#allocation2 + $0x24] sm:$0xe]
      %v1477 = vld [vmem:[#allocation2 + $0x30] sm:$0xe]
      %v1478 = vld [vmem:[#allocation2 + $0x3c] sm:$0xe]
      %v1479 = vld [vmem:[#allocation2 + $0x48] sm:$0xe]
      %v1480 = vld [vmem:[#allocation2 + $0x54] sm:$0xe]
      %vm1497 = vcmask 1042432
      %vm1498 = vcmask 1046532
      %vm1499 = vmor %vm1497, %vm1498
      %v1500 = vrot.slane %v1473, 5
      %v1501 = vrot.slane %v1500, 4
      %v1502 = vrot.slane %v756, 5
      %v1503 = vsel %vm1499, %v1501, %v1502
      %v1504 = vrot.slane %v1502, 4
      %v1505 = vrot.slane %v787, 5
      %v1506 = vsel %vm1499, %v1504, %v1505
      %v1507 = vrot.slane %v1474, 5
      %v1508 = vrot.slane %v1507, 4
      %v1509 = vrot.slane %v758, 5
      %v1510 = vsel %vm1499, %v1508, %v1509
      %v1511 = vrot.slane %v1509, 4
      %v1512 = vrot.slane %v788, 5
      %v1513 = vsel %vm1499, %v1511, %v1512
      %v1514 = vrot.slane %v1475, 5
      %v1515 = vrot.slane %v1514, 4
      %v1516 = vrot.slane %v760, 5
      %v1517 = vsel %vm1499, %v1515, %v1516
      %v1518 = vrot.slane %v1516, 4
      %v1519 = vrot.slane %v789, 5
      %v1520 = vsel %vm1499, %v1518, %v1519
      %v1521 = vrot.slane %v1476, 5
      %v1522 = vrot.slane %v1521, 4
      %v1523 = vrot.slane %v762, 5
      %v1524 = vsel %vm1499, %v1522, %v1523
      %v1525 = vrot.slane %v1523, 4
      %v1526 = vrot.slane %v790, 5
      %v1527 = vsel %vm1499, %v1525, %v1526
      %v1528 = vrot.slane %v1477, 5
      %v1529 = vrot.slane %v1528, 4
      %v1530 = vrot.slane %v764, 5
      %v1531 = vsel %vm1499, %v1529, %v1530
      %v1532 = vrot.slane %v1530, 4
      %v1533 = vrot.slane %v791, 5
      %v1534 = vsel %vm1499, %v1532, %v1533
      %v1535 = vrot.slane %v1478, 5
      %v1536 = vrot.slane %v1535, 4
      %v1537 = vrot.slane %v766, 5
      %v1538 = vsel %vm1499, %v1536, %v1537
      %v1539 = vrot.slane %v1537, 4
      %v1540 = vrot.slane %v792, 5
      %v1541 = vsel %vm1499, %v1539, %v1540
      %v1542 = vrot.slane %v1479, 5
      %v1543 = vrot.slane %v1542, 4
      %v1544 = vrot.slane %v768, 5
      %v1545 = vsel %vm1499, %v1543, %v1544
      %v1546 = vrot.slane %v1544, 4
      %v1547 = vrot.slane %v793, 5
      %v1548 = vsel %vm1499, %v1546, %v1547
      %v1549 = vrot.slane %v1480, 5
      %v1550 = vrot.slane %v1549, 4
      %v1551 = vrot.slane %v770, 5
      %v1552 = vsel %vm1499, %v1550, %v1551
      %v1553 = vrot.slane %v1551, 4
      %v1554 = vrot.slane %v794, 5
      %v1555 = vsel %vm1499, %v1553, %v1554
      %s1556 = scalar_lea.vmem %s3, 256
      %v1557 = vld [vmem:[%s1556] sm:$0xff]
      %v1558 = vld [vmem:[%s1556 + $0x8] sm:$0xff]
      %v1559 = vld [vmem:[%s1556 + $0x10] sm:$0xff]
      %v1560 = vld [vmem:[%s1556 + $0x18] sm:$0xff]
      %v1561 = vld [vmem:[%s1556 + $0x20] sm:$0xff]
      %v1562 = vld [vmem:[%s1556 + $0x28] sm:$0xff]
      %v1563 = vld [vmem:[%s1556 + $0x30] sm:$0xff]
      %v1564 = vld [vmem:[%s1556 + $0x38] sm:$0xff]
      %v1565 = vld [vmem:[%s1556 + $0x40] sm:$0xff]
      %v1566 = vld [vmem:[%s1556 + $0x48] sm:$0xff]
      %v1567 = vld [vmem:[%s1556 + $0x50] sm:$0xff]
      %v1568 = vld [vmem:[%s1556 + $0x58] sm:$0xff]
      %v1569 = vld [vmem:[%s1556 + $0x60] sm:$0xff]
      %v1570 = vld [vmem:[%s1556 + $0x68] sm:$0xff]
      %v1571 = vld [vmem:[%s1556 + $0x70] sm:$0xff]
      %v1572 = vld [vmem:[%s1556 + $0x78] sm:$0xff]
      %v1573 = vunpack.c.l.b16 %v1503
      %v1574 = vunpack.c.l.b16 %v1506
      %v1575 = vunpack.c.l.b16 %v1510
      %v1576 = vunpack.c.l.b16 %v1513
      %v1577 = vunpack.c.l.b16 %v1517
      %v1578 = vunpack.c.l.b16 %v1520
      %v1579 = vunpack.c.l.b16 %v1524
      %v1580 = vunpack.c.l.b16 %v1527
      %v1581 = vunpack.c.l.b16 %v1531
      %v1582 = vunpack.c.l.b16 %v1534
      %v1583 = vunpack.c.l.b16 %v1538
      %v1584 = vunpack.c.l.b16 %v1541
      %v1585 = vunpack.c.l.b16 %v1545
      %v1586 = vunpack.c.l.b16 %v1548
      %v1587 = vunpack.c.l.b16 %v1552
      %v1588 = vunpack.c.l.b16 %v1555
      %v1589 = vpack.c.b16 %v1574, %v1573
      %v1590 = vpack.c.b16 %v1576, %v1575
      %v1591 = vpack.c.b16 %v1578, %v1577
      %v1592 = vpack.c.b16 %v1580, %v1579
      %v1593 = vpack.c.b16 %v1582, %v1581
      %v1594 = vpack.c.b16 %v1584, %v1583
      %v1595 = vpack.c.b16 %v1586, %v1585
      %v1596 = vpack.c.b16 %v1588, %v1587
      %v1621 = vunpack.c.l.b16 %v1557
      %v1622 = vunpack.c.h.b16 %v1557
      %v1623 = vunpack.c.l.b16 %v1558
      %v1624 = vunpack.c.h.b16 %v1558
      %v1625 = vunpack.c.l.b16 %v1559
      %v1626 = vunpack.c.h.b16 %v1559
      %v1627 = vunpack.c.l.b16 %v1560
      %v1628 = vunpack.c.h.b16 %v1560
      %v1629 = vunpack.c.l.b16 %v1561
      %v1630 = vunpack.c.h.b16 %v1561
      %v1631 = vunpack.c.l.b16 %v1562
      %v1632 = vunpack.c.h.b16 %v1562
      %v1633 = vunpack.c.l.b16 %v1563
      %v1634 = vunpack.c.h.b16 %v1563
      %v1635 = vunpack.c.l.b16 %v1564
      %v1636 = vunpack.c.h.b16 %v1564
      %v1637 = vunpack.c.l.b16 %v1565
      %v1638 = vunpack.c.h.b16 %v1565
      %v1639 = vunpack.c.l.b16 %v1566
      %v1640 = vunpack.c.h.b16 %v1566
      %v1641 = vunpack.c.l.b16 %v1567
      %v1642 = vunpack.c.h.b16 %v1567
      %v1643 = vunpack.c.l.b16 %v1568
      %v1644 = vunpack.c.h.b16 %v1568
      %v1645 = vunpack.c.l.b16 %v1569
      %v1646 = vunpack.c.h.b16 %v1569
      %v1647 = vunpack.c.l.b16 %v1570
      %v1648 = vunpack.c.h.b16 %v1570
      %v1649 = vunpack.c.l.b16 %v1571
      %v1650 = vunpack.c.h.b16 %v1571
      %v1651 = vunpack.c.l.b16 %v1572
      %v1652 = vunpack.c.h.b16 %v1572
      %v1653 = vpack.c.b16 %v1623, %v1621
      %v1654 = vpack.c.b16 %v1624, %v1622
      %v1655 = vpack.c.b16 %v1627, %v1625
      %v1656 = vpack.c.b16 %v1628, %v1626
      %v1657 = vpack.c.b16 %v1631, %v1629
      %v1658 = vpack.c.b16 %v1632, %v1630
      %v1659 = vpack.c.b16 %v1635, %v1633
      %v1660 = vpack.c.b16 %v1636, %v1634
      %v1661 = vpack.c.b16 %v1639, %v1637
      %v1662 = vpack.c.b16 %v1640, %v1638
      %v1663 = vpack.c.b16 %v1643, %v1641
      %v1664 = vpack.c.b16 %v1644, %v1642
      %v1665 = vpack.c.b16 %v1647, %v1645
      %v1666 = vpack.c.b16 %v1648, %v1646
      %v1667 = vpack.c.b16 %v1651, %v1649
      %v1668 = vpack.c.b16 %v1652, %v1650
      %1685 = vmatprep.subr.bf16.mxu0 %v1654
      %1686 = vmatpush1.bf16.msra.mxu0 %v1653
      %1687 = vmatprep.subr.bf16.mxu0 %v1656
      %1688 = vmatpush1.bf16.msra.mxu0 %v1655
      %1689 = vmatprep.subr.bf16.mxu0 %v1658
      %1690 = vmatpush1.bf16.msra.mxu0 %v1657
      %1691 = vmatprep.subr.bf16.mxu0 %v1660
      %1692 = vmatpush1.bf16.msra.mxu0 %v1659
      %1693 = vmatprep.subr.bf16.mxu0 %v1662
      %1694 = vmatpush1.bf16.msra.mxu0 %v1661
      %1695 = vmatprep.subr.bf16.mxu0 %v1664
      %1696 = vmatpush1.bf16.msra.mxu0 %v1663
      %1697 = vmatprep.subr.bf16.mxu0 %v1666
      %1698 = vmatpush1.bf16.msra.mxu0 %v1665
      %1699 = vmatprep.subr.bf16.mxu0 %v1668
      %1700 = vmatpush1.bf16.msra.mxu0 %v1667
      %1701 = vmatprep.subr.bf16.mxu0 0
      %1702 = vmatpush1.bf16.msra.mxu0 0
      %1703 = vmatprep.subr.bf16.mxu0 0
      %1704 = vmatpush1.bf16.msra.mxu0 0
      %1705 = vmatprep.subr.bf16.mxu0 0
      %1706 = vmatpush1.bf16.msra.mxu0 0
      %1707 = vmatprep.subr.bf16.mxu0 0
      %1708 = vmatpush1.bf16.msra.mxu0 0
      %1709 = vmatprep.subr.bf16.mxu0 0
      %1710 = vmatpush1.bf16.msra.mxu0 0
      %1711 = vmatprep.subr.bf16.mxu0 0
      %1712 = vmatpush1.bf16.msra.mxu0 0
      %1713 = vmatprep.subr.bf16.mxu0 0
      %1714 = vmatpush1.bf16.msra.mxu0 0
      %1715 = vmatprep.subr.bf16.mxu0 0
      %1716 = vmatpush1.bf16.msra.mxu0 0
      %1717 = vmatprep.mubr.bf16.mxu0 0
      %1718 = vmatmul.mubr.bf16.gmra.mrb[0].mxu0 %v1589
      %v1719 = vpop.f32.mrb[0].mxu0
      %v1720 = vadd.f32 0.0, %v1719
      %v1721 = vpop.f32.mrb[0].mxu0
      %v1722 = vadd.f32 0.0, %v1721
      %v1723 = vpop.f32.mrb[0].mxu0
      %v1724 = vadd.f32 0.0, %v1723
      %v1725 = vpop.f32.mrb[0].mxu0
      %v1726 = vadd.f32 0.0, %v1725
      %1727 = vmatprep.mubr.bf16.mxu0 0
      %1728 = vmatmul.mubr.bf16.gmra.mrb[0].mxu0 %v1590
      %v1729 = vpop.f32.mrb[0].mxu0
      %v1730 = vadd.f32 0.0, %v1729
      %v1731 = vpop.f32.mrb[0].mxu0
      %v1732 = vadd.f32 0.0, %v1731
      %v1733 = vpop.f32.mrb[0].mxu0
      %v1734 = vadd.f32 0.0, %v1733
      %v1735 = vpop.f32.mrb[0].mxu0
      %v1736 = vadd.f32 0.0, %v1735
      %1737 = vmatprep.mubr.bf16.mxu0 0
      %1738 = vmatmul.mubr.bf16.gmra.mrb[0].mxu0 %v1591
      %v1739 = vpop.f32.mrb[0].mxu0
      %v1740 = vadd.f32 0.0, %v1739
      %v1741 = vpop.f32.mrb[0].mxu0
      %v1742 = vadd.f32 0.0, %v1741
      %v1743 = vpop.f32.mrb[0].mxu0
      %v1744 = vadd.f32 0.0, %v1743
      %v1745 = vpop.f32.mrb[0].mxu0
      %v1746 = vadd.f32 0.0, %v1745
      %1747 = vmatprep.mubr.bf16.mxu0 0
      %1748 = vmatmul.mubr.bf16.gmra.mrb[0].mxu0 %v1592
      %v1749 = vpop.f32.mrb[0].mxu0
      %v1750 = vadd.f32 0.0, %v1749
      %v1751 = vpop.f32.mrb[0].mxu0
      %v1752 = vadd.f32 0.0, %v1751
      %v1753 = vpop.f32.mrb[0].mxu0
      %v1754 = vadd.f32 0.0, %v1753
      %v1755 = vpop.f32.mrb[0].mxu0
      %v1756 = vadd.f32 0.0, %v1755
      %1757 = vmatprep.mubr.bf16.mxu0 0
      %1758 = vmatmul.mubr.bf16.gmra.mrb[0].mxu0 %v1593
      %v1759 = vpop.f32.mrb[0].mxu0
      %v1760 = vadd.f32 0.0, %v1759
      %v1761 = vpop.f32.mrb[0].mxu0
      %v1762 = vadd.f32 0.0, %v1761
      %v1763 = vpop.f32.mrb[0].mxu0
      %v1764 = vadd.f32 0.0, %v1763
      %v1765 = vpop.f32.mrb[0].mxu0
      %v1766 = vadd.f32 0.0, %v1765
      %1767 = vmatprep.mubr.bf16.mxu0 0
      %1768 = vmatmul.mubr.bf16.gmra.mrb[0].mxu0 %v1594
      %v1769 = vpop.f32.mrb[0].mxu0
      %v1770 = vadd.f32 0.0, %v1769
      %v1771 = vpop.f32.mrb[0].mxu0
      %v1772 = vadd.f32 0.0, %v1771
      %v1773 = vpop.f32.mrb[0].mxu0
      %v1774 = vadd.f32 0.0, %v1773
      %v1775 = vpop.f32.mrb[0].mxu0
      %v1776 = vadd.f32 0.0, %v1775
      %1777 = vmatprep.mubr.bf16.mxu0 0
      %1778 = vmatmul.mubr.bf16.gmra.mrb[0].mxu0 %v1595
      %v1779 = vpop.f32.mrb[0].mxu0
      %v1780 = vadd.f32 0.0, %v1779
      %v1781 = vpop.f32.mrb[0].mxu0
      %v1782 = vadd.f32 0.0, %v1781
      %v1783 = vpop.f32.mrb[0].mxu0
      %v1784 = vadd.f32 0.0, %v1783
      %v1785 = vpop.f32.mrb[0].mxu0
      %v1786 = vadd.f32 0.0, %v1785
      %1787 = vmatprep.mubr.bf16.mxu0 0
      %1788 = vmatmul.mubr.bf16.gmra.mrb[0].mxu0 %v1596
      %v1789 = vpop.f32.mrb[0].mxu0
      %v1790 = vadd.f32 0.0, %v1789
      %v1791 = vpop.f32.mrb[0].mxu0
      %v1792 = vadd.f32 0.0, %v1791
      %v1793 = vpop.f32.mrb[0].mxu0
      %v1794 = vadd.f32 0.0, %v1793
      %v1795 = vpop.f32.mrb[0].mxu0
      %v1796 = vadd.f32 0.0, %v1795
      %1797 = vdwg.mxu0
      %v1798 = vadd.f32 %v1395, %v1720
      %v1799 = vadd.f32 %v1397, %v1722
      %v1800 = vadd.f32 %v1399, %v1724
      %v1801 = vadd.f32 %v1401, %v1726
      %v1802 = vadd.f32 %v1405, %v1730
      %v1803 = vadd.f32 %v1407, %v1732
      %v1804 = vadd.f32 %v1409, %v1734
      %v1805 = vadd.f32 %v1411, %v1736
      %v1806 = vadd.f32 %v1415, %v1740
      %v1807 = vadd.f32 %v1417, %v1742
      %v1808 = vadd.f32 %v1419, %v1744
      %v1809 = vadd.f32 %v1421, %v1746
      %v1810 = vadd.f32 %v1425, %v1750
      %v1811 = vadd.f32 %v1427, %v1752
      %v1812 = vadd.f32 %v1429, %v1754
      %v1813 = vadd.f32 %v1431, %v1756
      %v1814 = vadd.f32 %v1435, %v1760
      %v1815 = vadd.f32 %v1437, %v1762
      %v1816 = vadd.f32 %v1439, %v1764
      %v1817 = vadd.f32 %v1441, %v1766
      %v1818 = vadd.f32 %v1445, %v1770
      %v1819 = vadd.f32 %v1447, %v1772
      %v1820 = vadd.f32 %v1449, %v1774
      %v1821 = vadd.f32 %v1451, %v1776
      %v1822 = vadd.f32 %v1455, %v1780
      %v1823 = vadd.f32 %v1457, %v1782
      %v1824 = vadd.f32 %v1459, %v1784
      %v1825 = vadd.f32 %v1461, %v1786
      %v1826 = vadd.f32 %v1465, %v1790
      %v1827 = vadd.f32 %v1467, %v1792
      %v1828 = vadd.f32 %v1469, %v1794
      %v1829 = vadd.f32 %v1471, %v1796
      %v1830 = vld [vmem:[%s626] sm:$0xf]
      %v1831 = vld [vmem:[%s626 + $0x4] sm:$0xf]
      %v1832 = vld [vmem:[%s626 + $0xc] sm:$0xf]
      %v1833 = vld [vmem:[%s626 + $0x10] sm:$0xf]
      %v1834 = vld [vmem:[%s626 + $0x18] sm:$0xf]
      %v1835 = vld [vmem:[%s626 + $0x1c] sm:$0xf]
      %v1836 = vld [vmem:[%s626 + $0x24] sm:$0xf]
      %v1837 = vld [vmem:[%s626 + $0x28] sm:$0xf]
      %v1838 = vld [vmem:[%s626 + $0x30] sm:$0xf]
      %v1839 = vld [vmem:[%s626 + $0x34] sm:$0xf]
      %v1840 = vld [vmem:[%s626 + $0x3c] sm:$0xf]
      %v1841 = vld [vmem:[%s626 + $0x40] sm:$0xf]
      %v1842 = vld [vmem:[%s626 + $0x48] sm:$0xf]
      %v1843 = vld [vmem:[%s626 + $0x4c] sm:$0xf]
      %v1844 = vld [vmem:[%s626 + $0x54] sm:$0xf]
      %v1845 = vld [vmem:[%s626 + $0x58] sm:$0xf]
      %s1846 = scalar_lea.vmem %s3, 384
      %v1847 = vld [vmem:[%s1846] sm:$0xff]
      %v1848 = vld [vmem:[%s1846 + $0x8] sm:$0xff]
      %v1849 = vld [vmem:[%s1846 + $0x10] sm:$0xff]
      %v1850 = vld [vmem:[%s1846 + $0x18] sm:$0xff]
      %v1851 = vld [vmem:[%s1846 + $0x20] sm:$0xff]
      %v1852 = vld [vmem:[%s1846 + $0x28] sm:$0xff]
      %v1853 = vld [vmem:[%s1846 + $0x30] sm:$0xff]
      %v1854 = vld [vmem:[%s1846 + $0x38] sm:$0xff]
      %v1855 = vld [vmem:[%s1846 + $0x40] sm:$0xff]
      %v1856 = vld [vmem:[%s1846 + $0x48] sm:$0xff]
      %v1857 = vld [vmem:[%s1846 + $0x50] sm:$0xff]
      %v1858 = vld [vmem:[%s1846 + $0x58] sm:$0xff]
      %v1859 = vld [vmem:[%s1846 + $0x60] sm:$0xff]
      %v1860 = vld [vmem:[%s1846 + $0x68] sm:$0xff]
      %v1861 = vld [vmem:[%s1846 + $0x70] sm:$0xff]
      %v1862 = vld [vmem:[%s1846 + $0x78] sm:$0xff]
      %v1879 = vunpack.c.l.b16 %v1830
      %v1880 = vunpack.c.l.b16 %v1831
      %v1881 = vunpack.c.l.b16 %v1832
      %v1882 = vunpack.c.l.b16 %v1833
      %v1883 = vunpack.c.l.b16 %v1834
      %v1884 = vunpack.c.l.b16 %v1835
      %v1885 = vunpack.c.l.b16 %v1836
      %v1886 = vunpack.c.l.b16 %v1837
      %v1887 = vunpack.c.l.b16 %v1838
      %v1888 = vunpack.c.l.b16 %v1839
      %v1889 = vunpack.c.l.b16 %v1840
      %v1890 = vunpack.c.l.b16 %v1841
      %v1891 = vunpack.c.l.b16 %v1842
      %v1892 = vunpack.c.l.b16 %v1843
      %v1893 = vunpack.c.l.b16 %v1844
      %v1894 = vunpack.c.l.b16 %v1845
      %v1895 = vpack.c.b16 %v1880, %v1879
      %v1896 = vpack.c.b16 %v1882, %v1881
      %v1897 = vpack.c.b16 %v1884, %v1883
      %v1898 = vpack.c.b16 %v1886, %v1885
      %v1899 = vpack.c.b16 %v1888, %v1887
      %v1900 = vpack.c.b16 %v1890, %v1889
      %v1901 = vpack.c.b16 %v1892, %v1891
      %v1902 = vpack.c.b16 %v1894, %v1893
      %v1927 = vunpack.c.l.b16 %v1847
      %v1928 = vunpack.c.h.b16 %v1847
      %v1929 = vunpack.c.l.b16 %v1848
      %v1930 = vunpack.c.h.b16 %v1848
      %v1931 = vunpack.c.l.b16 %v1849
      %v1932 = vunpack.c.h.b16 %v1849
      %v1933 = vunpack.c.l.b16 %v1850
      %v1934 = vunpack.c.h.b16 %v1850
      %v1935 = vunpack.c.l.b16 %v1851
      %v1936 = vunpack.c.h.b16 %v1851
      %v1937 = vunpack.c.l.b16 %v1852
      %v1938 = vunpack.c.h.b16 %v1852
      %v1939 = vunpack.c.l.b16 %v1853
      %v1940 = vunpack.c.h.b16 %v1853
      %v1941 = vunpack.c.l.b16 %v1854
      %v1942 = vunpack.c.h.b16 %v1854
      %v1943 = vunpack.c.l.b16 %v1855
      %v1944 = vunpack.c.h.b16 %v1855
      %v1945 = vunpack.c.l.b16 %v1856
      %v1946 = vunpack.c.h.b16 %v1856
      %v1947 = vunpack.c.l.b16 %v1857
      %v1948 = vunpack.c.h.b16 %v1857
      %v1949 = vunpack.c.l.b16 %v1858
      %v1950 = vunpack.c.h.b16 %v1858
      %v1951 = vunpack.c.l.b16 %v1859
      %v1952 = vunpack.c.h.b16 %v1859
      %v1953 = vunpack.c.l.b16 %v1860
      %v1954 = vunpack.c.h.b16 %v1860
      %v1955 = vunpack.c.l.b16 %v1861
      %v1956 = vunpack.c.h.b16 %v1861
      %v1957 = vunpack.c.l.b16 %v1862
      %v1958 = vunpack.c.h.b16 %v1862
      %v1959 = vpack.c.b16 %v1929, %v1927
      %v1960 = vpack.c.b16 %v1930, %v1928
      %v1961 = vpack.c.b16 %v1933, %v1931
      %v1962 = vpack.c.b16 %v1934, %v1932
      %v1963 = vpack.c.b16 %v1937, %v1935
      %v1964 = vpack.c.b16 %v1938, %v1936
      %v1965 = vpack.c.b16 %v1941, %v1939
      %v1966 = vpack.c.b16 %v1942, %v1940
      %v1967 = vpack.c.b16 %v1945, %v1943
      %v1968 = vpack.c.b16 %v1946, %v1944
      %v1969 = vpack.c.b16 %v1949, %v1947
      %v1970 = vpack.c.b16 %v1950, %v1948
      %v1971 = vpack.c.b16 %v1953, %v1951
      %v1972 = vpack.c.b16 %v1954, %v1952
      %v1973 = vpack.c.b16 %v1957, %v1955
      %v1974 = vpack.c.b16 %v1958, %v1956
      %1991 = vmatprep.subr.bf16.mxu0 %v1960
      %1992 = vmatpush1.bf16.msra.mxu0 %v1959
      %1993 = vmatprep.subr.bf16.mxu0 %v1962
      %1994 = vmatpush1.bf16.msra.mxu0 %v1961
      %1995 = vmatprep.subr.bf16.mxu0 %v1964
      %1996 = vmatpush1.bf16.msra.mxu0 %v1963
      %1997 = vmatprep.subr.bf16.mxu0 %v1966
      %1998 = vmatpush1.bf16.msra.mxu0 %v1965
      %1999 = vmatprep.subr.bf16.mxu0 %v1968
      %2000 = vmatpush1.bf16.msra.mxu0 %v1967
      %2001 = vmatprep.subr.bf16.mxu0 %v1970
      %2002 = vmatpush1.bf16.msra.mxu0 %v1969
      %2003 = vmatprep.subr.bf16.mxu0 %v1972
      %2004 = vmatpush1.bf16.msra.mxu0 %v1971
      %2005 = vmatprep.subr.bf16.mxu0 %v1974
      %2006 = vmatpush1.bf16.msra.mxu0 %v1973
      %2007 = vmatprep.subr.bf16.mxu0 0
      %2008 = vmatpush1.bf16.msra.mxu0 0
      %2009 = vmatprep.subr.bf16.mxu0 0
      %2010 = vmatpush1.bf16.msra.mxu0 0
      %2011 = vmatprep.subr.bf16.mxu0 0
      %2012 = vmatpush1.bf16.msra.mxu0 0
      %2013 = vmatprep.subr.bf16.mxu0 0
      %2014 = vmatpush1.bf16.msra.mxu0 0
      %2015 = vmatprep.subr.bf16.mxu0 0
      %2016 = vmatpush1.bf16.msra.mxu0 0
      %2017 = vmatprep.subr.bf16.mxu0 0
      %2018 = vmatpush1.bf16.msra.mxu0 0
      %2019 = vmatprep.subr.bf16.mxu0 0
      %2020 = vmatpush1.bf16.msra.mxu0 0
      %2021 = vmatprep.subr.bf16.mxu0 0
      %2022 = vmatpush1.bf16.msra.mxu0 0
      %2023 = vmatprep.mubr.bf16.mxu0 0
      %2024 = vmatmul.mubr.bf16.gmra.mrb[0].mxu0 %v1895
      %v2025 = vpop.f32.mrb[0].mxu0
      %v2026 = vadd.f32 0.0, %v2025
      %v2027 = vpop.f32.mrb[0].mxu0
      %v2028 = vadd.f32 0.0, %v2027
      %v2029 = vpop.f32.mrb[0].mxu0
      %v2030 = vadd.f32 0.0, %v2029
      %v2031 = vpop.f32.mrb[0].mxu0
      %v2032 = vadd.f32 0.0, %v2031
      %2033 = vmatprep.mubr.bf16.mxu0 0
      %2034 = vmatmul.mubr.bf16.gmra.mrb[0].mxu0 %v1896
      %v2035 = vpop.f32.mrb[0].mxu0
      %v2036 = vadd.f32 0.0, %v2035
      %v2037 = vpop.f32.mrb[0].mxu0
      %v2038 = vadd.f32 0.0, %v2037
      %v2039 = vpop.f32.mrb[0].mxu0
      %v2040 = vadd.f32 0.0, %v2039
      %v2041 = vpop.f32.mrb[0].mxu0
      %v2042 = vadd.f32 0.0, %v2041
      %2043 = vmatprep.mubr.bf16.mxu0 0
      %2044 = vmatmul.mubr.bf16.gmra.mrb[0].mxu0 %v1897
      %v2045 = vpop.f32.mrb[0].mxu0
      %v2046 = vadd.f32 0.0, %v2045
      %v2047 = vpop.f32.mrb[0].mxu0
      %v2048 = vadd.f32 0.0, %v2047
      %v2049 = vpop.f32.mrb[0].mxu0
      %v2050 = vadd.f32 0.0, %v2049
      %v2051 = vpop.f32.mrb[0].mxu0
      %v2052 = vadd.f32 0.0, %v2051
      %2053 = vmatprep.mubr.bf16.mxu0 0
      %2054 = vmatmul.mubr.bf16.gmra.mrb[0].mxu0 %v1898
      %v2055 = vpop.f32.mrb[0].mxu0
      %v2056 = vadd.f32 0.0, %v2055
      %v2057 = vpop.f32.mrb[0].mxu0
      %v2058 = vadd.f32 0.0, %v2057
      %v2059 = vpop.f32.mrb[0].mxu0
      %v2060 = vadd.f32 0.0, %v2059
      %v2061 = vpop.f32.mrb[0].mxu0
      %v2062 = vadd.f32 0.0, %v2061
      %2063 = vmatprep.mubr.bf16.mxu0 0
      %2064 = vmatmul.mubr.bf16.gmra.mrb[0].mxu0 %v1899
      %v2065 = vpop.f32.mrb[0].mxu0
      %v2066 = vadd.f32 0.0, %v2065
      %v2067 = vpop.f32.mrb[0].mxu0
      %v2068 = vadd.f32 0.0, %v2067
      %v2069 = vpop.f32.mrb[0].mxu0
      %v2070 = vadd.f32 0.0, %v2069
      %v2071 = vpop.f32.mrb[0].mxu0
      %v2072 = vadd.f32 0.0, %v2071
      %2073 = vmatprep.mubr.bf16.mxu0 0
      %2074 = vmatmul.mubr.bf16.gmra.mrb[0].mxu0 %v1900
      %v2075 = vpop.f32.mrb[0].mxu0
      %v2076 = vadd.f32 0.0, %v2075
      %v2077 = vpop.f32.mrb[0].mxu0
      %v2078 = vadd.f32 0.0, %v2077
      %v2079 = vpop.f32.mrb[0].mxu0
      %v2080 = vadd.f32 0.0, %v2079
      %v2081 = vpop.f32.mrb[0].mxu0
      %v2082 = vadd.f32 0.0, %v2081
      %2083 = vmatprep.mubr.bf16.mxu0 0
      %2084 = vmatmul.mubr.bf16.gmra.mrb[0].mxu0 %v1901
      %v2085 = vpop.f32.mrb[0].mxu0
      %v2086 = vadd.f32 0.0, %v2085
      %v2087 = vpop.f32.mrb[0].mxu0
      %v2088 = vadd.f32 0.0, %v2087
      %v2089 = vpop.f32.mrb[0].mxu0
      %v2090 = vadd.f32 0.0, %v2089
      %v2091 = vpop.f32.mrb[0].mxu0
      %v2092 = vadd.f32 0.0, %v2091
      %2093 = vmatprep.mubr.bf16.mxu0 0
      %2094 = vmatmul.mubr.bf16.gmra.mrb[0].mxu0 %v1902
      %v2095 = vpop.f32.mrb[0].mxu0
      %v2096 = vadd.f32 0.0, %v2095
      %v2097 = vpop.f32.mrb[0].mxu0
      %v2098 = vadd.f32 0.0, %v2097
      %v2099 = vpop.f32.mrb[0].mxu0
      %v2100 = vadd.f32 0.0, %v2099
      %v2101 = vpop.f32.mrb[0].mxu0
      %v2102 = vadd.f32 0.0, %v2101
      %2103 = vdwg.mxu0
      %v2104 = vadd.f32 %v1798, %v2026
      %v2105 = vadd.f32 %v1799, %v2028
      %v2106 = vadd.f32 %v1800, %v2030
      %v2107 = vadd.f32 %v1801, %v2032
      %v2108 = vadd.f32 %v1802, %v2036
      %v2109 = vadd.f32 %v1803, %v2038
      %v2110 = vadd.f32 %v1804, %v2040
      %v2111 = vadd.f32 %v1805, %v2042
      %v2112 = vadd.f32 %v1806, %v2046
      %v2113 = vadd.f32 %v1807, %v2048
      %v2114 = vadd.f32 %v1808, %v2050
      %v2115 = vadd.f32 %v1809, %v2052
      %v2116 = vadd.f32 %v1810, %v2056
      %v2117 = vadd.f32 %v1811, %v2058
      %v2118 = vadd.f32 %v1812, %v2060
      %v2119 = vadd.f32 %v1813, %v2062
      %v2120 = vadd.f32 %v1814, %v2066
      %v2121 = vadd.f32 %v1815, %v2068
      %v2122 = vadd.f32 %v1816, %v2070
      %v2123 = vadd.f32 %v1817, %v2072
      %v2124 = vadd.f32 %v1818, %v2076
      %v2125 = vadd.f32 %v1819, %v2078
      %v2126 = vadd.f32 %v1820, %v2080
      %v2127 = vadd.f32 %v1821, %v2082
      %v2128 = vadd.f32 %v1822, %v2086
      %v2129 = vadd.f32 %v1823, %v2088
      %v2130 = vadd.f32 %v1824, %v2090
      %v2131 = vadd.f32 %v1825, %v2092
      %v2132 = vadd.f32 %v1826, %v2096
      %v2133 = vadd.f32 %v1827, %v2098
      %v2134 = vadd.f32 %v1828, %v2100
      %v2135 = vadd.f32 %v1829, %v2102
      %v2136 = vld [vmem:[%s626] sm:$0xf]
      %v2137 = vld [vmem:[%s626 + $0x4] sm:$0xf]
      %v2138 = vld [vmem:[%s626 + $0x8] sm:$0x1]
      %v2139 = vld [vmem:[%s626 + $0xc] sm:$0xf]
      %v2140 = vld [vmem:[%s626 + $0x10] sm:$0xf]
      %v2141 = vld [vmem:[%s626 + $0x14] sm:$0x1]
      %v2142 = vld [vmem:[%s626 + $0x18] sm:$0xf]
      %v2143 = vld [vmem:[%s626 + $0x1c] sm:$0xf]
      %v2144 = vld [vmem:[%s626 + $0x20] sm:$0x1]
      %v2145 = vld [vmem:[%s626 + $0x24] sm:$0xf]
      %v2146 = vld [vmem:[%s626 + $0x28] sm:$0xf]
      %v2147 = vld [vmem:[%s626 + $0x2c] sm:$0x1]
      %v2148 = vld [vmem:[%s626 + $0x30] sm:$0xf]
      %v2149 = vld [vmem:[%s626 + $0x34] sm:$0xf]
      %v2150 = vld [vmem:[%s626 + $0x38] sm:$0x1]
      %v2151 = vld [vmem:[%s626 + $0x3c] sm:$0xf]
      %v2152 = vld [vmem:[%s626 + $0x40] sm:$0xf]
      %v2153 = vld [vmem:[%s626 + $0x44] sm:$0x1]
      %v2154 = vld [vmem:[%s626 + $0x48] sm:$0xf]
      %v2155 = vld [vmem:[%s626 + $0x4c] sm:$0xf]
      %v2156 = vld [vmem:[%s626 + $0x50] sm:$0x1]
      %v2157 = vld [vmem:[%s626 + $0x54] sm:$0xf]
      %v2158 = vld [vmem:[%s626 + $0x58] sm:$0xf]
      %v2159 = vld [vmem:[%s626 + $0x5c] sm:$0x1]
      %v2161 = vshrl.u32 %v2136, 16
      %v2163 = vrot.slane %v2161, 4
      %v2164 = vshll.u32 %v2136, 16
      %v2166 = vrot.slane %v2164, 5
      %v2167 = vor.u32 %v2163, %v2166
      %v2168 = vrot.slane %v2167, 4
      %v2170 = vshll.u32 %v2137, 16
      %v2172 = vrot.slane %v2170, 5
      %v2173 = vsel %vm797, %v2168, %v2172
      %v2174 = vshrl.u32 %v2137, 16
      %v2176 = vrot.slane %v2174, 4
      %v2177 = vor.u32 %v2176, %v2172
      %v2178 = vrot.slane %v2177, 4
      %v2180 = vshll.u32 %v2138, 16
      %v2182 = vrot.slane %v2180, 5
      %v2183 = vsel %vm797, %v2178, %v2182
      %v2185 = vshrl.u32 %v2139, 16
      %v2187 = vrot.slane %v2185, 4
      %v2188 = vshll.u32 %v2139, 16
      %v2190 = vrot.slane %v2188, 5
      %v2191 = vor.u32 %v2187, %v2190
      %v2192 = vrot.slane %v2191, 4
      %v2194 = vshll.u32 %v2140, 16
      %v2196 = vrot.slane %v2194, 5
      %v2197 = vsel %vm797, %v2192, %v2196
      %v2198 = vshrl.u32 %v2140, 16
      %v2200 = vrot.slane %v2198, 4
      %v2201 = vor.u32 %v2200, %v2196
      %v2202 = vrot.slane %v2201, 4
      %v2204 = vshll.u32 %v2141, 16
      %v2206 = vrot.slane %v2204, 5
      %v2207 = vsel %vm797, %v2202, %v2206
      %v2209 = vshrl.u32 %v2142, 16
      %v2211 = vrot.slane %v2209, 4
      %v2212 = vshll.u32 %v2142, 16
      %v2214 = vrot.slane %v2212, 5
      %v2215 = vor.u32 %v2211, %v2214
      %v2216 = vrot.slane %v2215, 4
      %v2218 = vshll.u32 %v2143, 16
      %v2220 = vrot.slane %v2218, 5
      %v2221 = vsel %vm797, %v2216, %v2220
      %v2222 = vshrl.u32 %v2143, 16
      %v2224 = vrot.slane %v2222, 4
      %v2225 = vor.u32 %v2224, %v2220
      %v2226 = vrot.slane %v2225, 4
      %v2228 = vshll.u32 %v2144, 16
      %v2230 = vrot.slane %v2228, 5
      %v2231 = vsel %vm797, %v2226, %v2230
      %v2233 = vshrl.u32 %v2145, 16
      %v2235 = vrot.slane %v2233, 4
      %v2236 = vshll.u32 %v2145, 16
      %v2238 = vrot.slane %v2236, 5
      %v2239 = vor.u32 %v2235, %v2238
      %v2240 = vrot.slane %v2239, 4
      %v2242 = vshll.u32 %v2146, 16
      %v2244 = vrot.slane %v2242, 5
      %v2245 = vsel %vm797, %v2240, %v2244
      %v2246 = vshrl.u32 %v2146, 16
      %v2248 = vrot.slane %v2246, 4
      %v2249 = vor.u32 %v2248, %v2244
      %v2250 = vrot.slane %v2249, 4
      %v2252 = vshll.u32 %v2147, 16
      %v2254 = vrot.slane %v2252, 5
      %v2255 = vsel %vm797, %v2250, %v2254
      %v2257 = vshrl.u32 %v2148, 16
      %v2259 = vrot.slane %v2257, 4
      %v2260 = vshll.u32 %v2148, 16
      %v2262 = vrot.slane %v2260, 5
      %v2263 = vor.u32 %v2259, %v2262
      %v2264 = vrot.slane %v2263, 4
      %v2266 = vshll.u32 %v2149, 16
      %v2268 = vrot.slane %v2266, 5
      %v2269 = vsel %vm797, %v2264, %v2268
      %v2270 = vshrl.u32 %v2149, 16
      %v2272 = vrot.slane %v2270, 4
      %v2273 = vor.u32 %v2272, %v2268
      %v2274 = vrot.slane %v2273, 4
      %v2276 = vshll.u32 %v2150, 16
      %v2278 = vrot.slane %v2276, 5
      %v2279 = vsel %vm797, %v2274, %v2278
      %v2281 = vshrl.u32 %v2151, 16
      %v2283 = vrot.slane %v2281, 4
      %v2284 = vshll.u32 %v2151, 16
      %v2286 = vrot.slane %v2284, 5
      %v2287 = vor.u32 %v2283, %v2286
      %v2288 = vrot.slane %v2287, 4
      %v2290 = vshll.u32 %v2152, 16
      %v2292 = vrot.slane %v2290, 5
      %v2293 = vsel %vm797, %v2288, %v2292
      %v2294 = vshrl.u32 %v2152, 16
      %v2296 = vrot.slane %v2294, 4
      %v2297 = vor.u32 %v2296, %v2292
      %v2298 = vrot.slane %v2297, 4
      %v2300 = vshll.u32 %v2153, 16
      %v2302 = vrot.slane %v2300, 5
      %v2303 = vsel %vm797, %v2298, %v2302
      %v2305 = vshrl.u32 %v2154, 16
      %v2307 = vrot.slane %v2305, 4
      %v2308 = vshll.u32 %v2154, 16
      %v2310 = vrot.slane %v2308, 5
      %v2311 = vor.u32 %v2307, %v2310
      %v2312 = vrot.slane %v2311, 4
      %v2314 = vshll.u32 %v2155, 16
      %v2316 = vrot.slane %v2314, 5
      %v2317 = vsel %vm797, %v2312, %v2316
      %v2318 = vshrl.u32 %v2155, 16
      %v2320 = vrot.slane %v2318, 4
      %v2321 = vor.u32 %v2320, %v2316
      %v2322 = vrot.slane %v2321, 4
      %v2324 = vshll.u32 %v2156, 16
      %v2326 = vrot.slane %v2324, 5
      %v2327 = vsel %vm797, %v2322, %v2326
      %v2329 = vshrl.u32 %v2157, 16
      %v2331 = vrot.slane %v2329, 4
      %v2332 = vshll.u32 %v2157, 16
      %v2334 = vrot.slane %v2332, 5
      %v2335 = vor.u32 %v2331, %v2334
      %v2336 = vrot.slane %v2335, 4
      %v2338 = vshll.u32 %v2158, 16
      %v2340 = vrot.slane %v2338, 5
      %v2341 = vsel %vm797, %v2336, %v2340
      %v2342 = vshrl.u32 %v2158, 16
      %v2344 = vrot.slane %v2342, 4
      %v2345 = vor.u32 %v2344, %v2340
      %v2346 = vrot.slane %v2345, 4
      %v2348 = vshll.u32 %v2159, 16
      %v2350 = vrot.slane %v2348, 5
      %v2351 = vsel %vm797, %v2346, %v2350
      %s2352 = scalar_lea.vmem %s3, 512
      %v2353 = vld [vmem:[%s2352] sm:$0xff]
      %v2354 = vld [vmem:[%s2352 + $0x8] sm:$0xff]
      %v2355 = vld [vmem:[%s2352 + $0x10] sm:$0xff]
      %v2356 = vld [vmem:[%s2352 + $0x18] sm:$0xff]
      %v2357 = vld [vmem:[%s2352 + $0x20] sm:$0xff]
      %v2358 = vld [vmem:[%s2352 + $0x28] sm:$0xff]
      %v2359 = vld [vmem:[%s2352 + $0x30] sm:$0xff]
      %v2360 = vld [vmem:[%s2352 + $0x38] sm:$0xff]
      %v2361 = vld [vmem:[%s2352 + $0x40] sm:$0xff]
      %v2362 = vld [vmem:[%s2352 + $0x48] sm:$0xff]
      %v2363 = vld [vmem:[%s2352 + $0x50] sm:$0xff]
      %v2364 = vld [vmem:[%s2352 + $0x58] sm:$0xff]
      %v2365 = vld [vmem:[%s2352 + $0x60] sm:$0xff]
      %v2366 = vld [vmem:[%s2352 + $0x68] sm:$0xff]
      %v2367 = vld [vmem:[%s2352 + $0x70] sm:$0xff]
      %v2368 = vld [vmem:[%s2352 + $0x78] sm:$0xff]
      %v2369 = vunpack.c.l.b16 %v2173
      %v2370 = vunpack.c.l.b16 %v2183
      %v2371 = vunpack.c.l.b16 %v2197
      %v2372 = vunpack.c.l.b16 %v2207
      %v2373 = vunpack.c.l.b16 %v2221
      %v2374 = vunpack.c.l.b16 %v2231
      %v2375 = vunpack.c.l.b16 %v2245
      %v2376 = vunpack.c.l.b16 %v2255
      %v2377 = vunpack.c.l.b16 %v2269
      %v2378 = vunpack.c.l.b16 %v2279
      %v2379 = vunpack.c.l.b16 %v2293
      %v2380 = vunpack.c.l.b16 %v2303
      %v2381 = vunpack.c.l.b16 %v2317
      %v2382 = vunpack.c.l.b16 %v2327
      %v2383 = vunpack.c.l.b16 %v2341
      %v2384 = vunpack.c.l.b16 %v2351
      %v2385 = vpack.c.b16 %v2370, %v2369
      %v2386 = vpack.c.b16 %v2372, %v2371
      %v2387 = vpack.c.b16 %v2374, %v2373
      %v2388 = vpack.c.b16 %v2376, %v2375
      %v2389 = vpack.c.b16 %v2378, %v2377
      %v2390 = vpack.c.b16 %v2380, %v2379
      %v2391 = vpack.c.b16 %v2382, %v2381
      %v2392 = vpack.c.b16 %v2384, %v2383
      %v2417 = vunpack.c.l.b16 %v2353
      %v2418 = vunpack.c.h.b16 %v2353
      %v2419 = vunpack.c.l.b16 %v2354
      %v2420 = vunpack.c.h.b16 %v2354
      %v2421 = vunpack.c.l.b16 %v2355
      %v2422 = vunpack.c.h.b16 %v2355
      %v2423 = vunpack.c.l.b16 %v2356
      %v2424 = vunpack.c.h.b16 %v2356
      %v2425 = vunpack.c.l.b16 %v2357
      %v2426 = vunpack.c.h.b16 %v2357
      %v2427 = vunpack.c.l.b16 %v2358
      %v2428 = vunpack.c.h.b16 %v2358
      %v2429 = vunpack.c.l.b16 %v2359
      %v2430 = vunpack.c.h.b16 %v2359
      %v2431 = vunpack.c.l.b16 %v2360
      %v2432 = vunpack.c.h.b16 %v2360
      %v2433 = vunpack.c.l.b16 %v2361
      %v2434 = vunpack.c.h.b16 %v2361
      %v2435 = vunpack.c.l.b16 %v2362
      %v2436 = vunpack.c.h.b16 %v2362
      %v2437 = vunpack.c.l.b16 %v2363
      %v2438 = vunpack.c.h.b16 %v2363
      %v2439 = vunpack.c.l.b16 %v2364
      %v2440 = vunpack.c.h.b16 %v2364
      %v2441 = vunpack.c.l.b16 %v2365
      %v2442 = vunpack.c.h.b16 %v2365
      %v2443 = vunpack.c.l.b16 %v2366
      %v2444 = vunpack.c.h.b16 %v2366
      %v2445 = vunpack.c.l.b16 %v2367
      %v2446 = vunpack.c.h.b16 %v2367
      %v2447 = vunpack.c.l.b16 %v2368
      %v2448 = vunpack.c.h.b16 %v2368
      %v2449 = vpack.c.b16 %v2419, %v2417
      %v2450 = vpack.c.b16 %v2420, %v2418
      %v2451 = vpack.c.b16 %v2423, %v2421
      %v2452 = vpack.c.b16 %v2424, %v2422
      %v2453 = vpack.c.b16 %v2427, %v2425
      %v2454 = vpack.c.b16 %v2428, %v2426
      %v2455 = vpack.c.b16 %v2431, %v2429
      %v2456 = vpack.c.b16 %v2432, %v2430
      %v2457 = vpack.c.b16 %v2435, %v2433
      %v2458 = vpack.c.b16 %v2436, %v2434
      %v2459 = vpack.c.b16 %v2439, %v2437
      %v2460 = vpack.c.b16 %v2440, %v2438
      %v2461 = vpack.c.b16 %v2443, %v2441
      %v2462 = vpack.c.b16 %v2444, %v2442
      %v2463 = vpack.c.b16 %v2447, %v2445
      %v2464 = vpack.c.b16 %v2448, %v2446
      %2481 = vmatprep.subr.bf16.mxu0 %v2450
      %2482 = vmatpush1.bf16.msra.mxu0 %v2449
      %2483 = vmatprep.subr.bf16.mxu0 %v2452
      %2484 = vmatpush1.bf16.msra.mxu0 %v2451
      %2485 = vmatprep.subr.bf16.mxu0 %v2454
      %2486 = vmatpush1.bf16.msra.mxu0 %v2453
      %2487 = vmatprep.subr.bf16.mxu0 %v2456
      %2488 = vmatpush1.bf16.msra.mxu0 %v2455
      %2489 = vmatprep.subr.bf16.mxu0 %v2458
      %2490 = vmatpush1.bf16.msra.mxu0 %v2457
      %2491 = vmatprep.subr.bf16.mxu0 %v2460
      %2492 = vmatpush1.bf16.msra.mxu0 %v2459
      %2493 = vmatprep.subr.bf16.mxu0 %v2462
      %2494 = vmatpush1.bf16.msra.mxu0 %v2461
      %2495 = vmatprep.subr.bf16.mxu0 %v2464
      %2496 = vmatpush1.bf16.msra.mxu0 %v2463
      %2497 = vmatprep.subr.bf16.mxu0 0
      %2498 = vmatpush1.bf16.msra.mxu0 0
      %2499 = vmatprep.subr.bf16.mxu0 0
      %2500 = vmatpush1.bf16.msra.mxu0 0
      %2501 = vmatprep.subr.bf16.mxu0 0
      %2502 = vmatpush1.bf16.msra.mxu0 0
      %2503 = vmatprep.subr.bf16.mxu0 0
      %2504 = vmatpush1.bf16.msra.mxu0 0
      %2505 = vmatprep.subr.bf16.mxu0 0
      %2506 = vmatpush1.bf16.msra.mxu0 0
      %2507 = vmatprep.subr.bf16.mxu0 0
      %2508 = vmatpush1.bf16.msra.mxu0 0
      %2509 = vmatprep.subr.bf16.mxu0 0
      %2510 = vmatpush1.bf16.msra.mxu0 0
      %2511 = vmatprep.subr.bf16.mxu0 0
      %2512 = vmatpush1.bf16.msra.mxu0 0
      %2513 = vmatprep.mubr.bf16.mxu0 0
      %2514 = vmatmul.mubr.bf16.gmra.mrb[0].mxu0 %v2385
      %v2515 = vpop.f32.mrb[0].mxu0
      %v2516 = vadd.f32 0.0, %v2515
      %v2517 = vpop.f32.mrb[0].mxu0
      %v2518 = vadd.f32 0.0, %v2517
      %v2519 = vpop.f32.mrb[0].mxu0
      %v2520 = vadd.f32 0.0, %v2519
      %v2521 = vpop.f32.mrb[0].mxu0
      %v2522 = vadd.f32 0.0, %v2521
      %2523 = vmatprep.mubr.bf16.mxu0 0
      %2524 = vmatmul.mubr.bf16.gmra.mrb[0].mxu0 %v2386
      %v2525 = vpop.f32.mrb[0].mxu0
      %v2526 = vadd.f32 0.0, %v2525
      %v2527 = vpop.f32.mrb[0].mxu0
      %v2528 = vadd.f32 0.0, %v2527
      %v2529 = vpop.f32.mrb[0].mxu0
      %v2530 = vadd.f32 0.0, %v2529
      %v2531 = vpop.f32.mrb[0].mxu0
      %v2532 = vadd.f32 0.0, %v2531
      %2533 = vmatprep.mubr.bf16.mxu0 0
      %2534 = vmatmul.mubr.bf16.gmra.mrb[0].mxu0 %v2387
      %v2535 = vpop.f32.mrb[0].mxu0
      %v2536 = vadd.f32 0.0, %v2535
      %v2537 = vpop.f32.mrb[0].mxu0
      %v2538 = vadd.f32 0.0, %v2537
      %v2539 = vpop.f32.mrb[0].mxu0
      %v2540 = vadd.f32 0.0, %v2539
      %v2541 = vpop.f32.mrb[0].mxu0
      %v2542 = vadd.f32 0.0, %v2541
      %2543 = vmatprep.mubr.bf16.mxu0 0
      %2544 = vmatmul.mubr.bf16.gmra.mrb[0].mxu0 %v2388
      %v2545 = vpop.f32.mrb[0].mxu0
      %v2546 = vadd.f32 0.0, %v2545
      %v2547 = vpop.f32.mrb[0].mxu0
      %v2548 = vadd.f32 0.0, %v2547
      %v2549 = vpop.f32.mrb[0].mxu0
      %v2550 = vadd.f32 0.0, %v2549
      %v2551 = vpop.f32.mrb[0].mxu0
      %v2552 = vadd.f32 0.0, %v2551
      %2553 = vmatprep.mubr.bf16.mxu0 0
      %2554 = vmatmul.mubr.bf16.gmra.mrb[0].mxu0 %v2389
      %v2555 = vpop.f32.mrb[0].mxu0
      %v2556 = vadd.f32 0.0, %v2555
      %v2557 = vpop.f32.mrb[0].mxu0
      %v2558 = vadd.f32 0.0, %v2557
      %v2559 = vpop.f32.mrb[0].mxu0
      %v2560 = vadd.f32 0.0, %v2559
      %v2561 = vpop.f32.mrb[0].mxu0
      %v2562 = vadd.f32 0.0, %v2561
      %2563 = vmatprep.mubr.bf16.mxu0 0
      %2564 = vmatmul.mubr.bf16.gmra.mrb[0].mxu0 %v2390
      %v2565 = vpop.f32.mrb[0].mxu0
      %v2566 = vadd.f32 0.0, %v2565
      %v2567 = vpop.f32.mrb[0].mxu0
      %v2568 = vadd.f32 0.0, %v2567
      %v2569 = vpop.f32.mrb[0].mxu0
      %v2570 = vadd.f32 0.0, %v2569
      %v2571 = vpop.f32.mrb[0].mxu0
      %v2572 = vadd.f32 0.0, %v2571
      %2573 = vmatprep.mubr.bf16.mxu0 0
      %2574 = vmatmul.mubr.bf16.gmra.mrb[0].mxu0 %v2391
      %v2575 = vpop.f32.mrb[0].mxu0
      %v2576 = vadd.f32 0.0, %v2575
      %v2577 = vpop.f32.mrb[0].mxu0
      %v2578 = vadd.f32 0.0, %v2577
      %v2579 = vpop.f32.mrb[0].mxu0
      %v2580 = vadd.f32 0.0, %v2579
      %v2581 = vpop.f32.mrb[0].mxu0
      %v2582 = vadd.f32 0.0, %v2581
      %2583 = vmatprep.mubr.bf16.mxu0 0
      %2584 = vmatmul.mubr.bf16.gmra.mrb[0].mxu0 %v2392
      %v2585 = vpop.f32.mrb[0].mxu0
      %v2586 = vadd.f32 0.0, %v2585
      %v2587 = vpop.f32.mrb[0].mxu0
      %v2588 = vadd.f32 0.0, %v2587
      %v2589 = vpop.f32.mrb[0].mxu0
      %v2590 = vadd.f32 0.0, %v2589
      %v2591 = vpop.f32.mrb[0].mxu0
      %v2592 = vadd.f32 0.0, %v2591
      %2593 = vdwg.mxu0
      %v2594 = vadd.f32 %v2104, %v2516
      %v2595 = vadd.f32 %v2105, %v2518
      %v2596 = vadd.f32 %v2106, %v2520
      %v2597 = vadd.f32 %v2107, %v2522
      %v2598 = vadd.f32 %v2108, %v2526
      %v2599 = vadd.f32 %v2109, %v2528
      %v2600 = vadd.f32 %v2110, %v2530
      %v2601 = vadd.f32 %v2111, %v2532
      %v2602 = vadd.f32 %v2112, %v2536
      %v2603 = vadd.f32 %v2113, %v2538
      %v2604 = vadd.f32 %v2114, %v2540
      %v2605 = vadd.f32 %v2115, %v2542
      %v2606 = vadd.f32 %v2116, %v2546
      %v2607 = vadd.f32 %v2117, %v2548
      %v2608 = vadd.f32 %v2118, %v2550
      %v2609 = vadd.f32 %v2119, %v2552
      %v2610 = vadd.f32 %v2120, %v2556
      %v2611 = vadd.f32 %v2121, %v2558
      %v2612 = vadd.f32 %v2122, %v2560
      %v2613 = vadd.f32 %v2123, %v2562
      %v2614 = vadd.f32 %v2124, %v2566
      %v2615 = vadd.f32 %v2125, %v2568
      %v2616 = vadd.f32 %v2126, %v2570
      %v2617 = vadd.f32 %v2127, %v2572
      %v2618 = vadd.f32 %v2128, %v2576
      %v2619 = vadd.f32 %v2129, %v2578
      %v2620 = vadd.f32 %v2130, %v2580
      %v2621 = vadd.f32 %v2131, %v2582
      %v2622 = vadd.f32 %v2132, %v2586
      %v2623 = vadd.f32 %v2133, %v2588
      %v2624 = vadd.f32 %v2134, %v2590
      %v2625 = vadd.f32 %v2135, %v2592
      %v2626 = vld [vmem:[%s626] sm:$0xe]
      %v2627 = vld [vmem:[%s626 + $0xc] sm:$0xe]
      %v2628 = vld [vmem:[%s626 + $0x18] sm:$0xe]
      %v2629 = vld [vmem:[%s626 + $0x24] sm:$0xe]
      %v2630 = vld [vmem:[%s626 + $0x30] sm:$0xe]
      %v2631 = vld [vmem:[%s626 + $0x3c] sm:$0xe]
      %v2632 = vld [vmem:[%s626 + $0x48] sm:$0xe]
      %v2633 = vld [vmem:[%s626 + $0x54] sm:$0xe]
      %v2658 = vrot.slane %v2626, 5
      %v2659 = vrot.slane %v2658, 4
      %v2660 = vrot.slane %v2137, 5
      %v2661 = vsel %vm1499, %v2659, %v2660
      %v2662 = vrot.slane %v2660, 4
      %v2663 = vrot.slane %v2138, 5
      %v2664 = vsel %vm1499, %v2662, %v2663
      %v2665 = vrot.slane %v2627, 5
      %v2666 = vrot.slane %v2665, 4
      %v2667 = vrot.slane %v2140, 5
      %v2668 = vsel %vm1499, %v2666, %v2667
      %v2669 = vrot.slane %v2667, 4
      %v2670 = vrot.slane %v2141, 5
      %v2671 = vsel %vm1499, %v2669, %v2670
      %v2672 = vrot.slane %v2628, 5
      %v2673 = vrot.slane %v2672, 4
      %v2674 = vrot.slane %v2143, 5
      %v2675 = vsel %vm1499, %v2673, %v2674
      %v2676 = vrot.slane %v2674, 4
      %v2677 = vrot.slane %v2144, 5
      %v2678 = vsel %vm1499, %v2676, %v2677
      %v2679 = vrot.slane %v2629, 5
      %v2680 = vrot.slane %v2679, 4
      %v2681 = vrot.slane %v2146, 5
      %v2682 = vsel %vm1499, %v2680, %v2681
      %v2683 = vrot.slane %v2681, 4
      %v2684 = vrot.slane %v2147, 5
      %v2685 = vsel %vm1499, %v2683, %v2684
      %v2686 = vrot.slane %v2630, 5
      %v2687 = vrot.slane %v2686, 4
      %v2688 = vrot.slane %v2149, 5
      %v2689 = vsel %vm1499, %v2687, %v2688
      %v2690 = vrot.slane %v2688, 4
      %v2691 = vrot.slane %v2150, 5
      %v2692 = vsel %vm1499, %v2690, %v2691
      %v2693 = vrot.slane %v2631, 5
      %v2694 = vrot.slane %v2693, 4
      %v2695 = vrot.slane %v2152, 5
      %v2696 = vsel %vm1499, %v2694, %v2695
      %v2697 = vrot.slane %v2695, 4
      %v2698 = vrot.slane %v2153, 5
      %v2699 = vsel %vm1499, %v2697, %v2698
      %v2700 = vrot.slane %v2632, 5
      %v2701 = vrot.slane %v2700, 4
      %v2702 = vrot.slane %v2155, 5
      %v2703 = vsel %vm1499, %v2701, %v2702
      %v2704 = vrot.slane %v2702, 4
      %v2705 = vrot.slane %v2156, 5
      %v2706 = vsel %vm1499, %v2704, %v2705
      %v2707 = vrot.slane %v2633, 5
      %v2708 = vrot.slane %v2707, 4
      %v2709 = vrot.slane %v2158, 5
      %v2710 = vsel %vm1499, %v2708, %v2709
      %v2711 = vrot.slane %v2709, 4
      %v2712 = vrot.slane %v2159, 5
      %v2713 = vsel %vm1499, %v2711, %v2712
      %s2714 = scalar_lea.vmem %s3, 640
      %v2715 = vld [vmem:[%s2714] sm:$0xff]
      %v2716 = vld [vmem:[%s2714 + $0x8] sm:$0xff]
      %v2717 = vld [vmem:[%s2714 + $0x10] sm:$0xff]
      %v2718 = vld [vmem:[%s2714 + $0x18] sm:$0xff]
      %v2719 = vld [vmem:[%s2714 + $0x20] sm:$0xff]
      %v2720 = vld [vmem:[%s2714 + $0x28] sm:$0xff]
      %v2721 = vld [vmem:[%s2714 + $0x30] sm:$0xff]
      %v2722 = vld [vmem:[%s2714 + $0x38] sm:$0xff]
      %v2723 = vld [vmem:[%s2714 + $0x40] sm:$0xff]
      %v2724 = vld [vmem:[%s2714 + $0x48] sm:$0xff]
      %v2725 = vld [vmem:[%s2714 + $0x50] sm:$0xff]
      %v2726 = vld [vmem:[%s2714 + $0x58] sm:$0xff]
      %v2727 = vld [vmem:[%s2714 + $0x60] sm:$0xff]
      %v2728 = vld [vmem:[%s2714 + $0x68] sm:$0xff]
      %v2729 = vld [vmem:[%s2714 + $0x70] sm:$0xff]
      %v2730 = vld [vmem:[%s2714 + $0x78] sm:$0xff]
      %v2731 = vunpack.c.l.b16 %v2661
      %v2732 = vunpack.c.l.b16 %v2664
      %v2733 = vunpack.c.l.b16 %v2668
      %v2734 = vunpack.c.l.b16 %v2671
      %v2735 = vunpack.c.l.b16 %v2675
      %v2736 = vunpack.c.l.b16 %v2678
      %v2737 = vunpack.c.l.b16 %v2682
      %v2738 = vunpack.c.l.b16 %v2685
      %v2739 = vunpack.c.l.b16 %v2689
      %v2740 = vunpack.c.l.b16 %v2692
      %v2741 = vunpack.c.l.b16 %v2696
      %v2742 = vunpack.c.l.b16 %v2699
      %v2743 = vunpack.c.l.b16 %v2703
      %v2744 = vunpack.c.l.b16 %v2706
      %v2745 = vunpack.c.l.b16 %v2710
      %v2746 = vunpack.c.l.b16 %v2713
      %v2747 = vpack.c.b16 %v2732, %v2731
      %v2748 = vpack.c.b16 %v2734, %v2733
      %v2749 = vpack.c.b16 %v2736, %v2735
      %v2750 = vpack.c.b16 %v2738, %v2737
      %v2751 = vpack.c.b16 %v2740, %v2739
      %v2752 = vpack.c.b16 %v2742, %v2741
      %v2753 = vpack.c.b16 %v2744, %v2743
      %v2754 = vpack.c.b16 %v2746, %v2745
      %v2779 = vunpack.c.l.b16 %v2715
      %v2780 = vunpack.c.h.b16 %v2715
      %v2781 = vunpack.c.l.b16 %v2716
      %v2782 = vunpack.c.h.b16 %v2716
      %v2783 = vunpack.c.l.b16 %v2717
      %v2784 = vunpack.c.h.b16 %v2717
      %v2785 = vunpack.c.l.b16 %v2718
      %v2786 = vunpack.c.h.b16 %v2718
      %v2787 = vunpack.c.l.b16 %v2719
      %v2788 = vunpack.c.h.b16 %v2719
      %v2789 = vunpack.c.l.b16 %v2720
      %v2790 = vunpack.c.h.b16 %v2720
      %v2791 = vunpack.c.l.b16 %v2721
      %v2792 = vunpack.c.h.b16 %v2721
      %v2793 = vunpack.c.l.b16 %v2722
      %v2794 = vunpack.c.h.b16 %v2722
      %v2795 = vunpack.c.l.b16 %v2723
      %v2796 = vunpack.c.h.b16 %v2723
      %v2797 = vunpack.c.l.b16 %v2724
      %v2798 = vunpack.c.h.b16 %v2724
      %v2799 = vunpack.c.l.b16 %v2725
      %v2800 = vunpack.c.h.b16 %v2725
      %v2801 = vunpack.c.l.b16 %v2726
      %v2802 = vunpack.c.h.b16 %v2726
      %v2803 = vunpack.c.l.b16 %v2727
      %v2804 = vunpack.c.h.b16 %v2727
      %v2805 = vunpack.c.l.b16 %v2728
      %v2806 = vunpack.c.h.b16 %v2728
      %v2807 = vunpack.c.l.b16 %v2729
      %v2808 = vunpack.c.h.b16 %v2729
      %v2809 = vunpack.c.l.b16 %v2730
      %v2810 = vunpack.c.h.b16 %v2730
      %v2811 = vpack.c.b16 %v2781, %v2779
      %v2812 = vpack.c.b16 %v2782, %v2780
      %v2813 = vpack.c.b16 %v2785, %v2783
      %v2814 = vpack.c.b16 %v2786, %v2784
      %v2815 = vpack.c.b16 %v2789, %v2787
      %v2816 = vpack.c.b16 %v2790, %v2788
      %v2817 = vpack.c.b16 %v2793, %v2791
      %v2818 = vpack.c.b16 %v2794, %v2792
      %v2819 = vpack.c.b16 %v2797, %v2795
      %v2820 = vpack.c.b16 %v2798, %v2796
      %v2821 = vpack.c.b16 %v2801, %v2799
      %v2822 = vpack.c.b16 %v2802, %v2800
      %v2823 = vpack.c.b16 %v2805, %v2803
      %v2824 = vpack.c.b16 %v2806, %v2804
      %v2825 = vpack.c.b16 %v2809, %v2807
      %v2826 = vpack.c.b16 %v2810, %v2808
      %2843 = vmatprep.subr.bf16.mxu0 %v2812
      %2844 = vmatpush1.bf16.msra.mxu0 %v2811
      %2845 = vmatprep.subr.bf16.mxu0 %v2814
      %2846 = vmatpush1.bf16.msra.mxu0 %v2813
      %2847 = vmatprep.subr.bf16.mxu0 %v2816
      %2848 = vmatpush1.bf16.msra.mxu0 %v2815
      %2849 = vmatprep.subr.bf16.mxu0 %v2818
      %2850 = vmatpush1.bf16.msra.mxu0 %v2817
      %2851 = vmatprep.subr.bf16.mxu0 %v2820
      %2852 = vmatpush1.bf16.msra.mxu0 %v2819
      %2853 = vmatprep.subr.bf16.mxu0 %v2822
      %2854 = vmatpush1.bf16.msra.mxu0 %v2821
      %2855 = vmatprep.subr.bf16.mxu0 %v2824
      %2856 = vmatpush1.bf16.msra.mxu0 %v2823
      %2857 = vmatprep.subr.bf16.mxu0 %v2826
      %2858 = vmatpush1.bf16.msra.mxu0 %v2825
      %2859 = vmatprep.subr.bf16.mxu0 0
      %2860 = vmatpush1.bf16.msra.mxu0 0
      %2861 = vmatprep.subr.bf16.mxu0 0
      %2862 = vmatpush1.bf16.msra.mxu0 0
      %2863 = vmatprep.subr.bf16.mxu0 0
      %2864 = vmatpush1.bf16.msra.mxu0 0
      %2865 = vmatprep.subr.bf16.mxu0 0
      %2866 = vmatpush1.bf16.msra.mxu0 0
      %2867 = vmatprep.subr.bf16.mxu0 0
      %2868 = vmatpush1.bf16.msra.mxu0 0
      %2869 = vmatprep.subr.bf16.mxu0 0
      %2870 = vmatpush1.bf16.msra.mxu0 0
      %2871 = vmatprep.subr.bf16.mxu0 0
      %2872 = vmatpush1.bf16.msra.mxu0 0
      %2873 = vmatprep.subr.bf16.mxu0 0
      %2874 = vmatpush1.bf16.msra.mxu0 0
      %2875 = vmatprep.mubr.bf16.mxu0 0
      %2876 = vmatmul.mubr.bf16.gmra.mrb[0].mxu0 %v2747
      %v2877 = vpop.f32.mrb[0].mxu0
      %v2878 = vadd.f32 0.0, %v2877
      %v2879 = vpop.f32.mrb[0].mxu0
      %v2880 = vadd.f32 0.0, %v2879
      %v2881 = vpop.f32.mrb[0].mxu0
      %v2882 = vadd.f32 0.0, %v2881
      %v2883 = vpop.f32.mrb[0].mxu0
      %v2884 = vadd.f32 0.0, %v2883
      %2885 = vmatprep.mubr.bf16.mxu0 0
      %2886 = vmatmul.mubr.bf16.gmra.mrb[0].mxu0 %v2748
      %v2887 = vpop.f32.mrb[0].mxu0
      %v2888 = vadd.f32 0.0, %v2887
      %v2889 = vpop.f32.mrb[0].mxu0
      %v2890 = vadd.f32 0.0, %v2889
      %v2891 = vpop.f32.mrb[0].mxu0
      %v2892 = vadd.f32 0.0, %v2891
      %v2893 = vpop.f32.mrb[0].mxu0
      %v2894 = vadd.f32 0.0, %v2893
      %2895 = vmatprep.mubr.bf16.mxu0 0
      %2896 = vmatmul.mubr.bf16.gmra.mrb[0].mxu0 %v2749
      %v2897 = vpop.f32.mrb[0].mxu0
      %v2898 = vadd.f32 0.0, %v2897
      %v2899 = vpop.f32.mrb[0].mxu0
      %v2900 = vadd.f32 0.0, %v2899
      %v2901 = vpop.f32.mrb[0].mxu0
      %v2902 = vadd.f32 0.0, %v2901
      %v2903 = vpop.f32.mrb[0].mxu0
      %v2904 = vadd.f32 0.0, %v2903
      %2905 = vmatprep.mubr.bf16.mxu0 0
      %2906 = vmatmul.mubr.bf16.gmra.mrb[0].mxu0 %v2750
      %v2907 = vpop.f32.mrb[0].mxu0
      %v2908 = vadd.f32 0.0, %v2907
      %v2909 = vpop.f32.mrb[0].mxu0
      %v2910 = vadd.f32 0.0, %v2909
      %v2911 = vpop.f32.mrb[0].mxu0
      %v2912 = vadd.f32 0.0, %v2911
      %v2913 = vpop.f32.mrb[0].mxu0
      %v2914 = vadd.f32 0.0, %v2913
      %2915 = vmatprep.mubr.bf16.mxu0 0
      %2916 = vmatmul.mubr.bf16.gmra.mrb[0].mxu0 %v2751
      %v2917 = vpop.f32.mrb[0].mxu0
      %v2918 = vadd.f32 0.0, %v2917
      %v2919 = vpop.f32.mrb[0].mxu0
      %v2920 = vadd.f32 0.0, %v2919
      %v2921 = vpop.f32.mrb[0].mxu0
      %v2922 = vadd.f32 0.0, %v2921
      %v2923 = vpop.f32.mrb[0].mxu0
      %v2924 = vadd.f32 0.0, %v2923
      %2925 = vmatprep.mubr.bf16.mxu0 0
      %2926 = vmatmul.mubr.bf16.gmra.mrb[0].mxu0 %v2752
      %v2927 = vpop.f32.mrb[0].mxu0
      %v2928 = vadd.f32 0.0, %v2927
      %v2929 = vpop.f32.mrb[0].mxu0
      %v2930 = vadd.f32 0.0, %v2929
      %v2931 = vpop.f32.mrb[0].mxu0
      %v2932 = vadd.f32 0.0, %v2931
      %v2933 = vpop.f32.mrb[0].mxu0
      %v2934 = vadd.f32 0.0, %v2933
      %2935 = vmatprep.mubr.bf16.mxu0 0
      %2936 = vmatmul.mubr.bf16.gmra.mrb[0].mxu0 %v2753
      %v2937 = vpop.f32.mrb[0].mxu0
      %v2938 = vadd.f32 0.0, %v2937
      %v2939 = vpop.f32.mrb[0].mxu0
      %v2940 = vadd.f32 0.0, %v2939
      %v2941 = vpop.f32.mrb[0].mxu0
      %v2942 = vadd.f32 0.0, %v2941
      %v2943 = vpop.f32.mrb[0].mxu0
      %v2944 = vadd.f32 0.0, %v2943
      %2945 = vmatprep.mubr.bf16.mxu0 0
      %2946 = vmatmul.mubr.bf16.gmra.mrb[0].mxu0 %v2754
      %v2947 = vpop.f32.mrb[0].mxu0
      %v2948 = vadd.f32 0.0, %v2947
      %v2949 = vpop.f32.mrb[0].mxu0
      %v2950 = vadd.f32 0.0, %v2949
      %v2951 = vpop.f32.mrb[0].mxu0
      %v2952 = vadd.f32 0.0, %v2951
      %v2953 = vpop.f32.mrb[0].mxu0
      %v2954 = vadd.f32 0.0, %v2953
      %2955 = vdwg.mxu0
      %v2956 = vadd.f32 %v2594, %v2878
      %v2957 = vadd.f32 %v2595, %v2880
      %v2958 = vadd.f32 %v2596, %v2882
      %v2959 = vadd.f32 %v2597, %v2884
      %v2960 = vadd.f32 %v2598, %v2888
      %v2961 = vadd.f32 %v2599, %v2890
      %v2962 = vadd.f32 %v2600, %v2892
      %v2963 = vadd.f32 %v2601, %v2894
      %v2964 = vadd.f32 %v2602, %v2898
      %v2965 = vadd.f32 %v2603, %v2900
      %v2966 = vadd.f32 %v2604, %v2902
      %v2967 = vadd.f32 %v2605, %v2904
      %v2968 = vadd.f32 %v2606, %v2908
      %v2969 = vadd.f32 %v2607, %v2910
      %v2970 = vadd.f32 %v2608, %v2912
      %v2971 = vadd.f32 %v2609, %v2914
      %v2972 = vadd.f32 %v2610, %v2918
      %v2973 = vadd.f32 %v2611, %v2920
      %v2974 = vadd.f32 %v2612, %v2922
      %v2975 = vadd.f32 %v2613, %v2924
      %v2976 = vadd.f32 %v2614, %v2928
      %v2977 = vadd.f32 %v2615, %v2930
      %v2978 = vadd.f32 %v2616, %v2932
      %v2979 = vadd.f32 %v2617, %v2934
      %v2980 = vadd.f32 %v2618, %v2938
      %v2981 = vadd.f32 %v2619, %v2940
      %v2982 = vadd.f32 %v2620, %v2942
      %v2983 = vadd.f32 %v2621, %v2944
      %v2984 = vadd.f32 %v2622, %v2948
      %v2985 = vadd.f32 %v2623, %v2950
      %v2986 = vadd.f32 %v2624, %v2952
      %v2987 = vadd.f32 %v2625, %v2954
      %s2988 = scalar_lea.vmem [#allocation2], 24
      %v2989 = vld [vmem:[%s2988] sm:$0xf]
      %v2990 = vld [vmem:[%s2988 + $0x4] sm:$0xf]
      %v2991 = vld [vmem:[%s2988 + $0xc] sm:$0xf]
      %v2992 = vld [vmem:[%s2988 + $0x10] sm:$0xf]
      %v2993 = vld [vmem:[%s2988 + $0x18] sm:$0xf]
      %v2994 = vld [vmem:[%s2988 + $0x1c] sm:$0xf]
      %v2995 = vld [vmem:[%s2988 + $0x24] sm:$0xf]
      %v2996 = vld [vmem:[%s2988 + $0x28] sm:$0xf]
      %v2997 = vld [vmem:[%s2988 + $0x30] sm:$0xf]
      %v2998 = vld [vmem:[%s2988 + $0x34] sm:$0xf]
      %v2999 = vld [vmem:[%s2988 + $0x3c] sm:$0xf]
      %v3000 = vld [vmem:[%s2988 + $0x40] sm:$0xf]
      %v3001 = vld [vmem:[%s2988 + $0x48] sm:$0xf]
      %v3002 = vld [vmem:[%s2988 + $0x4c] sm:$0xf]
      %v3003 = vld [vmem:[%s2988 + $0x54] sm:$0xf]
      %v3004 = vld [vmem:[%s2988 + $0x58] sm:$0xf]
      %s3005 = scalar_lea.vmem %s3, 768
      %v3006 = vld [vmem:[%s3005] sm:$0xff]
      %v3007 = vld [vmem:[%s3005 + $0x8] sm:$0xff]
      %v3008 = vld [vmem:[%s3005 + $0x10] sm:$0xff]
      %v3009 = vld [vmem:[%s3005 + $0x18] sm:$0xff]
      %v3010 = vld [vmem:[%s3005 + $0x20] sm:$0xff]
      %v3011 = vld [vmem:[%s3005 + $0x28] sm:$0xff]
      %v3012 = vld [vmem:[%s3005 + $0x30] sm:$0xff]
      %v3013 = vld [vmem:[%s3005 + $0x38] sm:$0xff]
      %v3014 = vld [vmem:[%s3005 + $0x40] sm:$0xff]
      %v3015 = vld [vmem:[%s3005 + $0x48] sm:$0xff]
      %v3016 = vld [vmem:[%s3005 + $0x50] sm:$0xff]
      %v3017 = vld [vmem:[%s3005 + $0x58] sm:$0xff]
      %v3018 = vld [vmem:[%s3005 + $0x60] sm:$0xff]
      %v3019 = vld [vmem:[%s3005 + $0x68] sm:$0xff]
      %v3020 = vld [vmem:[%s3005 + $0x70] sm:$0xff]
      %v3021 = vld [vmem:[%s3005 + $0x78] sm:$0xff]
      %v3038 = vunpack.c.l.b16 %v2989
      %v3039 = vunpack.c.l.b16 %v2990
      %v3040 = vunpack.c.l.b16 %v2991
      %v3041 = vunpack.c.l.b16 %v2992
      %v3042 = vunpack.c.l.b16 %v2993
      %v3043 = vunpack.c.l.b16 %v2994
      %v3044 = vunpack.c.l.b16 %v2995
      %v3045 = vunpack.c.l.b16 %v2996
      %v3046 = vunpack.c.l.b16 %v2997
      %v3047 = vunpack.c.l.b16 %v2998
      %v3048 = vunpack.c.l.b16 %v2999
      %v3049 = vunpack.c.l.b16 %v3000
      %v3050 = vunpack.c.l.b16 %v3001
      %v3051 = vunpack.c.l.b16 %v3002
      %v3052 = vunpack.c.l.b16 %v3003
      %v3053 = vunpack.c.l.b16 %v3004
      %v3054 = vpack.c.b16 %v3039, %v3038
      %v3055 = vpack.c.b16 %v3041, %v3040
      %v3056 = vpack.c.b16 %v3043, %v3042
      %v3057 = vpack.c.b16 %v3045, %v3044
      %v3058 = vpack.c.b16 %v3047, %v3046
      %v3059 = vpack.c.b16 %v3049, %v3048
      %v3060 = vpack.c.b16 %v3051, %v3050
      %v3061 = vpack.c.b16 %v3053, %v3052
      %v3086 = vunpack.c.l.b16 %v3006
      %v3087 = vunpack.c.h.b16 %v3006
      %v3088 = vunpack.c.l.b16 %v3007
      %v3089 = vunpack.c.h.b16 %v3007
      %v3090 = vunpack.c.l.b16 %v3008
      %v3091 = vunpack.c.h.b16 %v3008
      %v3092 = vunpack.c.l.b16 %v3009
      %v3093 = vunpack.c.h.b16 %v3009
      %v3094 = vunpack.c.l.b16 %v3010
      %v3095 = vunpack.c.h.b16 %v3010
      %v3096 = vunpack.c.l.b16 %v3011
      %v3097 = vunpack.c.h.b16 %v3011
      %v3098 = vunpack.c.l.b16 %v3012
      %v3099 = vunpack.c.h.b16 %v3012
      %v3100 = vunpack.c.l.b16 %v3013
      %v3101 = vunpack.c.h.b16 %v3013
      %v3102 = vunpack.c.l.b16 %v3014
      %v3103 = vunpack.c.h.b16 %v3014
      %v3104 = vunpack.c.l.b16 %v3015
      %v3105 = vunpack.c.h.b16 %v3015
      %v3106 = vunpack.c.l.b16 %v3016
      %v3107 = vunpack.c.h.b16 %v3016
      %v3108 = vunpack.c.l.b16 %v3017
      %v3109 = vunpack.c.h.b16 %v3017
      %v3110 = vunpack.c.l.b16 %v3018
      %v3111 = vunpack.c.h.b16 %v3018
      %v3112 = vunpack.c.l.b16 %v3019
      %v3113 = vunpack.c.h.b16 %v3019
      %v3114 = vunpack.c.l.b16 %v3020
      %v3115 = vunpack.c.h.b16 %v3020
      %v3116 = vunpack.c.l.b16 %v3021
      %v3117 = vunpack.c.h.b16 %v3021
      %v3118 = vpack.c.b16 %v3088, %v3086
      %v3119 = vpack.c.b16 %v3089, %v3087
      %v3120 = vpack.c.b16 %v3092, %v3090
      %v3121 = vpack.c.b16 %v3093, %v3091
      %v3122 = vpack.c.b16 %v3096, %v3094
      %v3123 = vpack.c.b16 %v3097, %v3095
      %v3124 = vpack.c.b16 %v3100, %v3098
      %v3125 = vpack.c.b16 %v3101, %v3099
      %v3126 = vpack.c.b16 %v3104, %v3102
      %v3127 = vpack.c.b16 %v3105, %v3103
      %v3128 = vpack.c.b16 %v3108, %v3106
      %v3129 = vpack.c.b16 %v3109, %v3107
      %v3130 = vpack.c.b16 %v3112, %v3110
      %v3131 = vpack.c.b16 %v3113, %v3111
      %v3132 = vpack.c.b16 %v3116, %v3114
      %v3133 = vpack.c.b16 %v3117, %v3115
      %3150 = vmatprep.subr.bf16.mxu0 %v3119
      %3151 = vmatpush1.bf16.msra.mxu0 %v3118
      %3152 = vmatprep.subr.bf16.mxu0 %v3121
      %3153 = vmatpush1.bf16.msra.mxu0 %v3120
      %3154 = vmatprep.subr.bf16.mxu0 %v3123
      %3155 = vmatpush1.bf16.msra.mxu0 %v3122
      %3156 = vmatprep.subr.bf16.mxu0 %v3125
      %3157 = vmatpush1.bf16.msra.mxu0 %v3124
      %3158 = vmatprep.subr.bf16.mxu0 %v3127
      %3159 = vmatpush1.bf16.msra.mxu0 %v3126
      %3160 = vmatprep.subr.bf16.mxu0 %v3129
      %3161 = vmatpush1.bf16.msra.mxu0 %v3128
      %3162 = vmatprep.subr.bf16.mxu0 %v3131
      %3163 = vmatpush1.bf16.msra.mxu0 %v3130
      %3164 = vmatprep.subr.bf16.mxu0 %v3133
      %3165 = vmatpush1.bf16.msra.mxu0 %v3132
      %3166 = vmatprep.subr.bf16.mxu0 0
      %3167 = vmatpush1.bf16.msra.mxu0 0
      %3168 = vmatprep.subr.bf16.mxu0 0
      %3169 = vmatpush1.bf16.msra.mxu0 0
      %3170 = vmatprep.subr.bf16.mxu0 0
      %3171 = vmatpush1.bf16.msra.mxu0 0
      %3172 = vmatprep.subr.bf16.mxu0 0
      %3173 = vmatpush1.bf16.msra.mxu0 0
      %3174 = vmatprep.subr.bf16.mxu0 0
      %3175 = vmatpush1.bf16.msra.mxu0 0
      %3176 = vmatprep.subr.bf16.mxu0 0
      %3177 = vmatpush1.bf16.msra.mxu0 0
      %3178 = vmatprep.subr.bf16.mxu0 0
      %3179 = vmatpush1.bf16.msra.mxu0 0
      %3180 = vmatprep.subr.bf16.mxu0 0
      %3181 = vmatpush1.bf16.msra.mxu0 0
      %3182 = vmatprep.mubr.bf16.mxu0 0
      %3183 = vmatmul.mubr.bf16.gmra.mrb[0].mxu0 %v3054
      %v3184 = vpop.f32.mrb[0].mxu0
      %v3185 = vadd.f32 0.0, %v3184
      %v3186 = vpop.f32.mrb[0].mxu0
      %v3187 = vadd.f32 0.0, %v3186
      %v3188 = vpop.f32.mrb[0].mxu0
      %v3189 = vadd.f32 0.0, %v3188
      %v3190 = vpop.f32.mrb[0].mxu0
      %v3191 = vadd.f32 0.0, %v3190
      %3192 = vmatprep.mubr.bf16.mxu0 0
      %3193 = vmatmul.mubr.bf16.gmra.mrb[0].mxu0 %v3055
      %v3194 = vpop.f32.mrb[0].mxu0
      %v3195 = vadd.f32 0.0, %v3194
      %v3196 = vpop.f32.mrb[0].mxu0
      %v3197 = vadd.f32 0.0, %v3196
      %v3198 = vpop.f32.mrb[0].mxu0
      %v3199 = vadd.f32 0.0, %v3198
      %v3200 = vpop.f32.mrb[0].mxu0
      %v3201 = vadd.f32 0.0, %v3200
      %3202 = vmatprep.mubr.bf16.mxu0 0
      %3203 = vmatmul.mubr.bf16.gmra.mrb[0].mxu0 %v3056
      %v3204 = vpop.f32.mrb[0].mxu0
      %v3205 = vadd.f32 0.0, %v3204
      %v3206 = vpop.f32.mrb[0].mxu0
      %v3207 = vadd.f32 0.0, %v3206
      %v3208 = vpop.f32.mrb[0].mxu0
      %v3209 = vadd.f32 0.0, %v3208
      %v3210 = vpop.f32.mrb[0].mxu0
      %v3211 = vadd.f32 0.0, %v3210
      %3212 = vmatprep.mubr.bf16.mxu0 0
      %3213 = vmatmul.mubr.bf16.gmra.mrb[0].mxu0 %v3057
      %v3214 = vpop.f32.mrb[0].mxu0
      %v3215 = vadd.f32 0.0, %v3214
      %v3216 = vpop.f32.mrb[0].mxu0
      %v3217 = vadd.f32 0.0, %v3216
      %v3218 = vpop.f32.mrb[0].mxu0
      %v3219 = vadd.f32 0.0, %v3218
      %v3220 = vpop.f32.mrb[0].mxu0
      %v3221 = vadd.f32 0.0, %v3220
      %3222 = vmatprep.mubr.bf16.mxu0 0
      %3223 = vmatmul.mubr.bf16.gmra.mrb[0].mxu0 %v3058
      %v3224 = vpop.f32.mrb[0].mxu0
      %v3225 = vadd.f32 0.0, %v3224
      %v3226 = vpop.f32.mrb[0].mxu0
      %v3227 = vadd.f32 0.0, %v3226
      %v3228 = vpop.f32.mrb[0].mxu0
      %v3229 = vadd.f32 0.0, %v3228
      %v3230 = vpop.f32.mrb[0].mxu0
      %v3231 = vadd.f32 0.0, %v3230
      %3232 = vmatprep.mubr.bf16.mxu0 0
      %3233 = vmatmul.mubr.bf16.gmra.mrb[0].mxu0 %v3059
      %v3234 = vpop.f32.mrb[0].mxu0
      %v3235 = vadd.f32 0.0, %v3234
      %v3236 = vpop.f32.mrb[0].mxu0
      %v3237 = vadd.f32 0.0, %v3236
      %v3238 = vpop.f32.mrb[0].mxu0
      %v3239 = vadd.f32 0.0, %v3238
      %v3240 = vpop.f32.mrb[0].mxu0
      %v3241 = vadd.f32 0.0, %v3240
      %3242 = vmatprep.mubr.bf16.mxu0 0
      %3243 = vmatmul.mubr.bf16.gmra.mrb[0].mxu0 %v3060
      %v3244 = vpop.f32.mrb[0].mxu0
      %v3245 = vadd.f32 0.0, %v3244
      %v3246 = vpop.f32.mrb[0].mxu0
      %v3247 = vadd.f32 0.0, %v3246
      %v3248 = vpop.f32.mrb[0].mxu0
      %v3249 = vadd.f32 0.0, %v3248
      %v3250 = vpop.f32.mrb[0].mxu0
      %v3251 = vadd.f32 0.0, %v3250
      %3252 = vmatprep.mubr.bf16.mxu0 0
      %3253 = vmatmul.mubr.bf16.gmra.mrb[0].mxu0 %v3061
      %v3254 = vpop.f32.mrb[0].mxu0
      %v3255 = vadd.f32 0.0, %v3254
      %v3256 = vpop.f32.mrb[0].mxu0
      %v3257 = vadd.f32 0.0, %v3256
      %v3258 = vpop.f32.mrb[0].mxu0
      %v3259 = vadd.f32 0.0, %v3258
      %v3260 = vpop.f32.mrb[0].mxu0
      %v3261 = vadd.f32 0.0, %v3260
      %3262 = vdwg.mxu0
      %v3263 = vadd.f32 %v2956, %v3185
      %v3264 = vadd.f32 %v2957, %v3187
      %v3265 = vadd.f32 %v2958, %v3189
      %v3266 = vadd.f32 %v2959, %v3191
      %v3267 = vadd.f32 %v2960, %v3195
      %v3268 = vadd.f32 %v2961, %v3197
      %v3269 = vadd.f32 %v2962, %v3199
      %v3270 = vadd.f32 %v2963, %v3201
      %v3271 = vadd.f32 %v2964, %v3205
      %v3272 = vadd.f32 %v2965, %v3207
      %v3273 = vadd.f32 %v2966, %v3209
      %v3274 = vadd.f32 %v2967, %v3211
      %v3275 = vadd.f32 %v2968, %v3215
      %v3276 = vadd.f32 %v2969, %v3217
      %v3277 = vadd.f32 %v2970, %v3219
      %v3278 = vadd.f32 %v2971, %v3221
      %v3279 = vadd.f32 %v2972, %v3225
      %v3280 = vadd.f32 %v2973, %v3227
      %v3281 = vadd.f32 %v2974, %v3229
      %v3282 = vadd.f32 %v2975, %v3231
      %v3283 = vadd.f32 %v2976, %v3235
      %v3284 = vadd.f32 %v2977, %v3237
      %v3285 = vadd.f32 %v2978, %v3239
      %v3286 = vadd.f32 %v2979, %v3241
      %v3287 = vadd.f32 %v2980, %v3245
      %v3288 = vadd.f32 %v2981, %v3247
      %v3289 = vadd.f32 %v2982, %v3249
      %v3290 = vadd.f32 %v2983, %v3251
      %v3291 = vadd.f32 %v2984, %v3255
      %v3292 = vadd.f32 %v2985, %v3257
      %v3293 = vadd.f32 %v2986, %v3259
      %v3294 = vadd.f32 %v2987, %v3261
      %v3295 = vld [vmem:[%s2988] sm:$0xf]
      %v3296 = vld [vmem:[%s2988 + $0x4] sm:$0xf]
      %v3297 = vld [vmem:[%s2988 + $0x8] sm:$0x1]
      %v3298 = vld [vmem:[%s2988 + $0xc] sm:$0xf]
      %v3299 = vld [vmem:[%s2988 + $0x10] sm:$0xf]
      %v3300 = vld [vmem:[%s2988 + $0x14] sm:$0x1]
      %v3301 = vld [vmem:[%s2988 + $0x18] sm:$0xf]
      %v3302 = vld [vmem:[%s2988 + $0x1c] sm:$0xf]
      %v3303 = vld [vmem:[%s2988 + $0x20] sm:$0x1]
      %v3304 = vld [vmem:[%s2988 + $0x24] sm:$0xf]
      %v3305 = vld [vmem:[%s2988 + $0x28] sm:$0xf]
      %v3306 = vld [vmem:[%s2988 + $0x2c] sm:$0x1]
      %v3307 = vld [vmem:[%s2988 + $0x30] sm:$0xf]
      %v3308 = vld [vmem:[%s2988 + $0x34] sm:$0xf]
      %v3309 = vld [vmem:[%s2988 + $0x38] sm:$0x1]
      %v3310 = vld [vmem:[%s2988 + $0x3c] sm:$0xf]
      %v3311 = vld [vmem:[%s2988 + $0x40] sm:$0xf]
      %v3312 = vld [vmem:[%s2988 + $0x44] sm:$0x1]
      %v3313 = vld [vmem:[%s2988 + $0x48] sm:$0xf]
      %v3314 = vld [vmem:[%s2988 + $0x4c] sm:$0xf]
      %v3315 = vld [vmem:[%s2988 + $0x50] sm:$0x1]
      %v3316 = vld [vmem:[%s2988 + $0x54] sm:$0xf]
      %v3317 = vld [vmem:[%s2988 + $0x58] sm:$0xf]
      %v3318 = vld [vmem:[%s2988 + $0x5c] sm:$0x1]
      %v3320 = vshrl.u32 %v3295, 16
      %v3322 = vrot.slane %v3320, 4
      %v3323 = vshll.u32 %v3295, 16
      %v3325 = vrot.slane %v3323, 5
      %v3326 = vor.u32 %v3322, %v3325
      %v3327 = vrot.slane %v3326, 4
      %v3329 = vshll.u32 %v3296, 16
      %v3331 = vrot.slane %v3329, 5
      %v3332 = vsel %vm797, %v3327, %v3331
      %v3333 = vshrl.u32 %v3296, 16
      %v3335 = vrot.slane %v3333, 4
      %v3336 = vor.u32 %v3335, %v3331
      %v3337 = vrot.slane %v3336, 4
      %v3339 = vshll.u32 %v3297, 16
      %v3341 = vrot.slane %v3339, 5
      %v3342 = vsel %vm797, %v3337, %v3341
      %v3344 = vshrl.u32 %v3298, 16
      %v3346 = vrot.slane %v3344, 4
      %v3347 = vshll.u32 %v3298, 16
      %v3349 = vrot.slane %v3347, 5
      %v3350 = vor.u32 %v3346, %v3349
      %v3351 = vrot.slane %v3350, 4
      %v3353 = vshll.u32 %v3299, 16
      %v3355 = vrot.slane %v3353, 5
      %v3356 = vsel %vm797, %v3351, %v3355
      %v3357 = vshrl.u32 %v3299, 16
      %v3359 = vrot.slane %v3357, 4
      %v3360 = vor.u32 %v3359, %v3355
      %v3361 = vrot.slane %v3360, 4
      %v3363 = vshll.u32 %v3300, 16
      %v3365 = vrot.slane %v3363, 5
      %v3366 = vsel %vm797, %v3361, %v3365
      %v3368 = vshrl.u32 %v3301, 16
      %v3370 = vrot.slane %v3368, 4
      %v3371 = vshll.u32 %v3301, 16
      %v3373 = vrot.slane %v3371, 5
      %v3374 = vor.u32 %v3370, %v3373
      %v3375 = vrot.slane %v3374, 4
      %v3377 = vshll.u32 %v3302, 16
      %v3379 = vrot.slane %v3377, 5
      %v3380 = vsel %vm797, %v3375, %v3379
      %v3381 = vshrl.u32 %v3302, 16
      %v3383 = vrot.slane %v3381, 4
      %v3384 = vor.u32 %v3383, %v3379
      %v3385 = vrot.slane %v3384, 4
      %v3387 = vshll.u32 %v3303, 16
      %v3389 = vrot.slane %v3387, 5
      %v3390 = vsel %vm797, %v3385, %v3389
      %v3392 = vshrl.u32 %v3304, 16
      %v3394 = vrot.slane %v3392, 4
      %v3395 = vshll.u32 %v3304, 16
      %v3397 = vrot.slane %v3395, 5
      %v3398 = vor.u32 %v3394, %v3397
      %v3399 = vrot.slane %v3398, 4
      %v3401 = vshll.u32 %v3305, 16
      %v3403 = vrot.slane %v3401, 5
      %v3404 = vsel %vm797, %v3399, %v3403
      %v3405 = vshrl.u32 %v3305, 16
      %v3407 = vrot.slane %v3405, 4
      %v3408 = vor.u32 %v3407, %v3403
      %v3409 = vrot.slane %v3408, 4
      %v3411 = vshll.u32 %v3306, 16
      %v3413 = vrot.slane %v3411, 5
      %v3414 = vsel %vm797, %v3409, %v3413
      %v3416 = vshrl.u32 %v3307, 16
      %v3418 = vrot.slane %v3416, 4
      %v3419 = vshll.u32 %v3307, 16
      %v3421 = vrot.slane %v3419, 5
      %v3422 = vor.u32 %v3418, %v3421
      %v3423 = vrot.slane %v3422, 4
      %v3425 = vshll.u32 %v3308, 16
      %v3427 = vrot.slane %v3425, 5
      %v3428 = vsel %vm797, %v3423, %v3427
      %v3429 = vshrl.u32 %v3308, 16
      %v3431 = vrot.slane %v3429, 4
      %v3432 = vor.u32 %v3431, %v3427
      %v3433 = vrot.slane %v3432, 4
      %v3435 = vshll.u32 %v3309, 16
      %v3437 = vrot.slane %v3435, 5
      %v3438 = vsel %vm797, %v3433, %v3437
      %v3440 = vshrl.u32 %v3310, 16
      %v3442 = vrot.slane %v3440, 4
      %v3443 = vshll.u32 %v3310, 16
      %v3445 = vrot.slane %v3443, 5
      %v3446 = vor.u32 %v3442, %v3445
      %v3447 = vrot.slane %v3446, 4
      %v3449 = vshll.u32 %v3311, 16
      %v3451 = vrot.slane %v3449, 5
      %v3452 = vsel %vm797, %v3447, %v3451
      %v3453 = vshrl.u32 %v3311, 16
      %v3455 = vrot.slane %v3453, 4
      %v3456 = vor.u32 %v3455, %v3451
      %v3457 = vrot.slane %v3456, 4
      %v3459 = vshll.u32 %v3312, 16
      %v3461 = vrot.slane %v3459, 5
      %v3462 = vsel %vm797, %v3457, %v3461
      %v3464 = vshrl.u32 %v3313, 16
      %v3466 = vrot.slane %v3464, 4
      %v3467 = vshll.u32 %v3313, 16
      %v3469 = vrot.slane %v3467, 5
      %v3470 = vor.u32 %v3466, %v3469
      %v3471 = vrot.slane %v3470, 4
      %v3473 = vshll.u32 %v3314, 16
      %v3475 = vrot.slane %v3473, 5
      %v3476 = vsel %vm797, %v3471, %v3475
      %v3477 = vshrl.u32 %v3314, 16
      %v3479 = vrot.slane %v3477, 4
      %v3480 = vor.u32 %v3479, %v3475
      %v3481 = vrot.slane %v3480, 4
      %v3483 = vshll.u32 %v3315, 16
      %v3485 = vrot.slane %v3483, 5
      %v3486 = vsel %vm797, %v3481, %v3485
      %v3488 = vshrl.u32 %v3316, 16
      %v3490 = vrot.slane %v3488, 4
      %v3491 = vshll.u32 %v3316, 16
      %v3493 = vrot.slane %v3491, 5
      %v3494 = vor.u32 %v3490, %v3493
      %v3495 = vrot.slane %v3494, 4
      %v3497 = vshll.u32 %v3317, 16
      %v3499 = vrot.slane %v3497, 5
      %v3500 = vsel %vm797, %v3495, %v3499
      %v3501 = vshrl.u32 %v3317, 16
      %v3503 = vrot.slane %v3501, 4
      %v3504 = vor.u32 %v3503, %v3499
      %v3505 = vrot.slane %v3504, 4
      %v3507 = vshll.u32 %v3318, 16
      %v3509 = vrot.slane %v3507, 5
      %v3510 = vsel %vm797, %v3505, %v3509
      %s3511 = scalar_lea.vmem %s3, 896
      %v3512 = vld [vmem:[%s3511] sm:$0xff]
      %v3513 = vld [vmem:[%s3511 + $0x8] sm:$0xff]
      %v3514 = vld [vmem:[%s3511 + $0x10] sm:$0xff]
      %v3515 = vld [vmem:[%s3511 + $0x18] sm:$0xff]
      %v3516 = vld [vmem:[%s3511 + $0x20] sm:$0xff]
      %v3517 = vld [vmem:[%s3511 + $0x28] sm:$0xff]
      %v3518 = vld [vmem:[%s3511 + $0x30] sm:$0xff]
      %v3519 = vld [vmem:[%s3511 + $0x38] sm:$0xff]
      %v3520 = vld [vmem:[%s3511 + $0x40] sm:$0xff]
      %v3521 = vld [vmem:[%s3511 + $0x48] sm:$0xff]
      %v3522 = vld [vmem:[%s3511 + $0x50] sm:$0xff]
      %v3523 = vld [vmem:[%s3511 + $0x58] sm:$0xff]
      %v3524 = vld [vmem:[%s3511 + $0x60] sm:$0xff]
      %v3525 = vld [vmem:[%s3511 + $0x68] sm:$0xff]
      %v3526 = vld [vmem:[%s3511 + $0x70] sm:$0xff]
      %v3527 = vld [vmem:[%s3511 + $0x78] sm:$0xff]
      %v3528 = vunpack.c.l.b16 %v3332
      %v3529 = vunpack.c.l.b16 %v3342
      %v3530 = vunpack.c.l.b16 %v3356
      %v3531 = vunpack.c.l.b16 %v3366
      %v3532 = vunpack.c.l.b16 %v3380
      %v3533 = vunpack.c.l.b16 %v3390
      %v3534 = vunpack.c.l.b16 %v3404
      %v3535 = vunpack.c.l.b16 %v3414
      %v3536 = vunpack.c.l.b16 %v3428
      %v3537 = vunpack.c.l.b16 %v3438
      %v3538 = vunpack.c.l.b16 %v3452
      %v3539 = vunpack.c.l.b16 %v3462
      %v3540 = vunpack.c.l.b16 %v3476
      %v3541 = vunpack.c.l.b16 %v3486
      %v3542 = vunpack.c.l.b16 %v3500
      %v3543 = vunpack.c.l.b16 %v3510
      %v3544 = vpack.c.b16 %v3529, %v3528
      %v3545 = vpack.c.b16 %v3531, %v3530
      %v3546 = vpack.c.b16 %v3533, %v3532
      %v3547 = vpack.c.b16 %v3535, %v3534
      %v3548 = vpack.c.b16 %v3537, %v3536
      %v3549 = vpack.c.b16 %v3539, %v3538
      %v3550 = vpack.c.b16 %v3541, %v3540
      %v3551 = vpack.c.b16 %v3543, %v3542
      %v3576 = vunpack.c.l.b16 %v3512
      %v3577 = vunpack.c.h.b16 %v3512
      %v3578 = vunpack.c.l.b16 %v3513
      %v3579 = vunpack.c.h.b16 %v3513
      %v3580 = vunpack.c.l.b16 %v3514
      %v3581 = vunpack.c.h.b16 %v3514
      %v3582 = vunpack.c.l.b16 %v3515
      %v3583 = vunpack.c.h.b16 %v3515
      %v3584 = vunpack.c.l.b16 %v3516
      %v3585 = vunpack.c.h.b16 %v3516
      %v3586 = vunpack.c.l.b16 %v3517
      %v3587 = vunpack.c.h.b16 %v3517
      %v3588 = vunpack.c.l.b16 %v3518
      %v3589 = vunpack.c.h.b16 %v3518
      %v3590 = vunpack.c.l.b16 %v3519
      %v3591 = vunpack.c.h.b16 %v3519
      %v3592 = vunpack.c.l.b16 %v3520
      %v3593 = vunpack.c.h.b16 %v3520
      %v3594 = vunpack.c.l.b16 %v3521
      %v3595 = vunpack.c.h.b16 %v3521
      %v3596 = vunpack.c.l.b16 %v3522
      %v3597 = vunpack.c.h.b16 %v3522
      %v3598 = vunpack.c.l.b16 %v3523
      %v3599 = vunpack.c.h.b16 %v3523
      %v3600 = vunpack.c.l.b16 %v3524
      %v3601 = vunpack.c.h.b16 %v3524
      %v3602 = vunpack.c.l.b16 %v3525
      %v3603 = vunpack.c.h.b16 %v3525
      %v3604 = vunpack.c.l.b16 %v3526
      %v3605 = vunpack.c.h.b16 %v3526
      %v3606 = vunpack.c.l.b16 %v3527
      %v3607 = vunpack.c.h.b16 %v3527
      %v3608 = vpack.c.b16 %v3578, %v3576
      %v3609 = vpack.c.b16 %v3579, %v3577
      %v3610 = vpack.c.b16 %v3582, %v3580
      %v3611 = vpack.c.b16 %v3583, %v3581
      %v3612 = vpack.c.b16 %v3586, %v3584
      %v3613 = vpack.c.b16 %v3587, %v3585
      %v3614 = vpack.c.b16 %v3590, %v3588
      %v3615 = vpack.c.b16 %v3591, %v3589
      %v3616 = vpack.c.b16 %v3594, %v3592
      %v3617 = vpack.c.b16 %v3595, %v3593
      %v3618 = vpack.c.b16 %v3598, %v3596
      %v3619 = vpack.c.b16 %v3599, %v3597
      %v3620 = vpack.c.b16 %v3602, %v3600
      %v3621 = vpack.c.b16 %v3603, %v3601
      %v3622 = vpack.c.b16 %v3606, %v3604
      %v3623 = vpack.c.b16 %v3607, %v3605
      %3640 = vmatprep.subr.bf16.mxu0 %v3609
      %3641 = vmatpush1.bf16.msra.mxu0 %v3608
      %3642 = vmatprep.subr.bf16.mxu0 %v3611
      %3643 = vmatpush1.bf16.msra.mxu0 %v3610
      %3644 = vmatprep.subr.bf16.mxu0 %v3613
      %3645 = vmatpush1.bf16.msra.mxu0 %v3612
      %3646 = vmatprep.subr.bf16.mxu0 %v3615
      %3647 = vmatpush1.bf16.msra.mxu0 %v3614
      %3648 = vmatprep.subr.bf16.mxu0 %v3617
      %3649 = vmatpush1.bf16.msra.mxu0 %v3616
      %3650 = vmatprep.subr.bf16.mxu0 %v3619
      %3651 = vmatpush1.bf16.msra.mxu0 %v3618
      %3652 = vmatprep.subr.bf16.mxu0 %v3621
      %3653 = vmatpush1.bf16.msra.mxu0 %v3620
      %3654 = vmatprep.subr.bf16.mxu0 %v3623
      %3655 = vmatpush1.bf16.msra.mxu0 %v3622
      %3656 = vmatprep.subr.bf16.mxu0 0
      %3657 = vmatpush1.bf16.msra.mxu0 0
      %3658 = vmatprep.subr.bf16.mxu0 0
      %3659 = vmatpush1.bf16.msra.mxu0 0
      %3660 = vmatprep.subr.bf16.mxu0 0
      %3661 = vmatpush1.bf16.msra.mxu0 0
      %3662 = vmatprep.subr.bf16.mxu0 0
      %3663 = vmatpush1.bf16.msra.mxu0 0
      %3664 = vmatprep.subr.bf16.mxu0 0
      %3665 = vmatpush1.bf16.msra.mxu0 0
      %3666 = vmatprep.subr.bf16.mxu0 0
      %3667 = vmatpush1.bf16.msra.mxu0 0
      %3668 = vmatprep.subr.bf16.mxu0 0
      %3669 = vmatpush1.bf16.msra.mxu0 0
      %3670 = vmatprep.subr.bf16.mxu0 0
      %3671 = vmatpush1.bf16.msra.mxu0 0
      %3672 = vmatprep.mubr.bf16.mxu0 0
      %3673 = vmatmul.mubr.bf16.gmra.mrb[0].mxu0 %v3544
      %v3674 = vpop.f32.mrb[0].mxu0
      %v3675 = vadd.f32 0.0, %v3674
      %v3676 = vpop.f32.mrb[0].mxu0
      %v3677 = vadd.f32 0.0, %v3676
      %v3678 = vpop.f32.mrb[0].mxu0
      %v3679 = vadd.f32 0.0, %v3678
      %v3680 = vpop.f32.mrb[0].mxu0
      %v3681 = vadd.f32 0.0, %v3680
      %3682 = vmatprep.mubr.bf16.mxu0 0
      %3683 = vmatmul.mubr.bf16.gmra.mrb[0].mxu0 %v3545
      %v3684 = vpop.f32.mrb[0].mxu0
      %v3685 = vadd.f32 0.0, %v3684
      %v3686 = vpop.f32.mrb[0].mxu0
      %v3687 = vadd.f32 0.0, %v3686
      %v3688 = vpop.f32.mrb[0].mxu0
      %v3689 = vadd.f32 0.0, %v3688
      %v3690 = vpop.f32.mrb[0].mxu0
      %v3691 = vadd.f32 0.0, %v3690
      %3692 = vmatprep.mubr.bf16.mxu0 0
      %3693 = vmatmul.mubr.bf16.gmra.mrb[0].mxu0 %v3546
      %v3694 = vpop.f32.mrb[0].mxu0
      %v3695 = vadd.f32 0.0, %v3694
      %v3696 = vpop.f32.mrb[0].mxu0
      %v3697 = vadd.f32 0.0, %v3696
      %v3698 = vpop.f32.mrb[0].mxu0
      %v3699 = vadd.f32 0.0, %v3698
      %v3700 = vpop.f32.mrb[0].mxu0
      %v3701 = vadd.f32 0.0, %v3700
      %3702 = vmatprep.mubr.bf16.mxu0 0
      %3703 = vmatmul.mubr.bf16.gmra.mrb[0].mxu0 %v3547
      %v3704 = vpop.f32.mrb[0].mxu0
      %v3705 = vadd.f32 0.0, %v3704
      %v3706 = vpop.f32.mrb[0].mxu0
      %v3707 = vadd.f32 0.0, %v3706
      %v3708 = vpop.f32.mrb[0].mxu0
      %v3709 = vadd.f32 0.0, %v3708
      %v3710 = vpop.f32.mrb[0].mxu0
      %v3711 = vadd.f32 0.0, %v3710
      %3712 = vmatprep.mubr.bf16.mxu0 0
      %3713 = vmatmul.mubr.bf16.gmra.mrb[0].mxu0 %v3548
      %v3714 = vpop.f32.mrb[0].mxu0
      %v3715 = vadd.f32 0.0, %v3714
      %v3716 = vpop.f32.mrb[0].mxu0
      %v3717 = vadd.f32 0.0, %v3716
      %v3718 = vpop.f32.mrb[0].mxu0
      %v3719 = vadd.f32 0.0, %v3718
      %v3720 = vpop.f32.mrb[0].mxu0
      %v3721 = vadd.f32 0.0, %v3720
      %3722 = vmatprep.mubr.bf16.mxu0 0
      %3723 = vmatmul.mubr.bf16.gmra.mrb[0].mxu0 %v3549
      %v3724 = vpop.f32.mrb[0].mxu0
      %v3725 = vadd.f32 0.0, %v3724
      %v3726 = vpop.f32.mrb[0].mxu0
      %v3727 = vadd.f32 0.0, %v3726
      %v3728 = vpop.f32.mrb[0].mxu0
      %v3729 = vadd.f32 0.0, %v3728
      %v3730 = vpop.f32.mrb[0].mxu0
      %v3731 = vadd.f32 0.0, %v3730
      %3732 = vmatprep.mubr.bf16.mxu0 0
      %3733 = vmatmul.mubr.bf16.gmra.mrb[0].mxu0 %v3550
      %v3734 = vpop.f32.mrb[0].mxu0
      %v3735 = vadd.f32 0.0, %v3734
      %v3736 = vpop.f32.mrb[0].mxu0
      %v3737 = vadd.f32 0.0, %v3736
      %v3738 = vpop.f32.mrb[0].mxu0
      %v3739 = vadd.f32 0.0, %v3738
      %v3740 = vpop.f32.mrb[0].mxu0
      %v3741 = vadd.f32 0.0, %v3740
      %3742 = vmatprep.mubr.bf16.mxu0 0
      %3743 = vmatmul.mubr.bf16.gmra.mrb[0].mxu0 %v3551
      %v3744 = vpop.f32.mrb[0].mxu0
      %v3745 = vadd.f32 0.0, %v3744
      %v3746 = vpop.f32.mrb[0].mxu0
      %v3747 = vadd.f32 0.0, %v3746
      %v3748 = vpop.f32.mrb[0].mxu0
      %v3749 = vadd.f32 0.0, %v3748
      %v3750 = vpop.f32.mrb[0].mxu0
      %v3751 = vadd.f32 0.0, %v3750
      %3752 = vdwg.mxu0
      %v3753 = vadd.f32 %v3263, %v3675
      %v3754 = vadd.f32 %v3264, %v3677
      %v3755 = vadd.f32 %v3265, %v3679
      %v3756 = vadd.f32 %v3266, %v3681
      %v3757 = vadd.f32 %v3267, %v3685
      %v3758 = vadd.f32 %v3268, %v3687
      %v3759 = vadd.f32 %v3269, %v3689
      %v3760 = vadd.f32 %v3270, %v3691
      %v3761 = vadd.f32 %v3271, %v3695
      %v3762 = vadd.f32 %v3272, %v3697
      %v3763 = vadd.f32 %v3273, %v3699
      %v3764 = vadd.f32 %v3274, %v3701
      %v3765 = vadd.f32 %v3275, %v3705
      %v3766 = vadd.f32 %v3276, %v3707
      %v3767 = vadd.f32 %v3277, %v3709
      %v3768 = vadd.f32 %v3278, %v3711
      %v3769 = vadd.f32 %v3279, %v3715
      %v3770 = vadd.f32 %v3280, %v3717
      %v3771 = vadd.f32 %v3281, %v3719
      %v3772 = vadd.f32 %v3282, %v3721
      %v3773 = vadd.f32 %v3283, %v3725
      %v3774 = vadd.f32 %v3284, %v3727
      %v3775 = vadd.f32 %v3285, %v3729
      %v3776 = vadd.f32 %v3286, %v3731
      %v3777 = vadd.f32 %v3287, %v3735
      %v3778 = vadd.f32 %v3288, %v3737
      %v3779 = vadd.f32 %v3289, %v3739
      %v3780 = vadd.f32 %v3290, %v3741
      %v3781 = vadd.f32 %v3291, %v3745
      %v3782 = vadd.f32 %v3292, %v3747
      %v3783 = vadd.f32 %v3293, %v3749
      %v3784 = vadd.f32 %v3294, %v3751
      %v3785 = vld [vmem:[%s2988] sm:$0xe]
      %v3786 = vld [vmem:[%s2988 + $0xc] sm:$0xe]
      %v3787 = vld [vmem:[%s2988 + $0x18] sm:$0xe]
      %v3788 = vld [vmem:[%s2988 + $0x24] sm:$0xe]
      %v3789 = vld [vmem:[%s2988 + $0x30] sm:$0xe]
      %v3790 = vld [vmem:[%s2988 + $0x3c] sm:$0xe]
      %v3791 = vld [vmem:[%s2988 + $0x48] sm:$0xe]
      %v3792 = vld [vmem:[%s2988 + $0x54] sm:$0xe]
      %v3817 = vrot.slane %v3785, 5
      %v3818 = vrot.slane %v3817, 4
      %v3819 = vrot.slane %v3296, 5
      %v3820 = vsel %vm1499, %v3818, %v3819
      %v3821 = vrot.slane %v3819, 4
      %v3822 = vrot.slane %v3297, 5
      %v3823 = vsel %vm1499, %v3821, %v3822
      %v3824 = vrot.slane %v3786, 5
      %v3825 = vrot.slane %v3824, 4
      %v3826 = vrot.slane %v3299, 5
      %v3827 = vsel %vm1499, %v3825, %v3826
      %v3828 = vrot.slane %v3826, 4
      %v3829 = vrot.slane %v3300, 5
      %v3830 = vsel %vm1499, %v3828, %v3829
      %v3831 = vrot.slane %v3787, 5
      %v3832 = vrot.slane %v3831, 4
      %v3833 = vrot.slane %v3302, 5
      %v3834 = vsel %vm1499, %v3832, %v3833
      %v3835 = vrot.slane %v3833, 4
      %v3836 = vrot.slane %v3303, 5
      %v3837 = vsel %vm1499, %v3835, %v3836
      %v3838 = vrot.slane %v3788, 5
      %v3839 = vrot.slane %v3838, 4
      %v3840 = vrot.slane %v3305, 5
      %v3841 = vsel %vm1499, %v3839, %v3840
      %v3842 = vrot.slane %v3840, 4
      %v3843 = vrot.slane %v3306, 5
      %v3844 = vsel %vm1499, %v3842, %v3843
      %v3845 = vrot.slane %v3789, 5
      %v3846 = vrot.slane %v3845, 4
      %v3847 = vrot.slane %v3308, 5
      %v3848 = vsel %vm1499, %v3846, %v3847
      %v3849 = vrot.slane %v3847, 4
      %v3850 = vrot.slane %v3309, 5
      %v3851 = vsel %vm1499, %v3849, %v3850
      %v3852 = vrot.slane %v3790, 5
      %v3853 = vrot.slane %v3852, 4
      %v3854 = vrot.slane %v3311, 5
      %v3855 = vsel %vm1499, %v3853, %v3854
      %v3856 = vrot.slane %v3854, 4
      %v3857 = vrot.slane %v3312, 5
      %v3858 = vsel %vm1499, %v3856, %v3857
      %v3859 = vrot.slane %v3791, 5
      %v3860 = vrot.slane %v3859, 4
      %v3861 = vrot.slane %v3314, 5
      %v3862 = vsel %vm1499, %v3860, %v3861
      %v3863 = vrot.slane %v3861, 4
      %v3864 = vrot.slane %v3315, 5
      %v3865 = vsel %vm1499, %v3863, %v3864
      %v3866 = vrot.slane %v3792, 5
      %v3867 = vrot.slane %v3866, 4
      %v3868 = vrot.slane %v3317, 5
      %v3869 = vsel %vm1499, %v3867, %v3868
      %v3870 = vrot.slane %v3868, 4
      %v3871 = vrot.slane %v3318, 5
      %v3872 = vsel %vm1499, %v3870, %v3871
      %s3873 = scalar_lea.vmem %s3, 1024
      %v3874 = vld [vmem:[%s3873] sm:$0xff]
      %v3875 = vld [vmem:[%s3873 + $0x8] sm:$0xff]
      %v3876 = vld [vmem:[%s3873 + $0x10] sm:$0xff]
      %v3877 = vld [vmem:[%s3873 + $0x18] sm:$0xff]
      %v3878 = vld [vmem:[%s3873 + $0x20] sm:$0xff]
      %v3879 = vld [vmem:[%s3873 + $0x28] sm:$0xff]
      %v3880 = vld [vmem:[%s3873 + $0x30] sm:$0xff]
      %v3881 = vld [vmem:[%s3873 + $0x38] sm:$0xff]
      %v3882 = vld [vmem:[%s3873 + $0x40] sm:$0xff]
      %v3883 = vld [vmem:[%s3873 + $0x48] sm:$0xff]
      %v3884 = vld [vmem:[%s3873 + $0x50] sm:$0xff]
      %v3885 = vld [vmem:[%s3873 + $0x58] sm:$0xff]
      %v3886 = vld [vmem:[%s3873 + $0x60] sm:$0xff]
      %v3887 = vld [vmem:[%s3873 + $0x68] sm:$0xff]
      %v3888 = vld [vmem:[%s3873 + $0x70] sm:$0xff]
      %v3889 = vld [vmem:[%s3873 + $0x78] sm:$0xff]
      %v3890 = vunpack.c.l.b16 %v3820
      %v3891 = vunpack.c.l.b16 %v3823
      %v3892 = vunpack.c.l.b16 %v3827
      %v3893 = vunpack.c.l.b16 %v3830
      %v3894 = vunpack.c.l.b16 %v3834
      %v3895 = vunpack.c.l.b16 %v3837
      %v3896 = vunpack.c.l.b16 %v3841
      %v3897 = vunpack.c.l.b16 %v3844
      %v3898 = vunpack.c.l.b16 %v3848
      %v3899 = vunpack.c.l.b16 %v3851
      %v3900 = vunpack.c.l.b16 %v3855
      %v3901 = vunpack.c.l.b16 %v3858
      %v3902 = vunpack.c.l.b16 %v3862
      %v3903 = vunpack.c.l.b16 %v3865
      %v3904 = vunpack.c.l.b16 %v3869
      %v3905 = vunpack.c.l.b16 %v3872
      %v3906 = vpack.c.b16 %v3891, %v3890
      %v3907 = vpack.c.b16 %v3893, %v3892
      %v3908 = vpack.c.b16 %v3895, %v3894
      %v3909 = vpack.c.b16 %v3897, %v3896
      %v3910 = vpack.c.b16 %v3899, %v3898
      %v3911 = vpack.c.b16 %v3901, %v3900
      %v3912 = vpack.c.b16 %v3903, %v3902
      %v3913 = vpack.c.b16 %v3905, %v3904
      %v3938 = vunpack.c.l.b16 %v3874
      %v3939 = vunpack.c.h.b16 %v3874
      %v3940 = vunpack.c.l.b16 %v3875
      %v3941 = vunpack.c.h.b16 %v3875
      %v3942 = vunpack.c.l.b16 %v3876
      %v3943 = vunpack.c.h.b16 %v3876
      %v3944 = vunpack.c.l.b16 %v3877
      %v3945 = vunpack.c.h.b16 %v3877
      %v3946 = vunpack.c.l.b16 %v3878
      %v3947 = vunpack.c.h.b16 %v3878
      %v3948 = vunpack.c.l.b16 %v3879
      %v3949 = vunpack.c.h.b16 %v3879
      %v3950 = vunpack.c.l.b16 %v3880
      %v3951 = vunpack.c.h.b16 %v3880
      %v3952 = vunpack.c.l.b16 %v3881
      %v3953 = vunpack.c.h.b16 %v3881
      %v3954 = vunpack.c.l.b16 %v3882
      %v3955 = vunpack.c.h.b16 %v3882
      %v3956 = vunpack.c.l.b16 %v3883
      %v3957 = vunpack.c.h.b16 %v3883
      %v3958 = vunpack.c.l.b16 %v3884
      %v3959 = vunpack.c.h.b16 %v3884
      %v3960 = vunpack.c.l.b16 %v3885
      %v3961 = vunpack.c.h.b16 %v3885
      %v3962 = vunpack.c.l.b16 %v3886
      %v3963 = vunpack.c.h.b16 %v3886
      %v3964 = vunpack.c.l.b16 %v3887
      %v3965 = vunpack.c.h.b16 %v3887
      %v3966 = vunpack.c.l.b16 %v3888
      %v3967 = vunpack.c.h.b16 %v3888
      %v3968 = vunpack.c.l.b16 %v3889
      %v3969 = vunpack.c.h.b16 %v3889
      %v3970 = vpack.c.b16 %v3940, %v3938
      %v3971 = vpack.c.b16 %v3941, %v3939
      %v3972 = vpack.c.b16 %v3944, %v3942
      %v3973 = vpack.c.b16 %v3945, %v3943
      %v3974 = vpack.c.b16 %v3948, %v3946
      %v3975 = vpack.c.b16 %v3949, %v3947
      %v3976 = vpack.c.b16 %v3952, %v3950
      %v3977 = vpack.c.b16 %v3953, %v3951
      %v3978 = vpack.c.b16 %v3956, %v3954
      %v3979 = vpack.c.b16 %v3957, %v3955
      %v3980 = vpack.c.b16 %v3960, %v3958
      %v3981 = vpack.c.b16 %v3961, %v3959
      %v3982 = vpack.c.b16 %v3964, %v3962
      %v3983 = vpack.c.b16 %v3965, %v3963
      %v3984 = vpack.c.b16 %v3968, %v3966
      %v3985 = vpack.c.b16 %v3969, %v3967
      %4002 = vmatprep.subr.bf16.mxu0 %v3971
      %4003 = vmatpush1.bf16.msra.mxu0 %v3970
      %4004 = vmatprep.subr.bf16.mxu0 %v3973
      %4005 = vmatpush1.bf16.msra.mxu0 %v3972
      %4006 = vmatprep.subr.bf16.mxu0 %v3975
      %4007 = vmatpush1.bf16.msra.mxu0 %v3974
      %4008 = vmatprep.subr.bf16.mxu0 %v3977
      %4009 = vmatpush1.bf16.msra.mxu0 %v3976
      %4010 = vmatprep.subr.bf16.mxu0 %v3979
      %4011 = vmatpush1.bf16.msra.mxu0 %v3978
      %4012 = vmatprep.subr.bf16.mxu0 %v3981
      %4013 = vmatpush1.bf16.msra.mxu0 %v3980
      %4014 = vmatprep.subr.bf16.mxu0 %v3983
      %4015 = vmatpush1.bf16.msra.mxu0 %v3982
      %4016 = vmatprep.subr.bf16.mxu0 %v3985
      %4017 = vmatpush1.bf16.msra.mxu0 %v3984
      %4018 = vmatprep.subr.bf16.mxu0 0
      %4019 = vmatpush1.bf16.msra.mxu0 0
      %4020 = vmatprep.subr.bf16.mxu0 0
      %4021 = vmatpush1.bf16.msra.mxu0 0
      %4022 = vmatprep.subr.bf16.mxu0 0
      %4023 = vmatpush1.bf16.msra.mxu0 0
      %4024 = vmatprep.subr.bf16.mxu0 0
      %4025 = vmatpush1.bf16.msra.mxu0 0
      %4026 = vmatprep.subr.bf16.mxu0 0
      %4027 = vmatpush1.bf16.msra.mxu0 0
      %4028 = vmatprep.subr.bf16.mxu0 0
      %4029 = vmatpush1.bf16.msra.mxu0 0
      %4030 = vmatprep.subr.bf16.mxu0 0
      %4031 = vmatpush1.bf16.msra.mxu0 0
      %4032 = vmatprep.subr.bf16.mxu0 0
      %4033 = vmatpush1.bf16.msra.mxu0 0
      %4034 = vmatprep.mubr.bf16.mxu0 0
      %4035 = vmatmul.mubr.bf16.gmra.mrb[0].mxu0 %v3906
      %v4036 = vpop.f32.mrb[0].mxu0
      %v4037 = vadd.f32 0.0, %v4036
      %v4038 = vpop.f32.mrb[0].mxu0
      %v4039 = vadd.f32 0.0, %v4038
      %v4040 = vpop.f32.mrb[0].mxu0
      %v4041 = vadd.f32 0.0, %v4040
      %v4042 = vpop.f32.mrb[0].mxu0
      %v4043 = vadd.f32 0.0, %v4042
      %4044 = vmatprep.mubr.bf16.mxu0 0
      %4045 = vmatmul.mubr.bf16.gmra.mrb[0].mxu0 %v3907
      %v4046 = vpop.f32.mrb[0].mxu0
      %v4047 = vadd.f32 0.0, %v4046
      %v4048 = vpop.f32.mrb[0].mxu0
      %v4049 = vadd.f32 0.0, %v4048
      %v4050 = vpop.f32.mrb[0].mxu0
      %v4051 = vadd.f32 0.0, %v4050
      %v4052 = vpop.f32.mrb[0].mxu0
      %v4053 = vadd.f32 0.0, %v4052
      %4054 = vmatprep.mubr.bf16.mxu0 0
      %4055 = vmatmul.mubr.bf16.gmra.mrb[0].mxu0 %v3908
      %v4056 = vpop.f32.mrb[0].mxu0
      %v4057 = vadd.f32 0.0, %v4056
      %v4058 = vpop.f32.mrb[0].mxu0
      %v4059 = vadd.f32 0.0, %v4058
      %v4060 = vpop.f32.mrb[0].mxu0
      %v4061 = vadd.f32 0.0, %v4060
      %v4062 = vpop.f32.mrb[0].mxu0
      %v4063 = vadd.f32 0.0, %v4062
      %4064 = vmatprep.mubr.bf16.mxu0 0
      %4065 = vmatmul.mubr.bf16.gmra.mrb[0].mxu0 %v3909
      %v4066 = vpop.f32.mrb[0].mxu0
      %v4067 = vadd.f32 0.0, %v4066
      %v4068 = vpop.f32.mrb[0].mxu0
      %v4069 = vadd.f32 0.0, %v4068
      %v4070 = vpop.f32.mrb[0].mxu0
      %v4071 = vadd.f32 0.0, %v4070
      %v4072 = vpop.f32.mrb[0].mxu0
      %v4073 = vadd.f32 0.0, %v4072
      %4074 = vmatprep.mubr.bf16.mxu0 0
      %4075 = vmatmul.mubr.bf16.gmra.mrb[0].mxu0 %v3910
      %v4076 = vpop.f32.mrb[0].mxu0
      %v4077 = vadd.f32 0.0, %v4076
      %v4078 = vpop.f32.mrb[0].mxu0
      %v4079 = vadd.f32 0.0, %v4078
      %v4080 = vpop.f32.mrb[0].mxu0
      %v4081 = vadd.f32 0.0, %v4080
      %v4082 = vpop.f32.mrb[0].mxu0
      %v4083 = vadd.f32 0.0, %v4082
      %4084 = vmatprep.mubr.bf16.mxu0 0
      %4085 = vmatmul.mubr.bf16.gmra.mrb[0].mxu0 %v3911
      %v4086 = vpop.f32.mrb[0].mxu0
      %v4087 = vadd.f32 0.0, %v4086
      %v4088 = vpop.f32.mrb[0].mxu0
      %v4089 = vadd.f32 0.0, %v4088
      %v4090 = vpop.f32.mrb[0].mxu0
      %v4091 = vadd.f32 0.0, %v4090
      %v4092 = vpop.f32.mrb[0].mxu0
      %v4093 = vadd.f32 0.0, %v4092
      %4094 = vmatprep.mubr.bf16.mxu0 0
      %4095 = vmatmul.mubr.bf16.gmra.mrb[0].mxu0 %v3912
      %v4096 = vpop.f32.mrb[0].mxu0
      %v4097 = vadd.f32 0.0, %v4096
      %v4098 = vpop.f32.mrb[0].mxu0
      %v4099 = vadd.f32 0.0, %v4098
      %v4100 = vpop.f32.mrb[0].mxu0
      %v4101 = vadd.f32 0.0, %v4100
      %v4102 = vpop.f32.mrb[0].mxu0
      %v4103 = vadd.f32 0.0, %v4102
      %4104 = vmatprep.mubr.bf16.mxu0 0
      %4105 = vmatmul.mubr.bf16.gmra.mrb[0].mxu0 %v3913
      %v4106 = vpop.f32.mrb[0].mxu0
      %v4107 = vadd.f32 0.0, %v4106
      %v4108 = vpop.f32.mrb[0].mxu0
      %v4109 = vadd.f32 0.0, %v4108
      %v4110 = vpop.f32.mrb[0].mxu0
      %v4111 = vadd.f32 0.0, %v4110
      %v4112 = vpop.f32.mrb[0].mxu0
      %v4113 = vadd.f32 0.0, %v4112
      %4114 = vdwg.mxu0
      %v4115 = vadd.f32 %v3753, %v4037
      %v4116 = vadd.f32 %v3754, %v4039
      %v4117 = vadd.f32 %v3755, %v4041
      %v4118 = vadd.f32 %v3756, %v4043
      %v4119 = vadd.f32 %v3757, %v4047
      %v4120 = vadd.f32 %v3758, %v4049
      %v4121 = vadd.f32 %v3759, %v4051
      %v4122 = vadd.f32 %v3760, %v4053
      %v4123 = vadd.f32 %v3761, %v4057
      %v4124 = vadd.f32 %v3762, %v4059
      %v4125 = vadd.f32 %v3763, %v4061
      %v4126 = vadd.f32 %v3764, %v4063
      %v4127 = vadd.f32 %v3765, %v4067
      %v4128 = vadd.f32 %v3766, %v4069
      %v4129 = vadd.f32 %v3767, %v4071
      %v4130 = vadd.f32 %v3768, %v4073
      %v4131 = vadd.f32 %v3769, %v4077
      %v4132 = vadd.f32 %v3770, %v4079
      %v4133 = vadd.f32 %v3771, %v4081
      %v4134 = vadd.f32 %v3772, %v4083
      %v4135 = vadd.f32 %v3773, %v4087
      %v4136 = vadd.f32 %v3774, %v4089
      %v4137 = vadd.f32 %v3775, %v4091
      %v4138 = vadd.f32 %v3776, %v4093
      %v4139 = vadd.f32 %v3777, %v4097
      %v4140 = vadd.f32 %v3778, %v4099
      %v4141 = vadd.f32 %v3779, %v4101
      %v4142 = vadd.f32 %v3780, %v4103
      %v4143 = vadd.f32 %v3781, %v4107
      %v4144 = vadd.f32 %v3782, %v4109
      %v4145 = vadd.f32 %v3783, %v4111
      %v4146 = vadd.f32 %v3784, %v4113
      %v4147 = vpack.c.bf16 %v4117, %v4115
      %v4148 = vpack.c.bf16 %v4118, %v4116
      %v4149 = vpack.c.bf16 %v4121, %v4119
      %v4150 = vpack.c.bf16 %v4122, %v4120
      %v4151 = vpack.c.bf16 %v4125, %v4123
      %v4152 = vpack.c.bf16 %v4126, %v4124
      %v4153 = vpack.c.bf16 %v4129, %v4127
      %v4154 = vpack.c.bf16 %v4130, %v4128
      %v4155 = vpack.c.bf16 %v4133, %v4131
      %v4156 = vpack.c.bf16 %v4134, %v4132
      %v4157 = vpack.c.bf16 %v4137, %v4135
      %v4158 = vpack.c.bf16 %v4138, %v4136
      %v4159 = vpack.c.bf16 %v4141, %v4139
      %v4160 = vpack.c.bf16 %v4142, %v4140
      %v4161 = vpack.c.bf16 %v4145, %v4143
      %v4162 = vpack.c.bf16 %v4146, %v4144
      %v4179 = vunpack.c.l.b16 %v4147
      %v4180 = vunpack.c.l.b16 %v4148
      %v4181 = vunpack.c.h.b16 %v4147
      %v4182 = vunpack.c.h.b16 %v4148
      %v4183 = vunpack.c.l.b16 %v4149
      %v4184 = vunpack.c.l.b16 %v4150
      %v4185 = vunpack.c.h.b16 %v4149
      %v4186 = vunpack.c.h.b16 %v4150
      %v4187 = vunpack.c.l.b16 %v4151
      %v4188 = vunpack.c.l.b16 %v4152
      %v4189 = vunpack.c.h.b16 %v4151
      %v4190 = vunpack.c.h.b16 %v4152
      %v4191 = vunpack.c.l.b16 %v4153
      %v4192 = vunpack.c.l.b16 %v4154
      %v4193 = vunpack.c.h.b16 %v4153
      %v4194 = vunpack.c.h.b16 %v4154
      %v4195 = vunpack.c.l.b16 %v4155
      %v4196 = vunpack.c.l.b16 %v4156
      %v4197 = vunpack.c.h.b16 %v4155
      %v4198 = vunpack.c.h.b16 %v4156
      %v4199 = vunpack.c.l.b16 %v4157
      %v4200 = vunpack.c.l.b16 %v4158
      %v4201 = vunpack.c.h.b16 %v4157
      %v4202 = vunpack.c.h.b16 %v4158
      %v4203 = vunpack.c.l.b16 %v4159
      %v4204 = vunpack.c.l.b16 %v4160
      %v4205 = vunpack.c.h.b16 %v4159
      %v4206 = vunpack.c.h.b16 %v4160
      %v4207 = vunpack.c.l.b16 %v4161
      %v4208 = vunpack.c.l.b16 %v4162
      %v4209 = vunpack.c.h.b16 %v4161
      %v4210 = vunpack.c.h.b16 %v4162
      %v4211 = vpack.c.b16 %v4180, %v4179
      %v4212 = vpack.c.b16 %v4182, %v4181
      %v4213 = vpack.c.b16 %v4184, %v4183
      %v4214 = vpack.c.b16 %v4186, %v4185
      %v4215 = vpack.c.b16 %v4188, %v4187
      %v4216 = vpack.c.b16 %v4190, %v4189
      %v4217 = vpack.c.b16 %v4192, %v4191
      %v4218 = vpack.c.b16 %v4194, %v4193
      %v4219 = vpack.c.b16 %v4196, %v4195
      %v4220 = vpack.c.b16 %v4198, %v4197
      %v4221 = vpack.c.b16 %v4200, %v4199
      %v4222 = vpack.c.b16 %v4202, %v4201
      %v4223 = vpack.c.b16 %v4204, %v4203
      %v4224 = vpack.c.b16 %v4206, %v4205
      %v4225 = vpack.c.b16 %v4208, %v4207
      %v4226 = vpack.c.b16 %v4210, %v4209
      %4243 = vst [vmem:[%s405] sm:$0xff] %v4211
      %4244 = vst [vmem:[%s405 + $0x8] sm:$0xff] %v4212
      %4245 = vst [vmem:[%s405 + $0x10] sm:$0xff] %v4213
      %4246 = vst [vmem:[%s405 + $0x18] sm:$0xff] %v4214
      %4247 = vst [vmem:[%s405 + $0x20] sm:$0xff] %v4215
      %4248 = vst [vmem:[%s405 + $0x28] sm:$0xff] %v4216
      %4249 = vst [vmem:[%s405 + $0x30] sm:$0xff] %v4217
      %4250 = vst [vmem:[%s405 + $0x38] sm:$0xff] %v4218
      %4251 = vst [vmem:[%s405 + $0x40] sm:$0xff] %v4219
      %4252 = vst [vmem:[%s405 + $0x48] sm:$0xff] %v4220
      %4253 = vst [vmem:[%s405 + $0x50] sm:$0xff] %v4221
      %4254 = vst [vmem:[%s405 + $0x58] sm:$0xff] %v4222
      %4255 = vst [vmem:[%s405 + $0x60] sm:$0xff] %v4223
      %4256 = vst [vmem:[%s405 + $0x68] sm:$0xff] %v4224
      %4257 = vst [vmem:[%s405 + $0x70] sm:$0xff] %v4225
      %4258 = vst [vmem:[%s405 + $0x78] sm:$0xff] %v4226
      %v4259 = vadd.f32 %v4115, %v4117
      %v4260 = vadd.f32 %v4259, %v4119
      %v4261 = vadd.f32 %v4260, %v4121
      %v4262 = vadd.f32 %v4261, %v4123
      %v4263 = vadd.f32 %v4262, %v4125
      %v4264 = vadd.f32 %v4263, %v4127
      %v4265 = vadd.f32 %v4264, %v4129
      %v4266 = vadd.f32 %v4265, %v4131
      %v4267 = vadd.f32 %v4266, %v4133
      %v4268 = vadd.f32 %v4267, %v4135
      %v4269 = vadd.f32 %v4268, %v4137
      %v4270 = vadd.f32 %v4269, %v4139
      %v4271 = vadd.f32 %v4270, %v4141
      %v4272 = vadd.f32 %v4271, %v4143
      %v4273 = vadd.f32 %v4272, %v4145
      %v4274 = vrot.slane %v4273, 4
      %v4275 = vadd.f32 %v4273, %v4274
      %v4276 = vrot.slane %v4275, 2
      %v4277 = vadd.f32 %v4275, %v4276
      %v4278 = vrot.slane %v4277, 1
      %v4279 = vadd.f32 %v4277, %v4278
      %v4280 = vadd.f32 %v4116, %v4118
      %v4281 = vadd.f32 %v4280, %v4120
      %v4282 = vadd.f32 %v4281, %v4122
      %v4283 = vadd.f32 %v4282, %v4124
      %v4284 = vadd.f32 %v4283, %v4126
      %v4285 = vadd.f32 %v4284, %v4128
      %v4286 = vadd.f32 %v4285, %v4130
      %v4287 = vadd.f32 %v4286, %v4132
      %v4288 = vadd.f32 %v4287, %v4134
      %v4289 = vadd.f32 %v4288, %v4136
      %v4290 = vadd.f32 %v4289, %v4138
      %v4291 = vadd.f32 %v4290, %v4140
      %v4292 = vadd.f32 %v4291, %v4142
      %v4293 = vadd.f32 %v4292, %v4144
      %v4294 = vadd.f32 %v4293, %v4146
      %v4295 = vrot.slane %v4294, 4
      %v4296 = vadd.f32 %v4294, %v4295
      %v4297 = vrot.slane %v4296, 2
      %v4298 = vadd.f32 %v4296, %v4297
      %v4299 = vrot.slane %v4298, 1
      %v4300 = vadd.f32 %v4298, %v4299
      %v4301 = vmul.f32 %v4115, %v4115
      %v4302 = vmul.f32 %v4116, %v4116
      %v4303 = vmul.f32 %v4117, %v4117
      %v4304 = vmul.f32 %v4118, %v4118
      %v4305 = vmul.f32 %v4119, %v4119
      %v4306 = vmul.f32 %v4120, %v4120
      %v4307 = vmul.f32 %v4121, %v4121
      %v4308 = vmul.f32 %v4122, %v4122
      %v4309 = vmul.f32 %v4123, %v4123
      %v4310 = vmul.f32 %v4124, %v4124
      %v4311 = vmul.f32 %v4125, %v4125
      %v4312 = vmul.f32 %v4126, %v4126
      %v4313 = vmul.f32 %v4127, %v4127
      %v4314 = vmul.f32 %v4128, %v4128
      %v4315 = vmul.f32 %v4129, %v4129
      %v4316 = vmul.f32 %v4130, %v4130
      %v4317 = vmul.f32 %v4131, %v4131
      %v4318 = vmul.f32 %v4132, %v4132
      %v4319 = vmul.f32 %v4133, %v4133
      %v4320 = vmul.f32 %v4134, %v4134
      %v4321 = vmul.f32 %v4135, %v4135
      %v4322 = vmul.f32 %v4136, %v4136
      %v4323 = vmul.f32 %v4137, %v4137
      %v4324 = vmul.f32 %v4138, %v4138
      %v4325 = vmul.f32 %v4139, %v4139
      %v4326 = vmul.f32 %v4140, %v4140
      %v4327 = vmul.f32 %v4141, %v4141
      %v4328 = vmul.f32 %v4142, %v4142
      %v4329 = vmul.f32 %v4143, %v4143
      %v4330 = vmul.f32 %v4144, %v4144
      %v4331 = vmul.f32 %v4145, %v4145
      %v4332 = vmul.f32 %v4146, %v4146
      %v4333 = vadd.f32 %v4301, %v4303
      %v4334 = vadd.f32 %v4333, %v4305
      %v4335 = vadd.f32 %v4334, %v4307
      %v4336 = vadd.f32 %v4335, %v4309
      %v4337 = vadd.f32 %v4336, %v4311
      %v4338 = vadd.f32 %v4337, %v4313
      %v4339 = vadd.f32 %v4338, %v4315
      %v4340 = vadd.f32 %v4339, %v4317
      %v4341 = vadd.f32 %v4340, %v4319
      %v4342 = vadd.f32 %v4341, %v4321
      %v4343 = vadd.f32 %v4342, %v4323
      %v4344 = vadd.f32 %v4343, %v4325
      %v4345 = vadd.f32 %v4344, %v4327
      %v4346 = vadd.f32 %v4345, %v4329
      %v4347 = vadd.f32 %v4346, %v4331
      %v4348 = vrot.slane %v4347, 4
      %v4349 = vadd.f32 %v4347, %v4348
      %v4350 = vrot.slane %v4349, 2
      %v4351 = vadd.f32 %v4349, %v4350
      %v4352 = vrot.slane %v4351, 1
      %v4353 = vadd.f32 %v4351, %v4352
      %v4354 = vadd.f32 %v4302, %v4304
      %v4355 = vadd.f32 %v4354, %v4306
      %v4356 = vadd.f32 %v4355, %v4308
      %v4357 = vadd.f32 %v4356, %v4310
      %v4358 = vadd.f32 %v4357, %v4312
      %v4359 = vadd.f32 %v4358, %v4314
      %v4360 = vadd.f32 %v4359, %v4316
      %v4361 = vadd.f32 %v4360, %v4318
      %v4362 = vadd.f32 %v4361, %v4320
      %v4363 = vadd.f32 %v4362, %v4322
      %v4364 = vadd.f32 %v4363, %v4324
      %v4365 = vadd.f32 %v4364, %v4326
      %v4366 = vadd.f32 %v4365, %v4328
      %v4367 = vadd.f32 %v4366, %v4330
      %v4368 = vadd.f32 %v4367, %v4332
      %v4369 = vrot.slane %v4368, 4
      %v4370 = vadd.f32 %v4368, %v4369
      %v4371 = vrot.slane %v4370, 2
      %v4372 = vadd.f32 %v4370, %v4371
      %v4373 = vrot.slane %v4372, 1
      %v4374 = vadd.f32 %v4372, %v4373
      %vm4375 = vcmask 1040384
      %v4376 = vsel %vm4375, %v4279, %v4353
      %v4377 = vsel %vm4375, %v4300, %v4374
      %v4380 = vcombine.low %v4376, %v4377
      %v4382 = vunpack.c.l.s4 1983009808
      %v4383 = vunpack.c.0.s8 %v4382
      %v4384 = vlaneseq
      %v4385 = vshrl.u32 %v4384, 7
      %v4386 = vsub.s32 %v4383, %v4385
      %v4387 = vrot.slane %v4380, %v4386
      %4389 = vst [vmem:[%s415] sm:$0xf] %v4387
      %s4390 = smul.u32 8, %s22
      %p4391 = scmp.lt.s32.totalorder %s21, 1
      %s4392 = scalar_select %p4391, %s21, 1
      %p4393 = scmp.lt.s32.totalorder %s4390, 15
      %s4394 = scalar_select %p4393, %s4390, 15
      %s4395 = smul.addr %s4394, 4
      %s4396 = smul.addr %s4392, 64
      %s4397 = sadd.s32 %s4395, %s4396
      %s4398 = smul.addr %s4397, 4
      %s4399 = scalar_lea.vmem %s4, %s4398
      %p4400 = scmp.lt.s32.totalorder %s21, 1
      %s4401 = scalar_select %p4400, %s21, 1
      %p4402 = scmp.lt.s32.totalorder %s22, 1
      %s4403 = scalar_select %p4402, %s22, 1
      %s4404 = smul.addr %s4403, 2
      %s4405 = smul.addr %s4401, 4
      %s4406 = sadd.s32 %s4404, %s4405
      %s4407 = smul.addr %s4406, 2
      %s4408 = scalar_lea.vmem %s5, %s4407
      // Predicated region
      $region45: #{basic_block3d_forward.5} parent=35 // pred_check
        %p4409 = pneg %p170
      $region46: #{basic_block3d_forward.5} parent=35 // pred_check_branch
        %4411 = sbr.rel (%p4409) target = $region48
      $region47: #{basic_block3d_forward.5} parent=35 // pred_region
        %s4412 = smul.u32 8, %s22
      $region48: #{basic_block3d_forward.5} parent=35 // pred_fallthru
        _
      // Predicated region
      $region49: #{basic_block3d_forward.5} parent=35 // pred_check
        %p4413 = pneg %p198
      $region50: #{basic_block3d_forward.5} parent=35 // pred_check_branch
        %4415 = sbr.rel (%p4413) target = $region52
      $region51: #{basic_block3d_forward.5} parent=35 // pred_region
        _
      $region52: #{basic_block3d_forward.5} parent=35 // pred_fallthru
        _
    $region36: #{basic_block3d_forward.5} parent=5 // pred_fallthru
      _
    %p4416 = scmp.le.s32.totalorder 2, %s12
    // Predicated region
    $region53: #{basic_block3d_forward.5} parent=5 // pred_check
      %p4417 = pneg %p4416
    $region54: #{basic_block3d_forward.5} parent=5 // pred_check_branch
      %4419 = sbr.rel (%p4417) target = $region56
    $region55: #{basic_block3d_forward.5} parent=5 // pred_region
      %s4420 = ssub.s32 %s12, 2
      // Predicated region
      $region57: #{basic_block3d_forward.5} parent=55 // pred_check
        %p4421 = pneg %p176
      $region58: #{basic_block3d_forward.5} parent=55 // pred_check_branch
        %4423 = sbr.rel (%p4421) target = $region60
      $region59: #{basic_block3d_forward.5} parent=55 // pred_region
        %s4424 = smul.u32 8, %s24
        %p4425 = scmp.lt.s32.totalorder %s23, 1
        %s4426 = scalar_select %p4425, %s23, 1
        %p4427 = scmp.lt.s32.totalorder %s4424, 15
        %s4428 = scalar_select %p4427, %s4424, 15
        %s4429 = smul.addr %s4428, 4
        %s4430 = smul.addr %s4426, 64
        %s4431 = sadd.s32 %s4429, %s4430
        %s4432 = smul.addr %s4431, 4
        %s4433 = scalar_lea.vmem %s4, %s4432
      $region60: #{basic_block3d_forward.5} parent=55 // pred_fallthru
        _
      // Predicated region
      $region61: #{basic_block3d_forward.5} parent=55 // pred_check
        %p4434 = pneg %p204
      $region62: #{basic_block3d_forward.5} parent=55 // pred_check_branch
        %4436 = sbr.rel (%p4434) target = $region64
      $region63: #{basic_block3d_forward.5} parent=55 // pred_region
        %p4437 = scmp.lt.s32.totalorder %s23, 1
        %s4438 = scalar_select %p4437, %s23, 1
        %p4439 = scmp.lt.s32.totalorder %s24, 1
        %s4440 = scalar_select %p4439, %s24, 1
        %s4441 = smul.addr %s4440, 2
        %s4442 = smul.addr %s4438, 4
        %s4443 = sadd.s32 %s4441, %s4442
        %s4444 = smul.addr %s4443, 2
        %s4445 = scalar_lea.vmem %s5, %s4444
      $region64: #{basic_block3d_forward.5} parent=55 // pred_fallthru
        _
    $region56: #{basic_block3d_forward.5} parent=5 // pred_fallthru
      _
  $region6: #{basic_block3d_forward.5} parent=0 // loop_footer
    %s16 = sadd.s32 1, %s12
  $region7: #{basic_block3d_forward.5} parent=0 // loop_footer_branch
    %11 = sbr.rel target = $region3
  $region8: #{basic_block3d_forward.5} parent=0 // loop_exit
    _

// kernel: basic_block3d_forward.9
$region0: #{basic_block3d_forward.9}
  #allocation0 [shape = 'u32[]', space=smem, size = 0x4, offset = 0x4, fixed_abs, tag = 'smem constant byte address 0x4 - core index']
  #allocation1 [shape = 'u32[144,128]{1,0:T(1,128)}', space=vmem, size = 0x12000, scoped, tag = 'internal scratch']
  %s0 = inlined_call_operand.vmem [shape: bf16[512,256], index: 0, kind: input, shape index: {}]
  %s1 = inlined_call_operand.vmem [shape: f32[1,256], index: 1, kind: input, shape index: {}]
  %s2 = inlined_call_operand.vmem [shape: f32[1,256], index: 2, kind: input, shape index: {}]
  %s3 = inlined_call_operand.vmem [shape: bf16[512,128], index: 3, kind: input, shape index: {}]
  %s4 = inlined_call_operand.vmem [shape: bf16[128,256], index: 4, kind: input, shape index: {}]
  %s5 = inlined_call_operand.vmem [shape: f32[1,256], index: 5, kind: input, shape index: {}]
  %s6 = inlined_call_operand.vmem [shape: f32[1,256], index: 6, kind: input, shape index: {}]
  %s7 = inlined_call_operand.vmem [shape: f32[512,256], index: 7, kind: output, shape index: {}]
  %s8 = sld [smem:[#allocation0]]
  $region61: #{basic_block3d_forward.9} parent=0
    _
  %s10 = ssub.s32 1, %s8
  %s11 = scalar_select 0, %s10, %s8
  loop: start=0, step=1, limit=6
  $region2: #{basic_block3d_forward.9} parent=0 // loop_pre_header
    _
  $region3: #{basic_block3d_forward.9} parent=0 // loop_header
    %s13 = sphi 0, %s17
    %p14 = scmp.ge.s32.totalorder %s13, 6
    %s23 = sphi 0, %s25
    %s26 = sphi 0, %s23
    %s27 = sphi 0, %s26
    %s43 = sphi 0, %s27
    %s47 = sphi 0, %s47
    %s49 = sphi 0, %s47
    %s50 = sphi 0, %s49
    %s64 = sphi 0, %s50
    %s68 = sphi 0, %s68
    %s70 = sphi 0, %s68
    %s71 = sphi 0, %s70
    %s85 = sphi 0, %s71
    %s91 = sphi 0, %s93
    %s94 = sphi 0, %s91
    %s95 = sphi 0, %s94
    %s111 = sphi 0, %s95
    %s115 = sphi 0, %s115
    %s117 = sphi 0, %s115
    %s118 = sphi 0, %s117
    %s132 = sphi 0, %s118
    %s136 = sphi 0, %s136
    %s138 = sphi 0, %s136
    %s139 = sphi 0, %s138
    %s153 = sphi 0, %s139
    %s157 = sphi 0, %s157
    %s159 = sphi 0, %s157
    %s160 = sphi 0, %s159
    %s174 = sphi 0, %s160
    %s180 = sphi 0, %s182
    %s183 = sphi 0, %s180
    %s184 = sphi 0, %s183
    %s200 = sphi 0, %s184
  $region4: #{basic_block3d_forward.9} parent=0 // loop_header_branch
    %16 = sbr.rel (%p14) target = $region8
  $region5: #{basic_block3d_forward.9} parent=0 // loop_body
    %s18 = ssub.s32 %s13, 1
    %s19 = ssub.s32 %s13, 2
    %s20 = sadd.s32 %s13, 1
    %s21 = ssub.s32 %s13, %s20
    %p22 = scmp.eq.s32.totalorder %s21, 0
    %s24 = sadd.s32 %s23, 1
    %s25 = scalar_select %p22, %s23, %s24
    %p28 = pneg %p22
    %p29 = scmp.eq.s32.totalorder %s13, 3
    %p30 = por %p28, %p29
    %p31 = scmp.ne.s32.totalorder %s23, %s26
    %p32 = scmp.eq.s32.totalorder %s13, 0
    %p33 = por %p31, %p32
    %p34 = scmp.ne.s32.totalorder %s23, %s26
    %p35 = scmp.eq.s32.totalorder %s18, 3
    %p36 = por %p34, %p35
    %p37 = scmp.ne.s32.totalorder %s26, %s27
    %p38 = scmp.eq.s32.totalorder %s18, 0
    %p39 = por %p37, %p38
    %p40 = scmp.ne.s32.totalorder %s26, %s27
    %p41 = scmp.eq.s32.totalorder %s19, 3
    %p42 = por %p40, %p41
    %p44 = scmp.ne.s32.totalorder %s27, %s43
    %p45 = scmp.eq.s32.totalorder %s19, 0
    %p46 = por %p44, %p45
    %s48 = sadd.s32 %s47, 1
    %p51 = scmp.eq.s32.totalorder %s13, 3
    %p52 = scmp.ne.s32.totalorder %s47, %s49
    %p53 = scmp.eq.s32.totalorder %s13, 0
    %p54 = por %p52, %p53
    %p55 = scmp.ne.s32.totalorder %s47, %s49
    %p56 = scmp.eq.s32.totalorder %s18, 3
    %p57 = por %p55, %p56
    %p58 = scmp.ne.s32.totalorder %s49, %s50
    %p59 = scmp.eq.s32.totalorder %s18, 0
    %p60 = por %p58, %p59
    %p61 = scmp.ne.s32.totalorder %s49, %s50
    %p62 = scmp.eq.s32.totalorder %s19, 3
    %p63 = por %p61, %p62
    %p65 = scmp.ne.s32.totalorder %s50, %s64
    %p66 = scmp.eq.s32.totalorder %s19, 0
    %p67 = por %p65, %p66
    %s69 = sadd.s32 %s68, 1
    %p72 = scmp.eq.s32.totalorder %s13, 3
    %p73 = scmp.ne.s32.totalorder %s68, %s70
    %p74 = scmp.eq.s32.totalorder %s13, 0
    %p75 = por %p73, %p74
    %p76 = scmp.ne.s32.totalorder %s68, %s70
    %p77 = scmp.eq.s32.totalorder %s18, 3
    %p78 = por %p76, %p77
    %p79 = scmp.ne.s32.totalorder %s70, %s71
    %p80 = scmp.eq.s32.totalorder %s18, 0
    %p81 = por %p79, %p80
    %p82 = scmp.ne.s32.totalorder %s70, %s71
    %p83 = scmp.eq.s32.totalorder %s19, 3
    %p84 = por %p82, %p83
    %p86 = scmp.ne.s32.totalorder %s71, %s85
    %p87 = scmp.eq.s32.totalorder %s19, 0
    %p88 = por %p86, %p87
    %s89 = ssub.s32 %s13, %s20
    %p90 = scmp.eq.s32.totalorder %s89, 0
    %s92 = sadd.s32 %s91, 1
    %s93 = scalar_select %p90, %s91, %s92
    %p96 = pneg %p90
    %p97 = scmp.eq.s32.totalorder %s13, 3
    %p98 = por %p96, %p97
    %p99 = scmp.ne.s32.totalorder %s91, %s94
    %p100 = scmp.eq.s32.totalorder %s13, 0
    %p101 = por %p99, %p100
    %p102 = scmp.ne.s32.totalorder %s91, %s94
    %p103 = scmp.eq.s32.totalorder %s18, 3
    %p104 = por %p102, %p103
    %p105 = scmp.ne.s32.totalorder %s94, %s95
    %p106 = scmp.eq.s32.totalorder %s18, 0
    %p107 = por %p105, %p106
    %p108 = scmp.ne.s32.totalorder %s94, %s95
    %p109 = scmp.eq.s32.totalorder %s19, 3
    %p110 = por %p108, %p109
    %p112 = scmp.ne.s32.totalorder %s95, %s111
    %p113 = scmp.eq.s32.totalorder %s19, 0
    %p114 = por %p112, %p113
    %s116 = sadd.s32 %s115, 1
    %p119 = scmp.eq.s32.totalorder %s13, 3
    %p120 = scmp.ne.s32.totalorder %s115, %s117
    %p121 = scmp.eq.s32.totalorder %s13, 0
    %p122 = por %p120, %p121
    %p123 = scmp.ne.s32.totalorder %s115, %s117
    %p124 = scmp.eq.s32.totalorder %s18, 3
    %p125 = por %p123, %p124
    %p126 = scmp.ne.s32.totalorder %s117, %s118
    %p127 = scmp.eq.s32.totalorder %s18, 0
    %p128 = por %p126, %p127
    %p129 = scmp.ne.s32.totalorder %s117, %s118
    %p130 = scmp.eq.s32.totalorder %s19, 3
    %p131 = por %p129, %p130
    %p133 = scmp.ne.s32.totalorder %s118, %s132
    %p134 = scmp.eq.s32.totalorder %s19, 0
    %p135 = por %p133, %p134
    %s137 = sadd.s32 %s136, 1
    %p140 = scmp.eq.s32.totalorder %s13, 3
    %p141 = scmp.ne.s32.totalorder %s136, %s138
    %p142 = scmp.eq.s32.totalorder %s13, 0
    %p143 = por %p141, %p142
    %p144 = scmp.ne.s32.totalorder %s136, %s138
    %p145 = scmp.eq.s32.totalorder %s18, 3
    %p146 = por %p144, %p145
    %p147 = scmp.ne.s32.totalorder %s138, %s139
    %p148 = scmp.eq.s32.totalorder %s18, 0
    %p149 = por %p147, %p148
    %p150 = scmp.ne.s32.totalorder %s138, %s139
    %p151 = scmp.eq.s32.totalorder %s19, 3
    %p152 = por %p150, %p151
    %p154 = scmp.ne.s32.totalorder %s139, %s153
    %p155 = scmp.eq.s32.totalorder %s19, 0
    %p156 = por %p154, %p155
    %s158 = sadd.s32 %s157, 1
    %p161 = scmp.eq.s32.totalorder %s13, 3
    %p162 = scmp.ne.s32.totalorder %s157, %s159
    %p163 = scmp.eq.s32.totalorder %s13, 0
    %p164 = por %p162, %p163
    %p165 = scmp.ne.s32.totalorder %s157, %s159
    %p166 = scmp.eq.s32.totalorder %s18, 3
    %p167 = por %p165, %p166
    %p168 = scmp.ne.s32.totalorder %s159, %s160
    %p169 = scmp.eq.s32.totalorder %s18, 0
    %p170 = por %p168, %p169
    %p171 = scmp.ne.s32.totalorder %s159, %s160
    %p172 = scmp.eq.s32.totalorder %s19, 3
    %p173 = por %p171, %p172
    %p175 = scmp.ne.s32.totalorder %s160, %s174
    %p176 = scmp.eq.s32.totalorder %s19, 0
    %p177 = por %p175, %p176
    %s178 = ssub.s32 %s13, %s20
    %p179 = scmp.eq.s32.totalorder %s178, 0
    %s181 = sadd.s32 %s180, 1
    %s182 = scalar_select %p179, %s180, %s181
    %p185 = pneg %p179
    %p186 = scmp.eq.s32.totalorder %s13, 3
    %p187 = por %p185, %p186
    %p188 = scmp.ne.s32.totalorder %s180, %s183
    %p189 = scmp.eq.s32.totalorder %s13, 0
    %p190 = por %p188, %p189
    %p191 = scmp.ne.s32.totalorder %s180, %s183
    %p192 = scmp.eq.s32.totalorder %s18, 3
    %p193 = por %p191, %p192
    %p194 = scmp.ne.s32.totalorder %s183, %s184
    %p195 = scmp.eq.s32.totalorder %s18, 0
    %p196 = por %p194, %p195
    %p197 = scmp.ne.s32.totalorder %s183, %s184
    %p198 = scmp.eq.s32.totalorder %s19, 3
    %p199 = por %p197, %p198
    %p201 = scmp.ne.s32.totalorder %s184, %s200
    %p202 = scmp.eq.s32.totalorder %s19, 0
    %p203 = por %p201, %p202
    %p204 = scmp.le.s32.totalorder 1, %s13
    %p205 = scmp.lt.s32.totalorder %s13, 5
    %p206 = pnand %p204, %p205
    %p207 = pneg %p206
    // Predicated region
    $region9: #{basic_block3d_forward.9} parent=5 // pred_check
      _
    $region10: #{basic_block3d_forward.9} parent=5 // pred_check_branch
      %209 = sbr.rel (%p206) target = $region12
    $region11: #{basic_block3d_forward.9} parent=5 // pred_region
      %s210 = ssub.s32 %s13, 1
      // Predicated region
      $region13: #{basic_block3d_forward.9} parent=11 // pred_check
        %p211 = pneg %p60
      $region14: #{basic_block3d_forward.9} parent=11 // pred_check_branch
        %213 = sbr.rel (%p211) target = $region16
      $region15: #{basic_block3d_forward.9} parent=11 // pred_region
        _
      $region16: #{basic_block3d_forward.9} parent=11 // pred_fallthru
        _
      // Predicated region
      $region17: #{basic_block3d_forward.9} parent=11 // pred_check
        %p214 = pneg %p81
      $region18: #{basic_block3d_forward.9} parent=11 // pred_check_branch
        %216 = sbr.rel (%p214) target = $region20
      $region19: #{basic_block3d_forward.9} parent=11 // pred_region
        _
      $region20: #{basic_block3d_forward.9} parent=11 // pred_fallthru
        _
      // Predicated region
      $region21: #{basic_block3d_forward.9} parent=11 // pred_check
        %p217 = pneg %p128
      $region22: #{basic_block3d_forward.9} parent=11 // pred_check_branch
        %219 = sbr.rel (%p217) target = $region24
      $region23: #{basic_block3d_forward.9} parent=11 // pred_region
        _
      $region24: #{basic_block3d_forward.9} parent=11 // pred_fallthru
        _
      // Predicated region
      $region25: #{basic_block3d_forward.9} parent=11 // pred_check
        %p220 = pneg %p149
      $region26: #{basic_block3d_forward.9} parent=11 // pred_check_branch
        %222 = sbr.rel (%p220) target = $region28
      $region27: #{basic_block3d_forward.9} parent=11 // pred_region
        _
      $region28: #{basic_block3d_forward.9} parent=11 // pred_fallthru
        _
      // Predicated region
      $region29: #{basic_block3d_forward.9} parent=11 // pred_check
        %p223 = pneg %p170
      $region30: #{basic_block3d_forward.9} parent=11 // pred_check_branch
        %225 = sbr.rel (%p223) target = $region32
      $region31: #{basic_block3d_forward.9} parent=11 // pred_region
        _
      $region32: #{basic_block3d_forward.9} parent=11 // pred_fallthru
        _
    $region12: #{basic_block3d_forward.9} parent=5 // pred_fallthru
      _
    %p226 = scmp.lt.s32.totalorder %s13, 4
    // Predicated region
    $region33: #{basic_block3d_forward.9} parent=5 // pred_check
      %p227 = pneg %p226
    $region34: #{basic_block3d_forward.9} parent=5 // pred_check_branch
      %229 = sbr.rel (%p227) target = $region36
    $region35: #{basic_block3d_forward.9} parent=5 // pred_region
      // Predicated region
      $region37: #{basic_block3d_forward.9} parent=35 // pred_check
        %p230 = pneg %p33
      $region38: #{basic_block3d_forward.9} parent=35 // pred_check_branch
        %232 = sbr.rel (%p230) target = $region40
      $region39: #{basic_block3d_forward.9} parent=35 // pred_region
        %s233 = smul.u32 16, %s13
        %p234 = scmp.lt.s32.totalorder %s233, 63
        %s235 = scalar_select %p234, %s233, 63
        %s236 = smul.addr %s235, 2
        %s237 = smul.addr %s236, 4
        %s238 = scalar_lea.vmem %s0, %s237
        %s239 = smul.u32 16, %s13
      $region40: #{basic_block3d_forward.9} parent=35 // pred_fallthru
        _
      // Predicated region
      $region41: #{basic_block3d_forward.9} parent=35 // pred_check
        %p240 = pneg %p101
      $region42: #{basic_block3d_forward.9} parent=35 // pred_check_branch
        %242 = sbr.rel (%p240) target = $region44
      $region43: #{basic_block3d_forward.9} parent=35 // pred_region
        %s243 = smul.u32 16, %s13
        %p244 = scmp.lt.s32.totalorder %s243, 63
        %s245 = scalar_select %p244, %s243, 63
        %s246 = smul.addr %s245, 4
        %s247 = scalar_lea.vmem %s3, %s246
        %s248 = smul.u32 16, %s13
      $region44: #{basic_block3d_forward.9} parent=35 // pred_fallthru
        _
    $region36: #{basic_block3d_forward.9} parent=5 // pred_fallthru
      _
    %p249 = scmp.le.s32.totalorder 1, %s13
    %p250 = scmp.lt.s32.totalorder %s13, 5
    %p251 = pnand %p249, %p250
    %p252 = pneg %p251
    // Predicated region
    $region45: #{basic_block3d_forward.9} parent=5 // pred_check
      _
    $region46: #{basic_block3d_forward.9} parent=5 // pred_check_branch
      %254 = sbr.rel (%p251) target = $region48
    $region47: #{basic_block3d_forward.9} parent=5 // pred_region
      %s255 = ssub.s32 %s13, 1
      %s256 = smul.u32 16, %s18
      %p257 = scmp.lt.s32.totalorder %s256, 63
      %s258 = scalar_select %p257, %s256, 63
      %s259 = smul.addr %s258, 2
      %s260 = smul.addr %s259, 4
      %s261 = scalar_lea.vmem %s0, %s260
      %p262 = pneg %p39
      %p263 = pneg %p36
      %p264 = pneg %p60
      %p265 = pneg %p57
      %p266 = pneg %p81
      %p267 = pneg %p78
      %s268 = smul.u32 16, %s18
      %p269 = scmp.lt.s32.totalorder %s268, 63
      %s270 = scalar_select %p269, %s268, 63
      %s271 = smul.addr %s270, 4
      %s272 = scalar_lea.vmem %s3, %s271
      %p273 = pneg %p107
      %p274 = pneg %p104
      %p275 = pneg %p128
      %p276 = pneg %p125
      %p277 = pneg %p149
      %p278 = pneg %p146
      %p279 = pneg %p170
      %p280 = pneg %p167
      %p281 = pneg %p196
      %p282 = pneg %p193
      %s283 = smul.u32 16, %s18
      %p284 = scmp.lt.s32.totalorder %s283, 63
      %s285 = scalar_select %p284, %s283, 63
      %s286 = smul.addr %s285, 2
      %s287 = smul.addr %s286, 8
      %s288 = scalar_lea.vmem %s7, %s287
      %s289 = smul.u32 16, %s18
      %p290 = scmp.lt.s32.totalorder %s289, 63
      %s291 = scalar_select %p290, %s289, 63
      %s292 = smul.addr %s291, 2
      %s293 = smul.addr %s292, 4
      %s294 = scalar_lea.vmem %s0, %s293
      %s295 = smul.u32 16, %s18
      %s296 = smul.u32 16, %s18
      %p297 = scmp.lt.s32.totalorder %s296, 63
      %s298 = scalar_select %p297, %s296, 63
      %s299 = smul.addr %s298, 4
      %s300 = scalar_lea.vmem %s3, %s299
      %s301 = smul.u32 16, %s18
      %s302 = smul.u32 16, %s18
      %p303 = scmp.lt.s32.totalorder %s302, 63
      %s304 = scalar_select %p303, %s302, 63
      %s305 = smul.addr %s304, 2
      %s306 = smul.addr %s305, 8
      %s307 = scalar_lea.vmem %s7, %s306
      %s308 = smul.u32 16, %s18
      %v310 = vld [vmem:[%s294] sm:$0xff]
      %v311 = vld [vmem:[%s294 + $0x8] sm:$0xff]
      %v312 = vld [vmem:[%s294 + $0x10] sm:$0xff]
      %v313 = vld [vmem:[%s294 + $0x18] sm:$0xff]
      %v314 = vld [vmem:[%s294 + $0x20] sm:$0xff]
      %v315 = vld [vmem:[%s294 + $0x28] sm:$0xff]
      %v316 = vld [vmem:[%s294 + $0x30] sm:$0xff]
      %v317 = vld [vmem:[%s294 + $0x38] sm:$0xff]
      %v318 = vld [vmem:[%s294 + $0x40] sm:$0xff]
      %v319 = vld [vmem:[%s294 + $0x48] sm:$0xff]
      %v320 = vld [vmem:[%s294 + $0x50] sm:$0xff]
      %v321 = vld [vmem:[%s294 + $0x58] sm:$0xff]
      %v322 = vld [vmem:[%s294 + $0x60] sm:$0xff]
      %v323 = vld [vmem:[%s294 + $0x68] sm:$0xff]
      %v324 = vld [vmem:[%s294 + $0x70] sm:$0xff]
      %v325 = vld [vmem:[%s294 + $0x78] sm:$0xff]
      %v326 = vunpack.c.l.bf16 %v310
      %v327 = vunpack.c.h.bf16 %v310
      %v328 = vunpack.c.l.bf16 %v311
      %v329 = vunpack.c.h.bf16 %v311
      %v330 = vunpack.c.l.bf16 %v312
      %v331 = vunpack.c.h.bf16 %v312
      %v332 = vunpack.c.l.bf16 %v313
      %v333 = vunpack.c.h.bf16 %v313
      %v334 = vunpack.c.l.bf16 %v314
      %v335 = vunpack.c.h.bf16 %v314
      %v336 = vunpack.c.l.bf16 %v315
      %v337 = vunpack.c.h.bf16 %v315
      %v338 = vunpack.c.l.bf16 %v316
      %v339 = vunpack.c.h.bf16 %v316
      %v340 = vunpack.c.l.bf16 %v317
      %v341 = vunpack.c.h.bf16 %v317
      %v342 = vunpack.c.l.bf16 %v318
      %v343 = vunpack.c.h.bf16 %v318
      %v344 = vunpack.c.l.bf16 %v319
      %v345 = vunpack.c.h.bf16 %v319
      %v346 = vunpack.c.l.bf16 %v320
      %v347 = vunpack.c.h.bf16 %v320
      %v348 = vunpack.c.l.bf16 %v321
      %v349 = vunpack.c.h.bf16 %v321
      %v350 = vunpack.c.l.bf16 %v322
      %v351 = vunpack.c.h.bf16 %v322
      %v352 = vunpack.c.l.bf16 %v323
      %v353 = vunpack.c.h.bf16 %v323
      %v354 = vunpack.c.l.bf16 %v324
      %v355 = vunpack.c.h.bf16 %v324
      %v356 = vunpack.c.l.bf16 %v325
      %v357 = vunpack.c.h.bf16 %v325
      %v358 = vld [vmem:[%s1] sm:$0x3]
      %v360 = vlaneseq
      %v361 = vshrl.u32 %v360, 7
      %v362 = vsub.s32 0, %v361
      %v363 = vrot.slane %v358, %v362
      %v364 = vlaneseq
      %v365 = vshrl.u32 %v364, 7
      %v366 = vsub.s32 1, %v365
      %v367 = vrot.slane %v358, %v366
      %v370 = vmul.f32 %v326, %v363
      %v371 = vmul.f32 %v327, %v367
      %v372 = vmul.f32 %v328, %v363
      %v373 = vmul.f32 %v329, %v367
      %v374 = vmul.f32 %v330, %v363
      %v375 = vmul.f32 %v331, %v367
      %v376 = vmul.f32 %v332, %v363
      %v377 = vmul.f32 %v333, %v367
      %v378 = vmul.f32 %v334, %v363
      %v379 = vmul.f32 %v335, %v367
      %v380 = vmul.f32 %v336, %v363
      %v381 = vmul.f32 %v337, %v367
      %v382 = vmul.f32 %v338, %v363
      %v383 = vmul.f32 %v339, %v367
      %v384 = vmul.f32 %v340, %v363
      %v385 = vmul.f32 %v341, %v367
      %v386 = vmul.f32 %v342, %v363
      %v387 = vmul.f32 %v343, %v367
      %v388 = vmul.f32 %v344, %v363
      %v389 = vmul.f32 %v345, %v367
      %v390 = vmul.f32 %v346, %v363
      %v391 = vmul.f32 %v347, %v367
      %v392 = vmul.f32 %v348, %v363
      %v393 = vmul.f32 %v349, %v367
      %v394 = vmul.f32 %v350, %v363
      %v395 = vmul.f32 %v351, %v367
      %v396 = vmul.f32 %v352, %v363
      %v397 = vmul.f32 %v353, %v367
      %v398 = vmul.f32 %v354, %v363
      %v399 = vmul.f32 %v355, %v367
      %v400 = vmul.f32 %v356, %v363
      %v401 = vmul.f32 %v357, %v367
      %v402 = vld [vmem:[%s2] sm:$0x3]
      %v404 = vlaneseq
      %v405 = vshrl.u32 %v404, 7
      %v406 = vsub.s32 0, %v405
      %v407 = vrot.slane %v402, %v406
      %v408 = vlaneseq
      %v409 = vshrl.u32 %v408, 7
      %v410 = vsub.s32 1, %v409
      %v411 = vrot.slane %v402, %v410
      %v414 = vadd.f32 %v370, %v407
      %v415 = vadd.f32 %v371, %v411
      %v416 = vadd.f32 %v372, %v407
      %v417 = vadd.f32 %v373, %v411
      %v418 = vadd.f32 %v374, %v407
      %v419 = vadd.f32 %v375, %v411
      %v420 = vadd.f32 %v376, %v407
      %v421 = vadd.f32 %v377, %v411
      %v422 = vadd.f32 %v378, %v407
      %v423 = vadd.f32 %v379, %v411
      %v424 = vadd.f32 %v380, %v407
      %v425 = vadd.f32 %v381, %v411
      %v426 = vadd.f32 %v382, %v407
      %v427 = vadd.f32 %v383, %v411
      %v428 = vadd.f32 %v384, %v407
      %v429 = vadd.f32 %v385, %v411
      %v430 = vadd.f32 %v386, %v407
      %v431 = vadd.f32 %v387, %v411
      %v432 = vadd.f32 %v388, %v407
      %v433 = vadd.f32 %v389, %v411
      %v434 = vadd.f32 %v390, %v407
      %v435 = vadd.f32 %v391, %v411
      %v436 = vadd.f32 %v392, %v407
      %v437 = vadd.f32 %v393, %v411
      %v438 = vadd.f32 %v394, %v407
      %v439 = vadd.f32 %v395, %v411
      %v440 = vadd.f32 %v396, %v407
      %v441 = vadd.f32 %v397, %v411
      %v442 = vadd.f32 %v398, %v407
      %v443 = vadd.f32 %v399, %v411
      %v444 = vadd.f32 %v400, %v407
      %v445 = vadd.f32 %v401, %v411
      %v446 = vld [vmem:[%s300] sm:$0xf]
      %v447 = vld [vmem:[%s300 + $0x4] sm:$0xf]
      %v448 = vld [vmem:[%s300 + $0x8] sm:$0xf]
      %v449 = vld [vmem:[%s300 + $0xc] sm:$0xf]
      %v450 = vld [vmem:[%s300 + $0x10] sm:$0xf]
      %v451 = vld [vmem:[%s300 + $0x14] sm:$0xf]
      %v452 = vld [vmem:[%s300 + $0x18] sm:$0xf]
      %v453 = vld [vmem:[%s300 + $0x1c] sm:$0xf]
      %v454 = vld [vmem:[%s300 + $0x20] sm:$0xf]
      %v455 = vld [vmem:[%s300 + $0x24] sm:$0xf]
      %v456 = vld [vmem:[%s300 + $0x28] sm:$0xf]
      %v457 = vld [vmem:[%s300 + $0x2c] sm:$0xf]
      %v458 = vld [vmem:[%s300 + $0x30] sm:$0xf]
      %v459 = vld [vmem:[%s300 + $0x34] sm:$0xf]
      %v460 = vld [vmem:[%s300 + $0x38] sm:$0xf]
      %v461 = vld [vmem:[%s300 + $0x3c] sm:$0xf]
      %v462 = vld [vmem:[%s4] sm:$0xff]
      %v463 = vld [vmem:[%s4 + $0x8] sm:$0xff]
      %v464 = vld [vmem:[%s4 + $0x10] sm:$0xff]
      %v465 = vld [vmem:[%s4 + $0x18] sm:$0xff]
      %v466 = vld [vmem:[%s4 + $0x20] sm:$0xff]
      %v467 = vld [vmem:[%s4 + $0x28] sm:$0xff]
      %v468 = vld [vmem:[%s4 + $0x30] sm:$0xff]
      %v469 = vld [vmem:[%s4 + $0x38] sm:$0xff]
      %v470 = vld [vmem:[%s4 + $0x40] sm:$0xff]
      %v471 = vld [vmem:[%s4 + $0x48] sm:$0xff]
      %v472 = vld [vmem:[%s4 + $0x50] sm:$0xff]
      %v473 = vld [vmem:[%s4 + $0x58] sm:$0xff]
      %v474 = vld [vmem:[%s4 + $0x60] sm:$0xff]
      %v475 = vld [vmem:[%s4 + $0x68] sm:$0xff]
      %v476 = vld [vmem:[%s4 + $0x70] sm:$0xff]
      %v477 = vld [vmem:[%s4 + $0x78] sm:$0xff]
      %v494 = vunpack.c.l.b16 %v446
      %v495 = vunpack.c.l.b16 %v447
      %v496 = vunpack.c.l.b16 %v448
      %v497 = vunpack.c.l.b16 %v449
      %v498 = vunpack.c.l.b16 %v450
      %v499 = vunpack.c.l.b16 %v451
      %v500 = vunpack.c.l.b16 %v452
      %v501 = vunpack.c.l.b16 %v453
      %v502 = vunpack.c.l.b16 %v454
      %v503 = vunpack.c.l.b16 %v455
      %v504 = vunpack.c.l.b16 %v456
      %v505 = vunpack.c.l.b16 %v457
      %v506 = vunpack.c.l.b16 %v458
      %v507 = vunpack.c.l.b16 %v459
      %v508 = vunpack.c.l.b16 %v460
      %v509 = vunpack.c.l.b16 %v461
      %v510 = vpack.c.b16 %v495, %v494
      %v511 = vpack.c.b16 %v497, %v496
      %v512 = vpack.c.b16 %v499, %v498
      %v513 = vpack.c.b16 %v501, %v500
      %v514 = vpack.c.b16 %v503, %v502
      %v515 = vpack.c.b16 %v505, %v504
      %v516 = vpack.c.b16 %v507, %v506
      %v517 = vpack.c.b16 %v509, %v508
      %v542 = vunpack.c.l.b16 %v462
      %v543 = vunpack.c.h.b16 %v462
      %v544 = vunpack.c.l.b16 %v463
      %v545 = vunpack.c.h.b16 %v463
      %v546 = vunpack.c.l.b16 %v464
      %v547 = vunpack.c.h.b16 %v464
      %v548 = vunpack.c.l.b16 %v465
      %v549 = vunpack.c.h.b16 %v465
      %v550 = vunpack.c.l.b16 %v466
      %v551 = vunpack.c.h.b16 %v466
      %v552 = vunpack.c.l.b16 %v467
      %v553 = vunpack.c.h.b16 %v467
      %v554 = vunpack.c.l.b16 %v468
      %v555 = vunpack.c.h.b16 %v468
      %v556 = vunpack.c.l.b16 %v469
      %v557 = vunpack.c.h.b16 %v469
      %v558 = vunpack.c.l.b16 %v470
      %v559 = vunpack.c.h.b16 %v470
      %v560 = vunpack.c.l.b16 %v471
      %v561 = vunpack.c.h.b16 %v471
      %v562 = vunpack.c.l.b16 %v472
      %v563 = vunpack.c.h.b16 %v472
      %v564 = vunpack.c.l.b16 %v473
      %v565 = vunpack.c.h.b16 %v473
      %v566 = vunpack.c.l.b16 %v474
      %v567 = vunpack.c.h.b16 %v474
      %v568 = vunpack.c.l.b16 %v475
      %v569 = vunpack.c.h.b16 %v475
      %v570 = vunpack.c.l.b16 %v476
      %v571 = vunpack.c.h.b16 %v476
      %v572 = vunpack.c.l.b16 %v477
      %v573 = vunpack.c.h.b16 %v477
      %v574 = vpack.c.b16 %v544, %v542
      %v575 = vpack.c.b16 %v545, %v543
      %v576 = vpack.c.b16 %v548, %v546
      %v577 = vpack.c.b16 %v549, %v547
      %v578 = vpack.c.b16 %v552, %v550
      %v579 = vpack.c.b16 %v553, %v551
      %v580 = vpack.c.b16 %v556, %v554
      %v581 = vpack.c.b16 %v557, %v555
      %v582 = vpack.c.b16 %v560, %v558
      %v583 = vpack.c.b16 %v561, %v559
      %v584 = vpack.c.b16 %v564, %v562
      %v585 = vpack.c.b16 %v565, %v563
      %v586 = vpack.c.b16 %v568, %v566
      %v587 = vpack.c.b16 %v569, %v567
      %v588 = vpack.c.b16 %v572, %v570
      %v589 = vpack.c.b16 %v573, %v571
      %606 = vmatprep.subr.bf16.mxu0 %v575
      %607 = vmatpush1.bf16.msra.mxu0 %v574
      %608 = vmatprep.subr.bf16.mxu0 %v577
      %609 = vmatpush1.bf16.msra.mxu0 %v576
      %610 = vmatprep.subr.bf16.mxu0 %v579
      %611 = vmatpush1.bf16.msra.mxu0 %v578
      %612 = vmatprep.subr.bf16.mxu0 %v581
      %613 = vmatpush1.bf16.msra.mxu0 %v580
      %614 = vmatprep.subr.bf16.mxu0 %v583
      %615 = vmatpush1.bf16.msra.mxu0 %v582
      %616 = vmatprep.subr.bf16.mxu0 %v585
      %617 = vmatpush1.bf16.msra.mxu0 %v584
      %618 = vmatprep.subr.bf16.mxu0 %v587
      %619 = vmatpush1.bf16.msra.mxu0 %v586
      %620 = vmatprep.subr.bf16.mxu0 %v589
      %621 = vmatpush1.bf16.msra.mxu0 %v588
      %622 = vmatprep.subr.bf16.mxu0 0
      %623 = vmatpush1.bf16.msra.mxu0 0
      %624 = vmatprep.subr.bf16.mxu0 0
      %625 = vmatpush1.bf16.msra.mxu0 0
      %626 = vmatprep.subr.bf16.mxu0 0
      %627 = vmatpush1.bf16.msra.mxu0 0
      %628 = vmatprep.subr.bf16.mxu0 0
      %629 = vmatpush1.bf16.msra.mxu0 0
      %630 = vmatprep.subr.bf16.mxu0 0
      %631 = vmatpush1.bf16.msra.mxu0 0
      %632 = vmatprep.subr.bf16.mxu0 0
      %633 = vmatpush1.bf16.msra.mxu0 0
      %634 = vmatprep.subr.bf16.mxu0 0
      %635 = vmatpush1.bf16.msra.mxu0 0
      %636 = vmatprep.subr.bf16.mxu0 0
      %637 = vmatpush1.bf16.msra.mxu0 0
      %638 = vmatprep.mubr.bf16.mxu0 0
      %639 = vmatmul.mubr.bf16.gmra.mrb[0].mxu0 %v510
      %v640 = vpop.f32.mrb[0].mxu0
      %v641 = vadd.f32 0.0, %v640
      %v642 = vpop.f32.mrb[0].mxu0
      %v643 = vadd.f32 0.0, %v642
      %v644 = vpop.f32.mrb[0].mxu0
      %v645 = vadd.f32 0.0, %v644
      %v646 = vpop.f32.mrb[0].mxu0
      %v647 = vadd.f32 0.0, %v646
      %648 = vmatprep.mubr.bf16.mxu0 0
      %649 = vmatmul.mubr.bf16.gmra.mrb[0].mxu0 %v511
      %v650 = vpop.f32.mrb[0].mxu0
      %v651 = vadd.f32 0.0, %v650
      %v652 = vpop.f32.mrb[0].mxu0
      %v653 = vadd.f32 0.0, %v652
      %v654 = vpop.f32.mrb[0].mxu0
      %v655 = vadd.f32 0.0, %v654
      %v656 = vpop.f32.mrb[0].mxu0
      %v657 = vadd.f32 0.0, %v656
      %658 = vmatprep.mubr.bf16.mxu0 0
      %659 = vmatmul.mubr.bf16.gmra.mrb[0].mxu0 %v512
      %v660 = vpop.f32.mrb[0].mxu0
      %v661 = vadd.f32 0.0, %v660
      %v662 = vpop.f32.mrb[0].mxu0
      %v663 = vadd.f32 0.0, %v662
      %v664 = vpop.f32.mrb[0].mxu0
      %v665 = vadd.f32 0.0, %v664
      %v666 = vpop.f32.mrb[0].mxu0
      %v667 = vadd.f32 0.0, %v666
      %668 = vmatprep.mubr.bf16.mxu0 0
      %669 = vmatmul.mubr.bf16.gmra.mrb[0].mxu0 %v513
      %v670 = vpop.f32.mrb[0].mxu0
      %v671 = vadd.f32 0.0, %v670
      %v672 = vpop.f32.mrb[0].mxu0
      %v673 = vadd.f32 0.0, %v672
      %v674 = vpop.f32.mrb[0].mxu0
      %v675 = vadd.f32 0.0, %v674
      %v676 = vpop.f32.mrb[0].mxu0
      %v677 = vadd.f32 0.0, %v676
      %678 = vmatprep.mubr.bf16.mxu0 0
      %679 = vmatmul.mubr.bf16.gmra.mrb[0].mxu0 %v514
      %v680 = vpop.f32.mrb[0].mxu0
      %v681 = vadd.f32 0.0, %v680
      %v682 = vpop.f32.mrb[0].mxu0
      %v683 = vadd.f32 0.0, %v682
      %v684 = vpop.f32.mrb[0].mxu0
      %v685 = vadd.f32 0.0, %v684
      %v686 = vpop.f32.mrb[0].mxu0
      %v687 = vadd.f32 0.0, %v686
      %688 = vmatprep.mubr.bf16.mxu0 0
      %689 = vmatmul.mubr.bf16.gmra.mrb[0].mxu0 %v515
      %v690 = vpop.f32.mrb[0].mxu0
      %v691 = vadd.f32 0.0, %v690
      %v692 = vpop.f32.mrb[0].mxu0
      %v693 = vadd.f32 0.0, %v692
      %v694 = vpop.f32.mrb[0].mxu0
      %v695 = vadd.f32 0.0, %v694
      %v696 = vpop.f32.mrb[0].mxu0
      %v697 = vadd.f32 0.0, %v696
      %698 = vmatprep.mubr.bf16.mxu0 0
      %699 = vmatmul.mubr.bf16.gmra.mrb[0].mxu0 %v516
      %v700 = vpop.f32.mrb[0].mxu0
      %v701 = vadd.f32 0.0, %v700
      %v702 = vpop.f32.mrb[0].mxu0
      %v703 = vadd.f32 0.0, %v702
      %v704 = vpop.f32.mrb[0].mxu0
      %v705 = vadd.f32 0.0, %v704
      %v706 = vpop.f32.mrb[0].mxu0
      %v707 = vadd.f32 0.0, %v706
      %708 = vmatprep.mubr.bf16.mxu0 0
      %709 = vmatmul.mubr.bf16.gmra.mrb[0].mxu0 %v517
      %v710 = vpop.f32.mrb[0].mxu0
      %v711 = vadd.f32 0.0, %v710
      %v712 = vpop.f32.mrb[0].mxu0
      %v713 = vadd.f32 0.0, %v712
      %v714 = vpop.f32.mrb[0].mxu0
      %v715 = vadd.f32 0.0, %v714
      %v716 = vpop.f32.mrb[0].mxu0
      %v717 = vadd.f32 0.0, %v716
      %718 = vdwg.mxu0
      %v719 = vld [vmem:[%s5] sm:$0x3]
      %v721 = vlaneseq
      %v722 = vshrl.u32 %v721, 7
      %v723 = vsub.s32 0, %v722
      %v724 = vrot.slane %v719, %v723
      %v725 = vlaneseq
      %v726 = vshrl.u32 %v725, 7
      %v727 = vsub.s32 1, %v726
      %v728 = vrot.slane %v719, %v727
      %v731 = vmul.f32 %v641, %v724
      %v732 = vmul.f32 %v643, %v728
      %v733 = vmul.f32 %v645, %v724
      %v734 = vmul.f32 %v647, %v728
      %v735 = vmul.f32 %v651, %v724
      %v736 = vmul.f32 %v653, %v728
      %v737 = vmul.f32 %v655, %v724
      %v738 = vmul.f32 %v657, %v728
      %v739 = vmul.f32 %v661, %v724
      %v740 = vmul.f32 %v663, %v728
      %v741 = vmul.f32 %v665, %v724
      %v742 = vmul.f32 %v667, %v728
      %v743 = vmul.f32 %v671, %v724
      %v744 = vmul.f32 %v673, %v728
      %v745 = vmul.f32 %v675, %v724
      %v746 = vmul.f32 %v677, %v728
      %v747 = vmul.f32 %v681, %v724
      %v748 = vmul.f32 %v683, %v728
      %v749 = vmul.f32 %v685, %v724
      %v750 = vmul.f32 %v687, %v728
      %v751 = vmul.f32 %v691, %v724
      %v752 = vmul.f32 %v693, %v728
      %v753 = vmul.f32 %v695, %v724
      %v754 = vmul.f32 %v697, %v728
      %v755 = vmul.f32 %v701, %v724
      %v756 = vmul.f32 %v703, %v728
      %v757 = vmul.f32 %v705, %v724
      %v758 = vmul.f32 %v707, %v728
      %v759 = vmul.f32 %v711, %v724
      %v760 = vmul.f32 %v713, %v728
      %v761 = vmul.f32 %v715, %v724
      %v762 = vmul.f32 %v717, %v728
      %v763 = vadd.f32 %v414, %v731
      %v764 = vadd.f32 %v415, %v732
      %v765 = vadd.f32 %v416, %v733
      %v766 = vadd.f32 %v417, %v734
      %v767 = vadd.f32 %v418, %v735
      %v768 = vadd.f32 %v419, %v736
      %v769 = vadd.f32 %v420, %v737
      %v770 = vadd.f32 %v421, %v738
      %v771 = vadd.f32 %v422, %v739
      %v772 = vadd.f32 %v423, %v740
      %v773 = vadd.f32 %v424, %v741
      %v774 = vadd.f32 %v425, %v742
      %v775 = vadd.f32 %v426, %v743
      %v776 = vadd.f32 %v427, %v744
      %v777 = vadd.f32 %v428, %v745
      %v778 = vadd.f32 %v429, %v746
      %v779 = vadd.f32 %v430, %v747
      %v780 = vadd.f32 %v431, %v748
      %v781 = vadd.f32 %v432, %v749
      %v782 = vadd.f32 %v433, %v750
      %v783 = vadd.f32 %v434, %v751
      %v784 = vadd.f32 %v435, %v752
      %v785 = vadd.f32 %v436, %v753
      %v786 = vadd.f32 %v437, %v754
      %v787 = vadd.f32 %v438, %v755
      %v788 = vadd.f32 %v439, %v756
      %v789 = vadd.f32 %v440, %v757
      %v790 = vadd.f32 %v441, %v758
      %v791 = vadd.f32 %v442, %v759
      %v792 = vadd.f32 %v443, %v760
      %v793 = vadd.f32 %v444, %v761
      %v794 = vadd.f32 %v445, %v762
      %v795 = vld [vmem:[%s6] sm:$0x3]
      %v797 = vlaneseq
      %v798 = vshrl.u32 %v797, 7
      %v799 = vsub.s32 0, %v798
      %v800 = vrot.slane %v795, %v799
      %v801 = vlaneseq
      %v802 = vshrl.u32 %v801, 7
      %v803 = vsub.s32 1, %v802
      %v804 = vrot.slane %v795, %v803
      %v807 = vadd.f32 %v763, %v800
      %v808 = vadd.f32 %v764, %v804
      %v809 = vadd.f32 %v765, %v800
      %v810 = vadd.f32 %v766, %v804
      %v811 = vadd.f32 %v767, %v800
      %v812 = vadd.f32 %v768, %v804
      %v813 = vadd.f32 %v769, %v800
      %v814 = vadd.f32 %v770, %v804
      %v815 = vadd.f32 %v771, %v800
      %v816 = vadd.f32 %v772, %v804
      %v817 = vadd.f32 %v773, %v800
      %v818 = vadd.f32 %v774, %v804
      %v819 = vadd.f32 %v775, %v800
      %v820 = vadd.f32 %v776, %v804
      %v821 = vadd.f32 %v777, %v800
      %v822 = vadd.f32 %v778, %v804
      %v823 = vadd.f32 %v779, %v800
      %v824 = vadd.f32 %v780, %v804
      %v825 = vadd.f32 %v781, %v800
      %v826 = vadd.f32 %v782, %v804
      %v827 = vadd.f32 %v783, %v800
      %v828 = vadd.f32 %v784, %v804
      %v829 = vadd.f32 %v785, %v800
      %v830 = vadd.f32 %v786, %v804
      %v831 = vadd.f32 %v787, %v800
      %v832 = vadd.f32 %v788, %v804
      %v833 = vadd.f32 %v789, %v800
      %v834 = vadd.f32 %v790, %v804
      %v835 = vadd.f32 %v791, %v800
      %v836 = vadd.f32 %v792, %v804
      %v837 = vadd.f32 %v793, %v800
      %v838 = vadd.f32 %v794, %v804
      %vm839 = vcmp.ge.f32.partialorder %v807, 0.0
      %vm840 = vcmp.ge.f32.partialorder %v808, 0.0
      %vm841 = vcmp.ge.f32.partialorder %v809, 0.0
      %vm842 = vcmp.ge.f32.partialorder %v810, 0.0
      %vm843 = vcmp.ge.f32.partialorder %v811, 0.0
      %vm844 = vcmp.ge.f32.partialorder %v812, 0.0
      %vm845 = vcmp.ge.f32.partialorder %v813, 0.0
      %vm846 = vcmp.ge.f32.partialorder %v814, 0.0
      %vm847 = vcmp.ge.f32.partialorder %v815, 0.0
      %vm848 = vcmp.ge.f32.partialorder %v816, 0.0
      %vm849 = vcmp.ge.f32.partialorder %v817, 0.0
      %vm850 = vcmp.ge.f32.partialorder %v818, 0.0
      %vm851 = vcmp.ge.f32.partialorder %v819, 0.0
      %vm852 = vcmp.ge.f32.partialorder %v820, 0.0
      %vm853 = vcmp.ge.f32.partialorder %v821, 0.0
      %vm854 = vcmp.ge.f32.partialorder %v822, 0.0
      %vm855 = vcmp.ge.f32.partialorder %v823, 0.0
      %vm856 = vcmp.ge.f32.partialorder %v824, 0.0
      %vm857 = vcmp.ge.f32.partialorder %v825, 0.0
      %vm858 = vcmp.ge.f32.partialorder %v826, 0.0
      %vm859 = vcmp.ge.f32.partialorder %v827, 0.0
      %vm860 = vcmp.ge.f32.partialorder %v828, 0.0
      %vm861 = vcmp.ge.f32.partialorder %v829, 0.0
      %vm862 = vcmp.ge.f32.partialorder %v830, 0.0
      %vm863 = vcmp.ge.f32.partialorder %v831, 0.0
      %vm864 = vcmp.ge.f32.partialorder %v832, 0.0
      %vm865 = vcmp.ge.f32.partialorder %v833, 0.0
      %vm866 = vcmp.ge.f32.partialorder %v834, 0.0
      %vm867 = vcmp.ge.f32.partialorder %v835, 0.0
      %vm868 = vcmp.ge.f32.partialorder %v836, 0.0
      %vm869 = vcmp.ge.f32.partialorder %v837, 0.0
      %vm870 = vcmp.ge.f32.partialorder %v838, 0.0
      %v871 = vmul.f32 %v807, 0.01
      %v872 = vmul.f32 %v808, 0.01
      %v873 = vmul.f32 %v809, 0.01
      %v874 = vmul.f32 %v810, 0.01
      %v875 = vmul.f32 %v811, 0.01
      %v876 = vmul.f32 %v812, 0.01
      %v877 = vmul.f32 %v813, 0.01
      %v878 = vmul.f32 %v814, 0.01
      %v879 = vmul.f32 %v815, 0.01
      %v880 = vmul.f32 %v816, 0.01
      %v881 = vmul.f32 %v817, 0.01
      %v882 = vmul.f32 %v818, 0.01
      %v883 = vmul.f32 %v819, 0.01
      %v884 = vmul.f32 %v820, 0.01
      %v885 = vmul.f32 %v821, 0.01
      %v886 = vmul.f32 %v822, 0.01
      %v887 = vmul.f32 %v823, 0.01
      %v888 = vmul.f32 %v824, 0.01
      %v889 = vmul.f32 %v825, 0.01
      %v890 = vmul.f32 %v826, 0.01
      %v891 = vmul.f32 %v827, 0.01
      %v892 = vmul.f32 %v828, 0.01
      %v893 = vmul.f32 %v829, 0.01
      %v894 = vmul.f32 %v830, 0.01
      %v895 = vmul.f32 %v831, 0.01
      %v896 = vmul.f32 %v832, 0.01
      %v897 = vmul.f32 %v833, 0.01
      %v898 = vmul.f32 %v834, 0.01
      %v899 = vmul.f32 %v835, 0.01
      %v900 = vmul.f32 %v836, 0.01
      %v901 = vmul.f32 %v837, 0.01
      %v902 = vmul.f32 %v838, 0.01
      %v903 = vsel %vm839, %v807, %v871
      %v904 = vsel %vm840, %v808, %v872
      %v905 = vsel %vm841, %v809, %v873
      %v906 = vsel %vm842, %v810, %v874
      %v907 = vsel %vm843, %v811, %v875
      %v908 = vsel %vm844, %v812, %v876
      %v909 = vsel %vm845, %v813, %v877
      %v910 = vsel %vm846, %v814, %v878
      %v911 = vsel %vm847, %v815, %v879
      %v912 = vsel %vm848, %v816, %v880
      %v913 = vsel %vm849, %v817, %v881
      %v914 = vsel %vm850, %v818, %v882
      %v915 = vsel %vm851, %v819, %v883
      %v916 = vsel %vm852, %v820, %v884
      %v917 = vsel %vm853, %v821, %v885
      %v918 = vsel %vm854, %v822, %v886
      %v919 = vsel %vm855, %v823, %v887
      %v920 = vsel %vm856, %v824, %v888
      %v921 = vsel %vm857, %v825, %v889
      %v922 = vsel %vm858, %v826, %v890
      %v923 = vsel %vm859, %v827, %v891
      %v924 = vsel %vm860, %v828, %v892
      %v925 = vsel %vm861, %v829, %v893
      %v926 = vsel %vm862, %v830, %v894
      %v927 = vsel %vm863, %v831, %v895
      %v928 = vsel %vm864, %v832, %v896
      %v929 = vsel %vm865, %v833, %v897
      %v930 = vsel %vm866, %v834, %v898
      %v931 = vsel %vm867, %v835, %v899
      %v932 = vsel %vm868, %v836, %v900
      %v933 = vsel %vm869, %v837, %v901
      %v934 = vsel %vm870, %v838, %v902
      %935 = vst [vmem:[%s307] sm:$0xff] %v903
      %936 = vst [vmem:[%s307 + $0x8] sm:$0xff] %v904
      %937 = vst [vmem:[%s307 + $0x10] sm:$0xff] %v905
      %938 = vst [vmem:[%s307 + $0x18] sm:$0xff] %v906
      %939 = vst [vmem:[%s307 + $0x20] sm:$0xff] %v907
      %940 = vst [vmem:[%s307 + $0x28] sm:$0xff] %v908
      %941 = vst [vmem:[%s307 + $0x30] sm:$0xff] %v909
      %942 = vst [vmem:[%s307 + $0x38] sm:$0xff] %v910
      %943 = vst [vmem:[%s307 + $0x40] sm:$0xff] %v911
      %944 = vst [vmem:[%s307 + $0x48] sm:$0xff] %v912
      %945 = vst [vmem:[%s307 + $0x50] sm:$0xff] %v913
      %946 = vst [vmem:[%s307 + $0x58] sm:$0xff] %v914
      %947 = vst [vmem:[%s307 + $0x60] sm:$0xff] %v915
      %948 = vst [vmem:[%s307 + $0x68] sm:$0xff] %v916
      %949 = vst [vmem:[%s307 + $0x70] sm:$0xff] %v917
      %950 = vst [vmem:[%s307 + $0x78] sm:$0xff] %v918
      %951 = vst [vmem:[%s307 + $0x80] sm:$0xff] %v919
      %952 = vst [vmem:[%s307 + $0x88] sm:$0xff] %v920
      %953 = vst [vmem:[%s307 + $0x90] sm:$0xff] %v921
      %954 = vst [vmem:[%s307 + $0x98] sm:$0xff] %v922
      %955 = vst [vmem:[%s307 + $0xa0] sm:$0xff] %v923
      %956 = vst [vmem:[%s307 + $0xa8] sm:$0xff] %v924
      %957 = vst [vmem:[%s307 + $0xb0] sm:$0xff] %v925
      %958 = vst [vmem:[%s307 + $0xb8] sm:$0xff] %v926
      %959 = vst [vmem:[%s307 + $0xc0] sm:$0xff] %v927
      %960 = vst [vmem:[%s307 + $0xc8] sm:$0xff] %v928
      %961 = vst [vmem:[%s307 + $0xd0] sm:$0xff] %v929
      %962 = vst [vmem:[%s307 + $0xd8] sm:$0xff] %v930
      %963 = vst [vmem:[%s307 + $0xe0] sm:$0xff] %v931
      %964 = vst [vmem:[%s307 + $0xe8] sm:$0xff] %v932
      %965 = vst [vmem:[%s307 + $0xf0] sm:$0xff] %v933
      %966 = vst [vmem:[%s307 + $0xf8] sm:$0xff] %v934
      %s967 = smul.u32 16, %s18
      %p968 = scmp.lt.s32.totalorder %s967, 63
      %s969 = scalar_select %p968, %s967, 63
      %s970 = smul.addr %s969, 2
      %s971 = smul.addr %s970, 8
      %s972 = scalar_lea.vmem %s7, %s971
      // Predicated region
      $region49: #{basic_block3d_forward.9} parent=47 // pred_check
        %p973 = pneg %p193
      $region50: #{basic_block3d_forward.9} parent=47 // pred_check_branch
        %975 = sbr.rel (%p973) target = $region52
      $region51: #{basic_block3d_forward.9} parent=47 // pred_region
        %s976 = smul.u32 16, %s18
      $region52: #{basic_block3d_forward.9} parent=47 // pred_fallthru
        _
    $region48: #{basic_block3d_forward.9} parent=5 // pred_fallthru
      _
    %p977 = scmp.le.s32.totalorder 2, %s13
    // Predicated region
    $region53: #{basic_block3d_forward.9} parent=5 // pred_check
      %p978 = pneg %p977
    $region54: #{basic_block3d_forward.9} parent=5 // pred_check_branch
      %980 = sbr.rel (%p978) target = $region56
    $region55: #{basic_block3d_forward.9} parent=5 // pred_region
      %s981 = ssub.s32 %s13, 2
      // Predicated region
      $region57: #{basic_block3d_forward.9} parent=55 // pred_check
        %p982 = pneg %p199
      $region58: #{basic_block3d_forward.9} parent=55 // pred_check_branch
        %984 = sbr.rel (%p982) target = $region60
      $region59: #{basic_block3d_forward.9} parent=55 // pred_region
        %s985 = smul.u32 16, %s19
        %p986 = scmp.lt.s32.totalorder %s985, 63
        %s987 = scalar_select %p986, %s985, 63
        %s988 = smul.addr %s987, 2
        %s989 = smul.addr %s988, 8
        %s990 = scalar_lea.vmem %s7, %s989
      $region60: #{basic_block3d_forward.9} parent=55 // pred_fallthru
        _
    $region56: #{basic_block3d_forward.9} parent=5 // pred_fallthru
      _
  $region6: #{basic_block3d_forward.9} parent=0 // loop_footer
    %s17 = sadd.s32 1, %s13
  $region7: #{basic_block3d_forward.9} parent=0 // loop_footer_branch
    %12 = sbr.rel target = $region3
  $region8: #{basic_block3d_forward.9} parent=0 // loop_exit
    _

// kernel: basic_block3d_forward.7
$region0: #{basic_block3d_forward.7}
  #allocation0 [shape = 'u32[]', space=smem, size = 0x4, offset = 0x4, fixed_abs, tag = 'smem constant byte address 0x4 - core index']
  #allocation1 [shape = 'u32[144,128]{1,0:T(1,128)}', space=vmem, size = 0x12000, scoped, tag = 'internal scratch']
  #allocation2 [shape = 'bf16[10,18,256]{2,1,0:T(8,128)(2,1)}', space=vmem, size = 0x1e000, scoped, tag = 'scratch operand']
  %s0 = inlined_call_operand.vmem [shape: bf16[2,16,16,256], index: 0, kind: input, shape index: {}, may-alias: {0,1,2}]
  %s1 = inlined_call_operand.vmem [shape: bf16[2,16,16,256], index: 1, kind: input, shape index: {}, may-alias: {0,1,2}]
  %s2 = inlined_call_operand.vmem [shape: bf16[2,16,16,256], index: 2, kind: input, shape index: {}, may-alias: {0,1,2}]
  %s3 = inlined_call_operand.vmem [shape: bf16[9,256,256], index: 3, kind: input, shape index: {}]
  %s4 = inlined_call_operand.vmem [shape: bf16[2,16,16,256], index: 4, kind: output, shape index: {0}]
  %s5 = inlined_call_operand.vmem [shape: f32[2,2,2,256], index: 5, kind: output, shape index: {1}]
  %6 = xla_tuple %s4, %s5
  %s7 = sld [smem:[#allocation0]]
  $region65: #{basic_block3d_forward.7} parent=0
    _
  %s9 = ssub.s32 1, %s7
  %s10 = scalar_select 0, %s9, %s7
  loop: start=0, step=1, limit=6
  $region2: #{basic_block3d_forward.7} parent=0 // loop_pre_header
    _
  $region3: #{basic_block3d_forward.7} parent=0 // loop_header
    %s12 = sphi 0, %s16
    %p13 = scmp.ge.s32.totalorder %s12, 6
    %s19 = sphi 0, %s31
    %s20 = sphi 0, %s27
    %s21 = sphi 0, %s19
    %s22 = sphi 0, %s20
    %s23 = sphi 0, %s21
    %s24 = sphi 0, %s22
    %s44 = sphi 0, %s46
    %s47 = sphi 0, %s44
    %s48 = sphi 0, %s47
    %s64 = sphi 0, %s48
    %s72 = sphi 0, %s74
    %s75 = sphi 0, %s72
    %s76 = sphi 0, %s75
    %s92 = sphi 0, %s76
    %s108 = sphi 0, %s110
    %s111 = sphi 0, %s108
    %s112 = sphi 0, %s111
    %s128 = sphi 0, %s112
    %s132 = sphi 0, %s132
    %s134 = sphi 0, %s132
    %s135 = sphi 0, %s134
    %s149 = sphi 0, %s135
    %s157 = sphi 0, %s159
    %s160 = sphi 0, %s157
    %s161 = sphi 0, %s160
    %s177 = sphi 0, %s161
    %s185 = sphi 0, %s187
    %s188 = sphi 0, %s185
    %s189 = sphi 0, %s188
    %s205 = sphi 0, %s189
  $region4: #{basic_block3d_forward.7} parent=0 // loop_header_branch
    %15 = sbr.rel (%p13) target = $region8
  $region5: #{basic_block3d_forward.7} parent=0 // loop_body
    %s17 = ssub.s32 %s12, 1
    %s18 = ssub.s32 %s12, 2
    %s25 = sadd.s32 1, %s20
    %p26 = scmp.ge.s32.totalorder %s25, 2
    %s27 = scalar_select %p26, 0, %s25
    %s28 = sadd.s32 1, %s19
    %s29 = scalar_select %p26, %s28, %s19
    %p30 = scmp.ge.s32.totalorder %s29, 2
    %s31 = scalar_select %p30, 0, %s29
    %s32 = smul.u32 %s20, 8
    %s33 = ssub.s32 %s32, 1
    %p34 = scmp.gt.s32.totalorder %s33, 0
    %s35 = scalar_select %p34, %s33, 0
    %s36 = smul.u32 %s27, 8
    %s37 = ssub.s32 %s36, 1
    %p38 = scmp.gt.s32.totalorder %s37, 0
    %s39 = scalar_select %p38, %s37, 0
    %s40 = ssub.s32 %s19, %s31
    %s41 = ssub.s32 %s35, %s39
    %s42 = sor.u32 %s40, %s41
    %p43 = scmp.eq.s32.totalorder %s42, 0
    %s45 = sadd.s32 %s44, 1
    %s46 = scalar_select %p43, %s44, %s45
    %p49 = pneg %p43
    %p50 = scmp.eq.s32.totalorder %s12, 3
    %p51 = por %p49, %p50
    %p52 = scmp.ne.s32.totalorder %s44, %s47
    %p53 = scmp.eq.s32.totalorder %s12, 0
    %p54 = por %p52, %p53
    %p55 = scmp.ne.s32.totalorder %s44, %s47
    %p56 = scmp.eq.s32.totalorder %s17, 3
    %p57 = por %p55, %p56
    %p58 = scmp.ne.s32.totalorder %s47, %s48
    %p59 = scmp.eq.s32.totalorder %s17, 0
    %p60 = por %p58, %p59
    %p61 = scmp.ne.s32.totalorder %s47, %s48
    %p62 = scmp.eq.s32.totalorder %s18, 3
    %p63 = por %p61, %p62
    %p65 = scmp.ne.s32.totalorder %s48, %s64
    %p66 = scmp.eq.s32.totalorder %s18, 0
    %p67 = por %p65, %p66
    %s68 = ssub.s32 %s19, %s31
    %s69 = ssub.s32 %s20, %s27
    %s70 = sor.u32 %s68, %s69
    %p71 = scmp.eq.s32.totalorder %s70, 0
    %s73 = sadd.s32 %s72, 1
    %s74 = scalar_select %p71, %s72, %s73
    %p77 = pneg %p71
    %p78 = scmp.eq.s32.totalorder %s12, 3
    %p79 = por %p77, %p78
    %p80 = scmp.ne.s32.totalorder %s72, %s75
    %p81 = scmp.eq.s32.totalorder %s12, 0
    %p82 = por %p80, %p81
    %p83 = scmp.ne.s32.totalorder %s72, %s75
    %p84 = scmp.eq.s32.totalorder %s17, 3
    %p85 = por %p83, %p84
    %p86 = scmp.ne.s32.totalorder %s75, %s76
    %p87 = scmp.eq.s32.totalorder %s17, 0
    %p88 = por %p86, %p87
    %p89 = scmp.ne.s32.totalorder %s75, %s76
    %p90 = scmp.eq.s32.totalorder %s18, 3
    %p91 = por %p89, %p90
    %p93 = scmp.ne.s32.totalorder %s76, %s92
    %p94 = scmp.eq.s32.totalorder %s18, 0
    %p95 = por %p93, %p94
    %s96 = sadd.s32 %s20, 1
    %s97 = smul.u32 %s96, 8
    %p98 = scmp.lt.s32.totalorder %s97, 15
    %s99 = scalar_select %p98, %s97, 15
    %s100 = sadd.s32 %s27, 1
    %s101 = smul.u32 %s100, 8
    %p102 = scmp.lt.s32.totalorder %s101, 15
    %s103 = scalar_select %p102, %s101, 15
    %s104 = ssub.s32 %s19, %s31
    %s105 = ssub.s32 %s99, %s103
    %s106 = sor.u32 %s104, %s105
    %p107 = scmp.eq.s32.totalorder %s106, 0
    %s109 = sadd.s32 %s108, 1
    %s110 = scalar_select %p107, %s108, %s109
    %p113 = pneg %p107
    %p114 = scmp.eq.s32.totalorder %s12, 3
    %p115 = por %p113, %p114
    %p116 = scmp.ne.s32.totalorder %s108, %s111
    %p117 = scmp.eq.s32.totalorder %s12, 0
    %p118 = por %p116, %p117
    %p119 = scmp.ne.s32.totalorder %s108, %s111
    %p120 = scmp.eq.s32.totalorder %s17, 3
    %p121 = por %p119, %p120
    %p122 = scmp.ne.s32.totalorder %s111, %s112
    %p123 = scmp.eq.s32.totalorder %s17, 0
    %p124 = por %p122, %p123
    %p125 = scmp.ne.s32.totalorder %s111, %s112
    %p126 = scmp.eq.s32.totalorder %s18, 3
    %p127 = por %p125, %p126
    %p129 = scmp.ne.s32.totalorder %s112, %s128
    %p130 = scmp.eq.s32.totalorder %s18, 0
    %p131 = por %p129, %p130
    %s133 = sadd.s32 %s132, 1
    %p136 = scmp.eq.s32.totalorder %s12, 3
    %p137 = scmp.ne.s32.totalorder %s132, %s134
    %p138 = scmp.eq.s32.totalorder %s12, 0
    %p139 = por %p137, %p138
    %p140 = scmp.ne.s32.totalorder %s132, %s134
    %p141 = scmp.eq.s32.totalorder %s17, 3
    %p142 = por %p140, %p141
    %p143 = scmp.ne.s32.totalorder %s134, %s135
    %p144 = scmp.eq.s32.totalorder %s17, 0
    %p145 = por %p143, %p144
    %p146 = scmp.ne.s32.totalorder %s134, %s135
    %p147 = scmp.eq.s32.totalorder %s18, 3
    %p148 = por %p146, %p147
    %p150 = scmp.ne.s32.totalorder %s135, %s149
    %p151 = scmp.eq.s32.totalorder %s18, 0
    %p152 = por %p150, %p151
    %s153 = ssub.s32 %s19, %s31
    %s154 = ssub.s32 %s20, %s27
    %s155 = sor.u32 %s153, %s154
    %p156 = scmp.eq.s32.totalorder %s155, 0
    %s158 = sadd.s32 %s157, 1
    %s159 = scalar_select %p156, %s157, %s158
    %p162 = pneg %p156
    %p163 = scmp.eq.s32.totalorder %s12, 3
    %p164 = por %p162, %p163
    %p165 = scmp.ne.s32.totalorder %s157, %s160
    %p166 = scmp.eq.s32.totalorder %s12, 0
    %p167 = por %p165, %p166
    %p168 = scmp.ne.s32.totalorder %s157, %s160
    %p169 = scmp.eq.s32.totalorder %s17, 3
    %p170 = por %p168, %p169
    %p171 = scmp.ne.s32.totalorder %s160, %s161
    %p172 = scmp.eq.s32.totalorder %s17, 0
    %p173 = por %p171, %p172
    %p174 = scmp.ne.s32.totalorder %s160, %s161
    %p175 = scmp.eq.s32.totalorder %s18, 3
    %p176 = por %p174, %p175
    %p178 = scmp.ne.s32.totalorder %s161, %s177
    %p179 = scmp.eq.s32.totalorder %s18, 0
    %p180 = por %p178, %p179
    %s181 = ssub.s32 %s19, %s31
    %s182 = ssub.s32 %s20, %s27
    %s183 = sor.u32 %s181, %s182
    %p184 = scmp.eq.s32.totalorder %s183, 0
    %s186 = sadd.s32 %s185, 1
    %s187 = scalar_select %p184, %s185, %s186
    %p190 = pneg %p184
    %p191 = scmp.eq.s32.totalorder %s12, 3
    %p192 = por %p190, %p191
    %p193 = scmp.ne.s32.totalorder %s185, %s188
    %p194 = scmp.eq.s32.totalorder %s12, 0
    %p195 = por %p193, %p194
    %p196 = scmp.ne.s32.totalorder %s185, %s188
    %p197 = scmp.eq.s32.totalorder %s17, 3
    %p198 = por %p196, %p197
    %p199 = scmp.ne.s32.totalorder %s188, %s189
    %p200 = scmp.eq.s32.totalorder %s17, 0
    %p201 = por %p199, %p200
    %p202 = scmp.ne.s32.totalorder %s188, %s189
    %p203 = scmp.eq.s32.totalorder %s18, 3
    %p204 = por %p202, %p203
    %p206 = scmp.ne.s32.totalorder %s189, %s205
    %p207 = scmp.eq.s32.totalorder %s18, 0
    %p208 = por %p206, %p207
    %p209 = scmp.le.s32.totalorder 1, %s12
    %p210 = scmp.lt.s32.totalorder %s12, 5
    %p211 = pnand %p209, %p210
    %p212 = pneg %p211
    // Predicated region
    $region9: #{basic_block3d_forward.7} parent=5 // pred_check
      _
    $region10: #{basic_block3d_forward.7} parent=5 // pred_check_branch
      %214 = sbr.rel (%p211) target = $region12
    $region11: #{basic_block3d_forward.7} parent=5 // pred_region
      %s215 = ssub.s32 %s12, 1
      // Predicated region
      $region13: #{basic_block3d_forward.7} parent=11 // pred_check
        %p216 = pneg %p145
      $region14: #{basic_block3d_forward.7} parent=11 // pred_check_branch
        %218 = sbr.rel (%p216) target = $region16
      $region15: #{basic_block3d_forward.7} parent=11 // pred_region
        _
      $region16: #{basic_block3d_forward.7} parent=11 // pred_fallthru
        _
    $region12: #{basic_block3d_forward.7} parent=5 // pred_fallthru
      _
    %p219 = scmp.lt.s32.totalorder %s12, 4
    // Predicated region
    $region17: #{basic_block3d_forward.7} parent=5 // pred_check
      %p220 = pneg %p219
    $region18: #{basic_block3d_forward.7} parent=5 // pred_check_branch
      %222 = sbr.rel (%p220) target = $region20
    $region19: #{basic_block3d_forward.7} parent=5 // pred_region
      // Predicated region
      $region21: #{basic_block3d_forward.7} parent=19 // pred_check
        %p223 = pneg %p54
      $region22: #{basic_block3d_forward.7} parent=19 // pred_check_branch
        %225 = sbr.rel (%p223) target = $region24
      $region23: #{basic_block3d_forward.7} parent=19 // pred_region
        %s226 = smul.u32 %s20, 8
        %s227 = ssub.s32 %s226, 1
        %p228 = scmp.gt.s32.totalorder %s227, 0
        %s229 = scalar_select %p228, %s227, 0
        %p230 = scmp.lt.s32.totalorder %s19, 1
        %s231 = scalar_select %p230, %s19, 1
        %p232 = scmp.lt.s32.totalorder %s229, 15
        %s233 = scalar_select %p232, %s229, 15
        %s234 = smul.addr %s233, 4
        %s235 = smul.addr %s231, 64
        %s236 = sadd.s32 %s234, %s235
        %s237 = smul.addr %s236, 4
        %s238 = scalar_lea.vmem %s0, %s237
        %s239 = smul.u32 %s20, 8
        %s240 = ssub.s32 %s239, 1
        %p241 = scmp.gt.s32.totalorder %s240, 0
        %s242 = scalar_select %p241, %s240, 0
      $region24: #{basic_block3d_forward.7} parent=19 // pred_fallthru
        _
      // Predicated region
      $region25: #{basic_block3d_forward.7} parent=19 // pred_check
        %p243 = pneg %p82
      $region26: #{basic_block3d_forward.7} parent=19 // pred_check_branch
        %245 = sbr.rel (%p243) target = $region28
      $region27: #{basic_block3d_forward.7} parent=19 // pred_region
        %s246 = smul.u32 8, %s20
        %p247 = scmp.lt.s32.totalorder %s19, 1
        %s248 = scalar_select %p247, %s19, 1
        %p249 = scmp.lt.s32.totalorder %s246, 15
        %s250 = scalar_select %p249, %s246, 15
        %s251 = smul.addr %s250, 4
        %s252 = smul.addr %s248, 64
        %s253 = sadd.s32 %s251, %s252
        %s254 = smul.addr %s253, 4
        %s255 = scalar_lea.vmem %s1, %s254
        %s256 = smul.u32 8, %s20
      $region28: #{basic_block3d_forward.7} parent=19 // pred_fallthru
        _
      // Predicated region
      $region29: #{basic_block3d_forward.7} parent=19 // pred_check
        %p257 = pneg %p118
      $region30: #{basic_block3d_forward.7} parent=19 // pred_check_branch
        %259 = sbr.rel (%p257) target = $region32
      $region31: #{basic_block3d_forward.7} parent=19 // pred_region
        %s260 = sadd.s32 %s20, 1
        %s261 = smul.u32 %s260, 8
        %p262 = scmp.lt.s32.totalorder %s261, 15
        %s263 = scalar_select %p262, %s261, 15
        %p264 = scmp.lt.s32.totalorder %s19, 1
        %s265 = scalar_select %p264, %s19, 1
        %p266 = scmp.lt.s32.totalorder %s263, 15
        %s267 = scalar_select %p266, %s263, 15
        %s268 = smul.addr %s267, 4
        %s269 = smul.addr %s265, 64
        %s270 = sadd.s32 %s268, %s269
        %s271 = smul.addr %s270, 4
        %s272 = scalar_lea.vmem %s2, %s271
        %s273 = sadd.s32 %s20, 1
        %s274 = smul.u32 %s273, 8
        %p275 = scmp.lt.s32.totalorder %s274, 15
        %s276 = scalar_select %p275, %s274, 15
      $region32: #{basic_block3d_forward.7} parent=19 // pred_fallthru
        _
    $region20: #{basic_block3d_forward.7} parent=5 // pred_fallthru
      _
    %p277 = scmp.le.s32.totalorder 1, %s12
    %p278 = scmp.lt.s32.totalorder %s12, 5
    %p279 = pnand %p277, %p278
    %p280 = pneg %p279
    // Predicated region
    $region33: #{basic_block3d_forward.7} parent=5 // pred_check
      _
    $region34: #{basic_block3d_forward.7} parent=5 // pred_check_branch
      %282 = sbr.rel (%p279) target = $region36
    $region35: #{basic_block3d_forward.7} parent=5 // pred_region
      %s283 = ssub.s32 %s12, 1
      %s284 = smul.u32 %s22, 8
      %s285 = ssub.s32 %s284, 1
      %p286 = scmp.gt.s32.totalorder %s285, 0
      %s287 = scalar_select %p286, %s285, 0
      %p288 = scmp.lt.s32.totalorder %s21, 1
      %s289 = scalar_select %p288, %s21, 1
      %p290 = scmp.lt.s32.totalorder %s287, 15
      %s291 = scalar_select %p290, %s287, 15
      %s292 = smul.addr %s291, 4
      %s293 = smul.addr %s289, 64
      %s294 = sadd.s32 %s292, %s293
      %s295 = smul.addr %s294, 4
      %s296 = scalar_lea.vmem %s0, %s295
      %p297 = pneg %p60
      %p298 = pneg %p57
      %s299 = smul.u32 8, %s22
      %p300 = scmp.lt.s32.totalorder %s21, 1
      %s301 = scalar_select %p300, %s21, 1
      %p302 = scmp.lt.s32.totalorder %s299, 15
      %s303 = scalar_select %p302, %s299, 15
      %s304 = smul.addr %s303, 4
      %s305 = smul.addr %s301, 64
      %s306 = sadd.s32 %s304, %s305
      %s307 = smul.addr %s306, 4
      %s308 = scalar_lea.vmem %s1, %s307
      %p309 = pneg %p88
      %p310 = pneg %p85
      %s311 = sadd.s32 %s22, 1
      %s312 = smul.u32 %s311, 8
      %p313 = scmp.lt.s32.totalorder %s312, 15
      %s314 = scalar_select %p313, %s312, 15
      %p315 = scmp.lt.s32.totalorder %s21, 1
      %s316 = scalar_select %p315, %s21, 1
      %p317 = scmp.lt.s32.totalorder %s314, 15
      %s318 = scalar_select %p317, %s314, 15
      %s319 = smul.addr %s318, 4
      %s320 = smul.addr %s316, 64
      %s321 = sadd.s32 %s319, %s320
      %s322 = smul.addr %s321, 4
      %s323 = scalar_lea.vmem %s2, %s322
      %p324 = pneg %p124
      %p325 = pneg %p121
      %p326 = pneg %p145
      %p327 = pneg %p142
      %p328 = pneg %p173
      %p329 = pneg %p170
      %s330 = smul.u32 8, %s22
      %p331 = scmp.lt.s32.totalorder %s21, 1
      %s332 = scalar_select %p331, %s21, 1
      %p333 = scmp.lt.s32.totalorder %s330, 15
      %s334 = scalar_select %p333, %s330, 15
      %s335 = smul.addr %s334, 4
      %s336 = smul.addr %s332, 64
      %s337 = sadd.s32 %s335, %s336
      %s338 = smul.addr %s337, 4
      %s339 = scalar_lea.vmem %s4, %s338
      %p340 = pneg %p201
      %p341 = pneg %p198
      %p342 = scmp.lt.s32.totalorder %s21, 1
      %s343 = scalar_select %p342, %s21, 1
      %p344 = scmp.lt.s32.totalorder %s22, 1
      %s345 = scalar_select %p344, %s22, 1
      %s346 = smul.addr %s345, 2
      %s347 = smul.addr %s343, 4
      %s348 = sadd.s32 %s346, %s347
      %s349 = smul.addr %s348, 2
      %s350 = scalar_lea.vmem %s5, %s349
      %s351 = smul.u32 %s22, 8
      %s352 = ssub.s32 %s351, 1
      %p353 = scmp.gt.s32.totalorder %s352, 0
      %s354 = scalar_select %p353, %s352, 0
      %p355 = scmp.lt.s32.totalorder %s21, 1
      %s356 = scalar_select %p355, %s21, 1
      %p357 = scmp.lt.s32.totalorder %s354, 15
      %s358 = scalar_select %p357, %s354, 15
      %s359 = smul.addr %s358, 4
      %s360 = smul.addr %s356, 64
      %s361 = sadd.s32 %s359, %s360
      %s362 = smul.addr %s361, 4
      %s363 = scalar_lea.vmem %s0, %s362
      %s364 = smul.u32 %s22, 8
      %s365 = ssub.s32 %s364, 1
      %p366 = scmp.gt.s32.totalorder %s365, 0
      %s367 = scalar_select %p366, %s365, 0
      %s368 = smul.u32 8, %s22
      %p369 = scmp.lt.s32.totalorder %s21, 1
      %s370 = scalar_select %p369, %s21, 1
      %p371 = scmp.lt.s32.totalorder %s368, 15
      %s372 = scalar_select %p371, %s368, 15
      %s373 = smul.addr %s372, 4
      %s374 = smul.addr %s370, 64
      %s375 = sadd.s32 %s373, %s374
      %s376 = smul.addr %s375, 4
      %s377 = scalar_lea.vmem %s1, %s376
      %s378 = smul.u32 8, %s22
      %s379 = sadd.s32 %s22, 1
      %s380 = smul.u32 %s379, 8
      %p381 = scmp.lt.s32.totalorder %s380, 15
      %s382 = scalar_select %p381, %s380, 15
      %p383 = scmp.lt.s32.totalorder %s21, 1
      %s384 = scalar_select %p383, %s21, 1
      %p385 = scmp.lt.s32.totalorder %s382, 15
      %s386 = scalar_select %p385, %s382, 15
      %s387 = smul.addr %s386, 4
      %s388 = smul.addr %s384, 64
      %s389 = sadd.s32 %s387, %s388
      %s390 = smul.addr %s389, 4
      %s391 = scalar_lea.vmem %s2, %s390
      %s392 = sadd.s32 %s22, 1
      %s393 = smul.u32 %s392, 8
      %p394 = scmp.lt.s32.totalorder %s393, 15
      %s395 = scalar_select %p394, %s393, 15
      %s396 = smul.u32 8, %s22
      %p397 = scmp.lt.s32.totalorder %s21, 1
      %s398 = scalar_select %p397, %s21, 1
      %p399 = scmp.lt.s32.totalorder %s396, 15
      %s400 = scalar_select %p399, %s396, 15
      %s401 = smul.addr %s400, 4
      %s402 = smul.addr %s398, 64
      %s403 = sadd.s32 %s401, %s402
      %s404 = smul.addr %s403, 4
      %s405 = scalar_lea.vmem %s4, %s404
      %s406 = smul.u32 8, %s22
      %p407 = scmp.lt.s32.totalorder %s21, 1
      %s408 = scalar_select %p407, %s21, 1
      %p409 = scmp.lt.s32.totalorder %s22, 1
      %s410 = scalar_select %p409, %s22, 1
      %s411 = smul.addr %s410, 2
      %s412 = smul.addr %s408, 4
      %s413 = sadd.s32 %s411, %s412
      %s414 = smul.addr %s413, 2
      %s415 = scalar_lea.vmem %s5, %s414
      %417 = vst [vmem:[#allocation2] sm:$0xff] 0
      %418 = vst [vmem:[#allocation2 + $0x8] sm:$0xff] 0
      %419 = vst [vmem:[#allocation2 + $0x10] sm:$0x11] 0
      %420 = vst [vmem:[#allocation2 + $0x18] sm:$0xff] 0
      %421 = vst [vmem:[#allocation2 + $0x20] sm:$0xff] 0
      %422 = vst [vmem:[#allocation2 + $0x28] sm:$0x11] 0
      %423 = vst [vmem:[#allocation2 + $0x30] sm:$0xff] 0
      %424 = vst [vmem:[#allocation2 + $0x38] sm:$0xff] 0
      %425 = vst [vmem:[#allocation2 + $0x40] sm:$0x11] 0
      %426 = vst [vmem:[#allocation2 + $0x48] sm:$0xff] 0
      %427 = vst [vmem:[#allocation2 + $0x50] sm:$0xff] 0
      %428 = vst [vmem:[#allocation2 + $0x58] sm:$0x11] 0
      %429 = vst [vmem:[#allocation2 + $0x60] sm:$0xff] 0
      %430 = vst [vmem:[#allocation2 + $0x68] sm:$0xff] 0
      %431 = vst [vmem:[#allocation2 + $0x70] sm:$0x11] 0
      %432 = vst [vmem:[#allocation2 + $0x78] sm:$0xff] 0
      %433 = vst [vmem:[#allocation2 + $0x80] sm:$0xff] 0
      %434 = vst [vmem:[#allocation2 + $0x88] sm:$0x11] 0
      %435 = vst [vmem:[#allocation2 + $0x90] sm:$0xff] 0
      %436 = vst [vmem:[#allocation2 + $0x98] sm:$0xff] 0
      %437 = vst [vmem:[#allocation2 + $0xa0] sm:$0x11] 0
      %438 = vst [vmem:[#allocation2 + $0xa8] sm:$0xff] 0
      %439 = vst [vmem:[#allocation2 + $0xb0] sm:$0xff] 0
      %440 = vst [vmem:[#allocation2 + $0xb8] sm:$0x11] 0
      %441 = vst [vmem:[#allocation2 + $0xc0] sm:$0xff] 0
      %442 = vst [vmem:[#allocation2 + $0xc8] sm:$0xff] 0
      %443 = vst [vmem:[#allocation2 + $0xd0] sm:$0x11] 0
      %444 = vst [vmem:[#allocation2 + $0xd8] sm:$0xff] 0
      %445 = vst [vmem:[#allocation2 + $0xe0] sm:$0xff] 0
      %446 = vst [vmem:[#allocation2 + $0xe8] sm:$0x11] 0
      %v447 = vld [vmem:[%s377] sm:$0xff]
      %v448 = vld [vmem:[%s377 + $0x8] sm:$0xff]
      %v449 = vld [vmem:[%s377 + $0x10] sm:$0xff]
      %v450 = vld [vmem:[%s377 + $0x18] sm:$0xff]
      %v451 = vld [vmem:[%s377 + $0x20] sm:$0xff]
      %v452 = vld [vmem:[%s377 + $0x28] sm:$0xff]
      %v453 = vld [vmem:[%s377 + $0x30] sm:$0xff]
      %v454 = vld [vmem:[%s377 + $0x38] sm:$0xff]
      %v455 = vld [vmem:[%s377 + $0x40] sm:$0xff]
      %v456 = vld [vmem:[%s377 + $0x48] sm:$0xff]
      %v457 = vld [vmem:[%s377 + $0x50] sm:$0xff]
      %v458 = vld [vmem:[%s377 + $0x58] sm:$0xff]
      %v459 = vld [vmem:[%s377 + $0x60] sm:$0xff]
      %v460 = vld [vmem:[%s377 + $0x68] sm:$0xff]
      %v461 = vld [vmem:[%s377 + $0x70] sm:$0xff]
      %v462 = vld [vmem:[%s377 + $0x78] sm:$0xff]
      %vm463 = vsmask.f32 256
      %vm464 = vsmask.f32 4368
      %vm465 = vmor %vm463, %vm464
      %v467 = vshrl.u32 %v447, 16
      %v469 = vrot.slane %v467, 7
      %v470 = vshll.u32 %v447, 16
      %v472 = vor.u32 %v469, %v470
      %v473 = vrot.slane %v469, 4
      %v475 = vshrl.u32 %v448, 16
      %v477 = vrot.slane %v475, 7
      %v478 = vshll.u32 %v448, 16
      %v480 = vor.u32 %v477, %v478
      %v481 = vsel %vm465, %v473, %v480
      %v482 = vrot.slane %v477, 4
      %v484 = vshrl.u32 %v449, 16
      %v486 = vrot.slane %v484, 7
      %v487 = vshll.u32 %v449, 16
      %v489 = vor.u32 %v486, %v487
      %v490 = vrot.slane %v486, 4
      %v492 = vshrl.u32 %v450, 16
      %v494 = vrot.slane %v492, 7
      %v495 = vshll.u32 %v450, 16
      %v497 = vor.u32 %v494, %v495
      %v498 = vsel %vm465, %v490, %v497
      %v499 = vrot.slane %v494, 4
      %v501 = vshrl.u32 %v451, 16
      %v503 = vrot.slane %v501, 7
      %v504 = vshll.u32 %v451, 16
      %v506 = vor.u32 %v503, %v504
      %v507 = vrot.slane %v503, 4
      %v509 = vshrl.u32 %v452, 16
      %v511 = vrot.slane %v509, 7
      %v512 = vshll.u32 %v452, 16
      %v514 = vor.u32 %v511, %v512
      %v515 = vsel %vm465, %v507, %v514
      %v516 = vrot.slane %v511, 4
      %v518 = vshrl.u32 %v453, 16
      %v520 = vrot.slane %v518, 7
      %v521 = vshll.u32 %v453, 16
      %v523 = vor.u32 %v520, %v521
      %v524 = vrot.slane %v520, 4
      %v526 = vshrl.u32 %v454, 16
      %v528 = vrot.slane %v526, 7
      %v529 = vshll.u32 %v454, 16
      %v531 = vor.u32 %v528, %v529
      %v532 = vsel %vm465, %v524, %v531
      %v533 = vrot.slane %v528, 4
      %v535 = vshrl.u32 %v455, 16
      %v537 = vrot.slane %v535, 7
      %v538 = vshll.u32 %v455, 16
      %v540 = vor.u32 %v537, %v538
      %v541 = vrot.slane %v537, 4
      %v543 = vshrl.u32 %v456, 16
      %v545 = vrot.slane %v543, 7
      %v546 = vshll.u32 %v456, 16
      %v548 = vor.u32 %v545, %v546
      %v549 = vsel %vm465, %v541, %v548
      %v550 = vrot.slane %v545, 4
      %v552 = vshrl.u32 %v457, 16
      %v554 = vrot.slane %v552, 7
      %v555 = vshll.u32 %v457, 16
      %v557 = vor.u32 %v554, %v555
      %v558 = vrot.slane %v554, 4
      %v560 = vshrl.u32 %v458, 16
      %v562 = vrot.slane %v560, 7
      %v563 = vshll.u32 %v458, 16
      %v565 = vor.u32 %v562, %v563
      %v566 = vsel %vm465, %v558, %v565
      %v567 = vrot.slane %v562, 4
      %v569 = vshrl.u32 %v459, 16
      %v571 = vrot.slane %v569, 7
      %v572 = vshll.u32 %v459, 16
      %v574 = vor.u32 %v571, %v572
      %v575 = vrot.slane %v571, 4
      %v577 = vshrl.u32 %v460, 16
      %v579 = vrot.slane %v577, 7
      %v580 = vshll.u32 %v460, 16
      %v582 = vor.u32 %v579, %v580
      %v583 = vsel %vm465, %v575, %v582
      %v584 = vrot.slane %v579, 4
      %v586 = vshrl.u32 %v461, 16
      %v588 = vrot.slane %v586, 7
      %v589 = vshll.u32 %v461, 16
      %v591 = vor.u32 %v588, %v589
      %v592 = vrot.slane %v588, 4
      %v594 = vshrl.u32 %v462, 16
      %v596 = vrot.slane %v594, 7
      %v597 = vshll.u32 %v462, 16
      %v599 = vor.u32 %v596, %v597
      %v600 = vsel %vm465, %v592, %v599
      %v601 = vrot.slane %v596, 4
      %s626 = scalar_lea.vmem [#allocation2], 24
      %vm627 = vcmask 1043456
      %vm628 = vsmask.f32 7938
      %vm629 = vmand %vm627, %vm628
      %vm630 = vcmask 1047556
      %vm631 = vsmask.f32 7954
      %vm632 = vmand %vm630, %vm631
      %vm633 = vmor %vm632, %vm629
      %v634 = vld [vmem:[%s626] sm:$0xff]
      %v635 = vsel %vm633, %v472, %v634
      %636 = vst [vmem:[%s626] sm:$0xff] %v635
      %637 = vst [vmem:[%s626 + $0x8] sm:$0xff] %v481
      %vm638 = vcmask 1040384
      %vm639 = vmand %vm638, %vm463
      %vm640 = vcmask 1044484
      %vm641 = vsmask.f32 4352
      %vm642 = vmand %vm640, %vm641
      %vm643 = vmor %vm642, %vm639
      %v644 = vld [vmem:[%s626 + $0x10] sm:$0x11]
      %v645 = vsel %vm643, %v482, %v644
      %646 = vst [vmem:[%s626 + $0x10] sm:$0x11] %v645
      %v647 = vld [vmem:[%s626 + $0x18] sm:$0xff]
      %v648 = vsel %vm633, %v489, %v647
      %649 = vst [vmem:[%s626 + $0x18] sm:$0xff] %v648
      %650 = vst [vmem:[%s626 + $0x20] sm:$0xff] %v498
      %v651 = vld [vmem:[%s626 + $0x28] sm:$0x11]
      %v652 = vsel %vm643, %v499, %v651
      %653 = vst [vmem:[%s626 + $0x28] sm:$0x11] %v652
      %v654 = vld [vmem:[%s626 + $0x30] sm:$0xff]
      %v655 = vsel %vm633, %v506, %v654
      %656 = vst [vmem:[%s626 + $0x30] sm:$0xff] %v655
      %657 = vst [vmem:[%s626 + $0x38] sm:$0xff] %v515
      %v658 = vld [vmem:[%s626 + $0x40] sm:$0x11]
      %v659 = vsel %vm643, %v516, %v658
      %660 = vst [vmem:[%s626 + $0x40] sm:$0x11] %v659
      %v661 = vld [vmem:[%s626 + $0x48] sm:$0xff]
      %v662 = vsel %vm633, %v523, %v661
      %663 = vst [vmem:[%s626 + $0x48] sm:$0xff] %v662
      %664 = vst [vmem:[%s626 + $0x50] sm:$0xff] %v532
      %v665 = vld [vmem:[%s626 + $0x58] sm:$0x11]
      %v666 = vsel %vm643, %v533, %v665
      %667 = vst [vmem:[%s626 + $0x58] sm:$0x11] %v666
      %v668 = vld [vmem:[%s626 + $0x60] sm:$0xff]
      %v669 = vsel %vm633, %v540, %v668
      %670 = vst [vmem:[%s626 + $0x60] sm:$0xff] %v669
      %671 = vst [vmem:[%s626 + $0x68] sm:$0xff] %v549
      %v672 = vld [vmem:[%s626 + $0x70] sm:$0x11]
      %v673 = vsel %vm643, %v550, %v672
      %674 = vst [vmem:[%s626 + $0x70] sm:$0x11] %v673
      %v675 = vld [vmem:[%s626 + $0x78] sm:$0xff]
      %v676 = vsel %vm633, %v557, %v675
      %677 = vst [vmem:[%s626 + $0x78] sm:$0xff] %v676
      %678 = vst [vmem:[%s626 + $0x80] sm:$0xff] %v566
      %v679 = vld [vmem:[%s626 + $0x88] sm:$0x11]
      %v680 = vsel %vm643, %v567, %v679
      %681 = vst [vmem:[%s626 + $0x88] sm:$0x11] %v680
      %v682 = vld [vmem:[%s626 + $0x90] sm:$0xff]
      %v683 = vsel %vm633, %v574, %v682
      %684 = vst [vmem:[%s626 + $0x90] sm:$0xff] %v683
      %685 = vst [vmem:[%s626 + $0x98] sm:$0xff] %v583
      %v686 = vld [vmem:[%s626 + $0xa0] sm:$0x11]
      %v687 = vsel %vm643, %v584, %v686
      %688 = vst [vmem:[%s626 + $0xa0] sm:$0x11] %v687
      %v689 = vld [vmem:[%s626 + $0xa8] sm:$0xff]
      %v690 = vsel %vm633, %v591, %v689
      %691 = vst [vmem:[%s626 + $0xa8] sm:$0xff] %v690
      %692 = vst [vmem:[%s626 + $0xb0] sm:$0xff] %v600
      %v693 = vld [vmem:[%s626 + $0xb8] sm:$0x11]
      %v694 = vsel %vm643, %v601, %v693
      %695 = vst [vmem:[%s626 + $0xb8] sm:$0x11] %v694
      %p696 = scmp.gt.s32.totalorder %s22, 0
      // Predicated region
      $region37: #{basic_block3d_forward.7} parent=35 // pred_check
        %p697 = pneg %p696
      $region38: #{basic_block3d_forward.7} parent=35 // pred_check_branch
        %699 = sbr.rel (%p697) target = $region40
      $region39: #{basic_block3d_forward.7} parent=35 // pred_region
        %v700 = vld [vmem:[%s363] sm:$0xff]
        %v701 = vld [vmem:[%s363 + $0x8] sm:$0xff]
        %v703 = vshrl.u32 %v700, 16
        %v705 = vrot.slane %v703, 7
        %v706 = vshll.u32 %v700, 16
        %v708 = vor.u32 %v705, %v706
        %v709 = vrot.slane %v705, 4
        %v711 = vshrl.u32 %v701, 16
        %v713 = vrot.slane %v711, 7
        %v714 = vshll.u32 %v701, 16
        %v716 = vor.u32 %v713, %v714
        %v717 = vsel %vm465, %v709, %v716
        %v718 = vrot.slane %v713, 4
        %v722 = vld [vmem:[#allocation2] sm:$0xff]
        %v723 = vsel %vm633, %v708, %v722
        %724 = vst [vmem:[#allocation2] sm:$0xff] %v723
        %725 = vst [vmem:[#allocation2 + $0x8] sm:$0xff] %v717
        %v726 = vld [vmem:[#allocation2 + $0x10] sm:$0x11]
        %v727 = vsel %vm643, %v718, %v726
        %728 = vst [vmem:[#allocation2 + $0x10] sm:$0x11] %v727
      $region40: #{basic_block3d_forward.7} parent=35 // pred_fallthru
        _
      %p729 = scmp.lt.s32.totalorder %s22, 1
      // Predicated region
      $region41: #{basic_block3d_forward.7} parent=35 // pred_check
        %p730 = pneg %p729
      $region42: #{basic_block3d_forward.7} parent=35 // pred_check_branch
        %732 = sbr.rel (%p730) target = $region44
      $region43: #{basic_block3d_forward.7} parent=35 // pred_region
        %v733 = vld [vmem:[%s391] sm:$0xff]
        %v734 = vld [vmem:[%s391 + $0x8] sm:$0xff]
        %v736 = vshrl.u32 %v733, 16
        %v738 = vrot.slane %v736, 7
        %v739 = vshll.u32 %v733, 16
        %v741 = vor.u32 %v738, %v739
        %v742 = vrot.slane %v738, 4
        %v744 = vshrl.u32 %v734, 16
        %v746 = vrot.slane %v744, 7
        %v747 = vshll.u32 %v734, 16
        %v749 = vor.u32 %v746, %v747
        %v750 = vsel %vm465, %v742, %v749
        %v751 = vrot.slane %v746, 4
        %s755 = scalar_lea.vmem [#allocation2], 216
        %v756 = vld [vmem:[%s755] sm:$0xff]
        %v757 = vsel %vm633, %v741, %v756
        %758 = vst [vmem:[%s755] sm:$0xff] %v757
        %759 = vst [vmem:[%s755 + $0x8] sm:$0xff] %v750
        %v760 = vld [vmem:[%s755 + $0x10] sm:$0x11]
        %v761 = vsel %vm643, %v751, %v760
        %762 = vst [vmem:[%s755 + $0x10] sm:$0x11] %v761
      $region44: #{basic_block3d_forward.7} parent=35 // pred_fallthru
        _
      %v763 = vld [vmem:[#allocation2] sm:$0xff]
      %v764 = vld [vmem:[#allocation2 + $0x8] sm:$0xff]
      %v765 = vld [vmem:[#allocation2 + $0x18] sm:$0xff]
      %v766 = vld [vmem:[#allocation2 + $0x20] sm:$0xff]
      %v767 = vld [vmem:[#allocation2 + $0x30] sm:$0xff]
      %v768 = vld [vmem:[#allocation2 + $0x38] sm:$0xff]
      %v769 = vld [vmem:[#allocation2 + $0x48] sm:$0xff]
      %v770 = vld [vmem:[#allocation2 + $0x50] sm:$0xff]
      %v771 = vld [vmem:[#allocation2 + $0x60] sm:$0xff]
      %v772 = vld [vmem:[#allocation2 + $0x68] sm:$0xff]
      %v773 = vld [vmem:[#allocation2 + $0x78] sm:$0xff]
      %v774 = vld [vmem:[#allocation2 + $0x80] sm:$0xff]
      %v775 = vld [vmem:[#allocation2 + $0x90] sm:$0xff]
      %v776 = vld [vmem:[#allocation2 + $0x98] sm:$0xff]
      %v777 = vld [vmem:[#allocation2 + $0xa8] sm:$0xff]
      %v778 = vld [vmem:[#allocation2 + $0xb0] sm:$0xff]
      %v779 = vld [vmem:[%s3] sm:$0xff]
      %v780 = vld [vmem:[%s3 + $0x8] sm:$0xff]
      %v781 = vld [vmem:[%s3 + $0x10] sm:$0xff]
      %v782 = vld [vmem:[%s3 + $0x18] sm:$0xff]
      %v783 = vld [vmem:[%s3 + $0x20] sm:$0xff]
      %v784 = vld [vmem:[%s3 + $0x28] sm:$0xff]
      %v785 = vld [vmem:[%s3 + $0x30] sm:$0xff]
      %v786 = vld [vmem:[%s3 + $0x38] sm:$0xff]
      %v787 = vld [vmem:[%s3 + $0x40] sm:$0xff]
      %v788 = vld [vmem:[%s3 + $0x48] sm:$0xff]
      %v789 = vld [vmem:[%s3 + $0x50] sm:$0xff]
      %v790 = vld [vmem:[%s3 + $0x58] sm:$0xff]
      %v791 = vld [vmem:[%s3 + $0x60] sm:$0xff]
      %v792 = vld [vmem:[%s3 + $0x68] sm:$0xff]
      %v793 = vld [vmem:[%s3 + $0x70] sm:$0xff]
      %v794 = vld [vmem:[%s3 + $0x78] sm:$0xff]
      %v795 = vld [vmem:[%s3 + $0x80] sm:$0xff]
      %v796 = vld [vmem:[%s3 + $0x88] sm:$0xff]
      %v797 = vld [vmem:[%s3 + $0x90] sm:$0xff]
      %v798 = vld [vmem:[%s3 + $0x98] sm:$0xff]
      %v799 = vld [vmem:[%s3 + $0xa0] sm:$0xff]
      %v800 = vld [vmem:[%s3 + $0xa8] sm:$0xff]
      %v801 = vld [vmem:[%s3 + $0xb0] sm:$0xff]
      %v802 = vld [vmem:[%s3 + $0xb8] sm:$0xff]
      %v803 = vld [vmem:[%s3 + $0xc0] sm:$0xff]
      %v804 = vld [vmem:[%s3 + $0xc8] sm:$0xff]
      %v805 = vld [vmem:[%s3 + $0xd0] sm:$0xff]
      %v806 = vld [vmem:[%s3 + $0xd8] sm:$0xff]
      %v807 = vld [vmem:[%s3 + $0xe0] sm:$0xff]
      %v808 = vld [vmem:[%s3 + $0xe8] sm:$0xff]
      %v809 = vld [vmem:[%s3 + $0xf0] sm:$0xff]
      %v810 = vld [vmem:[%s3 + $0xf8] sm:$0xff]
      %v811 = vld [vmem:[#allocation2 + $0x10] sm:$0x11]
      %v812 = vld [vmem:[#allocation2 + $0x28] sm:$0x11]
      %v813 = vld [vmem:[#allocation2 + $0x40] sm:$0x11]
      %v814 = vld [vmem:[#allocation2 + $0x58] sm:$0x11]
      %v815 = vld [vmem:[#allocation2 + $0x70] sm:$0x11]
      %v816 = vld [vmem:[#allocation2 + $0x88] sm:$0x11]
      %v817 = vld [vmem:[#allocation2 + $0xa0] sm:$0x11]
      %v818 = vld [vmem:[#allocation2 + $0xb8] sm:$0x11]
      %vm819 = vsmask.f32 3328
      %vm820 = vsmask.f32 7440
      %vm821 = vmor %vm819, %vm820
      %v823 = vshrl.u32 %v763, 16
      %v825 = vrot.slane %v823, 4
      %v826 = vshll.u32 %v763, 16
      %v828 = vrot.slane %v826, 5
      %v829 = vor.u32 %v825, %v828
      %v830 = vrot.slane %v829, 4
      %v832 = vshll.u32 %v764, 16
      %v834 = vrot.slane %v832, 5
      %v835 = vsel %vm821, %v830, %v834
      %v836 = vshrl.u32 %v764, 16
      %v838 = vrot.slane %v836, 4
      %v839 = vor.u32 %v838, %v834
      %v840 = vrot.slane %v839, 4
      %v842 = vshll.u32 %v811, 16
      %v844 = vrot.slane %v842, 5
      %v845 = vsel %vm821, %v840, %v844
      %v847 = vshrl.u32 %v765, 16
      %v849 = vrot.slane %v847, 4
      %v850 = vshll.u32 %v765, 16
      %v852 = vrot.slane %v850, 5
      %v853 = vor.u32 %v849, %v852
      %v854 = vrot.slane %v853, 4
      %v856 = vshll.u32 %v766, 16
      %v858 = vrot.slane %v856, 5
      %v859 = vsel %vm821, %v854, %v858
      %v860 = vshrl.u32 %v766, 16
      %v862 = vrot.slane %v860, 4
      %v863 = vor.u32 %v862, %v858
      %v864 = vrot.slane %v863, 4
      %v866 = vshll.u32 %v812, 16
      %v868 = vrot.slane %v866, 5
      %v869 = vsel %vm821, %v864, %v868
      %v871 = vshrl.u32 %v767, 16
      %v873 = vrot.slane %v871, 4
      %v874 = vshll.u32 %v767, 16
      %v876 = vrot.slane %v874, 5
      %v877 = vor.u32 %v873, %v876
      %v878 = vrot.slane %v877, 4
      %v880 = vshll.u32 %v768, 16
      %v882 = vrot.slane %v880, 5
      %v883 = vsel %vm821, %v878, %v882
      %v884 = vshrl.u32 %v768, 16
      %v886 = vrot.slane %v884, 4
      %v887 = vor.u32 %v886, %v882
      %v888 = vrot.slane %v887, 4
      %v890 = vshll.u32 %v813, 16
      %v892 = vrot.slane %v890, 5
      %v893 = vsel %vm821, %v888, %v892
      %v895 = vshrl.u32 %v769, 16
      %v897 = vrot.slane %v895, 4
      %v898 = vshll.u32 %v769, 16
      %v900 = vrot.slane %v898, 5
      %v901 = vor.u32 %v897, %v900
      %v902 = vrot.slane %v901, 4
      %v904 = vshll.u32 %v770, 16
      %v906 = vrot.slane %v904, 5
      %v907 = vsel %vm821, %v902, %v906
      %v908 = vshrl.u32 %v770, 16
      %v910 = vrot.slane %v908, 4
      %v911 = vor.u32 %v910, %v906
      %v912 = vrot.slane %v911, 4
      %v914 = vshll.u32 %v814, 16
      %v916 = vrot.slane %v914, 5
      %v917 = vsel %vm821, %v912, %v916
      %v919 = vshrl.u32 %v771, 16
      %v921 = vrot.slane %v919, 4
      %v922 = vshll.u32 %v771, 16
      %v924 = vrot.slane %v922, 5
      %v925 = vor.u32 %v921, %v924
      %v926 = vrot.slane %v925, 4
      %v928 = vshll.u32 %v772, 16
      %v930 = vrot.slane %v928, 5
      %v931 = vsel %vm821, %v926, %v930
      %v932 = vshrl.u32 %v772, 16
      %v934 = vrot.slane %v932, 4
      %v935 = vor.u32 %v934, %v930
      %v936 = vrot.slane %v935, 4
      %v938 = vshll.u32 %v815, 16
      %v940 = vrot.slane %v938, 5
      %v941 = vsel %vm821, %v936, %v940
      %v943 = vshrl.u32 %v773, 16
      %v945 = vrot.slane %v943, 4
      %v946 = vshll.u32 %v773, 16
      %v948 = vrot.slane %v946, 5
      %v949 = vor.u32 %v945, %v948
      %v950 = vrot.slane %v949, 4
      %v952 = vshll.u32 %v774, 16
      %v954 = vrot.slane %v952, 5
      %v955 = vsel %vm821, %v950, %v954
      %v956 = vshrl.u32 %v774, 16
      %v958 = vrot.slane %v956, 4
      %v959 = vor.u32 %v958, %v954
      %v960 = vrot.slane %v959, 4
      %v962 = vshll.u32 %v816, 16
      %v964 = vrot.slane %v962, 5
      %v965 = vsel %vm821, %v960, %v964
      %v967 = vshrl.u32 %v775, 16
      %v969 = vrot.slane %v967, 4
      %v970 = vshll.u32 %v775, 16
      %v972 = vrot.slane %v970, 5
      %v973 = vor.u32 %v969, %v972
      %v974 = vrot.slane %v973, 4
      %v976 = vshll.u32 %v776, 16
      %v978 = vrot.slane %v976, 5
      %v979 = vsel %vm821, %v974, %v978
      %v980 = vshrl.u32 %v776, 16
      %v982 = vrot.slane %v980, 4
      %v983 = vor.u32 %v982, %v978
      %v984 = vrot.slane %v983, 4
      %v986 = vshll.u32 %v817, 16
      %v988 = vrot.slane %v986, 5
      %v989 = vsel %vm821, %v984, %v988
      %v991 = vshrl.u32 %v777, 16
      %v993 = vrot.slane %v991, 4
      %v994 = vshll.u32 %v777, 16
      %v996 = vrot.slane %v994, 5
      %v997 = vor.u32 %v993, %v996
      %v998 = vrot.slane %v997, 4
      %v1000 = vshll.u32 %v778, 16
      %v1002 = vrot.slane %v1000, 5
      %v1003 = vsel %vm821, %v998, %v1002
      %v1004 = vshrl.u32 %v778, 16
      %v1006 = vrot.slane %v1004, 4
      %v1007 = vor.u32 %v1006, %v1002
      %v1008 = vrot.slane %v1007, 4
      %v1010 = vshll.u32 %v818, 16
      %v1012 = vrot.slane %v1010, 5
      %v1013 = vsel %vm821, %v1008, %v1012
      %s1014 = scalar_lea.vmem %s3, 256
      %v1015 = vld [vmem:[%s1014] sm:$0xff]
      %v1016 = vld [vmem:[%s1014 + $0x8] sm:$0xff]
      %v1017 = vld [vmem:[%s1014 + $0x10] sm:$0xff]
      %v1018 = vld [vmem:[%s1014 + $0x18] sm:$0xff]
      %v1019 = vld [vmem:[%s1014 + $0x20] sm:$0xff]
      %v1020 = vld [vmem:[%s1014 + $0x28] sm:$0xff]
      %v1021 = vld [vmem:[%s1014 + $0x30] sm:$0xff]
      %v1022 = vld [vmem:[%s1014 + $0x38] sm:$0xff]
      %v1023 = vld [vmem:[%s1014 + $0x40] sm:$0xff]
      %v1024 = vld [vmem:[%s1014 + $0x48] sm:$0xff]
      %v1025 = vld [vmem:[%s1014 + $0x50] sm:$0xff]
      %v1026 = vld [vmem:[%s1014 + $0x58] sm:$0xff]
      %v1027 = vld [vmem:[%s1014 + $0x60] sm:$0xff]
      %v1028 = vld [vmem:[%s1014 + $0x68] sm:$0xff]
      %v1029 = vld [vmem:[%s1014 + $0x70] sm:$0xff]
      %v1030 = vld [vmem:[%s1014 + $0x78] sm:$0xff]
      %v1031 = vld [vmem:[%s1014 + $0x80] sm:$0xff]
      %v1032 = vld [vmem:[%s1014 + $0x88] sm:$0xff]
      %v1033 = vld [vmem:[%s1014 + $0x90] sm:$0xff]
      %v1034 = vld [vmem:[%s1014 + $0x98] sm:$0xff]
      %v1035 = vld [vmem:[%s1014 + $0xa0] sm:$0xff]
      %v1036 = vld [vmem:[%s1014 + $0xa8] sm:$0xff]
      %v1037 = vld [vmem:[%s1014 + $0xb0] sm:$0xff]
      %v1038 = vld [vmem:[%s1014 + $0xb8] sm:$0xff]
      %v1039 = vld [vmem:[%s1014 + $0xc0] sm:$0xff]
      %v1040 = vld [vmem:[%s1014 + $0xc8] sm:$0xff]
      %v1041 = vld [vmem:[%s1014 + $0xd0] sm:$0xff]
      %v1042 = vld [vmem:[%s1014 + $0xd8] sm:$0xff]
      %v1043 = vld [vmem:[%s1014 + $0xe0] sm:$0xff]
      %v1044 = vld [vmem:[%s1014 + $0xe8] sm:$0xff]
      %v1045 = vld [vmem:[%s1014 + $0xf0] sm:$0xff]
      %v1046 = vld [vmem:[%s1014 + $0xf8] sm:$0xff]
      %v1047 = vunpack.c.l.b16 %v835
      %v1048 = vunpack.c.h.b16 %v835
      %v1049 = vunpack.c.l.b16 %v845
      %v1050 = vunpack.c.h.b16 %v845
      %v1051 = vunpack.c.l.b16 %v859
      %v1052 = vunpack.c.h.b16 %v859
      %v1053 = vunpack.c.l.b16 %v869
      %v1054 = vunpack.c.h.b16 %v869
      %v1055 = vunpack.c.l.b16 %v883
      %v1056 = vunpack.c.h.b16 %v883
      %v1057 = vunpack.c.l.b16 %v893
      %v1058 = vunpack.c.h.b16 %v893
      %v1059 = vunpack.c.l.b16 %v907
      %v1060 = vunpack.c.h.b16 %v907
      %v1061 = vunpack.c.l.b16 %v917
      %v1062 = vunpack.c.h.b16 %v917
      %v1063 = vunpack.c.l.b16 %v931
      %v1064 = vunpack.c.h.b16 %v931
      %v1065 = vunpack.c.l.b16 %v941
      %v1066 = vunpack.c.h.b16 %v941
      %v1067 = vunpack.c.l.b16 %v955
      %v1068 = vunpack.c.h.b16 %v955
      %v1069 = vunpack.c.l.b16 %v965
      %v1070 = vunpack.c.h.b16 %v965
      %v1071 = vunpack.c.l.b16 %v979
      %v1072 = vunpack.c.h.b16 %v979
      %v1073 = vunpack.c.l.b16 %v989
      %v1074 = vunpack.c.h.b16 %v989
      %v1075 = vunpack.c.l.b16 %v1003
      %v1076 = vunpack.c.h.b16 %v1003
      %v1077 = vunpack.c.l.b16 %v1013
      %v1078 = vunpack.c.h.b16 %v1013
      %v1079 = vpack.c.b16 %v1049, %v1047
      %v1080 = vpack.c.b16 %v1050, %v1048
      %v1081 = vpack.c.b16 %v1053, %v1051
      %v1082 = vpack.c.b16 %v1054, %v1052
      %v1083 = vpack.c.b16 %v1057, %v1055
      %v1084 = vpack.c.b16 %v1058, %v1056
      %v1085 = vpack.c.b16 %v1061, %v1059
      %v1086 = vpack.c.b16 %v1062, %v1060
      %v1087 = vpack.c.b16 %v1065, %v1063
      %v1088 = vpack.c.b16 %v1066, %v1064
      %v1089 = vpack.c.b16 %v1069, %v1067
      %v1090 = vpack.c.b16 %v1070, %v1068
      %v1091 = vpack.c.b16 %v1073, %v1071
      %v1092 = vpack.c.b16 %v1074, %v1072
      %v1093 = vpack.c.b16 %v1077, %v1075
      %v1094 = vpack.c.b16 %v1078, %v1076
      %v1143 = vunpack.c.l.b16 %v1015
      %v1144 = vunpack.c.h.b16 %v1015
      %v1145 = vunpack.c.l.b16 %v1016
      %v1146 = vunpack.c.h.b16 %v1016
      %v1147 = vunpack.c.l.b16 %v1017
      %v1148 = vunpack.c.h.b16 %v1017
      %v1149 = vunpack.c.l.b16 %v1018
      %v1150 = vunpack.c.h.b16 %v1018
      %v1151 = vunpack.c.l.b16 %v1019
      %v1152 = vunpack.c.h.b16 %v1019
      %v1153 = vunpack.c.l.b16 %v1020
      %v1154 = vunpack.c.h.b16 %v1020
      %v1155 = vunpack.c.l.b16 %v1021
      %v1156 = vunpack.c.h.b16 %v1021
      %v1157 = vunpack.c.l.b16 %v1022
      %v1158 = vunpack.c.h.b16 %v1022
      %v1159 = vunpack.c.l.b16 %v1023
      %v1160 = vunpack.c.h.b16 %v1023
      %v1161 = vunpack.c.l.b16 %v1024
      %v1162 = vunpack.c.h.b16 %v1024
      %v1163 = vunpack.c.l.b16 %v1025
      %v1164 = vunpack.c.h.b16 %v1025
      %v1165 = vunpack.c.l.b16 %v1026
      %v1166 = vunpack.c.h.b16 %v1026
      %v1167 = vunpack.c.l.b16 %v1027
      %v1168 = vunpack.c.h.b16 %v1027
      %v1169 = vunpack.c.l.b16 %v1028
      %v1170 = vunpack.c.h.b16 %v1028
      %v1171 = vunpack.c.l.b16 %v1029
      %v1172 = vunpack.c.h.b16 %v1029
      %v1173 = vunpack.c.l.b16 %v1030
      %v1174 = vunpack.c.h.b16 %v1030
      %v1175 = vunpack.c.l.b16 %v1031
      %v1176 = vunpack.c.h.b16 %v1031
      %v1177 = vunpack.c.l.b16 %v1032
      %v1178 = vunpack.c.h.b16 %v1032
      %v1179 = vunpack.c.l.b16 %v1033
      %v1180 = vunpack.c.h.b16 %v1033
      %v1181 = vunpack.c.l.b16 %v1034
      %v1182 = vunpack.c.h.b16 %v1034
      %v1183 = vunpack.c.l.b16 %v1035
      %v1184 = vunpack.c.h.b16 %v1035
      %v1185 = vunpack.c.l.b16 %v1036
      %v1186 = vunpack.c.h.b16 %v1036
      %v1187 = vunpack.c.l.b16 %v1037
      %v1188 = vunpack.c.h.b16 %v1037
      %v1189 = vunpack.c.l.b16 %v1038
      %v1190 = vunpack.c.h.b16 %v1038
      %v1191 = vunpack.c.l.b16 %v1039
      %v1192 = vunpack.c.h.b16 %v1039
      %v1193 = vunpack.c.l.b16 %v1040
      %v1194 = vunpack.c.h.b16 %v1040
      %v1195 = vunpack.c.l.b16 %v1041
      %v1196 = vunpack.c.h.b16 %v1041
      %v1197 = vunpack.c.l.b16 %v1042
      %v1198 = vunpack.c.h.b16 %v1042
      %v1199 = vunpack.c.l.b16 %v1043
      %v1200 = vunpack.c.h.b16 %v1043
      %v1201 = vunpack.c.l.b16 %v1044
      %v1202 = vunpack.c.h.b16 %v1044
      %v1203 = vunpack.c.l.b16 %v1045
      %v1204 = vunpack.c.h.b16 %v1045
      %v1205 = vunpack.c.l.b16 %v1046
      %v1206 = vunpack.c.h.b16 %v1046
      %v1207 = vpack.c.b16 %v1145, %v1143
      %v1208 = vpack.c.b16 %v1146, %v1144
      %v1209 = vpack.c.b16 %v1149, %v1147
      %v1210 = vpack.c.b16 %v1150, %v1148
      %v1211 = vpack.c.b16 %v1153, %v1151
      %v1212 = vpack.c.b16 %v1154, %v1152
      %v1213 = vpack.c.b16 %v1157, %v1155
      %v1214 = vpack.c.b16 %v1158, %v1156
      %v1215 = vpack.c.b16 %v1161, %v1159
      %v1216 = vpack.c.b16 %v1162, %v1160
      %v1217 = vpack.c.b16 %v1165, %v1163
      %v1218 = vpack.c.b16 %v1166, %v1164
      %v1219 = vpack.c.b16 %v1169, %v1167
      %v1220 = vpack.c.b16 %v1170, %v1168
      %v1221 = vpack.c.b16 %v1173, %v1171
      %v1222 = vpack.c.b16 %v1174, %v1172
      %v1223 = vpack.c.b16 %v1177, %v1175
      %v1224 = vpack.c.b16 %v1178, %v1176
      %v1225 = vpack.c.b16 %v1181, %v1179
      %v1226 = vpack.c.b16 %v1182, %v1180
      %v1227 = vpack.c.b16 %v1185, %v1183
      %v1228 = vpack.c.b16 %v1186, %v1184
      %v1229 = vpack.c.b16 %v1189, %v1187
      %v1230 = vpack.c.b16 %v1190, %v1188
      %v1231 = vpack.c.b16 %v1193, %v1191
      %v1232 = vpack.c.b16 %v1194, %v1192
      %v1233 = vpack.c.b16 %v1197, %v1195
      %v1234 = vpack.c.b16 %v1198, %v1196
      %v1235 = vpack.c.b16 %v1201, %v1199
      %v1236 = vpack.c.b16 %v1202, %v1200
      %v1237 = vpack.c.b16 %v1205, %v1203
      %v1238 = vpack.c.b16 %v1206, %v1204
      %1271 = vmatprep.subr.bf16.mxu0 %v1208
      %1272 = vmatpush1.bf16.msra.mxu0 %v1207
      %1273 = vmatprep.subr.bf16.mxu0 %v1210
      %1274 = vmatpush1.bf16.msra.mxu0 %v1209
      %1275 = vmatprep.subr.bf16.mxu0 %v1212
      %1276 = vmatpush1.bf16.msra.mxu0 %v1211
      %1277 = vmatprep.subr.bf16.mxu0 %v1214
      %1278 = vmatpush1.bf16.msra.mxu0 %v1213
      %1279 = vmatprep.subr.bf16.mxu0 %v1216
      %1280 = vmatpush1.bf16.msra.mxu0 %v1215
      %1281 = vmatprep.subr.bf16.mxu0 %v1218
      %1282 = vmatpush1.bf16.msra.mxu0 %v1217
      %1283 = vmatprep.subr.bf16.mxu0 %v1220
      %1284 = vmatpush1.bf16.msra.mxu0 %v1219
      %1285 = vmatprep.subr.bf16.mxu0 %v1222
      %1286 = vmatpush1.bf16.msra.mxu0 %v1221
      %1287 = vmatprep.subr.bf16.mxu0 %v1224
      %1288 = vmatpush1.bf16.msra.mxu0 %v1223
      %1289 = vmatprep.subr.bf16.mxu0 %v1226
      %1290 = vmatpush1.bf16.msra.mxu0 %v1225
      %1291 = vmatprep.subr.bf16.mxu0 %v1228
      %1292 = vmatpush1.bf16.msra.mxu0 %v1227
      %1293 = vmatprep.subr.bf16.mxu0 %v1230
      %1294 = vmatpush1.bf16.msra.mxu0 %v1229
      %1295 = vmatprep.subr.bf16.mxu0 %v1232
      %1296 = vmatpush1.bf16.msra.mxu0 %v1231
      %1297 = vmatprep.subr.bf16.mxu0 %v1234
      %1298 = vmatpush1.bf16.msra.mxu0 %v1233
      %1299 = vmatprep.subr.bf16.mxu0 %v1236
      %1300 = vmatpush1.bf16.msra.mxu0 %v1235
      %1301 = vmatprep.subr.bf16.mxu0 %v1238
      %1302 = vmatpush1.bf16.msra.mxu0 %v1237
      %1303 = vmatprep.mubr.bf16.mxu0 %v1080
      %1304 = vmatmul.mubr.bf16.gmra.mrb[0].mxu0 %v1079
      %v1305 = vpop.f32.mrb[0].mxu0
      %v1306 = vadd.f32 0.0, %v1305
      %v1307 = vpop.f32.mrb[0].mxu0
      %v1308 = vadd.f32 0.0, %v1307
      %v1309 = vpop.f32.mrb[0].mxu0
      %v1310 = vadd.f32 0.0, %v1309
      %v1311 = vpop.f32.mrb[0].mxu0
      %v1312 = vadd.f32 0.0, %v1311
      %1313 = vmatprep.mubr.bf16.mxu0 %v1082
      %1314 = vmatmul.mubr.bf16.gmra.mrb[0].mxu0 %v1081
      %v1315 = vpop.f32.mrb[0].mxu0
      %v1316 = vadd.f32 0.0, %v1315
      %v1317 = vpop.f32.mrb[0].mxu0
      %v1318 = vadd.f32 0.0, %v1317
      %v1319 = vpop.f32.mrb[0].mxu0
      %v1320 = vadd.f32 0.0, %v1319
      %v1321 = vpop.f32.mrb[0].mxu0
      %v1322 = vadd.f32 0.0, %v1321
      %1323 = vmatprep.mubr.bf16.mxu0 %v1084
      %1324 = vmatmul.mubr.bf16.gmra.mrb[0].mxu0 %v1083
      %v1325 = vpop.f32.mrb[0].mxu0
      %v1326 = vadd.f32 0.0, %v1325
      %v1327 = vpop.f32.mrb[0].mxu0
      %v1328 = vadd.f32 0.0, %v1327
      %v1329 = vpop.f32.mrb[0].mxu0
      %v1330 = vadd.f32 0.0, %v1329
      %v1331 = vpop.f32.mrb[0].mxu0
      %v1332 = vadd.f32 0.0, %v1331
      %1333 = vmatprep.mubr.bf16.mxu0 %v1086
      %1334 = vmatmul.mubr.bf16.gmra.mrb[0].mxu0 %v1085
      %v1335 = vpop.f32.mrb[0].mxu0
      %v1336 = vadd.f32 0.0, %v1335
      %v1337 = vpop.f32.mrb[0].mxu0
      %v1338 = vadd.f32 0.0, %v1337
      %v1339 = vpop.f32.mrb[0].mxu0
      %v1340 = vadd.f32 0.0, %v1339
      %v1341 = vpop.f32.mrb[0].mxu0
      %v1342 = vadd.f32 0.0, %v1341
      %1343 = vmatprep.mubr.bf16.mxu0 %v1088
      %1344 = vmatmul.mubr.bf16.gmra.mrb[0].mxu0 %v1087
      %v1345 = vpop.f32.mrb[0].mxu0
      %v1346 = vadd.f32 0.0, %v1345
      %v1347 = vpop.f32.mrb[0].mxu0
      %v1348 = vadd.f32 0.0, %v1347
      %v1349 = vpop.f32.mrb[0].mxu0
      %v1350 = vadd.f32 0.0, %v1349
      %v1351 = vpop.f32.mrb[0].mxu0
      %v1352 = vadd.f32 0.0, %v1351
      %1353 = vmatprep.mubr.bf16.mxu0 %v1090
      %1354 = vmatmul.mubr.bf16.gmra.mrb[0].mxu0 %v1089
      %v1355 = vpop.f32.mrb[0].mxu0
      %v1356 = vadd.f32 0.0, %v1355
      %v1357 = vpop.f32.mrb[0].mxu0
      %v1358 = vadd.f32 0.0, %v1357
      %v1359 = vpop.f32.mrb[0].mxu0
      %v1360 = vadd.f32 0.0, %v1359
      %v1361 = vpop.f32.mrb[0].mxu0
      %v1362 = vadd.f32 0.0, %v1361
      %1363 = vmatprep.mubr.bf16.mxu0 %v1092
      %1364 = vmatmul.mubr.bf16.gmra.mrb[0].mxu0 %v1091
      %v1365 = vpop.f32.mrb[0].mxu0
      %v1366 = vadd.f32 0.0, %v1365
      %v1367 = vpop.f32.mrb[0].mxu0
      %v1368 = vadd.f32 0.0, %v1367
      %v1369 = vpop.f32.mrb[0].mxu0
      %v1370 = vadd.f32 0.0, %v1369
      %v1371 = vpop.f32.mrb[0].mxu0
      %v1372 = vadd.f32 0.0, %v1371
      %1373 = vmatprep.mubr.bf16.mxu0 %v1094
      %1374 = vmatmul.mubr.bf16.gmra.mrb[0].mxu0 %v1093
      %v1375 = vpop.f32.mrb[0].mxu0
      %v1376 = vadd.f32 0.0, %v1375
      %v1377 = vpop.f32.mrb[0].mxu0
      %v1378 = vadd.f32 0.0, %v1377
      %v1379 = vpop.f32.mrb[0].mxu0
      %v1380 = vadd.f32 0.0, %v1379
      %v1381 = vpop.f32.mrb[0].mxu0
      %v1382 = vadd.f32 0.0, %v1381
      %1383 = vdwg.mxu0
      %v1400 = vunpack.c.l.b16 %v763
      %v1401 = vunpack.c.h.b16 %v763
      %v1402 = vunpack.c.l.b16 %v764
      %v1403 = vunpack.c.h.b16 %v764
      %v1404 = vunpack.c.l.b16 %v765
      %v1405 = vunpack.c.h.b16 %v765
      %v1406 = vunpack.c.l.b16 %v766
      %v1407 = vunpack.c.h.b16 %v766
      %v1408 = vunpack.c.l.b16 %v767
      %v1409 = vunpack.c.h.b16 %v767
      %v1410 = vunpack.c.l.b16 %v768
      %v1411 = vunpack.c.h.b16 %v768
      %v1412 = vunpack.c.l.b16 %v769
      %v1413 = vunpack.c.h.b16 %v769
      %v1414 = vunpack.c.l.b16 %v770
      %v1415 = vunpack.c.h.b16 %v770
      %v1416 = vunpack.c.l.b16 %v771
      %v1417 = vunpack.c.h.b16 %v771
      %v1418 = vunpack.c.l.b16 %v772
      %v1419 = vunpack.c.h.b16 %v772
      %v1420 = vunpack.c.l.b16 %v773
      %v1421 = vunpack.c.h.b16 %v773
      %v1422 = vunpack.c.l.b16 %v774
      %v1423 = vunpack.c.h.b16 %v774
      %v1424 = vunpack.c.l.b16 %v775
      %v1425 = vunpack.c.h.b16 %v775
      %v1426 = vunpack.c.l.b16 %v776
      %v1427 = vunpack.c.h.b16 %v776
      %v1428 = vunpack.c.l.b16 %v777
      %v1429 = vunpack.c.h.b16 %v777
      %v1430 = vunpack.c.l.b16 %v778
      %v1431 = vunpack.c.h.b16 %v778
      %v1432 = vpack.c.b16 %v1402, %v1400
      %v1433 = vpack.c.b16 %v1403, %v1401
      %v1434 = vpack.c.b16 %v1406, %v1404
      %v1435 = vpack.c.b16 %v1407, %v1405
      %v1436 = vpack.c.b16 %v1410, %v1408
      %v1437 = vpack.c.b16 %v1411, %v1409
      %v1438 = vpack.c.b16 %v1414, %v1412
      %v1439 = vpack.c.b16 %v1415, %v1413
      %v1440 = vpack.c.b16 %v1418, %v1416
      %v1441 = vpack.c.b16 %v1419, %v1417
      %v1442 = vpack.c.b16 %v1422, %v1420
      %v1443 = vpack.c.b16 %v1423, %v1421
      %v1444 = vpack.c.b16 %v1426, %v1424
      %v1445 = vpack.c.b16 %v1427, %v1425
      %v1446 = vpack.c.b16 %v1430, %v1428
      %v1447 = vpack.c.b16 %v1431, %v1429
      %v1496 = vunpack.c.l.b16 %v779
      %v1497 = vunpack.c.h.b16 %v779
      %v1498 = vunpack.c.l.b16 %v780
      %v1499 = vunpack.c.h.b16 %v780
      %v1500 = vunpack.c.l.b16 %v781
      %v1501 = vunpack.c.h.b16 %v781
      %v1502 = vunpack.c.l.b16 %v782
      %v1503 = vunpack.c.h.b16 %v782
      %v1504 = vunpack.c.l.b16 %v783
      %v1505 = vunpack.c.h.b16 %v783
      %v1506 = vunpack.c.l.b16 %v784
      %v1507 = vunpack.c.h.b16 %v784
      %v1508 = vunpack.c.l.b16 %v785
      %v1509 = vunpack.c.h.b16 %v785
      %v1510 = vunpack.c.l.b16 %v786
      %v1511 = vunpack.c.h.b16 %v786
      %v1512 = vunpack.c.l.b16 %v787
      %v1513 = vunpack.c.h.b16 %v787
      %v1514 = vunpack.c.l.b16 %v788
      %v1515 = vunpack.c.h.b16 %v788
      %v1516 = vunpack.c.l.b16 %v789
      %v1517 = vunpack.c.h.b16 %v789
      %v1518 = vunpack.c.l.b16 %v790
      %v1519 = vunpack.c.h.b16 %v790
      %v1520 = vunpack.c.l.b16 %v791
      %v1521 = vunpack.c.h.b16 %v791
      %v1522 = vunpack.c.l.b16 %v792
      %v1523 = vunpack.c.h.b16 %v792
      %v1524 = vunpack.c.l.b16 %v793
      %v1525 = vunpack.c.h.b16 %v793
      %v1526 = vunpack.c.l.b16 %v794
      %v1527 = vunpack.c.h.b16 %v794
      %v1528 = vunpack.c.l.b16 %v795
      %v1529 = vunpack.c.h.b16 %v795
      %v1530 = vunpack.c.l.b16 %v796
      %v1531 = vunpack.c.h.b16 %v796
      %v1532 = vunpack.c.l.b16 %v797
      %v1533 = vunpack.c.h.b16 %v797
      %v1534 = vunpack.c.l.b16 %v798
      %v1535 = vunpack.c.h.b16 %v798
      %v1536 = vunpack.c.l.b16 %v799
      %v1537 = vunpack.c.h.b16 %v799
      %v1538 = vunpack.c.l.b16 %v800
      %v1539 = vunpack.c.h.b16 %v800
      %v1540 = vunpack.c.l.b16 %v801
      %v1541 = vunpack.c.h.b16 %v801
      %v1542 = vunpack.c.l.b16 %v802
      %v1543 = vunpack.c.h.b16 %v802
      %v1544 = vunpack.c.l.b16 %v803
      %v1545 = vunpack.c.h.b16 %v803
      %v1546 = vunpack.c.l.b16 %v804
      %v1547 = vunpack.c.h.b16 %v804
      %v1548 = vunpack.c.l.b16 %v805
      %v1549 = vunpack.c.h.b16 %v805
      %v1550 = vunpack.c.l.b16 %v806
      %v1551 = vunpack.c.h.b16 %v806
      %v1552 = vunpack.c.l.b16 %v807
      %v1553 = vunpack.c.h.b16 %v807
      %v1554 = vunpack.c.l.b16 %v808
      %v1555 = vunpack.c.h.b16 %v808
      %v1556 = vunpack.c.l.b16 %v809
      %v1557 = vunpack.c.h.b16 %v809
      %v1558 = vunpack.c.l.b16 %v810
      %v1559 = vunpack.c.h.b16 %v810
      %v1560 = vpack.c.b16 %v1498, %v1496
      %v1561 = vpack.c.b16 %v1499, %v1497
      %v1562 = vpack.c.b16 %v1502, %v1500
      %v1563 = vpack.c.b16 %v1503, %v1501
      %v1564 = vpack.c.b16 %v1506, %v1504
      %v1565 = vpack.c.b16 %v1507, %v1505
      %v1566 = vpack.c.b16 %v1510, %v1508
      %v1567 = vpack.c.b16 %v1511, %v1509
      %v1568 = vpack.c.b16 %v1514, %v1512
      %v1569 = vpack.c.b16 %v1515, %v1513
      %v1570 = vpack.c.b16 %v1518, %v1516
      %v1571 = vpack.c.b16 %v1519, %v1517
      %v1572 = vpack.c.b16 %v1522, %v1520
      %v1573 = vpack.c.b16 %v1523, %v1521
      %v1574 = vpack.c.b16 %v1526, %v1524
      %v1575 = vpack.c.b16 %v1527, %v1525
      %v1576 = vpack.c.b16 %v1530, %v1528
      %v1577 = vpack.c.b16 %v1531, %v1529
      %v1578 = vpack.c.b16 %v1534, %v1532
      %v1579 = vpack.c.b16 %v1535, %v1533
      %v1580 = vpack.c.b16 %v1538, %v1536
      %v1581 = vpack.c.b16 %v1539, %v1537
      %v1582 = vpack.c.b16 %v1542, %v1540
      %v1583 = vpack.c.b16 %v1543, %v1541
      %v1584 = vpack.c.b16 %v1546, %v1544
      %v1585 = vpack.c.b16 %v1547, %v1545
      %v1586 = vpack.c.b16 %v1550, %v1548
      %v1587 = vpack.c.b16 %v1551, %v1549
      %v1588 = vpack.c.b16 %v1554, %v1552
      %v1589 = vpack.c.b16 %v1555, %v1553
      %v1590 = vpack.c.b16 %v1558, %v1556
      %v1591 = vpack.c.b16 %v1559, %v1557
      %1624 = vmatprep.subr.bf16.mxu0 %v1561
      %1625 = vmatpush1.bf16.msra.mxu0 %v1560
      %1626 = vmatprep.subr.bf16.mxu0 %v1563
      %1627 = vmatpush1.bf16.msra.mxu0 %v1562
      %1628 = vmatprep.subr.bf16.mxu0 %v1565
      %1629 = vmatpush1.bf16.msra.mxu0 %v1564
      %1630 = vmatprep.subr.bf16.mxu0 %v1567
      %1631 = vmatpush1.bf16.msra.mxu0 %v1566
      %1632 = vmatprep.subr.bf16.mxu0 %v1569
      %1633 = vmatpush1.bf16.msra.mxu0 %v1568
      %1634 = vmatprep.subr.bf16.mxu0 %v1571
      %1635 = vmatpush1.bf16.msra.mxu0 %v1570
      %1636 = vmatprep.subr.bf16.mxu0 %v1573
      %1637 = vmatpush1.bf16.msra.mxu0 %v1572
      %1638 = vmatprep.subr.bf16.mxu0 %v1575
      %1639 = vmatpush1.bf16.msra.mxu0 %v1574
      %1640 = vmatprep.subr.bf16.mxu0 %v1577
      %1641 = vmatpush1.bf16.msra.mxu0 %v1576
      %1642 = vmatprep.subr.bf16.mxu0 %v1579
      %1643 = vmatpush1.bf16.msra.mxu0 %v1578
      %1644 = vmatprep.subr.bf16.mxu0 %v1581
      %1645 = vmatpush1.bf16.msra.mxu0 %v1580
      %1646 = vmatprep.subr.bf16.mxu0 %v1583
      %1647 = vmatpush1.bf16.msra.mxu0 %v1582
      %1648 = vmatprep.subr.bf16.mxu0 %v1585
      %1649 = vmatpush1.bf16.msra.mxu0 %v1584
      %1650 = vmatprep.subr.bf16.mxu0 %v1587
      %1651 = vmatpush1.bf16.msra.mxu0 %v1586
      %1652 = vmatprep.subr.bf16.mxu0 %v1589
      %1653 = vmatpush1.bf16.msra.mxu0 %v1588
      %1654 = vmatprep.subr.bf16.mxu0 %v1591
      %1655 = vmatpush1.bf16.msra.mxu0 %v1590
      %1656 = vmatprep.mubr.bf16.mxu0 %v1433
      %1657 = vmatmul.mubr.bf16.gmra.mrb[0].mxu0 %v1432
      %v1658 = vpop.f32.mrb[0].mxu0
      %v1659 = vadd.f32 %v1306, %v1658
      %v1660 = vpop.f32.mrb[0].mxu0
      %v1661 = vadd.f32 %v1308, %v1660
      %v1662 = vpop.f32.mrb[0].mxu0
      %v1663 = vadd.f32 %v1310, %v1662
      %v1664 = vpop.f32.mrb[0].mxu0
      %v1665 = vadd.f32 %v1312, %v1664
      %1666 = vmatprep.mubr.bf16.mxu0 %v1435
      %1667 = vmatmul.mubr.bf16.gmra.mrb[0].mxu0 %v1434
      %v1668 = vpop.f32.mrb[0].mxu0
      %v1669 = vadd.f32 %v1316, %v1668
      %v1670 = vpop.f32.mrb[0].mxu0
      %v1671 = vadd.f32 %v1318, %v1670
      %v1672 = vpop.f32.mrb[0].mxu0
      %v1673 = vadd.f32 %v1320, %v1672
      %v1674 = vpop.f32.mrb[0].mxu0
      %v1675 = vadd.f32 %v1322, %v1674
      %1676 = vmatprep.mubr.bf16.mxu0 %v1437
      %1677 = vmatmul.mubr.bf16.gmra.mrb[0].mxu0 %v1436
      %v1678 = vpop.f32.mrb[0].mxu0
      %v1679 = vadd.f32 %v1326, %v1678
      %v1680 = vpop.f32.mrb[0].mxu0
      %v1681 = vadd.f32 %v1328, %v1680
      %v1682 = vpop.f32.mrb[0].mxu0
      %v1683 = vadd.f32 %v1330, %v1682
      %v1684 = vpop.f32.mrb[0].mxu0
      %v1685 = vadd.f32 %v1332, %v1684
      %1686 = vmatprep.mubr.bf16.mxu0 %v1439
      %1687 = vmatmul.mubr.bf16.gmra.mrb[0].mxu0 %v1438
      %v1688 = vpop.f32.mrb[0].mxu0
      %v1689 = vadd.f32 %v1336, %v1688
      %v1690 = vpop.f32.mrb[0].mxu0
      %v1691 = vadd.f32 %v1338, %v1690
      %v1692 = vpop.f32.mrb[0].mxu0
      %v1693 = vadd.f32 %v1340, %v1692
      %v1694 = vpop.f32.mrb[0].mxu0
      %v1695 = vadd.f32 %v1342, %v1694
      %1696 = vmatprep.mubr.bf16.mxu0 %v1441
      %1697 = vmatmul.mubr.bf16.gmra.mrb[0].mxu0 %v1440
      %v1698 = vpop.f32.mrb[0].mxu0
      %v1699 = vadd.f32 %v1346, %v1698
      %v1700 = vpop.f32.mrb[0].mxu0
      %v1701 = vadd.f32 %v1348, %v1700
      %v1702 = vpop.f32.mrb[0].mxu0
      %v1703 = vadd.f32 %v1350, %v1702
      %v1704 = vpop.f32.mrb[0].mxu0
      %v1705 = vadd.f32 %v1352, %v1704
      %1706 = vmatprep.mubr.bf16.mxu0 %v1443
      %1707 = vmatmul.mubr.bf16.gmra.mrb[0].mxu0 %v1442
      %v1708 = vpop.f32.mrb[0].mxu0
      %v1709 = vadd.f32 %v1356, %v1708
      %v1710 = vpop.f32.mrb[0].mxu0
      %v1711 = vadd.f32 %v1358, %v1710
      %v1712 = vpop.f32.mrb[0].mxu0
      %v1713 = vadd.f32 %v1360, %v1712
      %v1714 = vpop.f32.mrb[0].mxu0
      %v1715 = vadd.f32 %v1362, %v1714
      %1716 = vmatprep.mubr.bf16.mxu0 %v1445
      %1717 = vmatmul.mubr.bf16.gmra.mrb[0].mxu0 %v1444
      %v1718 = vpop.f32.mrb[0].mxu0
      %v1719 = vadd.f32 %v1366, %v1718
      %v1720 = vpop.f32.mrb[0].mxu0
      %v1721 = vadd.f32 %v1368, %v1720
      %v1722 = vpop.f32.mrb[0].mxu0
      %v1723 = vadd.f32 %v1370, %v1722
      %v1724 = vpop.f32.mrb[0].mxu0
      %v1725 = vadd.f32 %v1372, %v1724
      %1726 = vmatprep.mubr.bf16.mxu0 %v1447
      %1727 = vmatmul.mubr.bf16.gmra.mrb[0].mxu0 %v1446
      %v1728 = vpop.f32.mrb[0].mxu0
      %v1729 = vadd.f32 %v1376, %v1728
      %v1730 = vpop.f32.mrb[0].mxu0
      %v1731 = vadd.f32 %v1378, %v1730
      %v1732 = vpop.f32.mrb[0].mxu0
      %v1733 = vadd.f32 %v1380, %v1732
      %v1734 = vpop.f32.mrb[0].mxu0
      %v1735 = vadd.f32 %v1382, %v1734
      %1736 = vdwg.mxu0
      %v1737 = vld [vmem:[#allocation2] sm:$0xee]
      %v1738 = vld [vmem:[#allocation2 + $0x18] sm:$0xee]
      %v1739 = vld [vmem:[#allocation2 + $0x30] sm:$0xee]
      %v1740 = vld [vmem:[#allocation2 + $0x48] sm:$0xee]
      %v1741 = vld [vmem:[#allocation2 + $0x60] sm:$0xee]
      %v1742 = vld [vmem:[#allocation2 + $0x78] sm:$0xee]
      %v1743 = vld [vmem:[#allocation2 + $0x90] sm:$0xee]
      %v1744 = vld [vmem:[#allocation2 + $0xa8] sm:$0xee]
      %vm1761 = vcmask 1042432
      %vm1762 = vcmask 1046532
      %vm1763 = vmor %vm1761, %vm1762
      %v1764 = vrot.slane %v1737, 5
      %v1765 = vrot.slane %v1764, 4
      %v1766 = vrot.slane %v764, 5
      %v1767 = vsel %vm1763, %v1765, %v1766
      %v1768 = vrot.slane %v1766, 4
      %v1769 = vrot.slane %v811, 5
      %v1770 = vsel %vm1763, %v1768, %v1769
      %v1771 = vrot.slane %v1738, 5
      %v1772 = vrot.slane %v1771, 4
      %v1773 = vrot.slane %v766, 5
      %v1774 = vsel %vm1763, %v1772, %v1773
      %v1775 = vrot.slane %v1773, 4
      %v1776 = vrot.slane %v812, 5
      %v1777 = vsel %vm1763, %v1775, %v1776
      %v1778 = vrot.slane %v1739, 5
      %v1779 = vrot.slane %v1778, 4
      %v1780 = vrot.slane %v768, 5
      %v1781 = vsel %vm1763, %v1779, %v1780
      %v1782 = vrot.slane %v1780, 4
      %v1783 = vrot.slane %v813, 5
      %v1784 = vsel %vm1763, %v1782, %v1783
      %v1785 = vrot.slane %v1740, 5
      %v1786 = vrot.slane %v1785, 4
      %v1787 = vrot.slane %v770, 5
      %v1788 = vsel %vm1763, %v1786, %v1787
      %v1789 = vrot.slane %v1787, 4
      %v1790 = vrot.slane %v814, 5
      %v1791 = vsel %vm1763, %v1789, %v1790
      %v1792 = vrot.slane %v1741, 5
      %v1793 = vrot.slane %v1792, 4
      %v1794 = vrot.slane %v772, 5
      %v1795 = vsel %vm1763, %v1793, %v1794
      %v1796 = vrot.slane %v1794, 4
      %v1797 = vrot.slane %v815, 5
      %v1798 = vsel %vm1763, %v1796, %v1797
      %v1799 = vrot.slane %v1742, 5
      %v1800 = vrot.slane %v1799, 4
      %v1801 = vrot.slane %v774, 5
      %v1802 = vsel %vm1763, %v1800, %v1801
      %v1803 = vrot.slane %v1801, 4
      %v1804 = vrot.slane %v816, 5
      %v1805 = vsel %vm1763, %v1803, %v1804
      %v1806 = vrot.slane %v1743, 5
      %v1807 = vrot.slane %v1806, 4
      %v1808 = vrot.slane %v776, 5
      %v1809 = vsel %vm1763, %v1807, %v1808
      %v1810 = vrot.slane %v1808, 4
      %v1811 = vrot.slane %v817, 5
      %v1812 = vsel %vm1763, %v1810, %v1811
      %v1813 = vrot.slane %v1744, 5
      %v1814 = vrot.slane %v1813, 4
      %v1815 = vrot.slane %v778, 5
      %v1816 = vsel %vm1763, %v1814, %v1815
      %v1817 = vrot.slane %v1815, 4
      %v1818 = vrot.slane %v818, 5
      %v1819 = vsel %vm1763, %v1817, %v1818
      %s1820 = scalar_lea.vmem %s3, 512
      %v1821 = vld [vmem:[%s1820] sm:$0xff]
      %v1822 = vld [vmem:[%s1820 + $0x8] sm:$0xff]
      %v1823 = vld [vmem:[%s1820 + $0x10] sm:$0xff]
      %v1824 = vld [vmem:[%s1820 + $0x18] sm:$0xff]
      %v1825 = vld [vmem:[%s1820 + $0x20] sm:$0xff]
      %v1826 = vld [vmem:[%s1820 + $0x28] sm:$0xff]
      %v1827 = vld [vmem:[%s1820 + $0x30] sm:$0xff]
      %v1828 = vld [vmem:[%s1820 + $0x38] sm:$0xff]
      %v1829 = vld [vmem:[%s1820 + $0x40] sm:$0xff]
      %v1830 = vld [vmem:[%s1820 + $0x48] sm:$0xff]
      %v1831 = vld [vmem:[%s1820 + $0x50] sm:$0xff]
      %v1832 = vld [vmem:[%s1820 + $0x58] sm:$0xff]
      %v1833 = vld [vmem:[%s1820 + $0x60] sm:$0xff]
      %v1834 = vld [vmem:[%s1820 + $0x68] sm:$0xff]
      %v1835 = vld [vmem:[%s1820 + $0x70] sm:$0xff]
      %v1836 = vld [vmem:[%s1820 + $0x78] sm:$0xff]
      %v1837 = vld [vmem:[%s1820 + $0x80] sm:$0xff]
      %v1838 = vld [vmem:[%s1820 + $0x88] sm:$0xff]
      %v1839 = vld [vmem:[%s1820 + $0x90] sm:$0xff]
      %v1840 = vld [vmem:[%s1820 + $0x98] sm:$0xff]
      %v1841 = vld [vmem:[%s1820 + $0xa0] sm:$0xff]
      %v1842 = vld [vmem:[%s1820 + $0xa8] sm:$0xff]
      %v1843 = vld [vmem:[%s1820 + $0xb0] sm:$0xff]
      %v1844 = vld [vmem:[%s1820 + $0xb8] sm:$0xff]
      %v1845 = vld [vmem:[%s1820 + $0xc0] sm:$0xff]
      %v1846 = vld [vmem:[%s1820 + $0xc8] sm:$0xff]
      %v1847 = vld [vmem:[%s1820 + $0xd0] sm:$0xff]
      %v1848 = vld [vmem:[%s1820 + $0xd8] sm:$0xff]
      %v1849 = vld [vmem:[%s1820 + $0xe0] sm:$0xff]
      %v1850 = vld [vmem:[%s1820 + $0xe8] sm:$0xff]
      %v1851 = vld [vmem:[%s1820 + $0xf0] sm:$0xff]
      %v1852 = vld [vmem:[%s1820 + $0xf8] sm:$0xff]
      %v1853 = vunpack.c.l.b16 %v1767
      %v1854 = vunpack.c.h.b16 %v1767
      %v1855 = vunpack.c.l.b16 %v1770
      %v1856 = vunpack.c.h.b16 %v1770
      %v1857 = vunpack.c.l.b16 %v1774
      %v1858 = vunpack.c.h.b16 %v1774
      %v1859 = vunpack.c.l.b16 %v1777
      %v1860 = vunpack.c.h.b16 %v1777
      %v1861 = vunpack.c.l.b16 %v1781
      %v1862 = vunpack.c.h.b16 %v1781
      %v1863 = vunpack.c.l.b16 %v1784
      %v1864 = vunpack.c.h.b16 %v1784
      %v1865 = vunpack.c.l.b16 %v1788
      %v1866 = vunpack.c.h.b16 %v1788
      %v1867 = vunpack.c.l.b16 %v1791
      %v1868 = vunpack.c.h.b16 %v1791
      %v1869 = vunpack.c.l.b16 %v1795
      %v1870 = vunpack.c.h.b16 %v1795
      %v1871 = vunpack.c.l.b16 %v1798
      %v1872 = vunpack.c.h.b16 %v1798
      %v1873 = vunpack.c.l.b16 %v1802
      %v1874 = vunpack.c.h.b16 %v1802
      %v1875 = vunpack.c.l.b16 %v1805
      %v1876 = vunpack.c.h.b16 %v1805
      %v1877 = vunpack.c.l.b16 %v1809
      %v1878 = vunpack.c.h.b16 %v1809
      %v1879 = vunpack.c.l.b16 %v1812
      %v1880 = vunpack.c.h.b16 %v1812
      %v1881 = vunpack.c.l.b16 %v1816
      %v1882 = vunpack.c.h.b16 %v1816
      %v1883 = vunpack.c.l.b16 %v1819
      %v1884 = vunpack.c.h.b16 %v1819
      %v1885 = vpack.c.b16 %v1855, %v1853
      %v1886 = vpack.c.b16 %v1856, %v1854
      %v1887 = vpack.c.b16 %v1859, %v1857
      %v1888 = vpack.c.b16 %v1860, %v1858
      %v1889 = vpack.c.b16 %v1863, %v1861
      %v1890 = vpack.c.b16 %v1864, %v1862
      %v1891 = vpack.c.b16 %v1867, %v1865
      %v1892 = vpack.c.b16 %v1868, %v1866
      %v1893 = vpack.c.b16 %v1871, %v1869
      %v1894 = vpack.c.b16 %v1872, %v1870
      %v1895 = vpack.c.b16 %v1875, %v1873
      %v1896 = vpack.c.b16 %v1876, %v1874
      %v1897 = vpack.c.b16 %v1879, %v1877
      %v1898 = vpack.c.b16 %v1880, %v1878
      %v1899 = vpack.c.b16 %v1883, %v1881
      %v1900 = vpack.c.b16 %v1884, %v1882
      %v1949 = vunpack.c.l.b16 %v1821
      %v1950 = vunpack.c.h.b16 %v1821
      %v1951 = vunpack.c.l.b16 %v1822
      %v1952 = vunpack.c.h.b16 %v1822
      %v1953 = vunpack.c.l.b16 %v1823
      %v1954 = vunpack.c.h.b16 %v1823
      %v1955 = vunpack.c.l.b16 %v1824
      %v1956 = vunpack.c.h.b16 %v1824
      %v1957 = vunpack.c.l.b16 %v1825
      %v1958 = vunpack.c.h.b16 %v1825
      %v1959 = vunpack.c.l.b16 %v1826
      %v1960 = vunpack.c.h.b16 %v1826
      %v1961 = vunpack.c.l.b16 %v1827
      %v1962 = vunpack.c.h.b16 %v1827
      %v1963 = vunpack.c.l.b16 %v1828
      %v1964 = vunpack.c.h.b16 %v1828
      %v1965 = vunpack.c.l.b16 %v1829
      %v1966 = vunpack.c.h.b16 %v1829
      %v1967 = vunpack.c.l.b16 %v1830
      %v1968 = vunpack.c.h.b16 %v1830
      %v1969 = vunpack.c.l.b16 %v1831
      %v1970 = vunpack.c.h.b16 %v1831
      %v1971 = vunpack.c.l.b16 %v1832
      %v1972 = vunpack.c.h.b16 %v1832
      %v1973 = vunpack.c.l.b16 %v1833
      %v1974 = vunpack.c.h.b16 %v1833
      %v1975 = vunpack.c.l.b16 %v1834
      %v1976 = vunpack.c.h.b16 %v1834
      %v1977 = vunpack.c.l.b16 %v1835
      %v1978 = vunpack.c.h.b16 %v1835
      %v1979 = vunpack.c.l.b16 %v1836
      %v1980 = vunpack.c.h.b16 %v1836
      %v1981 = vunpack.c.l.b16 %v1837
      %v1982 = vunpack.c.h.b16 %v1837
      %v1983 = vunpack.c.l.b16 %v1838
      %v1984 = vunpack.c.h.b16 %v1838
      %v1985 = vunpack.c.l.b16 %v1839
      %v1986 = vunpack.c.h.b16 %v1839
      %v1987 = vunpack.c.l.b16 %v1840
      %v1988 = vunpack.c.h.b16 %v1840
      %v1989 = vunpack.c.l.b16 %v1841
      %v1990 = vunpack.c.h.b16 %v1841
      %v1991 = vunpack.c.l.b16 %v1842
      %v1992 = vunpack.c.h.b16 %v1842
      %v1993 = vunpack.c.l.b16 %v1843
      %v1994 = vunpack.c.h.b16 %v1843
      %v1995 = vunpack.c.l.b16 %v1844
      %v1996 = vunpack.c.h.b16 %v1844
      %v1997 = vunpack.c.l.b16 %v1845
      %v1998 = vunpack.c.h.b16 %v1845
      %v1999 = vunpack.c.l.b16 %v1846
      %v2000 = vunpack.c.h.b16 %v1846
      %v2001 = vunpack.c.l.b16 %v1847
      %v2002 = vunpack.c.h.b16 %v1847
      %v2003 = vunpack.c.l.b16 %v1848
      %v2004 = vunpack.c.h.b16 %v1848
      %v2005 = vunpack.c.l.b16 %v1849
      %v2006 = vunpack.c.h.b16 %v1849
      %v2007 = vunpack.c.l.b16 %v1850
      %v2008 = vunpack.c.h.b16 %v1850
      %v2009 = vunpack.c.l.b16 %v1851
      %v2010 = vunpack.c.h.b16 %v1851
      %v2011 = vunpack.c.l.b16 %v1852
      %v2012 = vunpack.c.h.b16 %v1852
      %v2013 = vpack.c.b16 %v1951, %v1949
      %v2014 = vpack.c.b16 %v1952, %v1950
      %v2015 = vpack.c.b16 %v1955, %v1953
      %v2016 = vpack.c.b16 %v1956, %v1954
      %v2017 = vpack.c.b16 %v1959, %v1957
      %v2018 = vpack.c.b16 %v1960, %v1958
      %v2019 = vpack.c.b16 %v1963, %v1961
      %v2020 = vpack.c.b16 %v1964, %v1962
      %v2021 = vpack.c.b16 %v1967, %v1965
      %v2022 = vpack.c.b16 %v1968, %v1966
      %v2023 = vpack.c.b16 %v1971, %v1969
      %v2024 = vpack.c.b16 %v1972, %v1970
      %v2025 = vpack.c.b16 %v1975, %v1973
      %v2026 = vpack.c.b16 %v1976, %v1974
      %v2027 = vpack.c.b16 %v1979, %v1977
      %v2028 = vpack.c.b16 %v1980, %v1978
      %v2029 = vpack.c.b16 %v1983, %v1981
      %v2030 = vpack.c.b16 %v1984, %v1982
      %v2031 = vpack.c.b16 %v1987, %v1985
      %v2032 = vpack.c.b16 %v1988, %v1986
      %v2033 = vpack.c.b16 %v1991, %v1989
      %v2034 = vpack.c.b16 %v1992, %v1990
      %v2035 = vpack.c.b16 %v1995, %v1993
      %v2036 = vpack.c.b16 %v1996, %v1994
      %v2037 = vpack.c.b16 %v1999, %v1997
      %v2038 = vpack.c.b16 %v2000, %v1998
      %v2039 = vpack.c.b16 %v2003, %v2001
      %v2040 = vpack.c.b16 %v2004, %v2002
      %v2041 = vpack.c.b16 %v2007, %v2005
      %v2042 = vpack.c.b16 %v2008, %v2006
      %v2043 = vpack.c.b16 %v2011, %v2009
      %v2044 = vpack.c.b16 %v2012, %v2010
      %2077 = vmatprep.subr.bf16.mxu0 %v2014
      %2078 = vmatpush1.bf16.msra.mxu0 %v2013
      %2079 = vmatprep.subr.bf16.mxu0 %v2016
      %2080 = vmatpush1.bf16.msra.mxu0 %v2015
      %2081 = vmatprep.subr.bf16.mxu0 %v2018
      %2082 = vmatpush1.bf16.msra.mxu0 %v2017
      %2083 = vmatprep.subr.bf16.mxu0 %v2020
      %2084 = vmatpush1.bf16.msra.mxu0 %v2019
      %2085 = vmatprep.subr.bf16.mxu0 %v2022
      %2086 = vmatpush1.bf16.msra.mxu0 %v2021
      %2087 = vmatprep.subr.bf16.mxu0 %v2024
      %2088 = vmatpush1.bf16.msra.mxu0 %v2023
      %2089 = vmatprep.subr.bf16.mxu0 %v2026
      %2090 = vmatpush1.bf16.msra.mxu0 %v2025
      %2091 = vmatprep.subr.bf16.mxu0 %v2028
      %2092 = vmatpush1.bf16.msra.mxu0 %v2027
      %2093 = vmatprep.subr.bf16.mxu0 %v2030
      %2094 = vmatpush1.bf16.msra.mxu0 %v2029
      %2095 = vmatprep.subr.bf16.mxu0 %v2032
      %2096 = vmatpush1.bf16.msra.mxu0 %v2031
      %2097 = vmatprep.subr.bf16.mxu0 %v2034
      %2098 = vmatpush1.bf16.msra.mxu0 %v2033
      %2099 = vmatprep.subr.bf16.mxu0 %v2036
      %2100 = vmatpush1.bf16.msra.mxu0 %v2035
      %2101 = vmatprep.subr.bf16.mxu0 %v2038
      %2102 = vmatpush1.bf16.msra.mxu0 %v2037
      %2103 = vmatprep.subr.bf16.mxu0 %v2040
      %2104 = vmatpush1.bf16.msra.mxu0 %v2039
      %2105 = vmatprep.subr.bf16.mxu0 %v2042
      %2106 = vmatpush1.bf16.msra.mxu0 %v2041
      %2107 = vmatprep.subr.bf16.mxu0 %v2044
      %2108 = vmatpush1.bf16.msra.mxu0 %v2043
      %2109 = vmatprep.mubr.bf16.mxu0 %v1886
      %2110 = vmatmul.mubr.bf16.gmra.mrb[0].mxu0 %v1885
      %v2111 = vpop.f32.mrb[0].mxu0
      %v2112 = vadd.f32 0.0, %v2111
      %v2113 = vpop.f32.mrb[0].mxu0
      %v2114 = vadd.f32 0.0, %v2113
      %v2115 = vpop.f32.mrb[0].mxu0
      %v2116 = vadd.f32 0.0, %v2115
      %v2117 = vpop.f32.mrb[0].mxu0
      %v2118 = vadd.f32 0.0, %v2117
      %2119 = vmatprep.mubr.bf16.mxu0 %v1888
      %2120 = vmatmul.mubr.bf16.gmra.mrb[0].mxu0 %v1887
      %v2121 = vpop.f32.mrb[0].mxu0
      %v2122 = vadd.f32 0.0, %v2121
      %v2123 = vpop.f32.mrb[0].mxu0
      %v2124 = vadd.f32 0.0, %v2123
      %v2125 = vpop.f32.mrb[0].mxu0
      %v2126 = vadd.f32 0.0, %v2125
      %v2127 = vpop.f32.mrb[0].mxu0
      %v2128 = vadd.f32 0.0, %v2127
      %2129 = vmatprep.mubr.bf16.mxu0 %v1890
      %2130 = vmatmul.mubr.bf16.gmra.mrb[0].mxu0 %v1889
      %v2131 = vpop.f32.mrb[0].mxu0
      %v2132 = vadd.f32 0.0, %v2131
      %v2133 = vpop.f32.mrb[0].mxu0
      %v2134 = vadd.f32 0.0, %v2133
      %v2135 = vpop.f32.mrb[0].mxu0
      %v2136 = vadd.f32 0.0, %v2135
      %v2137 = vpop.f32.mrb[0].mxu0
      %v2138 = vadd.f32 0.0, %v2137
      %2139 = vmatprep.mubr.bf16.mxu0 %v1892
      %2140 = vmatmul.mubr.bf16.gmra.mrb[0].mxu0 %v1891
      %v2141 = vpop.f32.mrb[0].mxu0
      %v2142 = vadd.f32 0.0, %v2141
      %v2143 = vpop.f32.mrb[0].mxu0
      %v2144 = vadd.f32 0.0, %v2143
      %v2145 = vpop.f32.mrb[0].mxu0
      %v2146 = vadd.f32 0.0, %v2145
      %v2147 = vpop.f32.mrb[0].mxu0
      %v2148 = vadd.f32 0.0, %v2147
      %2149 = vmatprep.mubr.bf16.mxu0 %v1894
      %2150 = vmatmul.mubr.bf16.gmra.mrb[0].mxu0 %v1893
      %v2151 = vpop.f32.mrb[0].mxu0
      %v2152 = vadd.f32 0.0, %v2151
      %v2153 = vpop.f32.mrb[0].mxu0
      %v2154 = vadd.f32 0.0, %v2153
      %v2155 = vpop.f32.mrb[0].mxu0
      %v2156 = vadd.f32 0.0, %v2155
      %v2157 = vpop.f32.mrb[0].mxu0
      %v2158 = vadd.f32 0.0, %v2157
      %2159 = vmatprep.mubr.bf16.mxu0 %v1896
      %2160 = vmatmul.mubr.bf16.gmra.mrb[0].mxu0 %v1895
      %v2161 = vpop.f32.mrb[0].mxu0
      %v2162 = vadd.f32 0.0, %v2161
      %v2163 = vpop.f32.mrb[0].mxu0
      %v2164 = vadd.f32 0.0, %v2163
      %v2165 = vpop.f32.mrb[0].mxu0
      %v2166 = vadd.f32 0.0, %v2165
      %v2167 = vpop.f32.mrb[0].mxu0
      %v2168 = vadd.f32 0.0, %v2167
      %2169 = vmatprep.mubr.bf16.mxu0 %v1898
      %2170 = vmatmul.mubr.bf16.gmra.mrb[0].mxu0 %v1897
      %v2171 = vpop.f32.mrb[0].mxu0
      %v2172 = vadd.f32 0.0, %v2171
      %v2173 = vpop.f32.mrb[0].mxu0
      %v2174 = vadd.f32 0.0, %v2173
      %v2175 = vpop.f32.mrb[0].mxu0
      %v2176 = vadd.f32 0.0, %v2175
      %v2177 = vpop.f32.mrb[0].mxu0
      %v2178 = vadd.f32 0.0, %v2177
      %2179 = vmatprep.mubr.bf16.mxu0 %v1900
      %2180 = vmatmul.mubr.bf16.gmra.mrb[0].mxu0 %v1899
      %v2181 = vpop.f32.mrb[0].mxu0
      %v2182 = vadd.f32 0.0, %v2181
      %v2183 = vpop.f32.mrb[0].mxu0
      %v2184 = vadd.f32 0.0, %v2183
      %v2185 = vpop.f32.mrb[0].mxu0
      %v2186 = vadd.f32 0.0, %v2185
      %v2187 = vpop.f32.mrb[0].mxu0
      %v2188 = vadd.f32 0.0, %v2187
      %2189 = vdwg.mxu0
      %v2190 = vadd.f32 %v1659, %v2112
      %v2191 = vadd.f32 %v1661, %v2114
      %v2192 = vadd.f32 %v1663, %v2116
      %v2193 = vadd.f32 %v1665, %v2118
      %v2194 = vadd.f32 %v1669, %v2122
      %v2195 = vadd.f32 %v1671, %v2124
      %v2196 = vadd.f32 %v1673, %v2126
      %v2197 = vadd.f32 %v1675, %v2128
      %v2198 = vadd.f32 %v1679, %v2132
      %v2199 = vadd.f32 %v1681, %v2134
      %v2200 = vadd.f32 %v1683, %v2136
      %v2201 = vadd.f32 %v1685, %v2138
      %v2202 = vadd.f32 %v1689, %v2142
      %v2203 = vadd.f32 %v1691, %v2144
      %v2204 = vadd.f32 %v1693, %v2146
      %v2205 = vadd.f32 %v1695, %v2148
      %v2206 = vadd.f32 %v1699, %v2152
      %v2207 = vadd.f32 %v1701, %v2154
      %v2208 = vadd.f32 %v1703, %v2156
      %v2209 = vadd.f32 %v1705, %v2158
      %v2210 = vadd.f32 %v1709, %v2162
      %v2211 = vadd.f32 %v1711, %v2164
      %v2212 = vadd.f32 %v1713, %v2166
      %v2213 = vadd.f32 %v1715, %v2168
      %v2214 = vadd.f32 %v1719, %v2172
      %v2215 = vadd.f32 %v1721, %v2174
      %v2216 = vadd.f32 %v1723, %v2176
      %v2217 = vadd.f32 %v1725, %v2178
      %v2218 = vadd.f32 %v1729, %v2182
      %v2219 = vadd.f32 %v1731, %v2184
      %v2220 = vadd.f32 %v1733, %v2186
      %v2221 = vadd.f32 %v1735, %v2188
      %v2222 = vld [vmem:[%s626] sm:$0xff]
      %v2223 = vld [vmem:[%s626 + $0x8] sm:$0xff]
      %v2224 = vld [vmem:[%s626 + $0x18] sm:$0xff]
      %v2225 = vld [vmem:[%s626 + $0x20] sm:$0xff]
      %v2226 = vld [vmem:[%s626 + $0x30] sm:$0xff]
      %v2227 = vld [vmem:[%s626 + $0x38] sm:$0xff]
      %v2228 = vld [vmem:[%s626 + $0x48] sm:$0xff]
      %v2229 = vld [vmem:[%s626 + $0x50] sm:$0xff]
      %v2230 = vld [vmem:[%s626 + $0x60] sm:$0xff]
      %v2231 = vld [vmem:[%s626 + $0x68] sm:$0xff]
      %v2232 = vld [vmem:[%s626 + $0x78] sm:$0xff]
      %v2233 = vld [vmem:[%s626 + $0x80] sm:$0xff]
      %v2234 = vld [vmem:[%s626 + $0x90] sm:$0xff]
      %v2235 = vld [vmem:[%s626 + $0x98] sm:$0xff]
      %v2236 = vld [vmem:[%s626 + $0xa8] sm:$0xff]
      %v2237 = vld [vmem:[%s626 + $0xb0] sm:$0xff]
      %s2238 = scalar_lea.vmem %s3, 768
      %v2239 = vld [vmem:[%s2238] sm:$0xff]
      %v2240 = vld [vmem:[%s2238 + $0x8] sm:$0xff]
      %v2241 = vld [vmem:[%s2238 + $0x10] sm:$0xff]
      %v2242 = vld [vmem:[%s2238 + $0x18] sm:$0xff]
      %v2243 = vld [vmem:[%s2238 + $0x20] sm:$0xff]
      %v2244 = vld [vmem:[%s2238 + $0x28] sm:$0xff]
      %v2245 = vld [vmem:[%s2238 + $0x30] sm:$0xff]
      %v2246 = vld [vmem:[%s2238 + $0x38] sm:$0xff]
      %v2247 = vld [vmem:[%s2238 + $0x40] sm:$0xff]
      %v2248 = vld [vmem:[%s2238 + $0x48] sm:$0xff]
      %v2249 = vld [vmem:[%s2238 + $0x50] sm:$0xff]
      %v2250 = vld [vmem:[%s2238 + $0x58] sm:$0xff]
      %v2251 = vld [vmem:[%s2238 + $0x60] sm:$0xff]
      %v2252 = vld [vmem:[%s2238 + $0x68] sm:$0xff]
      %v2253 = vld [vmem:[%s2238 + $0x70] sm:$0xff]
      %v2254 = vld [vmem:[%s2238 + $0x78] sm:$0xff]
      %v2255 = vld [vmem:[%s2238 + $0x80] sm:$0xff]
      %v2256 = vld [vmem:[%s2238 + $0x88] sm:$0xff]
      %v2257 = vld [vmem:[%s2238 + $0x90] sm:$0xff]
      %v2258 = vld [vmem:[%s2238 + $0x98] sm:$0xff]
      %v2259 = vld [vmem:[%s2238 + $0xa0] sm:$0xff]
      %v2260 = vld [vmem:[%s2238 + $0xa8] sm:$0xff]
      %v2261 = vld [vmem:[%s2238 + $0xb0] sm:$0xff]
      %v2262 = vld [vmem:[%s2238 + $0xb8] sm:$0xff]
      %v2263 = vld [vmem:[%s2238 + $0xc0] sm:$0xff]
      %v2264 = vld [vmem:[%s2238 + $0xc8] sm:$0xff]
      %v2265 = vld [vmem:[%s2238 + $0xd0] sm:$0xff]
      %v2266 = vld [vmem:[%s2238 + $0xd8] sm:$0xff]
      %v2267 = vld [vmem:[%s2238 + $0xe0] sm:$0xff]
      %v2268 = vld [vmem:[%s2238 + $0xe8] sm:$0xff]
      %v2269 = vld [vmem:[%s2238 + $0xf0] sm:$0xff]
      %v2270 = vld [vmem:[%s2238 + $0xf8] sm:$0xff]
      %v2287 = vunpack.c.l.b16 %v2222
      %v2288 = vunpack.c.h.b16 %v2222
      %v2289 = vunpack.c.l.b16 %v2223
      %v2290 = vunpack.c.h.b16 %v2223
      %v2291 = vunpack.c.l.b16 %v2224
      %v2292 = vunpack.c.h.b16 %v2224
      %v2293 = vunpack.c.l.b16 %v2225
      %v2294 = vunpack.c.h.b16 %v2225
      %v2295 = vunpack.c.l.b16 %v2226
      %v2296 = vunpack.c.h.b16 %v2226
      %v2297 = vunpack.c.l.b16 %v2227
      %v2298 = vunpack.c.h.b16 %v2227
      %v2299 = vunpack.c.l.b16 %v2228
      %v2300 = vunpack.c.h.b16 %v2228
      %v2301 = vunpack.c.l.b16 %v2229
      %v2302 = vunpack.c.h.b16 %v2229
      %v2303 = vunpack.c.l.b16 %v2230
      %v2304 = vunpack.c.h.b16 %v2230
      %v2305 = vunpack.c.l.b16 %v2231
      %v2306 = vunpack.c.h.b16 %v2231
      %v2307 = vunpack.c.l.b16 %v2232
      %v2308 = vunpack.c.h.b16 %v2232
      %v2309 = vunpack.c.l.b16 %v2233
      %v2310 = vunpack.c.h.b16 %v2233
      %v2311 = vunpack.c.l.b16 %v2234
      %v2312 = vunpack.c.h.b16 %v2234
      %v2313 = vunpack.c.l.b16 %v2235
      %v2314 = vunpack.c.h.b16 %v2235
      %v2315 = vunpack.c.l.b16 %v2236
      %v2316 = vunpack.c.h.b16 %v2236
      %v2317 = vunpack.c.l.b16 %v2237
      %v2318 = vunpack.c.h.b16 %v2237
      %v2319 = vpack.c.b16 %v2289, %v2287
      %v2320 = vpack.c.b16 %v2290, %v2288
      %v2321 = vpack.c.b16 %v2293, %v2291
      %v2322 = vpack.c.b16 %v2294, %v2292
      %v2323 = vpack.c.b16 %v2297, %v2295
      %v2324 = vpack.c.b16 %v2298, %v2296
      %v2325 = vpack.c.b16 %v2301, %v2299
      %v2326 = vpack.c.b16 %v2302, %v2300
      %v2327 = vpack.c.b16 %v2305, %v2303
      %v2328 = vpack.c.b16 %v2306, %v2304
      %v2329 = vpack.c.b16 %v2309, %v2307
      %v2330 = vpack.c.b16 %v2310, %v2308
      %v2331 = vpack.c.b16 %v2313, %v2311
      %v2332 = vpack.c.b16 %v2314, %v2312
      %v2333 = vpack.c.b16 %v2317, %v2315
      %v2334 = vpack.c.b16 %v2318, %v2316
      %v2383 = vunpack.c.l.b16 %v2239
      %v2384 = vunpack.c.h.b16 %v2239
      %v2385 = vunpack.c.l.b16 %v2240
      %v2386 = vunpack.c.h.b16 %v2240
      %v2387 = vunpack.c.l.b16 %v2241
      %v2388 = vunpack.c.h.b16 %v2241
      %v2389 = vunpack.c.l.b16 %v2242
      %v2390 = vunpack.c.h.b16 %v2242
      %v2391 = vunpack.c.l.b16 %v2243
      %v2392 = vunpack.c.h.b16 %v2243
      %v2393 = vunpack.c.l.b16 %v2244
      %v2394 = vunpack.c.h.b16 %v2244
      %v2395 = vunpack.c.l.b16 %v2245
      %v2396 = vunpack.c.h.b16 %v2245
      %v2397 = vunpack.c.l.b16 %v2246
      %v2398 = vunpack.c.h.b16 %v2246
      %v2399 = vunpack.c.l.b16 %v2247
      %v2400 = vunpack.c.h.b16 %v2247
      %v2401 = vunpack.c.l.b16 %v2248
      %v2402 = vunpack.c.h.b16 %v2248
      %v2403 = vunpack.c.l.b16 %v2249
      %v2404 = vunpack.c.h.b16 %v2249
      %v2405 = vunpack.c.l.b16 %v2250
      %v2406 = vunpack.c.h.b16 %v2250
      %v2407 = vunpack.c.l.b16 %v2251
      %v2408 = vunpack.c.h.b16 %v2251
      %v2409 = vunpack.c.l.b16 %v2252
      %v2410 = vunpack.c.h.b16 %v2252
      %v2411 = vunpack.c.l.b16 %v2253
      %v2412 = vunpack.c.h.b16 %v2253
      %v2413 = vunpack.c.l.b16 %v2254
      %v2414 = vunpack.c.h.b16 %v2254
      %v2415 = vunpack.c.l.b16 %v2255
      %v2416 = vunpack.c.h.b16 %v2255
      %v2417 = vunpack.c.l.b16 %v2256
      %v2418 = vunpack.c.h.b16 %v2256
      %v2419 = vunpack.c.l.b16 %v2257
      %v2420 = vunpack.c.h.b16 %v2257
      %v2421 = vunpack.c.l.b16 %v2258
      %v2422 = vunpack.c.h.b16 %v2258
      %v2423 = vunpack.c.l.b16 %v2259
      %v2424 = vunpack.c.h.b16 %v2259
      %v2425 = vunpack.c.l.b16 %v2260
      %v2426 = vunpack.c.h.b16 %v2260
      %v2427 = vunpack.c.l.b16 %v2261
      %v2428 = vunpack.c.h.b16 %v2261
      %v2429 = vunpack.c.l.b16 %v2262
      %v2430 = vunpack.c.h.b16 %v2262
      %v2431 = vunpack.c.l.b16 %v2263
      %v2432 = vunpack.c.h.b16 %v2263
      %v2433 = vunpack.c.l.b16 %v2264
      %v2434 = vunpack.c.h.b16 %v2264
      %v2435 = vunpack.c.l.b16 %v2265
      %v2436 = vunpack.c.h.b16 %v2265
      %v2437 = vunpack.c.l.b16 %v2266
      %v2438 = vunpack.c.h.b16 %v2266
      %v2439 = vunpack.c.l.b16 %v2267
      %v2440 = vunpack.c.h.b16 %v2267
      %v2441 = vunpack.c.l.b16 %v2268
      %v2442 = vunpack.c.h.b16 %v2268
      %v2443 = vunpack.c.l.b16 %v2269
      %v2444 = vunpack.c.h.b16 %v2269
      %v2445 = vunpack.c.l.b16 %v2270
      %v2446 = vunpack.c.h.b16 %v2270
      %v2447 = vpack.c.b16 %v2385, %v2383
      %v2448 = vpack.c.b16 %v2386, %v2384
      %v2449 = vpack.c.b16 %v2389, %v2387
      %v2450 = vpack.c.b16 %v2390, %v2388
      %v2451 = vpack.c.b16 %v2393, %v2391
      %v2452 = vpack.c.b16 %v2394, %v2392
      %v2453 = vpack.c.b16 %v2397, %v2395
      %v2454 = vpack.c.b16 %v2398, %v2396
      %v2455 = vpack.c.b16 %v2401, %v2399
      %v2456 = vpack.c.b16 %v2402, %v2400
      %v2457 = vpack.c.b16 %v2405, %v2403
      %v2458 = vpack.c.b16 %v2406, %v2404
      %v2459 = vpack.c.b16 %v2409, %v2407
      %v2460 = vpack.c.b16 %v2410, %v2408
      %v2461 = vpack.c.b16 %v2413, %v2411
      %v2462 = vpack.c.b16 %v2414, %v2412
      %v2463 = vpack.c.b16 %v2417, %v2415
      %v2464 = vpack.c.b16 %v2418, %v2416
      %v2465 = vpack.c.b16 %v2421, %v2419
      %v2466 = vpack.c.b16 %v2422, %v2420
      %v2467 = vpack.c.b16 %v2425, %v2423
      %v2468 = vpack.c.b16 %v2426, %v2424
      %v2469 = vpack.c.b16 %v2429, %v2427
      %v2470 = vpack.c.b16 %v2430, %v2428
      %v2471 = vpack.c.b16 %v2433, %v2431
      %v2472 = vpack.c.b16 %v2434, %v2432
      %v2473 = vpack.c.b16 %v2437, %v2435
      %v2474 = vpack.c.b16 %v2438, %v2436
      %v2475 = vpack.c.b16 %v2441, %v2439
      %v2476 = vpack.c.b16 %v2442, %v2440
      %v2477 = vpack.c.b16 %v2445, %v2443
      %v2478 = vpack.c.b16 %v2446, %v2444
      %2511 = vmatprep.subr.bf16.mxu0 %v2448
      %2512 = vmatpush1.bf16.msra.mxu0 %v2447
      %2513 = vmatprep.subr.bf16.mxu0 %v2450
      %2514 = vmatpush1.bf16.msra.mxu0 %v2449
      %2515 = vmatprep.subr.bf16.mxu0 %v2452
      %2516 = vmatpush1.bf16.msra.mxu0 %v2451
      %2517 = vmatprep.subr.bf16.mxu0 %v2454
      %2518 = vmatpush1.bf16.msra.mxu0 %v2453
      %2519 = vmatprep.subr.bf16.mxu0 %v2456
      %2520 = vmatpush1.bf16.msra.mxu0 %v2455
      %2521 = vmatprep.subr.bf16.mxu0 %v2458
      %2522 = vmatpush1.bf16.msra.mxu0 %v2457
      %2523 = vmatprep.subr.bf16.mxu0 %v2460
      %2524 = vmatpush1.bf16.msra.mxu0 %v2459
      %2525 = vmatprep.subr.bf16.mxu0 %v2462
      %2526 = vmatpush1.bf16.msra.mxu0 %v2461
      %2527 = vmatprep.subr.bf16.mxu0 %v2464
      %2528 = vmatpush1.bf16.msra.mxu0 %v2463
      %2529 = vmatprep.subr.bf16.mxu0 %v2466
      %2530 = vmatpush1.bf16.msra.mxu0 %v2465
      %2531 = vmatprep.subr.bf16.mxu0 %v2468
      %2532 = vmatpush1.bf16.msra.mxu0 %v2467
      %2533 = vmatprep.subr.bf16.mxu0 %v2470
      %2534 = vmatpush1.bf16.msra.mxu0 %v2469
      %2535 = vmatprep.subr.bf16.mxu0 %v2472
      %2536 = vmatpush1.bf16.msra.mxu0 %v2471
      %2537 = vmatprep.subr.bf16.mxu0 %v2474
      %2538 = vmatpush1.bf16.msra.mxu0 %v2473
      %2539 = vmatprep.subr.bf16.mxu0 %v2476
      %2540 = vmatpush1.bf16.msra.mxu0 %v2475
      %2541 = vmatprep.subr.bf16.mxu0 %v2478
      %2542 = vmatpush1.bf16.msra.mxu0 %v2477
      %2543 = vmatprep.mubr.bf16.mxu0 %v2320
      %2544 = vmatmul.mubr.bf16.gmra.mrb[0].mxu0 %v2319
      %v2545 = vpop.f32.mrb[0].mxu0
      %v2546 = vadd.f32 0.0, %v2545
      %v2547 = vpop.f32.mrb[0].mxu0
      %v2548 = vadd.f32 0.0, %v2547
      %v2549 = vpop.f32.mrb[0].mxu0
      %v2550 = vadd.f32 0.0, %v2549
      %v2551 = vpop.f32.mrb[0].mxu0
      %v2552 = vadd.f32 0.0, %v2551
      %2553 = vmatprep.mubr.bf16.mxu0 %v2322
      %2554 = vmatmul.mubr.bf16.gmra.mrb[0].mxu0 %v2321
      %v2555 = vpop.f32.mrb[0].mxu0
      %v2556 = vadd.f32 0.0, %v2555
      %v2557 = vpop.f32.mrb[0].mxu0
      %v2558 = vadd.f32 0.0, %v2557
      %v2559 = vpop.f32.mrb[0].mxu0
      %v2560 = vadd.f32 0.0, %v2559
      %v2561 = vpop.f32.mrb[0].mxu0
      %v2562 = vadd.f32 0.0, %v2561
      %2563 = vmatprep.mubr.bf16.mxu0 %v2324
      %2564 = vmatmul.mubr.bf16.gmra.mrb[0].mxu0 %v2323
      %v2565 = vpop.f32.mrb[0].mxu0
      %v2566 = vadd.f32 0.0, %v2565
      %v2567 = vpop.f32.mrb[0].mxu0
      %v2568 = vadd.f32 0.0, %v2567
      %v2569 = vpop.f32.mrb[0].mxu0
      %v2570 = vadd.f32 0.0, %v2569
      %v2571 = vpop.f32.mrb[0].mxu0
      %v2572 = vadd.f32 0.0, %v2571
      %2573 = vmatprep.mubr.bf16.mxu0 %v2326
      %2574 = vmatmul.mubr.bf16.gmra.mrb[0].mxu0 %v2325
      %v2575 = vpop.f32.mrb[0].mxu0
      %v2576 = vadd.f32 0.0, %v2575
      %v2577 = vpop.f32.mrb[0].mxu0
      %v2578 = vadd.f32 0.0, %v2577
      %v2579 = vpop.f32.mrb[0].mxu0
      %v2580 = vadd.f32 0.0, %v2579
      %v2581 = vpop.f32.mrb[0].mxu0
      %v2582 = vadd.f32 0.0, %v2581
      %2583 = vmatprep.mubr.bf16.mxu0 %v2328
      %2584 = vmatmul.mubr.bf16.gmra.mrb[0].mxu0 %v2327
      %v2585 = vpop.f32.mrb[0].mxu0
      %v2586 = vadd.f32 0.0, %v2585
      %v2587 = vpop.f32.mrb[0].mxu0
      %v2588 = vadd.f32 0.0, %v2587
      %v2589 = vpop.f32.mrb[0].mxu0
      %v2590 = vadd.f32 0.0, %v2589
      %v2591 = vpop.f32.mrb[0].mxu0
      %v2592 = vadd.f32 0.0, %v2591
      %2593 = vmatprep.mubr.bf16.mxu0 %v2330
      %2594 = vmatmul.mubr.bf16.gmra.mrb[0].mxu0 %v2329
      %v2595 = vpop.f32.mrb[0].mxu0
      %v2596 = vadd.f32 0.0, %v2595
      %v2597 = vpop.f32.mrb[0].mxu0
      %v2598 = vadd.f32 0.0, %v2597
      %v2599 = vpop.f32.mrb[0].mxu0
      %v2600 = vadd.f32 0.0, %v2599
      %v2601 = vpop.f32.mrb[0].mxu0
      %v2602 = vadd.f32 0.0, %v2601
      %2603 = vmatprep.mubr.bf16.mxu0 %v2332
      %2604 = vmatmul.mubr.bf16.gmra.mrb[0].mxu0 %v2331
      %v2605 = vpop.f32.mrb[0].mxu0
      %v2606 = vadd.f32 0.0, %v2605
      %v2607 = vpop.f32.mrb[0].mxu0
      %v2608 = vadd.f32 0.0, %v2607
      %v2609 = vpop.f32.mrb[0].mxu0
      %v2610 = vadd.f32 0.0, %v2609
      %v2611 = vpop.f32.mrb[0].mxu0
      %v2612 = vadd.f32 0.0, %v2611
      %2613 = vmatprep.mubr.bf16.mxu0 %v2334
      %2614 = vmatmul.mubr.bf16.gmra.mrb[0].mxu0 %v2333
      %v2615 = vpop.f32.mrb[0].mxu0
      %v2616 = vadd.f32 0.0, %v2615
      %v2617 = vpop.f32.mrb[0].mxu0
      %v2618 = vadd.f32 0.0, %v2617
      %v2619 = vpop.f32.mrb[0].mxu0
      %v2620 = vadd.f32 0.0, %v2619
      %v2621 = vpop.f32.mrb[0].mxu0
      %v2622 = vadd.f32 0.0, %v2621
      %2623 = vdwg.mxu0
      %v2624 = vadd.f32 %v2190, %v2546
      %v2625 = vadd.f32 %v2191, %v2548
      %v2626 = vadd.f32 %v2192, %v2550
      %v2627 = vadd.f32 %v2193, %v2552
      %v2628 = vadd.f32 %v2194, %v2556
      %v2629 = vadd.f32 %v2195, %v2558
      %v2630 = vadd.f32 %v2196, %v2560
      %v2631 = vadd.f32 %v2197, %v2562
      %v2632 = vadd.f32 %v2198, %v2566
      %v2633 = vadd.f32 %v2199, %v2568
      %v2634 = vadd.f32 %v2200, %v2570
      %v2635 = vadd.f32 %v2201, %v2572
      %v2636 = vadd.f32 %v2202, %v2576
      %v2637 = vadd.f32 %v2203, %v2578
      %v2638 = vadd.f32 %v2204, %v2580
      %v2639 = vadd.f32 %v2205, %v2582
      %v2640 = vadd.f32 %v2206, %v2586
      %v2641 = vadd.f32 %v2207, %v2588
      %v2642 = vadd.f32 %v2208, %v2590
      %v2643 = vadd.f32 %v2209, %v2592
      %v2644 = vadd.f32 %v2210, %v2596
      %v2645 = vadd.f32 %v2211, %v2598
      %v2646 = vadd.f32 %v2212, %v2600
      %v2647 = vadd.f32 %v2213, %v2602
      %v2648 = vadd.f32 %v2214, %v2606
      %v2649 = vadd.f32 %v2215, %v2608
      %v2650 = vadd.f32 %v2216, %v2610
      %v2651 = vadd.f32 %v2217, %v2612
      %v2652 = vadd.f32 %v2218, %v2616
      %v2653 = vadd.f32 %v2219, %v2618
      %v2654 = vadd.f32 %v2220, %v2620
      %v2655 = vadd.f32 %v2221, %v2622
      %v2656 = vld [vmem:[%s626] sm:$0xff]
      %v2657 = vld [vmem:[%s626 + $0x8] sm:$0xff]
      %v2658 = vld [vmem:[%s626 + $0x10] sm:$0x11]
      %v2659 = vld [vmem:[%s626 + $0x18] sm:$0xff]
      %v2660 = vld [vmem:[%s626 + $0x20] sm:$0xff]
      %v2661 = vld [vmem:[%s626 + $0x28] sm:$0x11]
      %v2662 = vld [vmem:[%s626 + $0x30] sm:$0xff]
      %v2663 = vld [vmem:[%s626 + $0x38] sm:$0xff]
      %v2664 = vld [vmem:[%s626 + $0x40] sm:$0x11]
      %v2665 = vld [vmem:[%s626 + $0x48] sm:$0xff]
      %v2666 = vld [vmem:[%s626 + $0x50] sm:$0xff]
      %v2667 = vld [vmem:[%s626 + $0x58] sm:$0x11]
      %v2668 = vld [vmem:[%s626 + $0x60] sm:$0xff]
      %v2669 = vld [vmem:[%s626 + $0x68] sm:$0xff]
      %v2670 = vld [vmem:[%s626 + $0x70] sm:$0x11]
      %v2671 = vld [vmem:[%s626 + $0x78] sm:$0xff]
      %v2672 = vld [vmem:[%s626 + $0x80] sm:$0xff]
      %v2673 = vld [vmem:[%s626 + $0x88] sm:$0x11]
      %v2674 = vld [vmem:[%s626 + $0x90] sm:$0xff]
      %v2675 = vld [vmem:[%s626 + $0x98] sm:$0xff]
      %v2676 = vld [vmem:[%s626 + $0xa0] sm:$0x11]
      %v2677 = vld [vmem:[%s626 + $0xa8] sm:$0xff]
      %v2678 = vld [vmem:[%s626 + $0xb0] sm:$0xff]
      %v2679 = vld [vmem:[%s626 + $0xb8] sm:$0x11]
      %v2681 = vshrl.u32 %v2656, 16
      %v2683 = vrot.slane %v2681, 4
      %v2684 = vshll.u32 %v2656, 16
      %v2686 = vrot.slane %v2684, 5
      %v2687 = vor.u32 %v2683, %v2686
      %v2688 = vrot.slane %v2687, 4
      %v2690 = vshll.u32 %v2657, 16
      %v2692 = vrot.slane %v2690, 5
      %v2693 = vsel %vm821, %v2688, %v2692
      %v2694 = vshrl.u32 %v2657, 16
      %v2696 = vrot.slane %v2694, 4
      %v2697 = vor.u32 %v2696, %v2692
      %v2698 = vrot.slane %v2697, 4
      %v2700 = vshll.u32 %v2658, 16
      %v2702 = vrot.slane %v2700, 5
      %v2703 = vsel %vm821, %v2698, %v2702
      %v2705 = vshrl.u32 %v2659, 16
      %v2707 = vrot.slane %v2705, 4
      %v2708 = vshll.u32 %v2659, 16
      %v2710 = vrot.slane %v2708, 5
      %v2711 = vor.u32 %v2707, %v2710
      %v2712 = vrot.slane %v2711, 4
      %v2714 = vshll.u32 %v2660, 16
      %v2716 = vrot.slane %v2714, 5
      %v2717 = vsel %vm821, %v2712, %v2716
      %v2718 = vshrl.u32 %v2660, 16
      %v2720 = vrot.slane %v2718, 4
      %v2721 = vor.u32 %v2720, %v2716
      %v2722 = vrot.slane %v2721, 4
      %v2724 = vshll.u32 %v2661, 16
      %v2726 = vrot.slane %v2724, 5
      %v2727 = vsel %vm821, %v2722, %v2726
      %v2729 = vshrl.u32 %v2662, 16
      %v2731 = vrot.slane %v2729, 4
      %v2732 = vshll.u32 %v2662, 16
      %v2734 = vrot.slane %v2732, 5
      %v2735 = vor.u32 %v2731, %v2734
      %v2736 = vrot.slane %v2735, 4
      %v2738 = vshll.u32 %v2663, 16
      %v2740 = vrot.slane %v2738, 5
      %v2741 = vsel %vm821, %v2736, %v2740
      %v2742 = vshrl.u32 %v2663, 16
      %v2744 = vrot.slane %v2742, 4
      %v2745 = vor.u32 %v2744, %v2740
      %v2746 = vrot.slane %v2745, 4
      %v2748 = vshll.u32 %v2664, 16
      %v2750 = vrot.slane %v2748, 5
      %v2751 = vsel %vm821, %v2746, %v2750
      %v2753 = vshrl.u32 %v2665, 16
      %v2755 = vrot.slane %v2753, 4
      %v2756 = vshll.u32 %v2665, 16
      %v2758 = vrot.slane %v2756, 5
      %v2759 = vor.u32 %v2755, %v2758
      %v2760 = vrot.slane %v2759, 4
      %v2762 = vshll.u32 %v2666, 16
      %v2764 = vrot.slane %v2762, 5
      %v2765 = vsel %vm821, %v2760, %v2764
      %v2766 = vshrl.u32 %v2666, 16
      %v2768 = vrot.slane %v2766, 4
      %v2769 = vor.u32 %v2768, %v2764
      %v2770 = vrot.slane %v2769, 4
      %v2772 = vshll.u32 %v2667, 16
      %v2774 = vrot.slane %v2772, 5
      %v2775 = vsel %vm821, %v2770, %v2774
      %v2777 = vshrl.u32 %v2668, 16
      %v2779 = vrot.slane %v2777, 4
      %v2780 = vshll.u32 %v2668, 16
      %v2782 = vrot.slane %v2780, 5
      %v2783 = vor.u32 %v2779, %v2782
      %v2784 = vrot.slane %v2783, 4
      %v2786 = vshll.u32 %v2669, 16
      %v2788 = vrot.slane %v2786, 5
      %v2789 = vsel %vm821, %v2784, %v2788
      %v2790 = vshrl.u32 %v2669, 16
      %v2792 = vrot.slane %v2790, 4
      %v2793 = vor.u32 %v2792, %v2788
      %v2794 = vrot.slane %v2793, 4
      %v2796 = vshll.u32 %v2670, 16
      %v2798 = vrot.slane %v2796, 5
      %v2799 = vsel %vm821, %v2794, %v2798
      %v2801 = vshrl.u32 %v2671, 16
      %v2803 = vrot.slane %v2801, 4
      %v2804 = vshll.u32 %v2671, 16
      %v2806 = vrot.slane %v2804, 5
      %v2807 = vor.u32 %v2803, %v2806
      %v2808 = vrot.slane %v2807, 4
      %v2810 = vshll.u32 %v2672, 16
      %v2812 = vrot.slane %v2810, 5
      %v2813 = vsel %vm821, %v2808, %v2812
      %v2814 = vshrl.u32 %v2672, 16
      %v2816 = vrot.slane %v2814, 4
      %v2817 = vor.u32 %v2816, %v2812
      %v2818 = vrot.slane %v2817, 4
      %v2820 = vshll.u32 %v2673, 16
      %v2822 = vrot.slane %v2820, 5
      %v2823 = vsel %vm821, %v2818, %v2822
      %v2825 = vshrl.u32 %v2674, 16
      %v2827 = vrot.slane %v2825, 4
      %v2828 = vshll.u32 %v2674, 16
      %v2830 = vrot.slane %v2828, 5
      %v2831 = vor.u32 %v2827, %v2830
      %v2832 = vrot.slane %v2831, 4
      %v2834 = vshll.u32 %v2675, 16
      %v2836 = vrot.slane %v2834, 5
      %v2837 = vsel %vm821, %v2832, %v2836
      %v2838 = vshrl.u32 %v2675, 16
      %v2840 = vrot.slane %v2838, 4
      %v2841 = vor.u32 %v2840, %v2836
      %v2842 = vrot.slane %v2841, 4
      %v2844 = vshll.u32 %v2676, 16
      %v2846 = vrot.slane %v2844, 5
      %v2847 = vsel %vm821, %v2842, %v2846
      %v2849 = vshrl.u32 %v2677, 16
      %v2851 = vrot.slane %v2849, 4
      %v2852 = vshll.u32 %v2677, 16
      %v2854 = vrot.slane %v2852, 5
      %v2855 = vor.u32 %v2851, %v2854
      %v2856 = vrot.slane %v2855, 4
      %v2858 = vshll.u32 %v2678, 16
      %v2860 = vrot.slane %v2858, 5
      %v2861 = vsel %vm821, %v2856, %v2860
      %v2862 = vshrl.u32 %v2678, 16
      %v2864 = vrot.slane %v2862, 4
      %v2865 = vor.u32 %v2864, %v2860
      %v2866 = vrot.slane %v2865, 4
      %v2868 = vshll.u32 %v2679, 16
      %v2870 = vrot.slane %v2868, 5
      %v2871 = vsel %vm821, %v2866, %v2870
      %s2872 = scalar_lea.vmem %s3, 1024
      %v2873 = vld [vmem:[%s2872] sm:$0xff]
      %v2874 = vld [vmem:[%s2872 + $0x8] sm:$0xff]
      %v2875 = vld [vmem:[%s2872 + $0x10] sm:$0xff]
      %v2876 = vld [vmem:[%s2872 + $0x18] sm:$0xff]
      %v2877 = vld [vmem:[%s2872 + $0x20] sm:$0xff]
      %v2878 = vld [vmem:[%s2872 + $0x28] sm:$0xff]
      %v2879 = vld [vmem:[%s2872 + $0x30] sm:$0xff]
      %v2880 = vld [vmem:[%s2872 + $0x38] sm:$0xff]
      %v2881 = vld [vmem:[%s2872 + $0x40] sm:$0xff]
      %v2882 = vld [vmem:[%s2872 + $0x48] sm:$0xff]
      %v2883 = vld [vmem:[%s2872 + $0x50] sm:$0xff]
      %v2884 = vld [vmem:[%s2872 + $0x58] sm:$0xff]
      %v2885 = vld [vmem:[%s2872 + $0x60] sm:$0xff]
      %v2886 = vld [vmem:[%s2872 + $0x68] sm:$0xff]
      %v2887 = vld [vmem:[%s2872 + $0x70] sm:$0xff]
      %v2888 = vld [vmem:[%s2872 + $0x78] sm:$0xff]
      %v2889 = vld [vmem:[%s2872 + $0x80] sm:$0xff]
      %v2890 = vld [vmem:[%s2872 + $0x88] sm:$0xff]
      %v2891 = vld [vmem:[%s2872 + $0x90] sm:$0xff]
      %v2892 = vld [vmem:[%s2872 + $0x98] sm:$0xff]
      %v2893 = vld [vmem:[%s2872 + $0xa0] sm:$0xff]
      %v2894 = vld [vmem:[%s2872 + $0xa8] sm:$0xff]
      %v2895 = vld [vmem:[%s2872 + $0xb0] sm:$0xff]
      %v2896 = vld [vmem:[%s2872 + $0xb8] sm:$0xff]
      %v2897 = vld [vmem:[%s2872 + $0xc0] sm:$0xff]
      %v2898 = vld [vmem:[%s2872 + $0xc8] sm:$0xff]
      %v2899 = vld [vmem:[%s2872 + $0xd0] sm:$0xff]
      %v2900 = vld [vmem:[%s2872 + $0xd8] sm:$0xff]
      %v2901 = vld [vmem:[%s2872 + $0xe0] sm:$0xff]
      %v2902 = vld [vmem:[%s2872 + $0xe8] sm:$0xff]
      %v2903 = vld [vmem:[%s2872 + $0xf0] sm:$0xff]
      %v2904 = vld [vmem:[%s2872 + $0xf8] sm:$0xff]
      %v2905 = vunpack.c.l.b16 %v2693
      %v2906 = vunpack.c.h.b16 %v2693
      %v2907 = vunpack.c.l.b16 %v2703
      %v2908 = vunpack.c.h.b16 %v2703
      %v2909 = vunpack.c.l.b16 %v2717
      %v2910 = vunpack.c.h.b16 %v2717
      %v2911 = vunpack.c.l.b16 %v2727
      %v2912 = vunpack.c.h.b16 %v2727
      %v2913 = vunpack.c.l.b16 %v2741
      %v2914 = vunpack.c.h.b16 %v2741
      %v2915 = vunpack.c.l.b16 %v2751
      %v2916 = vunpack.c.h.b16 %v2751
      %v2917 = vunpack.c.l.b16 %v2765
      %v2918 = vunpack.c.h.b16 %v2765
      %v2919 = vunpack.c.l.b16 %v2775
      %v2920 = vunpack.c.h.b16 %v2775
      %v2921 = vunpack.c.l.b16 %v2789
      %v2922 = vunpack.c.h.b16 %v2789
      %v2923 = vunpack.c.l.b16 %v2799
      %v2924 = vunpack.c.h.b16 %v2799
      %v2925 = vunpack.c.l.b16 %v2813
      %v2926 = vunpack.c.h.b16 %v2813
      %v2927 = vunpack.c.l.b16 %v2823
      %v2928 = vunpack.c.h.b16 %v2823
      %v2929 = vunpack.c.l.b16 %v2837
      %v2930 = vunpack.c.h.b16 %v2837
      %v2931 = vunpack.c.l.b16 %v2847
      %v2932 = vunpack.c.h.b16 %v2847
      %v2933 = vunpack.c.l.b16 %v2861
      %v2934 = vunpack.c.h.b16 %v2861
      %v2935 = vunpack.c.l.b16 %v2871
      %v2936 = vunpack.c.h.b16 %v2871
      %v2937 = vpack.c.b16 %v2907, %v2905
      %v2938 = vpack.c.b16 %v2908, %v2906
      %v2939 = vpack.c.b16 %v2911, %v2909
      %v2940 = vpack.c.b16 %v2912, %v2910
      %v2941 = vpack.c.b16 %v2915, %v2913
      %v2942 = vpack.c.b16 %v2916, %v2914
      %v2943 = vpack.c.b16 %v2919, %v2917
      %v2944 = vpack.c.b16 %v2920, %v2918
      %v2945 = vpack.c.b16 %v2923, %v2921
      %v2946 = vpack.c.b16 %v2924, %v2922
      %v2947 = vpack.c.b16 %v2927, %v2925
      %v2948 = vpack.c.b16 %v2928, %v2926
      %v2949 = vpack.c.b16 %v2931, %v2929
      %v2950 = vpack.c.b16 %v2932, %v2930
      %v2951 = vpack.c.b16 %v2935, %v2933
      %v2952 = vpack.c.b16 %v2936, %v2934
      %v3001 = vunpack.c.l.b16 %v2873
      %v3002 = vunpack.c.h.b16 %v2873
      %v3003 = vunpack.c.l.b16 %v2874
      %v3004 = vunpack.c.h.b16 %v2874
      %v3005 = vunpack.c.l.b16 %v2875
      %v3006 = vunpack.c.h.b16 %v2875
      %v3007 = vunpack.c.l.b16 %v2876
      %v3008 = vunpack.c.h.b16 %v2876
      %v3009 = vunpack.c.l.b16 %v2877
      %v3010 = vunpack.c.h.b16 %v2877
      %v3011 = vunpack.c.l.b16 %v2878
      %v3012 = vunpack.c.h.b16 %v2878
      %v3013 = vunpack.c.l.b16 %v2879
      %v3014 = vunpack.c.h.b16 %v2879
      %v3015 = vunpack.c.l.b16 %v2880
      %v3016 = vunpack.c.h.b16 %v2880
      %v3017 = vunpack.c.l.b16 %v2881
      %v3018 = vunpack.c.h.b16 %v2881
      %v3019 = vunpack.c.l.b16 %v2882
      %v3020 = vunpack.c.h.b16 %v2882
      %v3021 = vunpack.c.l.b16 %v2883
      %v3022 = vunpack.c.h.b16 %v2883
      %v3023 = vunpack.c.l.b16 %v2884
      %v3024 = vunpack.c.h.b16 %v2884
      %v3025 = vunpack.c.l.b16 %v2885
      %v3026 = vunpack.c.h.b16 %v2885
      %v3027 = vunpack.c.l.b16 %v2886
      %v3028 = vunpack.c.h.b16 %v2886
      %v3029 = vunpack.c.l.b16 %v2887
      %v3030 = vunpack.c.h.b16 %v2887
      %v3031 = vunpack.c.l.b16 %v2888
      %v3032 = vunpack.c.h.b16 %v2888
      %v3033 = vunpack.c.l.b16 %v2889
      %v3034 = vunpack.c.h.b16 %v2889
      %v3035 = vunpack.c.l.b16 %v2890
      %v3036 = vunpack.c.h.b16 %v2890
      %v3037 = vunpack.c.l.b16 %v2891
      %v3038 = vunpack.c.h.b16 %v2891
      %v3039 = vunpack.c.l.b16 %v2892
      %v3040 = vunpack.c.h.b16 %v2892
      %v3041 = vunpack.c.l.b16 %v2893
      %v3042 = vunpack.c.h.b16 %v2893
      %v3043 = vunpack.c.l.b16 %v2894
      %v3044 = vunpack.c.h.b16 %v2894
      %v3045 = vunpack.c.l.b16 %v2895
      %v3046 = vunpack.c.h.b16 %v2895
      %v3047 = vunpack.c.l.b16 %v2896
      %v3048 = vunpack.c.h.b16 %v2896
      %v3049 = vunpack.c.l.b16 %v2897
      %v3050 = vunpack.c.h.b16 %v2897
      %v3051 = vunpack.c.l.b16 %v2898
      %v3052 = vunpack.c.h.b16 %v2898
      %v3053 = vunpack.c.l.b16 %v2899
      %v3054 = vunpack.c.h.b16 %v2899
      %v3055 = vunpack.c.l.b16 %v2900
      %v3056 = vunpack.c.h.b16 %v2900
      %v3057 = vunpack.c.l.b16 %v2901
      %v3058 = vunpack.c.h.b16 %v2901
      %v3059 = vunpack.c.l.b16 %v2902
      %v3060 = vunpack.c.h.b16 %v2902
      %v3061 = vunpack.c.l.b16 %v2903
      %v3062 = vunpack.c.h.b16 %v2903
      %v3063 = vunpack.c.l.b16 %v2904
      %v3064 = vunpack.c.h.b16 %v2904
      %v3065 = vpack.c.b16 %v3003, %v3001
      %v3066 = vpack.c.b16 %v3004, %v3002
      %v3067 = vpack.c.b16 %v3007, %v3005
      %v3068 = vpack.c.b16 %v3008, %v3006
      %v3069 = vpack.c.b16 %v3011, %v3009
      %v3070 = vpack.c.b16 %v3012, %v3010
      %v3071 = vpack.c.b16 %v3015, %v3013
      %v3072 = vpack.c.b16 %v3016, %v3014
      %v3073 = vpack.c.b16 %v3019, %v3017
      %v3074 = vpack.c.b16 %v3020, %v3018
      %v3075 = vpack.c.b16 %v3023, %v3021
      %v3076 = vpack.c.b16 %v3024, %v3022
      %v3077 = vpack.c.b16 %v3027, %v3025
      %v3078 = vpack.c.b16 %v3028, %v3026
      %v3079 = vpack.c.b16 %v3031, %v3029
      %v3080 = vpack.c.b16 %v3032, %v3030
      %v3081 = vpack.c.b16 %v3035, %v3033
      %v3082 = vpack.c.b16 %v3036, %v3034
      %v3083 = vpack.c.b16 %v3039, %v3037
      %v3084 = vpack.c.b16 %v3040, %v3038
      %v3085 = vpack.c.b16 %v3043, %v3041
      %v3086 = vpack.c.b16 %v3044, %v3042
      %v3087 = vpack.c.b16 %v3047, %v3045
      %v3088 = vpack.c.b16 %v3048, %v3046
      %v3089 = vpack.c.b16 %v3051, %v3049
      %v3090 = vpack.c.b16 %v3052, %v3050
      %v3091 = vpack.c.b16 %v3055, %v3053
      %v3092 = vpack.c.b16 %v3056, %v3054
      %v3093 = vpack.c.b16 %v3059, %v3057
      %v3094 = vpack.c.b16 %v3060, %v3058
      %v3095 = vpack.c.b16 %v3063, %v3061
      %v3096 = vpack.c.b16 %v3064, %v3062
      %3129 = vmatprep.subr.bf16.mxu0 %v3066
      %3130 = vmatpush1.bf16.msra.mxu0 %v3065
      %3131 = vmatprep.subr.bf16.mxu0 %v3068
      %3132 = vmatpush1.bf16.msra.mxu0 %v3067
      %3133 = vmatprep.subr.bf16.mxu0 %v3070
      %3134 = vmatpush1.bf16.msra.mxu0 %v3069
      %3135 = vmatprep.subr.bf16.mxu0 %v3072
      %3136 = vmatpush1.bf16.msra.mxu0 %v3071
      %3137 = vmatprep.subr.bf16.mxu0 %v3074
      %3138 = vmatpush1.bf16.msra.mxu0 %v3073
      %3139 = vmatprep.subr.bf16.mxu0 %v3076
      %3140 = vmatpush1.bf16.msra.mxu0 %v3075
      %3141 = vmatprep.subr.bf16.mxu0 %v3078
      %3142 = vmatpush1.bf16.msra.mxu0 %v3077
      %3143 = vmatprep.subr.bf16.mxu0 %v3080
      %3144 = vmatpush1.bf16.msra.mxu0 %v3079
      %3145 = vmatprep.subr.bf16.mxu0 %v3082
      %3146 = vmatpush1.bf16.msra.mxu0 %v3081
      %3147 = vmatprep.subr.bf16.mxu0 %v3084
      %3148 = vmatpush1.bf16.msra.mxu0 %v3083
      %3149 = vmatprep.subr.bf16.mxu0 %v3086
      %3150 = vmatpush1.bf16.msra.mxu0 %v3085
      %3151 = vmatprep.subr.bf16.mxu0 %v3088
      %3152 = vmatpush1.bf16.msra.mxu0 %v3087
      %3153 = vmatprep.subr.bf16.mxu0 %v3090
      %3154 = vmatpush1.bf16.msra.mxu0 %v3089
      %3155 = vmatprep.subr.bf16.mxu0 %v3092
      %3156 = vmatpush1.bf16.msra.mxu0 %v3091
      %3157 = vmatprep.subr.bf16.mxu0 %v3094
      %3158 = vmatpush1.bf16.msra.mxu0 %v3093
      %3159 = vmatprep.subr.bf16.mxu0 %v3096
      %3160 = vmatpush1.bf16.msra.mxu0 %v3095
      %3161 = vmatprep.mubr.bf16.mxu0 %v2938
      %3162 = vmatmul.mubr.bf16.gmra.mrb[0].mxu0 %v2937
      %v3163 = vpop.f32.mrb[0].mxu0
      %v3164 = vadd.f32 0.0, %v3163
      %v3165 = vpop.f32.mrb[0].mxu0
      %v3166 = vadd.f32 0.0, %v3165
      %v3167 = vpop.f32.mrb[0].mxu0
      %v3168 = vadd.f32 0.0, %v3167
      %v3169 = vpop.f32.mrb[0].mxu0
      %v3170 = vadd.f32 0.0, %v3169
      %3171 = vmatprep.mubr.bf16.mxu0 %v2940
      %3172 = vmatmul.mubr.bf16.gmra.mrb[0].mxu0 %v2939
      %v3173 = vpop.f32.mrb[0].mxu0
      %v3174 = vadd.f32 0.0, %v3173
      %v3175 = vpop.f32.mrb[0].mxu0
      %v3176 = vadd.f32 0.0, %v3175
      %v3177 = vpop.f32.mrb[0].mxu0
      %v3178 = vadd.f32 0.0, %v3177
      %v3179 = vpop.f32.mrb[0].mxu0
      %v3180 = vadd.f32 0.0, %v3179
      %3181 = vmatprep.mubr.bf16.mxu0 %v2942
      %3182 = vmatmul.mubr.bf16.gmra.mrb[0].mxu0 %v2941
      %v3183 = vpop.f32.mrb[0].mxu0
      %v3184 = vadd.f32 0.0, %v3183
      %v3185 = vpop.f32.mrb[0].mxu0
      %v3186 = vadd.f32 0.0, %v3185
      %v3187 = vpop.f32.mrb[0].mxu0
      %v3188 = vadd.f32 0.0, %v3187
      %v3189 = vpop.f32.mrb[0].mxu0
      %v3190 = vadd.f32 0.0, %v3189
      %3191 = vmatprep.mubr.bf16.mxu0 %v2944
      %3192 = vmatmul.mubr.bf16.gmra.mrb[0].mxu0 %v2943
      %v3193 = vpop.f32.mrb[0].mxu0
      %v3194 = vadd.f32 0.0, %v3193
      %v3195 = vpop.f32.mrb[0].mxu0
      %v3196 = vadd.f32 0.0, %v3195
      %v3197 = vpop.f32.mrb[0].mxu0
      %v3198 = vadd.f32 0.0, %v3197
      %v3199 = vpop.f32.mrb[0].mxu0
      %v3200 = vadd.f32 0.0, %v3199
      %3201 = vmatprep.mubr.bf16.mxu0 %v2946
      %3202 = vmatmul.mubr.bf16.gmra.mrb[0].mxu0 %v2945
      %v3203 = vpop.f32.mrb[0].mxu0
      %v3204 = vadd.f32 0.0, %v3203
      %v3205 = vpop.f32.mrb[0].mxu0
      %v3206 = vadd.f32 0.0, %v3205
      %v3207 = vpop.f32.mrb[0].mxu0
      %v3208 = vadd.f32 0.0, %v3207
      %v3209 = vpop.f32.mrb[0].mxu0
      %v3210 = vadd.f32 0.0, %v3209
      %3211 = vmatprep.mubr.bf16.mxu0 %v2948
      %3212 = vmatmul.mubr.bf16.gmra.mrb[0].mxu0 %v2947
      %v3213 = vpop.f32.mrb[0].mxu0
      %v3214 = vadd.f32 0.0, %v3213
      %v3215 = vpop.f32.mrb[0].mxu0
      %v3216 = vadd.f32 0.0, %v3215
      %v3217 = vpop.f32.mrb[0].mxu0
      %v3218 = vadd.f32 0.0, %v3217
      %v3219 = vpop.f32.mrb[0].mxu0
      %v3220 = vadd.f32 0.0, %v3219
      %3221 = vmatprep.mubr.bf16.mxu0 %v2950
      %3222 = vmatmul.mubr.bf16.gmra.mrb[0].mxu0 %v2949
      %v3223 = vpop.f32.mrb[0].mxu0
      %v3224 = vadd.f32 0.0, %v3223
      %v3225 = vpop.f32.mrb[0].mxu0
      %v3226 = vadd.f32 0.0, %v3225
      %v3227 = vpop.f32.mrb[0].mxu0
      %v3228 = vadd.f32 0.0, %v3227
      %v3229 = vpop.f32.mrb[0].mxu0
      %v3230 = vadd.f32 0.0, %v3229
      %3231 = vmatprep.mubr.bf16.mxu0 %v2952
      %3232 = vmatmul.mubr.bf16.gmra.mrb[0].mxu0 %v2951
      %v3233 = vpop.f32.mrb[0].mxu0
      %v3234 = vadd.f32 0.0, %v3233
      %v3235 = vpop.f32.mrb[0].mxu0
      %v3236 = vadd.f32 0.0, %v3235
      %v3237 = vpop.f32.mrb[0].mxu0
      %v3238 = vadd.f32 0.0, %v3237
      %v3239 = vpop.f32.mrb[0].mxu0
      %v3240 = vadd.f32 0.0, %v3239
      %3241 = vdwg.mxu0
      %v3242 = vadd.f32 %v2624, %v3164
      %v3243 = vadd.f32 %v2625, %v3166
      %v3244 = vadd.f32 %v2626, %v3168
      %v3245 = vadd.f32 %v2627, %v3170
      %v3246 = vadd.f32 %v2628, %v3174
      %v3247 = vadd.f32 %v2629, %v3176
      %v3248 = vadd.f32 %v2630, %v3178
      %v3249 = vadd.f32 %v2631, %v3180
      %v3250 = vadd.f32 %v2632, %v3184
      %v3251 = vadd.f32 %v2633, %v3186
      %v3252 = vadd.f32 %v2634, %v3188
      %v3253 = vadd.f32 %v2635, %v3190
      %v3254 = vadd.f32 %v2636, %v3194
      %v3255 = vadd.f32 %v2637, %v3196
      %v3256 = vadd.f32 %v2638, %v3198
      %v3257 = vadd.f32 %v2639, %v3200
      %v3258 = vadd.f32 %v2640, %v3204
      %v3259 = vadd.f32 %v2641, %v3206
      %v3260 = vadd.f32 %v2642, %v3208
      %v3261 = vadd.f32 %v2643, %v3210
      %v3262 = vadd.f32 %v2644, %v3214
      %v3263 = vadd.f32 %v2645, %v3216
      %v3264 = vadd.f32 %v2646, %v3218
      %v3265 = vadd.f32 %v2647, %v3220
      %v3266 = vadd.f32 %v2648, %v3224
      %v3267 = vadd.f32 %v2649, %v3226
      %v3268 = vadd.f32 %v2650, %v3228
      %v3269 = vadd.f32 %v2651, %v3230
      %v3270 = vadd.f32 %v2652, %v3234
      %v3271 = vadd.f32 %v2653, %v3236
      %v3272 = vadd.f32 %v2654, %v3238
      %v3273 = vadd.f32 %v2655, %v3240
      %v3274 = vld [vmem:[%s626] sm:$0xee]
      %v3275 = vld [vmem:[%s626 + $0x18] sm:$0xee]
      %v3276 = vld [vmem:[%s626 + $0x30] sm:$0xee]
      %v3277 = vld [vmem:[%s626 + $0x48] sm:$0xee]
      %v3278 = vld [vmem:[%s626 + $0x60] sm:$0xee]
      %v3279 = vld [vmem:[%s626 + $0x78] sm:$0xee]
      %v3280 = vld [vmem:[%s626 + $0x90] sm:$0xee]
      %v3281 = vld [vmem:[%s626 + $0xa8] sm:$0xee]
      %v3306 = vrot.slane %v3274, 5
      %v3307 = vrot.slane %v3306, 4
      %v3308 = vrot.slane %v2657, 5
      %v3309 = vsel %vm1763, %v3307, %v3308
      %v3310 = vrot.slane %v3308, 4
      %v3311 = vrot.slane %v2658, 5
      %v3312 = vsel %vm1763, %v3310, %v3311
      %v3313 = vrot.slane %v3275, 5
      %v3314 = vrot.slane %v3313, 4
      %v3315 = vrot.slane %v2660, 5
      %v3316 = vsel %vm1763, %v3314, %v3315
      %v3317 = vrot.slane %v3315, 4
      %v3318 = vrot.slane %v2661, 5
      %v3319 = vsel %vm1763, %v3317, %v3318
      %v3320 = vrot.slane %v3276, 5
      %v3321 = vrot.slane %v3320, 4
      %v3322 = vrot.slane %v2663, 5
      %v3323 = vsel %vm1763, %v3321, %v3322
      %v3324 = vrot.slane %v3322, 4
      %v3325 = vrot.slane %v2664, 5
      %v3326 = vsel %vm1763, %v3324, %v3325
      %v3327 = vrot.slane %v3277, 5
      %v3328 = vrot.slane %v3327, 4
      %v3329 = vrot.slane %v2666, 5
      %v3330 = vsel %vm1763, %v3328, %v3329
      %v3331 = vrot.slane %v3329, 4
      %v3332 = vrot.slane %v2667, 5
      %v3333 = vsel %vm1763, %v3331, %v3332
      %v3334 = vrot.slane %v3278, 5
      %v3335 = vrot.slane %v3334, 4
      %v3336 = vrot.slane %v2669, 5
      %v3337 = vsel %vm1763, %v3335, %v3336
      %v3338 = vrot.slane %v3336, 4
      %v3339 = vrot.slane %v2670, 5
      %v3340 = vsel %vm1763, %v3338, %v3339
      %v3341 = vrot.slane %v3279, 5
      %v3342 = vrot.slane %v3341, 4
      %v3343 = vrot.slane %v2672, 5
      %v3344 = vsel %vm1763, %v3342, %v3343
      %v3345 = vrot.slane %v3343, 4
      %v3346 = vrot.slane %v2673, 5
      %v3347 = vsel %vm1763, %v3345, %v3346
      %v3348 = vrot.slane %v3280, 5
      %v3349 = vrot.slane %v3348, 4
      %v3350 = vrot.slane %v2675, 5
      %v3351 = vsel %vm1763, %v3349, %v3350
      %v3352 = vrot.slane %v3350, 4
      %v3353 = vrot.slane %v2676, 5
      %v3354 = vsel %vm1763, %v3352, %v3353
      %v3355 = vrot.slane %v3281, 5
      %v3356 = vrot.slane %v3355, 4
      %v3357 = vrot.slane %v2678, 5
      %v3358 = vsel %vm1763, %v3356, %v3357
      %v3359 = vrot.slane %v3357, 4
      %v3360 = vrot.slane %v2679, 5
      %v3361 = vsel %vm1763, %v3359, %v3360
      %s3362 = scalar_lea.vmem %s3, 1280
      %v3363 = vld [vmem:[%s3362] sm:$0xff]
      %v3364 = vld [vmem:[%s3362 + $0x8] sm:$0xff]
      %v3365 = vld [vmem:[%s3362 + $0x10] sm:$0xff]
      %v3366 = vld [vmem:[%s3362 + $0x18] sm:$0xff]
      %v3367 = vld [vmem:[%s3362 + $0x20] sm:$0xff]
      %v3368 = vld [vmem:[%s3362 + $0x28] sm:$0xff]
      %v3369 = vld [vmem:[%s3362 + $0x30] sm:$0xff]
      %v3370 = vld [vmem:[%s3362 + $0x38] sm:$0xff]
      %v3371 = vld [vmem:[%s3362 + $0x40] sm:$0xff]
      %v3372 = vld [vmem:[%s3362 + $0x48] sm:$0xff]
      %v3373 = vld [vmem:[%s3362 + $0x50] sm:$0xff]
      %v3374 = vld [vmem:[%s3362 + $0x58] sm:$0xff]
      %v3375 = vld [vmem:[%s3362 + $0x60] sm:$0xff]
      %v3376 = vld [vmem:[%s3362 + $0x68] sm:$0xff]
      %v3377 = vld [vmem:[%s3362 + $0x70] sm:$0xff]
      %v3378 = vld [vmem:[%s3362 + $0x78] sm:$0xff]
      %v3379 = vld [vmem:[%s3362 + $0x80] sm:$0xff]
      %v3380 = vld [vmem:[%s3362 + $0x88] sm:$0xff]
      %v3381 = vld [vmem:[%s3362 + $0x90] sm:$0xff]
      %v3382 = vld [vmem:[%s3362 + $0x98] sm:$0xff]
      %v3383 = vld [vmem:[%s3362 + $0xa0] sm:$0xff]
      %v3384 = vld [vmem:[%s3362 + $0xa8] sm:$0xff]
      %v3385 = vld [vmem:[%s3362 + $0xb0] sm:$0xff]
      %v3386 = vld [vmem:[%s3362 + $0xb8] sm:$0xff]
      %v3387 = vld [vmem:[%s3362 + $0xc0] sm:$0xff]
      %v3388 = vld [vmem:[%s3362 + $0xc8] sm:$0xff]
      %v3389 = vld [vmem:[%s3362 + $0xd0] sm:$0xff]
      %v3390 = vld [vmem:[%s3362 + $0xd8] sm:$0xff]
      %v3391 = vld [vmem:[%s3362 + $0xe0] sm:$0xff]
      %v3392 = vld [vmem:[%s3362 + $0xe8] sm:$0xff]
      %v3393 = vld [vmem:[%s3362 + $0xf0] sm:$0xff]
      %v3394 = vld [vmem:[%s3362 + $0xf8] sm:$0xff]
      %v3395 = vunpack.c.l.b16 %v3309
      %v3396 = vunpack.c.h.b16 %v3309
      %v3397 = vunpack.c.l.b16 %v3312
      %v3398 = vunpack.c.h.b16 %v3312
      %v3399 = vunpack.c.l.b16 %v3316
      %v3400 = vunpack.c.h.b16 %v3316
      %v3401 = vunpack.c.l.b16 %v3319
      %v3402 = vunpack.c.h.b16 %v3319
      %v3403 = vunpack.c.l.b16 %v3323
      %v3404 = vunpack.c.h.b16 %v3323
      %v3405 = vunpack.c.l.b16 %v3326
      %v3406 = vunpack.c.h.b16 %v3326
      %v3407 = vunpack.c.l.b16 %v3330
      %v3408 = vunpack.c.h.b16 %v3330
      %v3409 = vunpack.c.l.b16 %v3333
      %v3410 = vunpack.c.h.b16 %v3333
      %v3411 = vunpack.c.l.b16 %v3337
      %v3412 = vunpack.c.h.b16 %v3337
      %v3413 = vunpack.c.l.b16 %v3340
      %v3414 = vunpack.c.h.b16 %v3340
      %v3415 = vunpack.c.l.b16 %v3344
      %v3416 = vunpack.c.h.b16 %v3344
      %v3417 = vunpack.c.l.b16 %v3347
      %v3418 = vunpack.c.h.b16 %v3347
      %v3419 = vunpack.c.l.b16 %v3351
      %v3420 = vunpack.c.h.b16 %v3351
      %v3421 = vunpack.c.l.b16 %v3354
      %v3422 = vunpack.c.h.b16 %v3354
      %v3423 = vunpack.c.l.b16 %v3358
      %v3424 = vunpack.c.h.b16 %v3358
      %v3425 = vunpack.c.l.b16 %v3361
      %v3426 = vunpack.c.h.b16 %v3361
      %v3427 = vpack.c.b16 %v3397, %v3395
      %v3428 = vpack.c.b16 %v3398, %v3396
      %v3429 = vpack.c.b16 %v3401, %v3399
      %v3430 = vpack.c.b16 %v3402, %v3400
      %v3431 = vpack.c.b16 %v3405, %v3403
      %v3432 = vpack.c.b16 %v3406, %v3404
      %v3433 = vpack.c.b16 %v3409, %v3407
      %v3434 = vpack.c.b16 %v3410, %v3408
      %v3435 = vpack.c.b16 %v3413, %v3411
      %v3436 = vpack.c.b16 %v3414, %v3412
      %v3437 = vpack.c.b16 %v3417, %v3415
      %v3438 = vpack.c.b16 %v3418, %v3416
      %v3439 = vpack.c.b16 %v3421, %v3419
      %v3440 = vpack.c.b16 %v3422, %v3420
      %v3441 = vpack.c.b16 %v3425, %v3423
      %v3442 = vpack.c.b16 %v3426, %v3424
      %v3491 = vunpack.c.l.b16 %v3363
      %v3492 = vunpack.c.h.b16 %v3363
      %v3493 = vunpack.c.l.b16 %v3364
      %v3494 = vunpack.c.h.b16 %v3364
      %v3495 = vunpack.c.l.b16 %v3365
      %v3496 = vunpack.c.h.b16 %v3365
      %v3497 = vunpack.c.l.b16 %v3366
      %v3498 = vunpack.c.h.b16 %v3366
      %v3499 = vunpack.c.l.b16 %v3367
      %v3500 = vunpack.c.h.b16 %v3367
      %v3501 = vunpack.c.l.b16 %v3368
      %v3502 = vunpack.c.h.b16 %v3368
      %v3503 = vunpack.c.l.b16 %v3369
      %v3504 = vunpack.c.h.b16 %v3369
      %v3505 = vunpack.c.l.b16 %v3370
      %v3506 = vunpack.c.h.b16 %v3370
      %v3507 = vunpack.c.l.b16 %v3371
      %v3508 = vunpack.c.h.b16 %v3371
      %v3509 = vunpack.c.l.b16 %v3372
      %v3510 = vunpack.c.h.b16 %v3372
      %v3511 = vunpack.c.l.b16 %v3373
      %v3512 = vunpack.c.h.b16 %v3373
      %v3513 = vunpack.c.l.b16 %v3374
      %v3514 = vunpack.c.h.b16 %v3374
      %v3515 = vunpack.c.l.b16 %v3375
      %v3516 = vunpack.c.h.b16 %v3375
      %v3517 = vunpack.c.l.b16 %v3376
      %v3518 = vunpack.c.h.b16 %v3376
      %v3519 = vunpack.c.l.b16 %v3377
      %v3520 = vunpack.c.h.b16 %v3377
      %v3521 = vunpack.c.l.b16 %v3378
      %v3522 = vunpack.c.h.b16 %v3378
      %v3523 = vunpack.c.l.b16 %v3379
      %v3524 = vunpack.c.h.b16 %v3379
      %v3525 = vunpack.c.l.b16 %v3380
      %v3526 = vunpack.c.h.b16 %v3380
      %v3527 = vunpack.c.l.b16 %v3381
      %v3528 = vunpack.c.h.b16 %v3381
      %v3529 = vunpack.c.l.b16 %v3382
      %v3530 = vunpack.c.h.b16 %v3382
      %v3531 = vunpack.c.l.b16 %v3383
      %v3532 = vunpack.c.h.b16 %v3383
      %v3533 = vunpack.c.l.b16 %v3384
      %v3534 = vunpack.c.h.b16 %v3384
      %v3535 = vunpack.c.l.b16 %v3385
      %v3536 = vunpack.c.h.b16 %v3385
      %v3537 = vunpack.c.l.b16 %v3386
      %v3538 = vunpack.c.h.b16 %v3386
      %v3539 = vunpack.c.l.b16 %v3387
      %v3540 = vunpack.c.h.b16 %v3387
      %v3541 = vunpack.c.l.b16 %v3388
      %v3542 = vunpack.c.h.b16 %v3388
      %v3543 = vunpack.c.l.b16 %v3389
      %v3544 = vunpack.c.h.b16 %v3389
      %v3545 = vunpack.c.l.b16 %v3390
      %v3546 = vunpack.c.h.b16 %v3390
      %v3547 = vunpack.c.l.b16 %v3391
      %v3548 = vunpack.c.h.b16 %v3391
      %v3549 = vunpack.c.l.b16 %v3392
      %v3550 = vunpack.c.h.b16 %v3392
      %v3551 = vunpack.c.l.b16 %v3393
      %v3552 = vunpack.c.h.b16 %v3393
      %v3553 = vunpack.c.l.b16 %v3394
      %v3554 = vunpack.c.h.b16 %v3394
      %v3555 = vpack.c.b16 %v3493, %v3491
      %v3556 = vpack.c.b16 %v3494, %v3492
      %v3557 = vpack.c.b16 %v3497, %v3495
      %v3558 = vpack.c.b16 %v3498, %v3496
      %v3559 = vpack.c.b16 %v3501, %v3499
      %v3560 = vpack.c.b16 %v3502, %v3500
      %v3561 = vpack.c.b16 %v3505, %v3503
      %v3562 = vpack.c.b16 %v3506, %v3504
      %v3563 = vpack.c.b16 %v3509, %v3507
      %v3564 = vpack.c.b16 %v3510, %v3508
      %v3565 = vpack.c.b16 %v3513, %v3511
      %v3566 = vpack.c.b16 %v3514, %v3512
      %v3567 = vpack.c.b16 %v3517, %v3515
      %v3568 = vpack.c.b16 %v3518, %v3516
      %v3569 = vpack.c.b16 %v3521, %v3519
      %v3570 = vpack.c.b16 %v3522, %v3520
      %v3571 = vpack.c.b16 %v3525, %v3523
      %v3572 = vpack.c.b16 %v3526, %v3524
      %v3573 = vpack.c.b16 %v3529, %v3527
      %v3574 = vpack.c.b16 %v3530, %v3528
      %v3575 = vpack.c.b16 %v3533, %v3531
      %v3576 = vpack.c.b16 %v3534, %v3532
      %v3577 = vpack.c.b16 %v3537, %v3535
      %v3578 = vpack.c.b16 %v3538, %v3536
      %v3579 = vpack.c.b16 %v3541, %v3539
      %v3580 = vpack.c.b16 %v3542, %v3540
      %v3581 = vpack.c.b16 %v3545, %v3543
      %v3582 = vpack.c.b16 %v3546, %v3544
      %v3583 = vpack.c.b16 %v3549, %v3547
      %v3584 = vpack.c.b16 %v3550, %v3548
      %v3585 = vpack.c.b16 %v3553, %v3551
      %v3586 = vpack.c.b16 %v3554, %v3552
      %3619 = vmatprep.subr.bf16.mxu0 %v3556
      %3620 = vmatpush1.bf16.msra.mxu0 %v3555
      %3621 = vmatprep.subr.bf16.mxu0 %v3558
      %3622 = vmatpush1.bf16.msra.mxu0 %v3557
      %3623 = vmatprep.subr.bf16.mxu0 %v3560
      %3624 = vmatpush1.bf16.msra.mxu0 %v3559
      %3625 = vmatprep.subr.bf16.mxu0 %v3562
      %3626 = vmatpush1.bf16.msra.mxu0 %v3561
      %3627 = vmatprep.subr.bf16.mxu0 %v3564
      %3628 = vmatpush1.bf16.msra.mxu0 %v3563
      %3629 = vmatprep.subr.bf16.mxu0 %v3566
      %3630 = vmatpush1.bf16.msra.mxu0 %v3565
      %3631 = vmatprep.subr.bf16.mxu0 %v3568
      %3632 = vmatpush1.bf16.msra.mxu0 %v3567
      %3633 = vmatprep.subr.bf16.mxu0 %v3570
      %3634 = vmatpush1.bf16.msra.mxu0 %v3569
      %3635 = vmatprep.subr.bf16.mxu0 %v3572
      %3636 = vmatpush1.bf16.msra.mxu0 %v3571
      %3637 = vmatprep.subr.bf16.mxu0 %v3574
      %3638 = vmatpush1.bf16.msra.mxu0 %v3573
      %3639 = vmatprep.subr.bf16.mxu0 %v3576
      %3640 = vmatpush1.bf16.msra.mxu0 %v3575
      %3641 = vmatprep.subr.bf16.mxu0 %v3578
      %3642 = vmatpush1.bf16.msra.mxu0 %v3577
      %3643 = vmatprep.subr.bf16.mxu0 %v3580
      %3644 = vmatpush1.bf16.msra.mxu0 %v3579
      %3645 = vmatprep.subr.bf16.mxu0 %v3582
      %3646 = vmatpush1.bf16.msra.mxu0 %v3581
      %3647 = vmatprep.subr.bf16.mxu0 %v3584
      %3648 = vmatpush1.bf16.msra.mxu0 %v3583
      %3649 = vmatprep.subr.bf16.mxu0 %v3586
      %3650 = vmatpush1.bf16.msra.mxu0 %v3585
      %3651 = vmatprep.mubr.bf16.mxu0 %v3428
      %3652 = vmatmul.mubr.bf16.gmra.mrb[0].mxu0 %v3427
      %v3653 = vpop.f32.mrb[0].mxu0
      %v3654 = vadd.f32 0.0, %v3653
      %v3655 = vpop.f32.mrb[0].mxu0
      %v3656 = vadd.f32 0.0, %v3655
      %v3657 = vpop.f32.mrb[0].mxu0
      %v3658 = vadd.f32 0.0, %v3657
      %v3659 = vpop.f32.mrb[0].mxu0
      %v3660 = vadd.f32 0.0, %v3659
      %3661 = vmatprep.mubr.bf16.mxu0 %v3430
      %3662 = vmatmul.mubr.bf16.gmra.mrb[0].mxu0 %v3429
      %v3663 = vpop.f32.mrb[0].mxu0
      %v3664 = vadd.f32 0.0, %v3663
      %v3665 = vpop.f32.mrb[0].mxu0
      %v3666 = vadd.f32 0.0, %v3665
      %v3667 = vpop.f32.mrb[0].mxu0
      %v3668 = vadd.f32 0.0, %v3667
      %v3669 = vpop.f32.mrb[0].mxu0
      %v3670 = vadd.f32 0.0, %v3669
      %3671 = vmatprep.mubr.bf16.mxu0 %v3432
      %3672 = vmatmul.mubr.bf16.gmra.mrb[0].mxu0 %v3431
      %v3673 = vpop.f32.mrb[0].mxu0
      %v3674 = vadd.f32 0.0, %v3673
      %v3675 = vpop.f32.mrb[0].mxu0
      %v3676 = vadd.f32 0.0, %v3675
      %v3677 = vpop.f32.mrb[0].mxu0
      %v3678 = vadd.f32 0.0, %v3677
      %v3679 = vpop.f32.mrb[0].mxu0
      %v3680 = vadd.f32 0.0, %v3679
      %3681 = vmatprep.mubr.bf16.mxu0 %v3434
      %3682 = vmatmul.mubr.bf16.gmra.mrb[0].mxu0 %v3433
      %v3683 = vpop.f32.mrb[0].mxu0
      %v3684 = vadd.f32 0.0, %v3683
      %v3685 = vpop.f32.mrb[0].mxu0
      %v3686 = vadd.f32 0.0, %v3685
      %v3687 = vpop.f32.mrb[0].mxu0
      %v3688 = vadd.f32 0.0, %v3687
      %v3689 = vpop.f32.mrb[0].mxu0
      %v3690 = vadd.f32 0.0, %v3689
      %3691 = vmatprep.mubr.bf16.mxu0 %v3436
      %3692 = vmatmul.mubr.bf16.gmra.mrb[0].mxu0 %v3435
      %v3693 = vpop.f32.mrb[0].mxu0
      %v3694 = vadd.f32 0.0, %v3693
      %v3695 = vpop.f32.mrb[0].mxu0
      %v3696 = vadd.f32 0.0, %v3695
      %v3697 = vpop.f32.mrb[0].mxu0
      %v3698 = vadd.f32 0.0, %v3697
      %v3699 = vpop.f32.mrb[0].mxu0
      %v3700 = vadd.f32 0.0, %v3699
      %3701 = vmatprep.mubr.bf16.mxu0 %v3438
      %3702 = vmatmul.mubr.bf16.gmra.mrb[0].mxu0 %v3437
      %v3703 = vpop.f32.mrb[0].mxu0
      %v3704 = vadd.f32 0.0, %v3703
      %v3705 = vpop.f32.mrb[0].mxu0
      %v3706 = vadd.f32 0.0, %v3705
      %v3707 = vpop.f32.mrb[0].mxu0
      %v3708 = vadd.f32 0.0, %v3707
      %v3709 = vpop.f32.mrb[0].mxu0
      %v3710 = vadd.f32 0.0, %v3709
      %3711 = vmatprep.mubr.bf16.mxu0 %v3440
      %3712 = vmatmul.mubr.bf16.gmra.mrb[0].mxu0 %v3439
      %v3713 = vpop.f32.mrb[0].mxu0
      %v3714 = vadd.f32 0.0, %v3713
      %v3715 = vpop.f32.mrb[0].mxu0
      %v3716 = vadd.f32 0.0, %v3715
      %v3717 = vpop.f32.mrb[0].mxu0
      %v3718 = vadd.f32 0.0, %v3717
      %v3719 = vpop.f32.mrb[0].mxu0
      %v3720 = vadd.f32 0.0, %v3719
      %3721 = vmatprep.mubr.bf16.mxu0 %v3442
      %3722 = vmatmul.mubr.bf16.gmra.mrb[0].mxu0 %v3441
      %v3723 = vpop.f32.mrb[0].mxu0
      %v3724 = vadd.f32 0.0, %v3723
      %v3725 = vpop.f32.mrb[0].mxu0
      %v3726 = vadd.f32 0.0, %v3725
      %v3727 = vpop.f32.mrb[0].mxu0
      %v3728 = vadd.f32 0.0, %v3727
      %v3729 = vpop.f32.mrb[0].mxu0
      %v3730 = vadd.f32 0.0, %v3729
      %3731 = vdwg.mxu0
      %v3732 = vadd.f32 %v3242, %v3654
      %v3733 = vadd.f32 %v3243, %v3656
      %v3734 = vadd.f32 %v3244, %v3658
      %v3735 = vadd.f32 %v3245, %v3660
      %v3736 = vadd.f32 %v3246, %v3664
      %v3737 = vadd.f32 %v3247, %v3666
      %v3738 = vadd.f32 %v3248, %v3668
      %v3739 = vadd.f32 %v3249, %v3670
      %v3740 = vadd.f32 %v3250, %v3674
      %v3741 = vadd.f32 %v3251, %v3676
      %v3742 = vadd.f32 %v3252, %v3678
      %v3743 = vadd.f32 %v3253, %v3680
      %v3744 = vadd.f32 %v3254, %v3684
      %v3745 = vadd.f32 %v3255, %v3686
      %v3746 = vadd.f32 %v3256, %v3688
      %v3747 = vadd.f32 %v3257, %v3690
      %v3748 = vadd.f32 %v3258, %v3694
      %v3749 = vadd.f32 %v3259, %v3696
      %v3750 = vadd.f32 %v3260, %v3698
      %v3751 = vadd.f32 %v3261, %v3700
      %v3752 = vadd.f32 %v3262, %v3704
      %v3753 = vadd.f32 %v3263, %v3706
      %v3754 = vadd.f32 %v3264, %v3708
      %v3755 = vadd.f32 %v3265, %v3710
      %v3756 = vadd.f32 %v3266, %v3714
      %v3757 = vadd.f32 %v3267, %v3716
      %v3758 = vadd.f32 %v3268, %v3718
      %v3759 = vadd.f32 %v3269, %v3720
      %v3760 = vadd.f32 %v3270, %v3724
      %v3761 = vadd.f32 %v3271, %v3726
      %v3762 = vadd.f32 %v3272, %v3728
      %v3763 = vadd.f32 %v3273, %v3730
      %s3764 = scalar_lea.vmem [#allocation2], 48
      %v3765 = vld [vmem:[%s3764] sm:$0xff]
      %v3766 = vld [vmem:[%s3764 + $0x8] sm:$0xff]
      %v3767 = vld [vmem:[%s3764 + $0x18] sm:$0xff]
      %v3768 = vld [vmem:[%s3764 + $0x20] sm:$0xff]
      %v3769 = vld [vmem:[%s3764 + $0x30] sm:$0xff]
      %v3770 = vld [vmem:[%s3764 + $0x38] sm:$0xff]
      %v3771 = vld [vmem:[%s3764 + $0x48] sm:$0xff]
      %v3772 = vld [vmem:[%s3764 + $0x50] sm:$0xff]
      %v3773 = vld [vmem:[%s3764 + $0x60] sm:$0xff]
      %v3774 = vld [vmem:[%s3764 + $0x68] sm:$0xff]
      %v3775 = vld [vmem:[%s3764 + $0x78] sm:$0xff]
      %v3776 = vld [vmem:[%s3764 + $0x80] sm:$0xff]
      %v3777 = vld [vmem:[%s3764 + $0x90] sm:$0xff]
      %v3778 = vld [vmem:[%s3764 + $0x98] sm:$0xff]
      %v3779 = vld [vmem:[%s3764 + $0xa8] sm:$0xff]
      %v3780 = vld [vmem:[%s3764 + $0xb0] sm:$0xff]
      %s3781 = scalar_lea.vmem %s3, 1536
      %v3782 = vld [vmem:[%s3781] sm:$0xff]
      %v3783 = vld [vmem:[%s3781 + $0x8] sm:$0xff]
      %v3784 = vld [vmem:[%s3781 + $0x10] sm:$0xff]
      %v3785 = vld [vmem:[%s3781 + $0x18] sm:$0xff]
      %v3786 = vld [vmem:[%s3781 + $0x20] sm:$0xff]
      %v3787 = vld [vmem:[%s3781 + $0x28] sm:$0xff]
      %v3788 = vld [vmem:[%s3781 + $0x30] sm:$0xff]
      %v3789 = vld [vmem:[%s3781 + $0x38] sm:$0xff]
      %v3790 = vld [vmem:[%s3781 + $0x40] sm:$0xff]
      %v3791 = vld [vmem:[%s3781 + $0x48] sm:$0xff]
      %v3792 = vld [vmem:[%s3781 + $0x50] sm:$0xff]
      %v3793 = vld [vmem:[%s3781 + $0x58] sm:$0xff]
      %v3794 = vld [vmem:[%s3781 + $0x60] sm:$0xff]
      %v3795 = vld [vmem:[%s3781 + $0x68] sm:$0xff]
      %v3796 = vld [vmem:[%s3781 + $0x70] sm:$0xff]
      %v3797 = vld [vmem:[%s3781 + $0x78] sm:$0xff]
      %v3798 = vld [vmem:[%s3781 + $0x80] sm:$0xff]
      %v3799 = vld [vmem:[%s3781 + $0x88] sm:$0xff]
      %v3800 = vld [vmem:[%s3781 + $0x90] sm:$0xff]
      %v3801 = vld [vmem:[%s3781 + $0x98] sm:$0xff]
      %v3802 = vld [vmem:[%s3781 + $0xa0] sm:$0xff]
      %v3803 = vld [vmem:[%s3781 + $0xa8] sm:$0xff]
      %v3804 = vld [vmem:[%s3781 + $0xb0] sm:$0xff]
      %v3805 = vld [vmem:[%s3781 + $0xb8] sm:$0xff]
      %v3806 = vld [vmem:[%s3781 + $0xc0] sm:$0xff]
      %v3807 = vld [vmem:[%s3781 + $0xc8] sm:$0xff]
      %v3808 = vld [vmem:[%s3781 + $0xd0] sm:$0xff]
      %v3809 = vld [vmem:[%s3781 + $0xd8] sm:$0xff]
      %v3810 = vld [vmem:[%s3781 + $0xe0] sm:$0xff]
      %v3811 = vld [vmem:[%s3781 + $0xe8] sm:$0xff]
      %v3812 = vld [vmem:[%s3781 + $0xf0] sm:$0xff]
      %v3813 = vld [vmem:[%s3781 + $0xf8] sm:$0xff]
      %v3830 = vunpack.c.l.b16 %v3765
      %v3831 = vunpack.c.h.b16 %v3765
      %v3832 = vunpack.c.l.b16 %v3766
      %v3833 = vunpack.c.h.b16 %v3766
      %v3834 = vunpack.c.l.b16 %v3767
      %v3835 = vunpack.c.h.b16 %v3767
      %v3836 = vunpack.c.l.b16 %v3768
      %v3837 = vunpack.c.h.b16 %v3768
      %v3838 = vunpack.c.l.b16 %v3769
      %v3839 = vunpack.c.h.b16 %v3769
      %v3840 = vunpack.c.l.b16 %v3770
      %v3841 = vunpack.c.h.b16 %v3770
      %v3842 = vunpack.c.l.b16 %v3771
      %v3843 = vunpack.c.h.b16 %v3771
      %v3844 = vunpack.c.l.b16 %v3772
      %v3845 = vunpack.c.h.b16 %v3772
      %v3846 = vunpack.c.l.b16 %v3773
      %v3847 = vunpack.c.h.b16 %v3773
      %v3848 = vunpack.c.l.b16 %v3774
      %v3849 = vunpack.c.h.b16 %v3774
      %v3850 = vunpack.c.l.b16 %v3775
      %v3851 = vunpack.c.h.b16 %v3775
      %v3852 = vunpack.c.l.b16 %v3776
      %v3853 = vunpack.c.h.b16 %v3776
      %v3854 = vunpack.c.l.b16 %v3777
      %v3855 = vunpack.c.h.b16 %v3777
      %v3856 = vunpack.c.l.b16 %v3778
      %v3857 = vunpack.c.h.b16 %v3778
      %v3858 = vunpack.c.l.b16 %v3779
      %v3859 = vunpack.c.h.b16 %v3779
      %v3860 = vunpack.c.l.b16 %v3780
      %v3861 = vunpack.c.h.b16 %v3780
      %v3862 = vpack.c.b16 %v3832, %v3830
      %v3863 = vpack.c.b16 %v3833, %v3831
      %v3864 = vpack.c.b16 %v3836, %v3834
      %v3865 = vpack.c.b16 %v3837, %v3835
      %v3866 = vpack.c.b16 %v3840, %v3838
      %v3867 = vpack.c.b16 %v3841, %v3839
      %v3868 = vpack.c.b16 %v3844, %v3842
      %v3869 = vpack.c.b16 %v3845, %v3843
      %v3870 = vpack.c.b16 %v3848, %v3846
      %v3871 = vpack.c.b16 %v3849, %v3847
      %v3872 = vpack.c.b16 %v3852, %v3850
      %v3873 = vpack.c.b16 %v3853, %v3851
      %v3874 = vpack.c.b16 %v3856, %v3854
      %v3875 = vpack.c.b16 %v3857, %v3855
      %v3876 = vpack.c.b16 %v3860, %v3858
      %v3877 = vpack.c.b16 %v3861, %v3859
      %v3926 = vunpack.c.l.b16 %v3782
      %v3927 = vunpack.c.h.b16 %v3782
      %v3928 = vunpack.c.l.b16 %v3783
      %v3929 = vunpack.c.h.b16 %v3783
      %v3930 = vunpack.c.l.b16 %v3784
      %v3931 = vunpack.c.h.b16 %v3784
      %v3932 = vunpack.c.l.b16 %v3785
      %v3933 = vunpack.c.h.b16 %v3785
      %v3934 = vunpack.c.l.b16 %v3786
      %v3935 = vunpack.c.h.b16 %v3786
      %v3936 = vunpack.c.l.b16 %v3787
      %v3937 = vunpack.c.h.b16 %v3787
      %v3938 = vunpack.c.l.b16 %v3788
      %v3939 = vunpack.c.h.b16 %v3788
      %v3940 = vunpack.c.l.b16 %v3789
      %v3941 = vunpack.c.h.b16 %v3789
      %v3942 = vunpack.c.l.b16 %v3790
      %v3943 = vunpack.c.h.b16 %v3790
      %v3944 = vunpack.c.l.b16 %v3791
      %v3945 = vunpack.c.h.b16 %v3791
      %v3946 = vunpack.c.l.b16 %v3792
      %v3947 = vunpack.c.h.b16 %v3792
      %v3948 = vunpack.c.l.b16 %v3793
      %v3949 = vunpack.c.h.b16 %v3793
      %v3950 = vunpack.c.l.b16 %v3794
      %v3951 = vunpack.c.h.b16 %v3794
      %v3952 = vunpack.c.l.b16 %v3795
      %v3953 = vunpack.c.h.b16 %v3795
      %v3954 = vunpack.c.l.b16 %v3796
      %v3955 = vunpack.c.h.b16 %v3796
      %v3956 = vunpack.c.l.b16 %v3797
      %v3957 = vunpack.c.h.b16 %v3797
      %v3958 = vunpack.c.l.b16 %v3798
      %v3959 = vunpack.c.h.b16 %v3798
      %v3960 = vunpack.c.l.b16 %v3799
      %v3961 = vunpack.c.h.b16 %v3799
      %v3962 = vunpack.c.l.b16 %v3800
      %v3963 = vunpack.c.h.b16 %v3800
      %v3964 = vunpack.c.l.b16 %v3801
      %v3965 = vunpack.c.h.b16 %v3801
      %v3966 = vunpack.c.l.b16 %v3802
      %v3967 = vunpack.c.h.b16 %v3802
      %v3968 = vunpack.c.l.b16 %v3803
      %v3969 = vunpack.c.h.b16 %v3803
      %v3970 = vunpack.c.l.b16 %v3804
      %v3971 = vunpack.c.h.b16 %v3804
      %v3972 = vunpack.c.l.b16 %v3805
      %v3973 = vunpack.c.h.b16 %v3805
      %v3974 = vunpack.c.l.b16 %v3806
      %v3975 = vunpack.c.h.b16 %v3806
      %v3976 = vunpack.c.l.b16 %v3807
      %v3977 = vunpack.c.h.b16 %v3807
      %v3978 = vunpack.c.l.b16 %v3808
      %v3979 = vunpack.c.h.b16 %v3808
      %v3980 = vunpack.c.l.b16 %v3809
      %v3981 = vunpack.c.h.b16 %v3809
      %v3982 = vunpack.c.l.b16 %v3810
      %v3983 = vunpack.c.h.b16 %v3810
      %v3984 = vunpack.c.l.b16 %v3811
      %v3985 = vunpack.c.h.b16 %v3811
      %v3986 = vunpack.c.l.b16 %v3812
      %v3987 = vunpack.c.h.b16 %v3812
      %v3988 = vunpack.c.l.b16 %v3813
      %v3989 = vunpack.c.h.b16 %v3813
      %v3990 = vpack.c.b16 %v3928, %v3926
      %v3991 = vpack.c.b16 %v3929, %v3927
      %v3992 = vpack.c.b16 %v3932, %v3930
      %v3993 = vpack.c.b16 %v3933, %v3931
      %v3994 = vpack.c.b16 %v3936, %v3934
      %v3995 = vpack.c.b16 %v3937, %v3935
      %v3996 = vpack.c.b16 %v3940, %v3938
      %v3997 = vpack.c.b16 %v3941, %v3939
      %v3998 = vpack.c.b16 %v3944, %v3942
      %v3999 = vpack.c.b16 %v3945, %v3943
      %v4000 = vpack.c.b16 %v3948, %v3946
      %v4001 = vpack.c.b16 %v3949, %v3947
      %v4002 = vpack.c.b16 %v3952, %v3950
      %v4003 = vpack.c.b16 %v3953, %v3951
      %v4004 = vpack.c.b16 %v3956, %v3954
      %v4005 = vpack.c.b16 %v3957, %v3955
      %v4006 = vpack.c.b16 %v3960, %v3958
      %v4007 = vpack.c.b16 %v3961, %v3959
      %v4008 = vpack.c.b16 %v3964, %v3962
      %v4009 = vpack.c.b16 %v3965, %v3963
      %v4010 = vpack.c.b16 %v3968, %v3966
      %v4011 = vpack.c.b16 %v3969, %v3967
      %v4012 = vpack.c.b16 %v3972, %v3970
      %v4013 = vpack.c.b16 %v3973, %v3971
      %v4014 = vpack.c.b16 %v3976, %v3974
      %v4015 = vpack.c.b16 %v3977, %v3975
      %v4016 = vpack.c.b16 %v3980, %v3978
      %v4017 = vpack.c.b16 %v3981, %v3979
      %v4018 = vpack.c.b16 %v3984, %v3982
      %v4019 = vpack.c.b16 %v3985, %v3983
      %v4020 = vpack.c.b16 %v3988, %v3986
      %v4021 = vpack.c.b16 %v3989, %v3987
      %4054 = vmatprep.subr.bf16.mxu0 %v3991
      %4055 = vmatpush1.bf16.msra.mxu0 %v3990
      %4056 = vmatprep.subr.bf16.mxu0 %v3993
      %4057 = vmatpush1.bf16.msra.mxu0 %v3992
      %4058 = vmatprep.subr.bf16.mxu0 %v3995
      %4059 = vmatpush1.bf16.msra.mxu0 %v3994
      %4060 = vmatprep.subr.bf16.mxu0 %v3997
      %4061 = vmatpush1.bf16.msra.mxu0 %v3996
      %4062 = vmatprep.subr.bf16.mxu0 %v3999
      %4063 = vmatpush1.bf16.msra.mxu0 %v3998
      %4064 = vmatprep.subr.bf16.mxu0 %v4001
      %4065 = vmatpush1.bf16.msra.mxu0 %v4000
      %4066 = vmatprep.subr.bf16.mxu0 %v4003
      %4067 = vmatpush1.bf16.msra.mxu0 %v4002
      %4068 = vmatprep.subr.bf16.mxu0 %v4005
      %4069 = vmatpush1.bf16.msra.mxu0 %v4004
      %4070 = vmatprep.subr.bf16.mxu0 %v4007
      %4071 = vmatpush1.bf16.msra.mxu0 %v4006
      %4072 = vmatprep.subr.bf16.mxu0 %v4009
      %4073 = vmatpush1.bf16.msra.mxu0 %v4008
      %4074 = vmatprep.subr.bf16.mxu0 %v4011
      %4075 = vmatpush1.bf16.msra.mxu0 %v4010
      %4076 = vmatprep.subr.bf16.mxu0 %v4013
      %4077 = vmatpush1.bf16.msra.mxu0 %v4012
      %4078 = vmatprep.subr.bf16.mxu0 %v4015
      %4079 = vmatpush1.bf16.msra.mxu0 %v4014
      %4080 = vmatprep.subr.bf16.mxu0 %v4017
      %4081 = vmatpush1.bf16.msra.mxu0 %v4016
      %4082 = vmatprep.subr.bf16.mxu0 %v4019
      %4083 = vmatpush1.bf16.msra.mxu0 %v4018
      %4084 = vmatprep.subr.bf16.mxu0 %v4021
      %4085 = vmatpush1.bf16.msra.mxu0 %v4020
      %4086 = vmatprep.mubr.bf16.mxu0 %v3863
      %4087 = vmatmul.mubr.bf16.gmra.mrb[0].mxu0 %v3862
      %v4088 = vpop.f32.mrb[0].mxu0
      %v4089 = vadd.f32 0.0, %v4088
      %v4090 = vpop.f32.mrb[0].mxu0
      %v4091 = vadd.f32 0.0, %v4090
      %v4092 = vpop.f32.mrb[0].mxu0
      %v4093 = vadd.f32 0.0, %v4092
      %v4094 = vpop.f32.mrb[0].mxu0
      %v4095 = vadd.f32 0.0, %v4094
      %4096 = vmatprep.mubr.bf16.mxu0 %v3865
      %4097 = vmatmul.mubr.bf16.gmra.mrb[0].mxu0 %v3864
      %v4098 = vpop.f32.mrb[0].mxu0
      %v4099 = vadd.f32 0.0, %v4098
      %v4100 = vpop.f32.mrb[0].mxu0
      %v4101 = vadd.f32 0.0, %v4100
      %v4102 = vpop.f32.mrb[0].mxu0
      %v4103 = vadd.f32 0.0, %v4102
      %v4104 = vpop.f32.mrb[0].mxu0
      %v4105 = vadd.f32 0.0, %v4104
      %4106 = vmatprep.mubr.bf16.mxu0 %v3867
      %4107 = vmatmul.mubr.bf16.gmra.mrb[0].mxu0 %v3866
      %v4108 = vpop.f32.mrb[0].mxu0
      %v4109 = vadd.f32 0.0, %v4108
      %v4110 = vpop.f32.mrb[0].mxu0
      %v4111 = vadd.f32 0.0, %v4110
      %v4112 = vpop.f32.mrb[0].mxu0
      %v4113 = vadd.f32 0.0, %v4112
      %v4114 = vpop.f32.mrb[0].mxu0
      %v4115 = vadd.f32 0.0, %v4114
      %4116 = vmatprep.mubr.bf16.mxu0 %v3869
      %4117 = vmatmul.mubr.bf16.gmra.mrb[0].mxu0 %v3868
      %v4118 = vpop.f32.mrb[0].mxu0
      %v4119 = vadd.f32 0.0, %v4118
      %v4120 = vpop.f32.mrb[0].mxu0
      %v4121 = vadd.f32 0.0, %v4120
      %v4122 = vpop.f32.mrb[0].mxu0
      %v4123 = vadd.f32 0.0, %v4122
      %v4124 = vpop.f32.mrb[0].mxu0
      %v4125 = vadd.f32 0.0, %v4124
      %4126 = vmatprep.mubr.bf16.mxu0 %v3871
      %4127 = vmatmul.mubr.bf16.gmra.mrb[0].mxu0 %v3870
      %v4128 = vpop.f32.mrb[0].mxu0
      %v4129 = vadd.f32 0.0, %v4128
      %v4130 = vpop.f32.mrb[0].mxu0
      %v4131 = vadd.f32 0.0, %v4130
      %v4132 = vpop.f32.mrb[0].mxu0
      %v4133 = vadd.f32 0.0, %v4132
      %v4134 = vpop.f32.mrb[0].mxu0
      %v4135 = vadd.f32 0.0, %v4134
      %4136 = vmatprep.mubr.bf16.mxu0 %v3873
      %4137 = vmatmul.mubr.bf16.gmra.mrb[0].mxu0 %v3872
      %v4138 = vpop.f32.mrb[0].mxu0
      %v4139 = vadd.f32 0.0, %v4138
      %v4140 = vpop.f32.mrb[0].mxu0
      %v4141 = vadd.f32 0.0, %v4140
      %v4142 = vpop.f32.mrb[0].mxu0
      %v4143 = vadd.f32 0.0, %v4142
      %v4144 = vpop.f32.mrb[0].mxu0
      %v4145 = vadd.f32 0.0, %v4144
      %4146 = vmatprep.mubr.bf16.mxu0 %v3875
      %4147 = vmatmul.mubr.bf16.gmra.mrb[0].mxu0 %v3874
      %v4148 = vpop.f32.mrb[0].mxu0
      %v4149 = vadd.f32 0.0, %v4148
      %v4150 = vpop.f32.mrb[0].mxu0
      %v4151 = vadd.f32 0.0, %v4150
      %v4152 = vpop.f32.mrb[0].mxu0
      %v4153 = vadd.f32 0.0, %v4152
      %v4154 = vpop.f32.mrb[0].mxu0
      %v4155 = vadd.f32 0.0, %v4154
      %4156 = vmatprep.mubr.bf16.mxu0 %v3877
      %4157 = vmatmul.mubr.bf16.gmra.mrb[0].mxu0 %v3876
      %v4158 = vpop.f32.mrb[0].mxu0
      %v4159 = vadd.f32 0.0, %v4158
      %v4160 = vpop.f32.mrb[0].mxu0
      %v4161 = vadd.f32 0.0, %v4160
      %v4162 = vpop.f32.mrb[0].mxu0
      %v4163 = vadd.f32 0.0, %v4162
      %v4164 = vpop.f32.mrb[0].mxu0
      %v4165 = vadd.f32 0.0, %v4164
      %4166 = vdwg.mxu0
      %v4167 = vadd.f32 %v3732, %v4089
      %v4168 = vadd.f32 %v3733, %v4091
      %v4169 = vadd.f32 %v3734, %v4093
      %v4170 = vadd.f32 %v3735, %v4095
      %v4171 = vadd.f32 %v3736, %v4099
      %v4172 = vadd.f32 %v3737, %v4101
      %v4173 = vadd.f32 %v3738, %v4103
      %v4174 = vadd.f32 %v3739, %v4105
      %v4175 = vadd.f32 %v3740, %v4109
      %v4176 = vadd.f32 %v3741, %v4111
      %v4177 = vadd.f32 %v3742, %v4113
      %v4178 = vadd.f32 %v3743, %v4115
      %v4179 = vadd.f32 %v3744, %v4119
      %v4180 = vadd.f32 %v3745, %v4121
      %v4181 = vadd.f32 %v3746, %v4123
      %v4182 = vadd.f32 %v3747, %v4125
      %v4183 = vadd.f32 %v3748, %v4129
      %v4184 = vadd.f32 %v3749, %v4131
      %v4185 = vadd.f32 %v3750, %v4133
      %v4186 = vadd.f32 %v3751, %v4135
      %v4187 = vadd.f32 %v3752, %v4139
      %v4188 = vadd.f32 %v3753, %v4141
      %v4189 = vadd.f32 %v3754, %v4143
      %v4190 = vadd.f32 %v3755, %v4145
      %v4191 = vadd.f32 %v3756, %v4149
      %v4192 = vadd.f32 %v3757, %v4151
      %v4193 = vadd.f32 %v3758, %v4153
      %v4194 = vadd.f32 %v3759, %v4155
      %v4195 = vadd.f32 %v3760, %v4159
      %v4196 = vadd.f32 %v3761, %v4161
      %v4197 = vadd.f32 %v3762, %v4163
      %v4198 = vadd.f32 %v3763, %v4165
      %v4199 = vld [vmem:[%s3764] sm:$0xff]
      %v4200 = vld [vmem:[%s3764 + $0x8] sm:$0xff]
      %v4201 = vld [vmem:[%s3764 + $0x10] sm:$0x11]
      %v4202 = vld [vmem:[%s3764 + $0x18] sm:$0xff]
      %v4203 = vld [vmem:[%s3764 + $0x20] sm:$0xff]
      %v4204 = vld [vmem:[%s3764 + $0x28] sm:$0x11]
      %v4205 = vld [vmem:[%s3764 + $0x30] sm:$0xff]
      %v4206 = vld [vmem:[%s3764 + $0x38] sm:$0xff]
      %v4207 = vld [vmem:[%s3764 + $0x40] sm:$0x11]
      %v4208 = vld [vmem:[%s3764 + $0x48] sm:$0xff]
      %v4209 = vld [vmem:[%s3764 + $0x50] sm:$0xff]
      %v4210 = vld [vmem:[%s3764 + $0x58] sm:$0x11]
      %v4211 = vld [vmem:[%s3764 + $0x60] sm:$0xff]
      %v4212 = vld [vmem:[%s3764 + $0x68] sm:$0xff]
      %v4213 = vld [vmem:[%s3764 + $0x70] sm:$0x11]
      %v4214 = vld [vmem:[%s3764 + $0x78] sm:$0xff]
      %v4215 = vld [vmem:[%s3764 + $0x80] sm:$0xff]
      %v4216 = vld [vmem:[%s3764 + $0x88] sm:$0x11]
      %v4217 = vld [vmem:[%s3764 + $0x90] sm:$0xff]
      %v4218 = vld [vmem:[%s3764 + $0x98] sm:$0xff]
      %v4219 = vld [vmem:[%s3764 + $0xa0] sm:$0x11]
      %v4220 = vld [vmem:[%s3764 + $0xa8] sm:$0xff]
      %v4221 = vld [vmem:[%s3764 + $0xb0] sm:$0xff]
      %v4222 = vld [vmem:[%s3764 + $0xb8] sm:$0x11]
      %v4224 = vshrl.u32 %v4199, 16
      %v4226 = vrot.slane %v4224, 4
      %v4227 = vshll.u32 %v4199, 16
      %v4229 = vrot.slane %v4227, 5
      %v4230 = vor.u32 %v4226, %v4229
      %v4231 = vrot.slane %v4230, 4
      %v4233 = vshll.u32 %v4200, 16
      %v4235 = vrot.slane %v4233, 5
      %v4236 = vsel %vm821, %v4231, %v4235
      %v4237 = vshrl.u32 %v4200, 16
      %v4239 = vrot.slane %v4237, 4
      %v4240 = vor.u32 %v4239, %v4235
      %v4241 = vrot.slane %v4240, 4
      %v4243 = vshll.u32 %v4201, 16
      %v4245 = vrot.slane %v4243, 5
      %v4246 = vsel %vm821, %v4241, %v4245
      %v4248 = vshrl.u32 %v4202, 16
      %v4250 = vrot.slane %v4248, 4
      %v4251 = vshll.u32 %v4202, 16
      %v4253 = vrot.slane %v4251, 5
      %v4254 = vor.u32 %v4250, %v4253
      %v4255 = vrot.slane %v4254, 4
      %v4257 = vshll.u32 %v4203, 16
      %v4259 = vrot.slane %v4257, 5
      %v4260 = vsel %vm821, %v4255, %v4259
      %v4261 = vshrl.u32 %v4203, 16
      %v4263 = vrot.slane %v4261, 4
      %v4264 = vor.u32 %v4263, %v4259
      %v4265 = vrot.slane %v4264, 4
      %v4267 = vshll.u32 %v4204, 16
      %v4269 = vrot.slane %v4267, 5
      %v4270 = vsel %vm821, %v4265, %v4269
      %v4272 = vshrl.u32 %v4205, 16
      %v4274 = vrot.slane %v4272, 4
      %v4275 = vshll.u32 %v4205, 16
      %v4277 = vrot.slane %v4275, 5
      %v4278 = vor.u32 %v4274, %v4277
      %v4279 = vrot.slane %v4278, 4
      %v4281 = vshll.u32 %v4206, 16
      %v4283 = vrot.slane %v4281, 5
      %v4284 = vsel %vm821, %v4279, %v4283
      %v4285 = vshrl.u32 %v4206, 16
      %v4287 = vrot.slane %v4285, 4
      %v4288 = vor.u32 %v4287, %v4283
      %v4289 = vrot.slane %v4288, 4
      %v4291 = vshll.u32 %v4207, 16
      %v4293 = vrot.slane %v4291, 5
      %v4294 = vsel %vm821, %v4289, %v4293
      %v4296 = vshrl.u32 %v4208, 16
      %v4298 = vrot.slane %v4296, 4
      %v4299 = vshll.u32 %v4208, 16
      %v4301 = vrot.slane %v4299, 5
      %v4302 = vor.u32 %v4298, %v4301
      %v4303 = vrot.slane %v4302, 4
      %v4305 = vshll.u32 %v4209, 16
      %v4307 = vrot.slane %v4305, 5
      %v4308 = vsel %vm821, %v4303, %v4307
      %v4309 = vshrl.u32 %v4209, 16
      %v4311 = vrot.slane %v4309, 4
      %v4312 = vor.u32 %v4311, %v4307
      %v4313 = vrot.slane %v4312, 4
      %v4315 = vshll.u32 %v4210, 16
      %v4317 = vrot.slane %v4315, 5
      %v4318 = vsel %vm821, %v4313, %v4317
      %v4320 = vshrl.u32 %v4211, 16
      %v4322 = vrot.slane %v4320, 4
      %v4323 = vshll.u32 %v4211, 16
      %v4325 = vrot.slane %v4323, 5
      %v4326 = vor.u32 %v4322, %v4325
      %v4327 = vrot.slane %v4326, 4
      %v4329 = vshll.u32 %v4212, 16
      %v4331 = vrot.slane %v4329, 5
      %v4332 = vsel %vm821, %v4327, %v4331
      %v4333 = vshrl.u32 %v4212, 16
      %v4335 = vrot.slane %v4333, 4
      %v4336 = vor.u32 %v4335, %v4331
      %v4337 = vrot.slane %v4336, 4
      %v4339 = vshll.u32 %v4213, 16
      %v4341 = vrot.slane %v4339, 5
      %v4342 = vsel %vm821, %v4337, %v4341
      %v4344 = vshrl.u32 %v4214, 16
      %v4346 = vrot.slane %v4344, 4
      %v4347 = vshll.u32 %v4214, 16
      %v4349 = vrot.slane %v4347, 5
      %v4350 = vor.u32 %v4346, %v4349
      %v4351 = vrot.slane %v4350, 4
      %v4353 = vshll.u32 %v4215, 16
      %v4355 = vrot.slane %v4353, 5
      %v4356 = vsel %vm821, %v4351, %v4355
      %v4357 = vshrl.u32 %v4215, 16
      %v4359 = vrot.slane %v4357, 4
      %v4360 = vor.u32 %v4359, %v4355
      %v4361 = vrot.slane %v4360, 4
      %v4363 = vshll.u32 %v4216, 16
      %v4365 = vrot.slane %v4363, 5
      %v4366 = vsel %vm821, %v4361, %v4365
      %v4368 = vshrl.u32 %v4217, 16
      %v4370 = vrot.slane %v4368, 4
      %v4371 = vshll.u32 %v4217, 16
      %v4373 = vrot.slane %v4371, 5
      %v4374 = vor.u32 %v4370, %v4373
      %v4375 = vrot.slane %v4374, 4
      %v4377 = vshll.u32 %v4218, 16
      %v4379 = vrot.slane %v4377, 5
      %v4380 = vsel %vm821, %v4375, %v4379
      %v4381 = vshrl.u32 %v4218, 16
      %v4383 = vrot.slane %v4381, 4
      %v4384 = vor.u32 %v4383, %v4379
      %v4385 = vrot.slane %v4384, 4
      %v4387 = vshll.u32 %v4219, 16
      %v4389 = vrot.slane %v4387, 5
      %v4390 = vsel %vm821, %v4385, %v4389
      %v4392 = vshrl.u32 %v4220, 16
      %v4394 = vrot.slane %v4392, 4
      %v4395 = vshll.u32 %v4220, 16
      %v4397 = vrot.slane %v4395, 5
      %v4398 = vor.u32 %v4394, %v4397
      %v4399 = vrot.slane %v4398, 4
      %v4401 = vshll.u32 %v4221, 16
      %v4403 = vrot.slane %v4401, 5
      %v4404 = vsel %vm821, %v4399, %v4403
      %v4405 = vshrl.u32 %v4221, 16
      %v4407 = vrot.slane %v4405, 4
      %v4408 = vor.u32 %v4407, %v4403
      %v4409 = vrot.slane %v4408, 4
      %v4411 = vshll.u32 %v4222, 16
      %v4413 = vrot.slane %v4411, 5
      %v4414 = vsel %vm821, %v4409, %v4413
      %s4415 = scalar_lea.vmem %s3, 1792
      %v4416 = vld [vmem:[%s4415] sm:$0xff]
      %v4417 = vld [vmem:[%s4415 + $0x8] sm:$0xff]
      %v4418 = vld [vmem:[%s4415 + $0x10] sm:$0xff]
      %v4419 = vld [vmem:[%s4415 + $0x18] sm:$0xff]
      %v4420 = vld [vmem:[%s4415 + $0x20] sm:$0xff]
      %v4421 = vld [vmem:[%s4415 + $0x28] sm:$0xff]
      %v4422 = vld [vmem:[%s4415 + $0x30] sm:$0xff]
      %v4423 = vld [vmem:[%s4415 + $0x38] sm:$0xff]
      %v4424 = vld [vmem:[%s4415 + $0x40] sm:$0xff]
      %v4425 = vld [vmem:[%s4415 + $0x48] sm:$0xff]
      %v4426 = vld [vmem:[%s4415 + $0x50] sm:$0xff]
      %v4427 = vld [vmem:[%s4415 + $0x58] sm:$0xff]
      %v4428 = vld [vmem:[%s4415 + $0x60] sm:$0xff]
      %v4429 = vld [vmem:[%s4415 + $0x68] sm:$0xff]
      %v4430 = vld [vmem:[%s4415 + $0x70] sm:$0xff]
      %v4431 = vld [vmem:[%s4415 + $0x78] sm:$0xff]
      %v4432 = vld [vmem:[%s4415 + $0x80] sm:$0xff]
      %v4433 = vld [vmem:[%s4415 + $0x88] sm:$0xff]
      %v4434 = vld [vmem:[%s4415 + $0x90] sm:$0xff]
      %v4435 = vld [vmem:[%s4415 + $0x98] sm:$0xff]
      %v4436 = vld [vmem:[%s4415 + $0xa0] sm:$0xff]
      %v4437 = vld [vmem:[%s4415 + $0xa8] sm:$0xff]
      %v4438 = vld [vmem:[%s4415 + $0xb0] sm:$0xff]
      %v4439 = vld [vmem:[%s4415 + $0xb8] sm:$0xff]
      %v4440 = vld [vmem:[%s4415 + $0xc0] sm:$0xff]
      %v4441 = vld [vmem:[%s4415 + $0xc8] sm:$0xff]
      %v4442 = vld [vmem:[%s4415 + $0xd0] sm:$0xff]
      %v4443 = vld [vmem:[%s4415 + $0xd8] sm:$0xff]
      %v4444 = vld [vmem:[%s4415 + $0xe0] sm:$0xff]
      %v4445 = vld [vmem:[%s4415 + $0xe8] sm:$0xff]
      %v4446 = vld [vmem:[%s4415 + $0xf0] sm:$0xff]
      %v4447 = vld [vmem:[%s4415 + $0xf8] sm:$0xff]
      %v4448 = vunpack.c.l.b16 %v4236
      %v4449 = vunpack.c.h.b16 %v4236
      %v4450 = vunpack.c.l.b16 %v4246
      %v4451 = vunpack.c.h.b16 %v4246
      %v4452 = vunpack.c.l.b16 %v4260
      %v4453 = vunpack.c.h.b16 %v4260
      %v4454 = vunpack.c.l.b16 %v4270
      %v4455 = vunpack.c.h.b16 %v4270
      %v4456 = vunpack.c.l.b16 %v4284
      %v4457 = vunpack.c.h.b16 %v4284
      %v4458 = vunpack.c.l.b16 %v4294
      %v4459 = vunpack.c.h.b16 %v4294
      %v4460 = vunpack.c.l.b16 %v4308
      %v4461 = vunpack.c.h.b16 %v4308
      %v4462 = vunpack.c.l.b16 %v4318
      %v4463 = vunpack.c.h.b16 %v4318
      %v4464 = vunpack.c.l.b16 %v4332
      %v4465 = vunpack.c.h.b16 %v4332
      %v4466 = vunpack.c.l.b16 %v4342
      %v4467 = vunpack.c.h.b16 %v4342
      %v4468 = vunpack.c.l.b16 %v4356
      %v4469 = vunpack.c.h.b16 %v4356
      %v4470 = vunpack.c.l.b16 %v4366
      %v4471 = vunpack.c.h.b16 %v4366
      %v4472 = vunpack.c.l.b16 %v4380
      %v4473 = vunpack.c.h.b16 %v4380
      %v4474 = vunpack.c.l.b16 %v4390
      %v4475 = vunpack.c.h.b16 %v4390
      %v4476 = vunpack.c.l.b16 %v4404
      %v4477 = vunpack.c.h.b16 %v4404
      %v4478 = vunpack.c.l.b16 %v4414
      %v4479 = vunpack.c.h.b16 %v4414
      %v4480 = vpack.c.b16 %v4450, %v4448
      %v4481 = vpack.c.b16 %v4451, %v4449
      %v4482 = vpack.c.b16 %v4454, %v4452
      %v4483 = vpack.c.b16 %v4455, %v4453
      %v4484 = vpack.c.b16 %v4458, %v4456
      %v4485 = vpack.c.b16 %v4459, %v4457
      %v4486 = vpack.c.b16 %v4462, %v4460
      %v4487 = vpack.c.b16 %v4463, %v4461
      %v4488 = vpack.c.b16 %v4466, %v4464
      %v4489 = vpack.c.b16 %v4467, %v4465
      %v4490 = vpack.c.b16 %v4470, %v4468
      %v4491 = vpack.c.b16 %v4471, %v4469
      %v4492 = vpack.c.b16 %v4474, %v4472
      %v4493 = vpack.c.b16 %v4475, %v4473
      %v4494 = vpack.c.b16 %v4478, %v4476
      %v4495 = vpack.c.b16 %v4479, %v4477
      %v4544 = vunpack.c.l.b16 %v4416
      %v4545 = vunpack.c.h.b16 %v4416
      %v4546 = vunpack.c.l.b16 %v4417
      %v4547 = vunpack.c.h.b16 %v4417
      %v4548 = vunpack.c.l.b16 %v4418
      %v4549 = vunpack.c.h.b16 %v4418
      %v4550 = vunpack.c.l.b16 %v4419
      %v4551 = vunpack.c.h.b16 %v4419
      %v4552 = vunpack.c.l.b16 %v4420
      %v4553 = vunpack.c.h.b16 %v4420
      %v4554 = vunpack.c.l.b16 %v4421
      %v4555 = vunpack.c.h.b16 %v4421
      %v4556 = vunpack.c.l.b16 %v4422
      %v4557 = vunpack.c.h.b16 %v4422
      %v4558 = vunpack.c.l.b16 %v4423
      %v4559 = vunpack.c.h.b16 %v4423
      %v4560 = vunpack.c.l.b16 %v4424
      %v4561 = vunpack.c.h.b16 %v4424
      %v4562 = vunpack.c.l.b16 %v4425
      %v4563 = vunpack.c.h.b16 %v4425
      %v4564 = vunpack.c.l.b16 %v4426
      %v4565 = vunpack.c.h.b16 %v4426
      %v4566 = vunpack.c.l.b16 %v4427
      %v4567 = vunpack.c.h.b16 %v4427
      %v4568 = vunpack.c.l.b16 %v4428
      %v4569 = vunpack.c.h.b16 %v4428
      %v4570 = vunpack.c.l.b16 %v4429
      %v4571 = vunpack.c.h.b16 %v4429
      %v4572 = vunpack.c.l.b16 %v4430
      %v4573 = vunpack.c.h.b16 %v4430
      %v4574 = vunpack.c.l.b16 %v4431
      %v4575 = vunpack.c.h.b16 %v4431
      %v4576 = vunpack.c.l.b16 %v4432
      %v4577 = vunpack.c.h.b16 %v4432
      %v4578 = vunpack.c.l.b16 %v4433
      %v4579 = vunpack.c.h.b16 %v4433
      %v4580 = vunpack.c.l.b16 %v4434
      %v4581 = vunpack.c.h.b16 %v4434
      %v4582 = vunpack.c.l.b16 %v4435
      %v4583 = vunpack.c.h.b16 %v4435
      %v4584 = vunpack.c.l.b16 %v4436
      %v4585 = vunpack.c.h.b16 %v4436
      %v4586 = vunpack.c.l.b16 %v4437
      %v4587 = vunpack.c.h.b16 %v4437
      %v4588 = vunpack.c.l.b16 %v4438
      %v4589 = vunpack.c.h.b16 %v4438
      %v4590 = vunpack.c.l.b16 %v4439
      %v4591 = vunpack.c.h.b16 %v4439
      %v4592 = vunpack.c.l.b16 %v4440
      %v4593 = vunpack.c.h.b16 %v4440
      %v4594 = vunpack.c.l.b16 %v4441
      %v4595 = vunpack.c.h.b16 %v4441
      %v4596 = vunpack.c.l.b16 %v4442
      %v4597 = vunpack.c.h.b16 %v4442
      %v4598 = vunpack.c.l.b16 %v4443
      %v4599 = vunpack.c.h.b16 %v4443
      %v4600 = vunpack.c.l.b16 %v4444
      %v4601 = vunpack.c.h.b16 %v4444
      %v4602 = vunpack.c.l.b16 %v4445
      %v4603 = vunpack.c.h.b16 %v4445
      %v4604 = vunpack.c.l.b16 %v4446
      %v4605 = vunpack.c.h.b16 %v4446
      %v4606 = vunpack.c.l.b16 %v4447
      %v4607 = vunpack.c.h.b16 %v4447
      %v4608 = vpack.c.b16 %v4546, %v4544
      %v4609 = vpack.c.b16 %v4547, %v4545
      %v4610 = vpack.c.b16 %v4550, %v4548
      %v4611 = vpack.c.b16 %v4551, %v4549
      %v4612 = vpack.c.b16 %v4554, %v4552
      %v4613 = vpack.c.b16 %v4555, %v4553
      %v4614 = vpack.c.b16 %v4558, %v4556
      %v4615 = vpack.c.b16 %v4559, %v4557
      %v4616 = vpack.c.b16 %v4562, %v4560
      %v4617 = vpack.c.b16 %v4563, %v4561
      %v4618 = vpack.c.b16 %v4566, %v4564
      %v4619 = vpack.c.b16 %v4567, %v4565
      %v4620 = vpack.c.b16 %v4570, %v4568
      %v4621 = vpack.c.b16 %v4571, %v4569
      %v4622 = vpack.c.b16 %v4574, %v4572
      %v4623 = vpack.c.b16 %v4575, %v4573
      %v4624 = vpack.c.b16 %v4578, %v4576
      %v4625 = vpack.c.b16 %v4579, %v4577
      %v4626 = vpack.c.b16 %v4582, %v4580
      %v4627 = vpack.c.b16 %v4583, %v4581
      %v4628 = vpack.c.b16 %v4586, %v4584
      %v4629 = vpack.c.b16 %v4587, %v4585
      %v4630 = vpack.c.b16 %v4590, %v4588
      %v4631 = vpack.c.b16 %v4591, %v4589
      %v4632 = vpack.c.b16 %v4594, %v4592
      %v4633 = vpack.c.b16 %v4595, %v4593
      %v4634 = vpack.c.b16 %v4598, %v4596
      %v4635 = vpack.c.b16 %v4599, %v4597
      %v4636 = vpack.c.b16 %v4602, %v4600
      %v4637 = vpack.c.b16 %v4603, %v4601
      %v4638 = vpack.c.b16 %v4606, %v4604
      %v4639 = vpack.c.b16 %v4607, %v4605
      %4672 = vmatprep.subr.bf16.mxu0 %v4609
      %4673 = vmatpush1.bf16.msra.mxu0 %v4608
      %4674 = vmatprep.subr.bf16.mxu0 %v4611
      %4675 = vmatpush1.bf16.msra.mxu0 %v4610
      %4676 = vmatprep.subr.bf16.mxu0 %v4613
      %4677 = vmatpush1.bf16.msra.mxu0 %v4612
      %4678 = vmatprep.subr.bf16.mxu0 %v4615
      %4679 = vmatpush1.bf16.msra.mxu0 %v4614
      %4680 = vmatprep.subr.bf16.mxu0 %v4617
      %4681 = vmatpush1.bf16.msra.mxu0 %v4616
      %4682 = vmatprep.subr.bf16.mxu0 %v4619
      %4683 = vmatpush1.bf16.msra.mxu0 %v4618
      %4684 = vmatprep.subr.bf16.mxu0 %v4621
      %4685 = vmatpush1.bf16.msra.mxu0 %v4620
      %4686 = vmatprep.subr.bf16.mxu0 %v4623
      %4687 = vmatpush1.bf16.msra.mxu0 %v4622
      %4688 = vmatprep.subr.bf16.mxu0 %v4625
      %4689 = vmatpush1.bf16.msra.mxu0 %v4624
      %4690 = vmatprep.subr.bf16.mxu0 %v4627
      %4691 = vmatpush1.bf16.msra.mxu0 %v4626
      %4692 = vmatprep.subr.bf16.mxu0 %v4629
      %4693 = vmatpush1.bf16.msra.mxu0 %v4628
      %4694 = vmatprep.subr.bf16.mxu0 %v4631
      %4695 = vmatpush1.bf16.msra.mxu0 %v4630
      %4696 = vmatprep.subr.bf16.mxu0 %v4633
      %4697 = vmatpush1.bf16.msra.mxu0 %v4632
      %4698 = vmatprep.subr.bf16.mxu0 %v4635
      %4699 = vmatpush1.bf16.msra.mxu0 %v4634
      %4700 = vmatprep.subr.bf16.mxu0 %v4637
      %4701 = vmatpush1.bf16.msra.mxu0 %v4636
      %4702 = vmatprep.subr.bf16.mxu0 %v4639
      %4703 = vmatpush1.bf16.msra.mxu0 %v4638
      %4704 = vmatprep.mubr.bf16.mxu0 %v4481
      %4705 = vmatmul.mubr.bf16.gmra.mrb[0].mxu0 %v4480
      %v4706 = vpop.f32.mrb[0].mxu0
      %v4707 = vadd.f32 0.0, %v4706
      %v4708 = vpop.f32.mrb[0].mxu0
      %v4709 = vadd.f32 0.0, %v4708
      %v4710 = vpop.f32.mrb[0].mxu0
      %v4711 = vadd.f32 0.0, %v4710
      %v4712 = vpop.f32.mrb[0].mxu0
      %v4713 = vadd.f32 0.0, %v4712
      %4714 = vmatprep.mubr.bf16.mxu0 %v4483
      %4715 = vmatmul.mubr.bf16.gmra.mrb[0].mxu0 %v4482
      %v4716 = vpop.f32.mrb[0].mxu0
      %v4717 = vadd.f32 0.0, %v4716
      %v4718 = vpop.f32.mrb[0].mxu0
      %v4719 = vadd.f32 0.0, %v4718
      %v4720 = vpop.f32.mrb[0].mxu0
      %v4721 = vadd.f32 0.0, %v4720
      %v4722 = vpop.f32.mrb[0].mxu0
      %v4723 = vadd.f32 0.0, %v4722
      %4724 = vmatprep.mubr.bf16.mxu0 %v4485
      %4725 = vmatmul.mubr.bf16.gmra.mrb[0].mxu0 %v4484
      %v4726 = vpop.f32.mrb[0].mxu0
      %v4727 = vadd.f32 0.0, %v4726
      %v4728 = vpop.f32.mrb[0].mxu0
      %v4729 = vadd.f32 0.0, %v4728
      %v4730 = vpop.f32.mrb[0].mxu0
      %v4731 = vadd.f32 0.0, %v4730
      %v4732 = vpop.f32.mrb[0].mxu0
      %v4733 = vadd.f32 0.0, %v4732
      %4734 = vmatprep.mubr.bf16.mxu0 %v4487
      %4735 = vmatmul.mubr.bf16.gmra.mrb[0].mxu0 %v4486
      %v4736 = vpop.f32.mrb[0].mxu0
      %v4737 = vadd.f32 0.0, %v4736
      %v4738 = vpop.f32.mrb[0].mxu0
      %v4739 = vadd.f32 0.0, %v4738
      %v4740 = vpop.f32.mrb[0].mxu0
      %v4741 = vadd.f32 0.0, %v4740
      %v4742 = vpop.f32.mrb[0].mxu0
      %v4743 = vadd.f32 0.0, %v4742
      %4744 = vmatprep.mubr.bf16.mxu0 %v4489
      %4745 = vmatmul.mubr.bf16.gmra.mrb[0].mxu0 %v4488
      %v4746 = vpop.f32.mrb[0].mxu0
      %v4747 = vadd.f32 0.0, %v4746
      %v4748 = vpop.f32.mrb[0].mxu0
      %v4749 = vadd.f32 0.0, %v4748
      %v4750 = vpop.f32.mrb[0].mxu0
      %v4751 = vadd.f32 0.0, %v4750
      %v4752 = vpop.f32.mrb[0].mxu0
      %v4753 = vadd.f32 0.0, %v4752
      %4754 = vmatprep.mubr.bf16.mxu0 %v4491
      %4755 = vmatmul.mubr.bf16.gmra.mrb[0].mxu0 %v4490
      %v4756 = vpop.f32.mrb[0].mxu0
      %v4757 = vadd.f32 0.0, %v4756
      %v4758 = vpop.f32.mrb[0].mxu0
      %v4759 = vadd.f32 0.0, %v4758
      %v4760 = vpop.f32.mrb[0].mxu0
      %v4761 = vadd.f32 0.0, %v4760
      %v4762 = vpop.f32.mrb[0].mxu0
      %v4763 = vadd.f32 0.0, %v4762
      %4764 = vmatprep.mubr.bf16.mxu0 %v4493
      %4765 = vmatmul.mubr.bf16.gmra.mrb[0].mxu0 %v4492
      %v4766 = vpop.f32.mrb[0].mxu0
      %v4767 = vadd.f32 0.0, %v4766
      %v4768 = vpop.f32.mrb[0].mxu0
      %v4769 = vadd.f32 0.0, %v4768
      %v4770 = vpop.f32.mrb[0].mxu0
      %v4771 = vadd.f32 0.0, %v4770
      %v4772 = vpop.f32.mrb[0].mxu0
      %v4773 = vadd.f32 0.0, %v4772
      %4774 = vmatprep.mubr.bf16.mxu0 %v4495
      %4775 = vmatmul.mubr.bf16.gmra.mrb[0].mxu0 %v4494
      %v4776 = vpop.f32.mrb[0].mxu0
      %v4777 = vadd.f32 0.0, %v4776
      %v4778 = vpop.f32.mrb[0].mxu0
      %v4779 = vadd.f32 0.0, %v4778
      %v4780 = vpop.f32.mrb[0].mxu0
      %v4781 = vadd.f32 0.0, %v4780
      %v4782 = vpop.f32.mrb[0].mxu0
      %v4783 = vadd.f32 0.0, %v4782
      %4784 = vdwg.mxu0
      %v4785 = vadd.f32 %v4167, %v4707
      %v4786 = vadd.f32 %v4168, %v4709
      %v4787 = vadd.f32 %v4169, %v4711
      %v4788 = vadd.f32 %v4170, %v4713
      %v4789 = vadd.f32 %v4171, %v4717
      %v4790 = vadd.f32 %v4172, %v4719
      %v4791 = vadd.f32 %v4173, %v4721
      %v4792 = vadd.f32 %v4174, %v4723
      %v4793 = vadd.f32 %v4175, %v4727
      %v4794 = vadd.f32 %v4176, %v4729
      %v4795 = vadd.f32 %v4177, %v4731
      %v4796 = vadd.f32 %v4178, %v4733
      %v4797 = vadd.f32 %v4179, %v4737
      %v4798 = vadd.f32 %v4180, %v4739
      %v4799 = vadd.f32 %v4181, %v4741
      %v4800 = vadd.f32 %v4182, %v4743
      %v4801 = vadd.f32 %v4183, %v4747
      %v4802 = vadd.f32 %v4184, %v4749
      %v4803 = vadd.f32 %v4185, %v4751
      %v4804 = vadd.f32 %v4186, %v4753
      %v4805 = vadd.f32 %v4187, %v4757
      %v4806 = vadd.f32 %v4188, %v4759
      %v4807 = vadd.f32 %v4189, %v4761
      %v4808 = vadd.f32 %v4190, %v4763
      %v4809 = vadd.f32 %v4191, %v4767
      %v4810 = vadd.f32 %v4192, %v4769
      %v4811 = vadd.f32 %v4193, %v4771
      %v4812 = vadd.f32 %v4194, %v4773
      %v4813 = vadd.f32 %v4195, %v4777
      %v4814 = vadd.f32 %v4196, %v4779
      %v4815 = vadd.f32 %v4197, %v4781
      %v4816 = vadd.f32 %v4198, %v4783
      %v4817 = vld [vmem:[%s3764] sm:$0xee]
      %v4818 = vld [vmem:[%s3764 + $0x18] sm:$0xee]
      %v4819 = vld [vmem:[%s3764 + $0x30] sm:$0xee]
      %v4820 = vld [vmem:[%s3764 + $0x48] sm:$0xee]
      %v4821 = vld [vmem:[%s3764 + $0x60] sm:$0xee]
      %v4822 = vld [vmem:[%s3764 + $0x78] sm:$0xee]
      %v4823 = vld [vmem:[%s3764 + $0x90] sm:$0xee]
      %v4824 = vld [vmem:[%s3764 + $0xa8] sm:$0xee]
      %v4849 = vrot.slane %v4817, 5
      %v4850 = vrot.slane %v4849, 4
      %v4851 = vrot.slane %v4200, 5
      %v4852 = vsel %vm1763, %v4850, %v4851
      %v4853 = vrot.slane %v4851, 4
      %v4854 = vrot.slane %v4201, 5
      %v4855 = vsel %vm1763, %v4853, %v4854
      %v4856 = vrot.slane %v4818, 5
      %v4857 = vrot.slane %v4856, 4
      %v4858 = vrot.slane %v4203, 5
      %v4859 = vsel %vm1763, %v4857, %v4858
      %v4860 = vrot.slane %v4858, 4
      %v4861 = vrot.slane %v4204, 5
      %v4862 = vsel %vm1763, %v4860, %v4861
      %v4863 = vrot.slane %v4819, 5
      %v4864 = vrot.slane %v4863, 4
      %v4865 = vrot.slane %v4206, 5
      %v4866 = vsel %vm1763, %v4864, %v4865
      %v4867 = vrot.slane %v4865, 4
      %v4868 = vrot.slane %v4207, 5
      %v4869 = vsel %vm1763, %v4867, %v4868
      %v4870 = vrot.slane %v4820, 5
      %v4871 = vrot.slane %v4870, 4
      %v4872 = vrot.slane %v4209, 5
      %v4873 = vsel %vm1763, %v4871, %v4872
      %v4874 = vrot.slane %v4872, 4
      %v4875 = vrot.slane %v4210, 5
      %v4876 = vsel %vm1763, %v4874, %v4875
      %v4877 = vrot.slane %v4821, 5
      %v4878 = vrot.slane %v4877, 4
      %v4879 = vrot.slane %v4212, 5
      %v4880 = vsel %vm1763, %v4878, %v4879
      %v4881 = vrot.slane %v4879, 4
      %v4882 = vrot.slane %v4213, 5
      %v4883 = vsel %vm1763, %v4881, %v4882
      %v4884 = vrot.slane %v4822, 5
      %v4885 = vrot.slane %v4884, 4
      %v4886 = vrot.slane %v4215, 5
      %v4887 = vsel %vm1763, %v4885, %v4886
      %v4888 = vrot.slane %v4886, 4
      %v4889 = vrot.slane %v4216, 5
      %v4890 = vsel %vm1763, %v4888, %v4889
      %v4891 = vrot.slane %v4823, 5
      %v4892 = vrot.slane %v4891, 4
      %v4893 = vrot.slane %v4218, 5
      %v4894 = vsel %vm1763, %v4892, %v4893
      %v4895 = vrot.slane %v4893, 4
      %v4896 = vrot.slane %v4219, 5
      %v4897 = vsel %vm1763, %v4895, %v4896
      %v4898 = vrot.slane %v4824, 5
      %v4899 = vrot.slane %v4898, 4
      %v4900 = vrot.slane %v4221, 5
      %v4901 = vsel %vm1763, %v4899, %v4900
      %v4902 = vrot.slane %v4900, 4
      %v4903 = vrot.slane %v4222, 5
      %v4904 = vsel %vm1763, %v4902, %v4903
      %s4905 = scalar_lea.vmem %s3, 2048
      %v4906 = vld [vmem:[%s4905] sm:$0xff]
      %v4907 = vld [vmem:[%s4905 + $0x8] sm:$0xff]
      %v4908 = vld [vmem:[%s4905 + $0x10] sm:$0xff]
      %v4909 = vld [vmem:[%s4905 + $0x18] sm:$0xff]
      %v4910 = vld [vmem:[%s4905 + $0x20] sm:$0xff]
      %v4911 = vld [vmem:[%s4905 + $0x28] sm:$0xff]
      %v4912 = vld [vmem:[%s4905 + $0x30] sm:$0xff]
      %v4913 = vld [vmem:[%s4905 + $0x38] sm:$0xff]
      %v4914 = vld [vmem:[%s4905 + $0x40] sm:$0xff]
      %v4915 = vld [vmem:[%s4905 + $0x48] sm:$0xff]
      %v4916 = vld [vmem:[%s4905 + $0x50] sm:$0xff]
      %v4917 = vld [vmem:[%s4905 + $0x58] sm:$0xff]
      %v4918 = vld [vmem:[%s4905 + $0x60] sm:$0xff]
      %v4919 = vld [vmem:[%s4905 + $0x68] sm:$0xff]
      %v4920 = vld [vmem:[%s4905 + $0x70] sm:$0xff]
      %v4921 = vld [vmem:[%s4905 + $0x78] sm:$0xff]
      %v4922 = vld [vmem:[%s4905 + $0x80] sm:$0xff]
      %v4923 = vld [vmem:[%s4905 + $0x88] sm:$0xff]
      %v4924 = vld [vmem:[%s4905 + $0x90] sm:$0xff]
      %v4925 = vld [vmem:[%s4905 + $0x98] sm:$0xff]
      %v4926 = vld [vmem:[%s4905 + $0xa0] sm:$0xff]
      %v4927 = vld [vmem:[%s4905 + $0xa8] sm:$0xff]
      %v4928 = vld [vmem:[%s4905 + $0xb0] sm:$0xff]
      %v4929 = vld [vmem:[%s4905 + $0xb8] sm:$0xff]
      %v4930 = vld [vmem:[%s4905 + $0xc0] sm:$0xff]
      %v4931 = vld [vmem:[%s4905 + $0xc8] sm:$0xff]
      %v4932 = vld [vmem:[%s4905 + $0xd0] sm:$0xff]
      %v4933 = vld [vmem:[%s4905 + $0xd8] sm:$0xff]
      %v4934 = vld [vmem:[%s4905 + $0xe0] sm:$0xff]
      %v4935 = vld [vmem:[%s4905 + $0xe8] sm:$0xff]
      %v4936 = vld [vmem:[%s4905 + $0xf0] sm:$0xff]
      %v4937 = vld [vmem:[%s4905 + $0xf8] sm:$0xff]
      %v4938 = vunpack.c.l.b16 %v4852
      %v4939 = vunpack.c.h.b16 %v4852
      %v4940 = vunpack.c.l.b16 %v4855
      %v4941 = vunpack.c.h.b16 %v4855
      %v4942 = vunpack.c.l.b16 %v4859
      %v4943 = vunpack.c.h.b16 %v4859
      %v4944 = vunpack.c.l.b16 %v4862
      %v4945 = vunpack.c.h.b16 %v4862
      %v4946 = vunpack.c.l.b16 %v4866
      %v4947 = vunpack.c.h.b16 %v4866
      %v4948 = vunpack.c.l.b16 %v4869
      %v4949 = vunpack.c.h.b16 %v4869
      %v4950 = vunpack.c.l.b16 %v4873
      %v4951 = vunpack.c.h.b16 %v4873
      %v4952 = vunpack.c.l.b16 %v4876
      %v4953 = vunpack.c.h.b16 %v4876
      %v4954 = vunpack.c.l.b16 %v4880
      %v4955 = vunpack.c.h.b16 %v4880
      %v4956 = vunpack.c.l.b16 %v4883
      %v4957 = vunpack.c.h.b16 %v4883
      %v4958 = vunpack.c.l.b16 %v4887
      %v4959 = vunpack.c.h.b16 %v4887
      %v4960 = vunpack.c.l.b16 %v4890
      %v4961 = vunpack.c.h.b16 %v4890
      %v4962 = vunpack.c.l.b16 %v4894
      %v4963 = vunpack.c.h.b16 %v4894
      %v4964 = vunpack.c.l.b16 %v4897
      %v4965 = vunpack.c.h.b16 %v4897
      %v4966 = vunpack.c.l.b16 %v4901
      %v4967 = vunpack.c.h.b16 %v4901
      %v4968 = vunpack.c.l.b16 %v4904
      %v4969 = vunpack.c.h.b16 %v4904
      %v4970 = vpack.c.b16 %v4940, %v4938
      %v4971 = vpack.c.b16 %v4941, %v4939
      %v4972 = vpack.c.b16 %v4944, %v4942
      %v4973 = vpack.c.b16 %v4945, %v4943
      %v4974 = vpack.c.b16 %v4948, %v4946
      %v4975 = vpack.c.b16 %v4949, %v4947
      %v4976 = vpack.c.b16 %v4952, %v4950
      %v4977 = vpack.c.b16 %v4953, %v4951
      %v4978 = vpack.c.b16 %v4956, %v4954
      %v4979 = vpack.c.b16 %v4957, %v4955
      %v4980 = vpack.c.b16 %v4960, %v4958
      %v4981 = vpack.c.b16 %v4961, %v4959
      %v4982 = vpack.c.b16 %v4964, %v4962
      %v4983 = vpack.c.b16 %v4965, %v4963
      %v4984 = vpack.c.b16 %v4968, %v4966
      %v4985 = vpack.c.b16 %v4969, %v4967
      %v5034 = vunpack.c.l.b16 %v4906
      %v5035 = vunpack.c.h.b16 %v4906
      %v5036 = vunpack.c.l.b16 %v4907
      %v5037 = vunpack.c.h.b16 %v4907
      %v5038 = vunpack.c.l.b16 %v4908
      %v5039 = vunpack.c.h.b16 %v4908
      %v5040 = vunpack.c.l.b16 %v4909
      %v5041 = vunpack.c.h.b16 %v4909
      %v5042 = vunpack.c.l.b16 %v4910
      %v5043 = vunpack.c.h.b16 %v4910
      %v5044 = vunpack.c.l.b16 %v4911
      %v5045 = vunpack.c.h.b16 %v4911
      %v5046 = vunpack.c.l.b16 %v4912
      %v5047 = vunpack.c.h.b16 %v4912
      %v5048 = vunpack.c.l.b16 %v4913
      %v5049 = vunpack.c.h.b16 %v4913
      %v5050 = vunpack.c.l.b16 %v4914
      %v5051 = vunpack.c.h.b16 %v4914
      %v5052 = vunpack.c.l.b16 %v4915
      %v5053 = vunpack.c.h.b16 %v4915
      %v5054 = vunpack.c.l.b16 %v4916
      %v5055 = vunpack.c.h.b16 %v4916
      %v5056 = vunpack.c.l.b16 %v4917
      %v5057 = vunpack.c.h.b16 %v4917
      %v5058 = vunpack.c.l.b16 %v4918
      %v5059 = vunpack.c.h.b16 %v4918
      %v5060 = vunpack.c.l.b16 %v4919
      %v5061 = vunpack.c.h.b16 %v4919
      %v5062 = vunpack.c.l.b16 %v4920
      %v5063 = vunpack.c.h.b16 %v4920
      %v5064 = vunpack.c.l.b16 %v4921
      %v5065 = vunpack.c.h.b16 %v4921
      %v5066 = vunpack.c.l.b16 %v4922
      %v5067 = vunpack.c.h.b16 %v4922
      %v5068 = vunpack.c.l.b16 %v4923
      %v5069 = vunpack.c.h.b16 %v4923
      %v5070 = vunpack.c.l.b16 %v4924
      %v5071 = vunpack.c.h.b16 %v4924
      %v5072 = vunpack.c.l.b16 %v4925
      %v5073 = vunpack.c.h.b16 %v4925
      %v5074 = vunpack.c.l.b16 %v4926
      %v5075 = vunpack.c.h.b16 %v4926
      %v5076 = vunpack.c.l.b16 %v4927
      %v5077 = vunpack.c.h.b16 %v4927
      %v5078 = vunpack.c.l.b16 %v4928
      %v5079 = vunpack.c.h.b16 %v4928
      %v5080 = vunpack.c.l.b16 %v4929
      %v5081 = vunpack.c.h.b16 %v4929
      %v5082 = vunpack.c.l.b16 %v4930
      %v5083 = vunpack.c.h.b16 %v4930
      %v5084 = vunpack.c.l.b16 %v4931
      %v5085 = vunpack.c.h.b16 %v4931
      %v5086 = vunpack.c.l.b16 %v4932
      %v5087 = vunpack.c.h.b16 %v4932
      %v5088 = vunpack.c.l.b16 %v4933
      %v5089 = vunpack.c.h.b16 %v4933
      %v5090 = vunpack.c.l.b16 %v4934
      %v5091 = vunpack.c.h.b16 %v4934
      %v5092 = vunpack.c.l.b16 %v4935
      %v5093 = vunpack.c.h.b16 %v4935
      %v5094 = vunpack.c.l.b16 %v4936
      %v5095 = vunpack.c.h.b16 %v4936
      %v5096 = vunpack.c.l.b16 %v4937
      %v5097 = vunpack.c.h.b16 %v4937
      %v5098 = vpack.c.b16 %v5036, %v5034
      %v5099 = vpack.c.b16 %v5037, %v5035
      %v5100 = vpack.c.b16 %v5040, %v5038
      %v5101 = vpack.c.b16 %v5041, %v5039
      %v5102 = vpack.c.b16 %v5044, %v5042
      %v5103 = vpack.c.b16 %v5045, %v5043
      %v5104 = vpack.c.b16 %v5048, %v5046
      %v5105 = vpack.c.b16 %v5049, %v5047
      %v5106 = vpack.c.b16 %v5052, %v5050
      %v5107 = vpack.c.b16 %v5053, %v5051
      %v5108 = vpack.c.b16 %v5056, %v5054
      %v5109 = vpack.c.b16 %v5057, %v5055
      %v5110 = vpack.c.b16 %v5060, %v5058
      %v5111 = vpack.c.b16 %v5061, %v5059
      %v5112 = vpack.c.b16 %v5064, %v5062
      %v5113 = vpack.c.b16 %v5065, %v5063
      %v5114 = vpack.c.b16 %v5068, %v5066
      %v5115 = vpack.c.b16 %v5069, %v5067
      %v5116 = vpack.c.b16 %v5072, %v5070
      %v5117 = vpack.c.b16 %v5073, %v5071
      %v5118 = vpack.c.b16 %v5076, %v5074
      %v5119 = vpack.c.b16 %v5077, %v5075
      %v5120 = vpack.c.b16 %v5080, %v5078
      %v5121 = vpack.c.b16 %v5081, %v5079
      %v5122 = vpack.c.b16 %v5084, %v5082
      %v5123 = vpack.c.b16 %v5085, %v5083
      %v5124 = vpack.c.b16 %v5088, %v5086
      %v5125 = vpack.c.b16 %v5089, %v5087
      %v5126 = vpack.c.b16 %v5092, %v5090
      %v5127 = vpack.c.b16 %v5093, %v5091
      %v5128 = vpack.c.b16 %v5096, %v5094
      %v5129 = vpack.c.b16 %v5097, %v5095
      %5162 = vmatprep.subr.bf16.mxu0 %v5099
      %5163 = vmatpush1.bf16.msra.mxu0 %v5098
      %5164 = vmatprep.subr.bf16.mxu0 %v5101
      %5165 = vmatpush1.bf16.msra.mxu0 %v5100
      %5166 = vmatprep.subr.bf16.mxu0 %v5103
      %5167 = vmatpush1.bf16.msra.mxu0 %v5102
      %5168 = vmatprep.subr.bf16.mxu0 %v5105
      %5169 = vmatpush1.bf16.msra.mxu0 %v5104
      %5170 = vmatprep.subr.bf16.mxu0 %v5107
      %5171 = vmatpush1.bf16.msra.mxu0 %v5106
      %5172 = vmatprep.subr.bf16.mxu0 %v5109
      %5173 = vmatpush1.bf16.msra.mxu0 %v5108
      %5174 = vmatprep.subr.bf16.mxu0 %v5111
      %5175 = vmatpush1.bf16.msra.mxu0 %v5110
      %5176 = vmatprep.subr.bf16.mxu0 %v5113
      %5177 = vmatpush1.bf16.msra.mxu0 %v5112
      %5178 = vmatprep.subr.bf16.mxu0 %v5115
      %5179 = vmatpush1.bf16.msra.mxu0 %v5114
      %5180 = vmatprep.subr.bf16.mxu0 %v5117
      %5181 = vmatpush1.bf16.msra.mxu0 %v5116
      %5182 = vmatprep.subr.bf16.mxu0 %v5119
      %5183 = vmatpush1.bf16.msra.mxu0 %v5118
      %5184 = vmatprep.subr.bf16.mxu0 %v5121
      %5185 = vmatpush1.bf16.msra.mxu0 %v5120
      %5186 = vmatprep.subr.bf16.mxu0 %v5123
      %5187 = vmatpush1.bf16.msra.mxu0 %v5122
      %5188 = vmatprep.subr.bf16.mxu0 %v5125
      %5189 = vmatpush1.bf16.msra.mxu0 %v5124
      %5190 = vmatprep.subr.bf16.mxu0 %v5127
      %5191 = vmatpush1.bf16.msra.mxu0 %v5126
      %5192 = vmatprep.subr.bf16.mxu0 %v5129
      %5193 = vmatpush1.bf16.msra.mxu0 %v5128
      %5194 = vmatprep.mubr.bf16.mxu0 %v4971
      %5195 = vmatmul.mubr.bf16.gmra.mrb[0].mxu0 %v4970
      %v5196 = vpop.f32.mrb[0].mxu0
      %v5197 = vadd.f32 0.0, %v5196
      %v5198 = vpop.f32.mrb[0].mxu0
      %v5199 = vadd.f32 0.0, %v5198
      %v5200 = vpop.f32.mrb[0].mxu0
      %v5201 = vadd.f32 0.0, %v5200
      %v5202 = vpop.f32.mrb[0].mxu0
      %v5203 = vadd.f32 0.0, %v5202
      %5204 = vmatprep.mubr.bf16.mxu0 %v4973
      %5205 = vmatmul.mubr.bf16.gmra.mrb[0].mxu0 %v4972
      %v5206 = vpop.f32.mrb[0].mxu0
      %v5207 = vadd.f32 0.0, %v5206
      %v5208 = vpop.f32.mrb[0].mxu0
      %v5209 = vadd.f32 0.0, %v5208
      %v5210 = vpop.f32.mrb[0].mxu0
      %v5211 = vadd.f32 0.0, %v5210
      %v5212 = vpop.f32.mrb[0].mxu0
      %v5213 = vadd.f32 0.0, %v5212
      %5214 = vmatprep.mubr.bf16.mxu0 %v4975
      %5215 = vmatmul.mubr.bf16.gmra.mrb[0].mxu0 %v4974
      %v5216 = vpop.f32.mrb[0].mxu0
      %v5217 = vadd.f32 0.0, %v5216
      %v5218 = vpop.f32.mrb[0].mxu0
      %v5219 = vadd.f32 0.0, %v5218
      %v5220 = vpop.f32.mrb[0].mxu0
      %v5221 = vadd.f32 0.0, %v5220
      %v5222 = vpop.f32.mrb[0].mxu0
      %v5223 = vadd.f32 0.0, %v5222
      %5224 = vmatprep.mubr.bf16.mxu0 %v4977
      %5225 = vmatmul.mubr.bf16.gmra.mrb[0].mxu0 %v4976
      %v5226 = vpop.f32.mrb[0].mxu0
      %v5227 = vadd.f32 0.0, %v5226
      %v5228 = vpop.f32.mrb[0].mxu0
      %v5229 = vadd.f32 0.0, %v5228
      %v5230 = vpop.f32.mrb[0].mxu0
      %v5231 = vadd.f32 0.0, %v5230
      %v5232 = vpop.f32.mrb[0].mxu0
      %v5233 = vadd.f32 0.0, %v5232
      %5234 = vmatprep.mubr.bf16.mxu0 %v4979
      %5235 = vmatmul.mubr.bf16.gmra.mrb[0].mxu0 %v4978
      %v5236 = vpop.f32.mrb[0].mxu0
      %v5237 = vadd.f32 0.0, %v5236
      %v5238 = vpop.f32.mrb[0].mxu0
      %v5239 = vadd.f32 0.0, %v5238
      %v5240 = vpop.f32.mrb[0].mxu0
      %v5241 = vadd.f32 0.0, %v5240
      %v5242 = vpop.f32.mrb[0].mxu0
      %v5243 = vadd.f32 0.0, %v5242
      %5244 = vmatprep.mubr.bf16.mxu0 %v4981
      %5245 = vmatmul.mubr.bf16.gmra.mrb[0].mxu0 %v4980
      %v5246 = vpop.f32.mrb[0].mxu0
      %v5247 = vadd.f32 0.0, %v5246
      %v5248 = vpop.f32.mrb[0].mxu0
      %v5249 = vadd.f32 0.0, %v5248
      %v5250 = vpop.f32.mrb[0].mxu0
      %v5251 = vadd.f32 0.0, %v5250
      %v5252 = vpop.f32.mrb[0].mxu0
      %v5253 = vadd.f32 0.0, %v5252
      %5254 = vmatprep.mubr.bf16.mxu0 %v4983
      %5255 = vmatmul.mubr.bf16.gmra.mrb[0].mxu0 %v4982
      %v5256 = vpop.f32.mrb[0].mxu0
      %v5257 = vadd.f32 0.0, %v5256
      %v5258 = vpop.f32.mrb[0].mxu0
      %v5259 = vadd.f32 0.0, %v5258
      %v5260 = vpop.f32.mrb[0].mxu0
      %v5261 = vadd.f32 0.0, %v5260
      %v5262 = vpop.f32.mrb[0].mxu0
      %v5263 = vadd.f32 0.0, %v5262
      %5264 = vmatprep.mubr.bf16.mxu0 %v4985
      %5265 = vmatmul.mubr.bf16.gmra.mrb[0].mxu0 %v4984
      %v5266 = vpop.f32.mrb[0].mxu0
      %v5267 = vadd.f32 0.0, %v5266
      %v5268 = vpop.f32.mrb[0].mxu0
      %v5269 = vadd.f32 0.0, %v5268
      %v5270 = vpop.f32.mrb[0].mxu0
      %v5271 = vadd.f32 0.0, %v5270
      %v5272 = vpop.f32.mrb[0].mxu0
      %v5273 = vadd.f32 0.0, %v5272
      %5274 = vdwg.mxu0
      %v5275 = vadd.f32 %v4785, %v5197
      %v5276 = vadd.f32 %v4786, %v5199
      %v5277 = vadd.f32 %v4787, %v5201
      %v5278 = vadd.f32 %v4788, %v5203
      %v5279 = vadd.f32 %v4789, %v5207
      %v5280 = vadd.f32 %v4790, %v5209
      %v5281 = vadd.f32 %v4791, %v5211
      %v5282 = vadd.f32 %v4792, %v5213
      %v5283 = vadd.f32 %v4793, %v5217
      %v5284 = vadd.f32 %v4794, %v5219
      %v5285 = vadd.f32 %v4795, %v5221
      %v5286 = vadd.f32 %v4796, %v5223
      %v5287 = vadd.f32 %v4797, %v5227
      %v5288 = vadd.f32 %v4798, %v5229
      %v5289 = vadd.f32 %v4799, %v5231
      %v5290 = vadd.f32 %v4800, %v5233
      %v5291 = vadd.f32 %v4801, %v5237
      %v5292 = vadd.f32 %v4802, %v5239
      %v5293 = vadd.f32 %v4803, %v5241
      %v5294 = vadd.f32 %v4804, %v5243
      %v5295 = vadd.f32 %v4805, %v5247
      %v5296 = vadd.f32 %v4806, %v5249
      %v5297 = vadd.f32 %v4807, %v5251
      %v5298 = vadd.f32 %v4808, %v5253
      %v5299 = vadd.f32 %v4809, %v5257
      %v5300 = vadd.f32 %v4810, %v5259
      %v5301 = vadd.f32 %v4811, %v5261
      %v5302 = vadd.f32 %v4812, %v5263
      %v5303 = vadd.f32 %v4813, %v5267
      %v5304 = vadd.f32 %v4814, %v5269
      %v5305 = vadd.f32 %v4815, %v5271
      %v5306 = vadd.f32 %v4816, %v5273
      %v5307 = vpack.c.bf16 %v5277, %v5275
      %v5308 = vpack.c.bf16 %v5278, %v5276
      %v5309 = vpack.c.bf16 %v5281, %v5279
      %v5310 = vpack.c.bf16 %v5282, %v5280
      %v5311 = vpack.c.bf16 %v5285, %v5283
      %v5312 = vpack.c.bf16 %v5286, %v5284
      %v5313 = vpack.c.bf16 %v5289, %v5287
      %v5314 = vpack.c.bf16 %v5290, %v5288
      %v5315 = vpack.c.bf16 %v5293, %v5291
      %v5316 = vpack.c.bf16 %v5294, %v5292
      %v5317 = vpack.c.bf16 %v5297, %v5295
      %v5318 = vpack.c.bf16 %v5298, %v5296
      %v5319 = vpack.c.bf16 %v5301, %v5299
      %v5320 = vpack.c.bf16 %v5302, %v5300
      %v5321 = vpack.c.bf16 %v5305, %v5303
      %v5322 = vpack.c.bf16 %v5306, %v5304
      %v5339 = vunpack.c.l.b16 %v5307
      %v5340 = vunpack.c.l.b16 %v5308
      %v5341 = vunpack.c.h.b16 %v5307
      %v5342 = vunpack.c.h.b16 %v5308
      %v5343 = vunpack.c.l.b16 %v5309
      %v5344 = vunpack.c.l.b16 %v5310
      %v5345 = vunpack.c.h.b16 %v5309
      %v5346 = vunpack.c.h.b16 %v5310
      %v5347 = vunpack.c.l.b16 %v5311
      %v5348 = vunpack.c.l.b16 %v5312
      %v5349 = vunpack.c.h.b16 %v5311
      %v5350 = vunpack.c.h.b16 %v5312
      %v5351 = vunpack.c.l.b16 %v5313
      %v5352 = vunpack.c.l.b16 %v5314
      %v5353 = vunpack.c.h.b16 %v5313
      %v5354 = vunpack.c.h.b16 %v5314
      %v5355 = vunpack.c.l.b16 %v5315
      %v5356 = vunpack.c.l.b16 %v5316
      %v5357 = vunpack.c.h.b16 %v5315
      %v5358 = vunpack.c.h.b16 %v5316
      %v5359 = vunpack.c.l.b16 %v5317
      %v5360 = vunpack.c.l.b16 %v5318
      %v5361 = vunpack.c.h.b16 %v5317
      %v5362 = vunpack.c.h.b16 %v5318
      %v5363 = vunpack.c.l.b16 %v5319
      %v5364 = vunpack.c.l.b16 %v5320
      %v5365 = vunpack.c.h.b16 %v5319
      %v5366 = vunpack.c.h.b16 %v5320
      %v5367 = vunpack.c.l.b16 %v5321
      %v5368 = vunpack.c.l.b16 %v5322
      %v5369 = vunpack.c.h.b16 %v5321
      %v5370 = vunpack.c.h.b16 %v5322
      %v5371 = vpack.c.b16 %v5340, %v5339
      %v5372 = vpack.c.b16 %v5342, %v5341
      %v5373 = vpack.c.b16 %v5344, %v5343
      %v5374 = vpack.c.b16 %v5346, %v5345
      %v5375 = vpack.c.b16 %v5348, %v5347
      %v5376 = vpack.c.b16 %v5350, %v5349
      %v5377 = vpack.c.b16 %v5352, %v5351
      %v5378 = vpack.c.b16 %v5354, %v5353
      %v5379 = vpack.c.b16 %v5356, %v5355
      %v5380 = vpack.c.b16 %v5358, %v5357
      %v5381 = vpack.c.b16 %v5360, %v5359
      %v5382 = vpack.c.b16 %v5362, %v5361
      %v5383 = vpack.c.b16 %v5364, %v5363
      %v5384 = vpack.c.b16 %v5366, %v5365
      %v5385 = vpack.c.b16 %v5368, %v5367
      %v5386 = vpack.c.b16 %v5370, %v5369
      %5403 = vst [vmem:[%s405] sm:$0xff] %v5371
      %5404 = vst [vmem:[%s405 + $0x8] sm:$0xff] %v5372
      %5405 = vst [vmem:[%s405 + $0x10] sm:$0xff] %v5373
      %5406 = vst [vmem:[%s405 + $0x18] sm:$0xff] %v5374
      %5407 = vst [vmem:[%s405 + $0x20] sm:$0xff] %v5375
      %5408 = vst [vmem:[%s405 + $0x28] sm:$0xff] %v5376
      %5409 = vst [vmem:[%s405 + $0x30] sm:$0xff] %v5377
      %5410 = vst [vmem:[%s405 + $0x38] sm:$0xff] %v5378
      %5411 = vst [vmem:[%s405 + $0x40] sm:$0xff] %v5379
      %5412 = vst [vmem:[%s405 + $0x48] sm:$0xff] %v5380
      %5413 = vst [vmem:[%s405 + $0x50] sm:$0xff] %v5381
      %5414 = vst [vmem:[%s405 + $0x58] sm:$0xff] %v5382
      %5415 = vst [vmem:[%s405 + $0x60] sm:$0xff] %v5383
      %5416 = vst [vmem:[%s405 + $0x68] sm:$0xff] %v5384
      %5417 = vst [vmem:[%s405 + $0x70] sm:$0xff] %v5385
      %5418 = vst [vmem:[%s405 + $0x78] sm:$0xff] %v5386
      %v5419 = vadd.f32 %v5275, %v5277
      %v5420 = vadd.f32 %v5419, %v5279
      %v5421 = vadd.f32 %v5420, %v5281
      %v5422 = vadd.f32 %v5421, %v5283
      %v5423 = vadd.f32 %v5422, %v5285
      %v5424 = vadd.f32 %v5423, %v5287
      %v5425 = vadd.f32 %v5424, %v5289
      %v5426 = vadd.f32 %v5425, %v5291
      %v5427 = vadd.f32 %v5426, %v5293
      %v5428 = vadd.f32 %v5427, %v5295
      %v5429 = vadd.f32 %v5428, %v5297
      %v5430 = vadd.f32 %v5429, %v5299
      %v5431 = vadd.f32 %v5430, %v5301
      %v5432 = vadd.f32 %v5431, %v5303
      %v5433 = vadd.f32 %v5432, %v5305
      %v5434 = vrot.slane %v5433, 4
      %v5435 = vadd.f32 %v5433, %v5434
      %v5436 = vrot.slane %v5435, 2
      %v5437 = vadd.f32 %v5435, %v5436
      %v5438 = vrot.slane %v5437, 1
      %v5439 = vadd.f32 %v5437, %v5438
      %v5440 = vadd.f32 %v5276, %v5278
      %v5441 = vadd.f32 %v5440, %v5280
      %v5442 = vadd.f32 %v5441, %v5282
      %v5443 = vadd.f32 %v5442, %v5284
      %v5444 = vadd.f32 %v5443, %v5286
      %v5445 = vadd.f32 %v5444, %v5288
      %v5446 = vadd.f32 %v5445, %v5290
      %v5447 = vadd.f32 %v5446, %v5292
      %v5448 = vadd.f32 %v5447, %v5294
      %v5449 = vadd.f32 %v5448, %v5296
      %v5450 = vadd.f32 %v5449, %v5298
      %v5451 = vadd.f32 %v5450, %v5300
      %v5452 = vadd.f32 %v5451, %v5302
      %v5453 = vadd.f32 %v5452, %v5304
      %v5454 = vadd.f32 %v5453, %v5306
      %v5455 = vrot.slane %v5454, 4
      %v5456 = vadd.f32 %v5454, %v5455
      %v5457 = vrot.slane %v5456, 2
      %v5458 = vadd.f32 %v5456, %v5457
      %v5459 = vrot.slane %v5458, 1
      %v5460 = vadd.f32 %v5458, %v5459
      %v5461 = vmul.f32 %v5275, %v5275
      %v5462 = vmul.f32 %v5276, %v5276
      %v5463 = vmul.f32 %v5277, %v5277
      %v5464 = vmul.f32 %v5278, %v5278
      %v5465 = vmul.f32 %v5279, %v5279
      %v5466 = vmul.f32 %v5280, %v5280
      %v5467 = vmul.f32 %v5281, %v5281
      %v5468 = vmul.f32 %v5282, %v5282
      %v5469 = vmul.f32 %v5283, %v5283
      %v5470 = vmul.f32 %v5284, %v5284
      %v5471 = vmul.f32 %v5285, %v5285
      %v5472 = vmul.f32 %v5286, %v5286
      %v5473 = vmul.f32 %v5287, %v5287
      %v5474 = vmul.f32 %v5288, %v5288
      %v5475 = vmul.f32 %v5289, %v5289
      %v5476 = vmul.f32 %v5290, %v5290
      %v5477 = vmul.f32 %v5291, %v5291
      %v5478 = vmul.f32 %v5292, %v5292
      %v5479 = vmul.f32 %v5293, %v5293
      %v5480 = vmul.f32 %v5294, %v5294
      %v5481 = vmul.f32 %v5295, %v5295
      %v5482 = vmul.f32 %v5296, %v5296
      %v5483 = vmul.f32 %v5297, %v5297
      %v5484 = vmul.f32 %v5298, %v5298
      %v5485 = vmul.f32 %v5299, %v5299
      %v5486 = vmul.f32 %v5300, %v5300
      %v5487 = vmul.f32 %v5301, %v5301
      %v5488 = vmul.f32 %v5302, %v5302
      %v5489 = vmul.f32 %v5303, %v5303
      %v5490 = vmul.f32 %v5304, %v5304
      %v5491 = vmul.f32 %v5305, %v5305
      %v5492 = vmul.f32 %v5306, %v5306
      %v5493 = vadd.f32 %v5461, %v5463
      %v5494 = vadd.f32 %v5493, %v5465
      %v5495 = vadd.f32 %v5494, %v5467
      %v5496 = vadd.f32 %v5495, %v5469
      %v5497 = vadd.f32 %v5496, %v5471
      %v5498 = vadd.f32 %v5497, %v5473
      %v5499 = vadd.f32 %v5498, %v5475
      %v5500 = vadd.f32 %v5499, %v5477
      %v5501 = vadd.f32 %v5500, %v5479
      %v5502 = vadd.f32 %v5501, %v5481
      %v5503 = vadd.f32 %v5502, %v5483
      %v5504 = vadd.f32 %v5503, %v5485
      %v5505 = vadd.f32 %v5504, %v5487
      %v5506 = vadd.f32 %v5505, %v5489
      %v5507 = vadd.f32 %v5506, %v5491
      %v5508 = vrot.slane %v5507, 4
      %v5509 = vadd.f32 %v5507, %v5508
      %v5510 = vrot.slane %v5509, 2
      %v5511 = vadd.f32 %v5509, %v5510
      %v5512 = vrot.slane %v5511, 1
      %v5513 = vadd.f32 %v5511, %v5512
      %v5514 = vadd.f32 %v5462, %v5464
      %v5515 = vadd.f32 %v5514, %v5466
      %v5516 = vadd.f32 %v5515, %v5468
      %v5517 = vadd.f32 %v5516, %v5470
      %v5518 = vadd.f32 %v5517, %v5472
      %v5519 = vadd.f32 %v5518, %v5474
      %v5520 = vadd.f32 %v5519, %v5476
      %v5521 = vadd.f32 %v5520, %v5478
      %v5522 = vadd.f32 %v5521, %v5480
      %v5523 = vadd.f32 %v5522, %v5482
      %v5524 = vadd.f32 %v5523, %v5484
      %v5525 = vadd.f32 %v5524, %v5486
      %v5526 = vadd.f32 %v5525, %v5488
      %v5527 = vadd.f32 %v5526, %v5490
      %v5528 = vadd.f32 %v5527, %v5492
      %v5529 = vrot.slane %v5528, 4
      %v5530 = vadd.f32 %v5528, %v5529
      %v5531 = vrot.slane %v5530, 2
      %v5532 = vadd.f32 %v5530, %v5531
      %v5533 = vrot.slane %v5532, 1
      %v5534 = vadd.f32 %v5532, %v5533
      %vm5535 = vcmask 1040384
      %v5536 = vsel %vm5535, %v5439, %v5513
      %v5537 = vsel %vm5535, %v5460, %v5534
      %v5540 = vcombine.low %v5536, %v5537
      %v5542 = vunpack.c.l.s4 1983009808
      %v5543 = vunpack.c.0.s8 %v5542
      %v5544 = vlaneseq
      %v5545 = vshrl.u32 %v5544, 7
      %v5546 = vsub.s32 %v5543, %v5545
      %v5547 = vrot.slane %v5540, %v5546
      %5549 = vst [vmem:[%s415] sm:$0xf] %v5547
      %s5550 = smul.u32 8, %s22
      %p5551 = scmp.lt.s32.totalorder %s21, 1
      %s5552 = scalar_select %p5551, %s21, 1
      %p5553 = scmp.lt.s32.totalorder %s5550, 15
      %s5554 = scalar_select %p5553, %s5550, 15
      %s5555 = smul.addr %s5554, 4
      %s5556 = smul.addr %s5552, 64
      %s5557 = sadd.s32 %s5555, %s5556
      %s5558 = smul.addr %s5557, 4
      %s5559 = scalar_lea.vmem %s4, %s5558
      %p5560 = scmp.lt.s32.totalorder %s21, 1
      %s5561 = scalar_select %p5560, %s21, 1
      %p5562 = scmp.lt.s32.totalorder %s22, 1
      %s5563 = scalar_select %p5562, %s22, 1
      %s5564 = smul.addr %s5563, 2
      %s5565 = smul.addr %s5561, 4
      %s5566 = sadd.s32 %s5564, %s5565
      %s5567 = smul.addr %s5566, 2
      %s5568 = scalar_lea.vmem %s5, %s5567
      // Predicated region
      $region45: #{basic_block3d_forward.7} parent=35 // pred_check
        %p5569 = pneg %p170
      $region46: #{basic_block3d_forward.7} parent=35 // pred_check_branch
        %5571 = sbr.rel (%p5569) target = $region48
      $region47: #{basic_block3d_forward.7} parent=35 // pred_region
        %s5572 = smul.u32 8, %s22
      $region48: #{basic_block3d_forward.7} parent=35 // pred_fallthru
        _
      // Predicated region
      $region49: #{basic_block3d_forward.7} parent=35 // pred_check
        %p5573 = pneg %p198
      $region50: #{basic_block3d_forward.7} parent=35 // pred_check_branch
        %5575 = sbr.rel (%p5573) target = $region52
      $region51: #{basic_block3d_forward.7} parent=35 // pred_region
        _
      $region52: #{basic_block3d_forward.7} parent=35 // pred_fallthru
        _
    $region36: #{basic_block3d_forward.7} parent=5 // pred_fallthru
      _
    %p5576 = scmp.le.s32.totalorder 2, %s12
    // Predicated region
    $region53: #{basic_block3d_forward.7} parent=5 // pred_check
      %p5577 = pneg %p5576
    $region54: #{basic_block3d_forward.7} parent=5 // pred_check_branch
      %5579 = sbr.rel (%p5577) target = $region56
    $region55: #{basic_block3d_forward.7} parent=5 // pred_region
      %s5580 = ssub.s32 %s12, 2
      // Predicated region
      $region57: #{basic_block3d_forward.7} parent=55 // pred_check
        %p5581 = pneg %p176
      $region58: #{basic_block3d_forward.7} parent=55 // pred_check_branch
        %5583 = sbr.rel (%p5581) target = $region60
      $region59: #{basic_block3d_forward.7} parent=55 // pred_region
        %s5584 = smul.u32 8, %s24
        %p5585 = scmp.lt.s32.totalorder %s23, 1
        %s5586 = scalar_select %p5585, %s23, 1
        %p5587 = scmp.lt.s32.totalorder %s5584, 15
        %s5588 = scalar_select %p5587, %s5584, 15
        %s5589 = smul.addr %s5588, 4
        %s5590 = smul.addr %s5586, 64
        %s5591 = sadd.s32 %s5589, %s5590
        %s5592 = smul.addr %s5591, 4
        %s5593 = scalar_lea.vmem %s4, %s5592
      $region60: #{basic_block3d_forward.7} parent=55 // pred_fallthru
        _
      // Predicated region
      $region61: #{basic_block3d_forward.7} parent=55 // pred_check
        %p5594 = pneg %p204
      $region62: #{basic_block3d_forward.7} parent=55 // pred_check_branch
        %5596 = sbr.rel (%p5594) target = $region64
      $region63: #{basic_block3d_forward.7} parent=55 // pred_region
        %p5597 = scmp.lt.s32.totalorder %s23, 1
        %s5598 = scalar_select %p5597, %s23, 1
        %p5599 = scmp.lt.s32.totalorder %s24, 1
        %s5600 = scalar_select %p5599, %s24, 1
        %s5601 = smul.addr %s5600, 2
        %s5602 = smul.addr %s5598, 4
        %s5603 = sadd.s32 %s5601, %s5602
        %s5604 = smul.addr %s5603, 2
        %s5605 = scalar_lea.vmem %s5, %s5604
      $region64: #{basic_block3d_forward.7} parent=55 // pred_fallthru
        _
    $region56: #{basic_block3d_forward.7} parent=5 // pred_fallthru
      _
  $region6: #{basic_block3d_forward.7} parent=0 // loop_footer
    %s16 = sadd.s32 1, %s12
  $region7: #{basic_block3d_forward.7} parent=0 // loop_footer_branch
    %11 = sbr.rel target = $region3
  $region8: #{basic_block3d_forward.7} parent=0 // loop_exit
    _

</llo_original>
